<compile_context>
chip_gen: v5e
topology: v5e:2x2
jax: 0.10.0
libtpu: 0.0.40
codegen_flags: <defaults>
</compile_context>

<pallas_src>
import functools

import jax
import jax.numpy as jnp
from jax.experimental import pallas as pl
from jax.experimental.pallas import tpu as pltpu

C = 64            # per-slice channel width
CIN = 4 * C       # 256 input channels
H = 3 * C         # 192 MLP hidden/output width
HP = 256          # per-MLP padded block width in the fused first layer
NEG_SLOPE = 0.01  # PyTorch nn.LeakyReLU default


def _leaky_relu(x):
    return jnp.where(x > 0, x, NEG_SLOPE * x)


# ---------------------------------------------------------------------------
# Kernels
# ---------------------------------------------------------------------------
def _full_kernel(x_ref, const_ref, w1_ref, b1_ref, w2_ref, b2_ref,
                 w3_ref, b3_ref, mean_ref, scale_ref, prob_ref):
    """Full forward (to_dec == -1): three MLPs + learned d0 constants."""
    tm = x_ref.shape[0]
    # d0|d1|d2 are the first 192 contiguous lanes of x: one slice, no concat.
    x3 = x_ref[:, :3 * C].astype(jnp.bfloat16)                        # (tm, 192)

    # Fused first layer: (tm,192) @ (192,768).  Each MLP's block is padded to
    # 256 columns so the slices below start at 128-aligned lane offsets.
    h_all = jnp.dot(x3, w1_ref[...],
                    preferred_element_type=jnp.float32) + b1_ref[...]  # (tm,768) f32

    outs = []
    for i in range(3):
        h = _leaky_relu(h_all[:, i * HP:i * HP + H]).astype(jnp.bfloat16)
        g = jnp.dot(h, w2_ref[i], preferred_element_type=jnp.float32) + b2_ref[i]
        g = _leaky_relu(g).astype(jnp.bfloat16)
        o = jnp.dot(g, w3_ref[i], preferred_element_type=jnp.float32) + b3_ref[i]
        outs.append(o)                                                # (tm,192) f32

    cst = const_ref[...]                                              # (3, 64) f32
    mean_d0 = jnp.broadcast_to(cst[0:1, :], (tm, C))
    scale_d0 = jnp.broadcast_to(cst[1:2, :], (tm, C))
    prob_d0 = jnp.broadcast_to(cst[2:3, :], (tm, C))

    mean_ref[...] = jnp.concatenate(
        [mean_d0, outs[0][:, 0:C], outs[1][:, 0:C], outs[2][:, 0:C]],
        axis=-1).astype(mean_ref.dtype)
    scale_ref[...] = jnp.concatenate(
        [scale_d0, outs[0][:, C:2 * C], outs[1][:, C:2 * C], outs[2][:, C:2 * C]],
        axis=-1).astype(scale_ref.dtype)
    prob_ref[...] = jnp.concatenate(
        [prob_d0, outs[0][:, 2 * C:], outs[1][:, 2 * C:], outs[2][:, 2 * C:]],
        axis=-1).astype(prob_ref.dtype)


def _decode_kernel(x_ref, wa_ref, ba_ref, wb_ref, bb_ref, wc_ref, bc_ref,
                   out_ref):
    """Decode path (to_dec in {1,2,3}): only the one required MLP."""
    xb = x_ref[...].astype(jnp.bfloat16)          # (tm, 128) or (tm, 256)
    h = jnp.dot(xb, wa_ref[...], preferred_element_type=jnp.float32) + ba_ref[...]
    h = _leaky_relu(h).astype(jnp.bfloat16)
    g = jnp.dot(h, wb_ref[...], preferred_element_type=jnp.float32) + bb_ref[...]
    g = _leaky_relu(g).astype(jnp.bfloat16)
    out_ref[...] = (jnp.dot(g, wc_ref[...], preferred_element_type=jnp.float32)
                    + bc_ref[...]).astype(out_ref.dtype)


# ---------------------------------------------------------------------------
# Parameters
# ---------------------------------------------------------------------------
def make_params(key):
    """Deterministic parameter init; shapes follow the PyTorch __init__.

    Linear weights are stored [in, out] (transposed vs torch's [out, in]).
    """
    ks = jax.random.split(key, 24)
    i = iter(range(24))

    def w(shape, scale=0.05):
        return (scale * jax.random.normal(ks[next(i)], shape)).astype(jnp.float32)

    return dict(
        mean_d0=w((1, C)), scale_d0=w((1, C)), prob_d0=w((1, C)),
        # MLP_d0: 64 -> 192 -> 192 -> 192
        w0a=w((C, H)), b0a=w((1, H)),
        w0b=w((H, H)), b0b=w((1, H)),
        w0c=w((H, H)), b0c=w((1, H)),
        # MLP_d1: 128 -> 192 -> 192 -> 192
        w1a=w((2 * C, H)), b1a=w((1, H)),
        w1b=w((H, H)), b1b=w((1, H)),
        w1c=w((H, H)), b1c=w((1, H)),
        # MLP_d2: 192 -> 192 -> 192 -> 192
        w2a=w((3 * C, H)), b2a=w((1, H)),
        w2b=w((H, H)), b2b=w((1, H)),
        w2c=w((H, H)), b2c=w((1, H)),
    )


def pack_params(params, dtype=jnp.bfloat16):
    """Stack the 21 torch parameters into 7 kernel-friendly arrays.

    Weights go to bf16 for the MXU; biases and the learned d0 constants stay
    f32 (added to the f32 accumulator / written out directly).
    First-layer blocks are padded to 256 output columns (lane alignment).
    """
    const = jnp.concatenate(
        [params["mean_d0"], params["scale_d0"], params["prob_d0"]], axis=0)  # (3,64)

    # Fused, block-padded first layer (192, 768):
    #   cols [0,192)     <- MLP_d0 (rows [0,64) non-zero),   cols [192,256) pad
    #   cols [256,448)   <- MLP_d1 (rows [0,128) non-zero),  cols [448,512) pad
    #   cols [512,704)   <- MLP_d2,                          cols [704,768) pad
    w1 = jnp.zeros((3 * C, 3 * HP), jnp.float32)
    w1 = w1.at[:C, 0:H].set(params["w0a"])
    w1 = w1.at[:2 * C, HP:HP + H].set(params["w1a"])
    w1 = w1.at[:, 2 * HP:2 * HP + H].set(params["w2a"])
    b1 = jnp.zeros((1, 3 * HP), jnp.float32)
    b1 = b1.at[:, 0:H].set(params["b0a"])
    b1 = b1.at[:, HP:HP + H].set(params["b1a"])
    b1 = b1.at[:, 2 * HP:2 * HP + H].set(params["b2a"])

    w2 = jnp.stack([params["w0b"], params["w1b"], params["w2b"]])   # (3, 192, 192)
    b2 = jnp.stack([params["b0b"], params["b1b"], params["b2b"]])   # (3, 1, 192)
    w3 = jnp.stack([params["w0c"], params["w1c"], params["w2c"]])
    b3 = jnp.stack([params["b0c"], params["b1c"], params["b2c"]])

    return dict(
        const=const.astype(jnp.float32),
        w1=w1.astype(dtype), b1=b1.astype(jnp.float32),
        w2=w2.astype(dtype), b2=b2.astype(jnp.float32),
        w3=w3.astype(dtype), b3=b3.astype(jnp.float32),
    )


# ---------------------------------------------------------------------------
# Wrapper helpers
# ---------------------------------------------------------------------------
def _param_spec(p):
    """Whole (small) parameter array resident in VMEM for every grid step."""
    zero = (0,) * p.ndim
    return pl.BlockSpec(p.shape, lambda i, z=zero: z)


def _choose_tm(n, tm_max, min_steps=4):
    """Largest multiple-of-8 row tile <= tm_max with a megacore-friendly grid.

    Preference: exact divisor of n giving an even step count >= min_steps,
    then an exact divisor with >= min_steps steps, then any exact divisor,
    then tm_max (caller pads the rows).
    """
    tm_max = max(8, min(tm_max, n))
    tm_max -= tm_max % 8
    tm_max = max(tm_max, 8)
    divs = [t for t in range(tm_max, 7, -8) if n % t == 0]
    for t in divs:
        steps = n // t
        if steps >= min_steps and steps % 2 == 0:
            return t
    for t in divs:
        if n // t >= min_steps:
            return t
    if divs:
        return divs[0]
    return tm_max          # n has no multiple-of-8 divisor: wrapper pads rows


def _vmem_limit_bytes(tm, in_row_bytes, out_row_bytes, param_bytes,
                      interm_row_bytes):
    """Footprint-derived scoped-VMEM request (headroom on v7x's 64 MiB/TC)."""
    est = (2 * tm * (in_row_bytes + out_row_bytes)   # double-buffered IO blocks
           + 2 * param_bytes                         # buffered resident params
           + tm * interm_row_bytes                   # in-kernel temporaries
           + (4 << 20))                              # Mosaic internal scratch
    return int(min(max(est, 24 << 20), 48 << 20))


# ---------------------------------------------------------------------------
# Wrapper
# ---------------------------------------------------------------------------
@functools.partial(jax.jit, static_argnames=("to_dec", "tm", "out_dtype"))
def channel_ctx_fea(fea_q, packed, to_dec=-1, tm=1024, out_dtype=jnp.bfloat16):
    N = fea_q.shape[0]
    assert fea_q.shape[1] == CIN
    out_itemsize = jnp.dtype(out_dtype).itemsize

    if to_dec == 0:
        # Pure broadcast of learned constants; no kernel needed.
        cst = packed["const"].astype(out_dtype)
        return (jnp.broadcast_to(cst[0:1, :], (N, C)),
                jnp.broadcast_to(cst[1:2, :], (N, C)),
                jnp.broadcast_to(cst[2:3, :], (N, C)))

    tm = _choose_tm(N, tm)
    n_pad = -(-N // tm) * tm
    x = fea_q if n_pad == N else jnp.pad(fea_q, ((0, n_pad - N), (0, 0)))
    grid = (n_pad // tm,)

    if to_dec in (1, 2, 3):
        k = to_dec - 1
        # Input block: 128 lanes suffice for to_dec=1/2; full 256 for to_dec=3.
        in_w = 2 * C if to_dec in (1, 2) else CIN
        wa = packed["w1"][:, k * HP:k * HP + H]       # (192,192), zero unused rows
        if in_w <= wa.shape[0]:
            wa = wa[:in_w]
        else:
            wa = jnp.pad(wa, ((0, in_w - wa.shape[0]), (0, 0)))
        ba = packed["b1"][:, k * HP:k * HP + H]
        wb, bb = packed["w2"][k], packed["b2"][k]
        wc, bc = packed["w3"][k], packed["b3"][k]
        param_args = [wa, ba, wb, bb, wc, bc]
        param_bytes = sum(int(p.size) * p.dtype.itemsize for p in param_args)

        flops = 2 * n_pad * (in_w * H + 2 * H * H)
        bytes_acc = n_pad * (in_w * 4 + H * out_itemsize) + param_bytes
        compiler_params = pltpu.CompilerParams(
            dimension_semantics=("parallel",),
            vmem_limit_bytes=_vmem_limit_bytes(
                tm, in_w * 4, H * out_itemsize, param_bytes, 6 * H * 4),
        )
        out = pl.pallas_call(
            _decode_kernel,
            grid_spec=pltpu.PrefetchScalarGridSpec(
                num_scalar_prefetch=0,
                grid=grid,
                in_specs=[pl.BlockSpec((tm, in_w), lambda i: (i, 0))]
                + [_param_spec(p) for p in param_args],
                out_specs=pl.BlockSpec((tm, H), lambda i: (i, 0)),
            ),
            out_shape=jax.ShapeDtypeStruct((n_pad, H), out_dtype),
            compiler_params=compiler_params,
            cost_estimate=pl.CostEstimate(
                flops=flops, transcendentals=0, bytes_accessed=bytes_acc),
        )(x, *param_args)
        out = out[:N]
        # NOTE: three (N,64) slices match the torch module; a consumer that
        # can take the packed (N,192) block should use `out` directly to avoid
        # the extra slice copies under jit.
        return out[:, 0:C], out[:, C:2 * C], out[:, 2 * C:]

    # Full path (to_dec == -1): all three MLPs, three (N, 256) outputs.
    param_order = ("const", "w1", "b1", "w2", "b2", "w3", "b3")
    param_args = [packed[key] for key in param_order]
    param_bytes = sum(int(p.size) * p.dtype.itemsize for p in param_args)
    flops = 2 * n_pad * (3 * C * 3 * HP + 6 * H * H)
    bytes_acc = n_pad * (CIN * 4 + 3 * CIN * out_itemsize) + param_bytes
    compiler_params = pltpu.CompilerParams(
        dimension_semantics=("parallel",),
        vmem_limit_bytes=_vmem_limit_bytes(
            tm, CIN * 4, 3 * CIN * out_itemsize, param_bytes, 10 * 1024),
    )
    x_spec = pl.BlockSpec((tm, CIN), lambda i: (i, 0))
    out_spec = pl.BlockSpec((tm, CIN), lambda i: (i, 0))

    mean, scale, prob = pl.pallas_call(
        _full_kernel,
        grid_spec=pltpu.PrefetchScalarGridSpec(
            num_scalar_prefetch=0,
            grid=grid,
            in_specs=[x_spec] + [_param_spec(p) for p in param_args],
            out_specs=[out_spec] * 3,
        ),
        out_shape=[jax.ShapeDtypeStruct((n_pad, CIN), out_dtype)] * 3,
        compiler_params=compiler_params,
        cost_estimate=pl.CostEstimate(
            flops=flops, transcendentals=0, bytes_accessed=bytes_acc),
    )(x, *param_args)
    if n_pad != N:
        mean, scale, prob = mean[:N], scale[:N], prob[:N]
    return mean, scale, prob


# ---------------------------------------------------------------------------
# Pure-JAX f32 reference of the PyTorch forward (to_dec = -1)
# ---------------------------------------------------------------------------
def _reference(fea_q, params):
    N = fea_q.shape[0]
    d0 = fea_q[:, 0:C]
    d1 = fea_q[:, C:2 * C]
    d2 = fea_q[:, 2 * C:3 * C]

    def mlp(x, a, ba, b, bb, c, bc):
        h = _leaky_relu(x @ a + ba)
        h = _leaky_relu(h @ b + bb)
        return h @ c + bc

    o1 = mlp(d0, params["w0a"], params["b0a"], params["w0b"], params["b0b"],
             params["w0c"], params["b0c"])
    o2 = mlp(jnp.concatenate([d0, d1], -1), params["w1a"], params["b1a"],
             params["w1b"], params["b1b"], params["w1c"], params["b1c"])
    o3 = mlp(jnp.concatenate([d0, d1, d2], -1), params["w2a"], params["b2a"],
             params["w2b"], params["b2b"], params["w2c"], params["b2c"])

    mean = jnp.concatenate(
        [jnp.tile(params["mean_d0"], (N, 1)), o1[:, :C], o2[:, :C], o3[:, :C]], -1)
    scale = jnp.concatenate(
        [jnp.tile(params["scale_d0"], (N, 1)), o1[:, C:2 * C], o2[:, C:2 * C],
         o3[:, C:2 * C]], -1)
    prob = jnp.concatenate(
        [jnp.tile(params["prob_d0"], (N, 1)), o1[:, 2 * C:], o2[:, 2 * C:],
         o3[:, 2 * C:]], -1)
    return mean, scale, prob


if __name__ == "__main__":
    key = jax.random.PRNGKey(0)
    k_x, k_p = jax.random.split(key)

    N = 1024  # small batch of points; features = 4 * 64 = 256
    fea_q = jax.random.normal(k_x, (N, CIN), dtype=jnp.float32)
    params = make_params(k_p)
    packed = pack_params(params)

    # Full forward (bf16 outputs by default).
    mean, scale, prob = channel_ctx_fea(fea_q, packed, to_dec=-1)
    jax.block_until_ready((mean, scale, prob))

    mean_r, scale_r, prob_r = _reference(fea_q, params)
    assert mean.shape == (N, CIN) and scale.shape == (N, CIN) and prob.shape == (N, CIN)
    for a, b in ((mean, mean_r), (scale, scale_r), (prob, prob_r)):
        assert jnp.allclose(a.astype(jnp.float32), b, atol=5e-2, rtol=5e-2), \
            "mismatch vs reference"

    # Decode paths.
    m0, s0, p0 = channel_ctx_fea(fea_q, packed, to_dec=0)
    jax.block_until_ready((m0, s0, p0))
    assert m0.shape == (N, C)
    assert jnp.allclose(m0.astype(jnp.float32), mean_r[:, 0:C], atol=1e-2, rtol=1e-2)

    m1, s1, p1 = channel_ctx_fea(fea_q, packed, to_dec=1)
    jax.block_until_ready((m1, s1, p1))
    assert m1.shape == (N, C)
    assert jnp.allclose(m1.astype(jnp.float32), mean_r[:, C:2 * C], atol=5e-2, rtol=5e-2)
    assert jnp.allclose(s1.astype(jnp.float32), scale_r[:, C:2 * C], atol=5e-2, rtol=5e-2)
    assert jnp.allclose(p1.astype(jnp.float32), prob_r[:, C:2 * C], atol=5e-2, rtol=5e-2)

    m2, s2, p2 = channel_ctx_fea(fea_q, packed, to_dec=2)
    jax.block_until_ready((m2, s2, p2))
    assert jnp.allclose(m2.astype(jnp.float32), mean_r[:, 2 * C:3 * C],
                        atol=5e-2, rtol=5e-2)

    m3, s3, p3 = channel_ctx_fea(fea_q, packed, to_dec=3)
    jax.block_until_ready((m3, s3, p3))
    assert jnp.allclose(m3.astype(jnp.float32), mean_r[:, 3 * C:], atol=5e-2, rtol=5e-2)

    # f32-output variant (bit-compat path with the PyTorch module's dtype).
    mean32, scale32, prob32 = channel_ctx_fea(fea_q, packed, to_dec=-1,
                                              out_dtype=jnp.float32)
    jax.block_until_ready((mean32, scale32, prob32))
    assert mean32.dtype == jnp.float32
    assert jnp.allclose(mean32, mean_r, atol=3e-2, rtol=3e-2)

    print("KERNEL_OK")
</pallas_src>

<mosaic_0001>
module attributes {stable_mosaic.version = 11 : i64} {
  func.func @_full_kernel(%arg0: i32, %arg1: memref<256x256xf32, #tpu.memory_space<vmem>>, %arg2: memref<3x64xf32, #tpu.memory_space<vmem>>, %arg3: memref<192x768xbf16, #tpu.memory_space<vmem>>, %arg4: memref<1x768xf32, #tpu.memory_space<vmem>>, %arg5: memref<3x192x192xbf16, #tpu.memory_space<vmem>>, %arg6: memref<3x1x192xf32, #tpu.memory_space<vmem>>, %arg7: memref<3x192x192xbf16, #tpu.memory_space<vmem>>, %arg8: memref<3x1x192xf32, #tpu.memory_space<vmem>>, %arg9: memref<256x256xbf16, #tpu.memory_space<vmem>>, %arg10: memref<256x256xbf16, #tpu.memory_space<vmem>>, %arg11: memref<256x256xbf16, #tpu.memory_space<vmem>>) attributes {dimension_semantics = [#tpu.dimension_semantics<parallel>], iteration_bounds = array<i64: 4>, scalar_prefetch = 0 : i64, scratch_operands = 0 : i64, tpu.core_type = #tpu.core_type<tc>, window_params = [{transform_indices = @transform_0, window_bounds = array<i64: 256, 256>}, {pipeline_mode = #tpu.pipeline_mode<synchronous>, transform_indices = @transform_1, window_bounds = array<i64: 3, 64>}, {pipeline_mode = #tpu.pipeline_mode<synchronous>, transform_indices = @transform_2, window_bounds = array<i64: 192, 768>}, {pipeline_mode = #tpu.pipeline_mode<synchronous>, transform_indices = @transform_3, window_bounds = array<i64: 1, 768>}, {pipeline_mode = #tpu.pipeline_mode<synchronous>, transform_indices = @transform_4, window_bounds = array<i64: 3, 192, 192>}, {pipeline_mode = #tpu.pipeline_mode<synchronous>, transform_indices = @transform_5, window_bounds = array<i64: 3, 1, 192>}, {pipeline_mode = #tpu.pipeline_mode<synchronous>, transform_indices = @transform_6, window_bounds = array<i64: 3, 192, 192>}, {pipeline_mode = #tpu.pipeline_mode<synchronous>, transform_indices = @transform_7, window_bounds = array<i64: 3, 1, 192>}, {transform_indices = @transform_8, window_bounds = array<i64: 256, 256>}, {transform_indices = @transform_9, window_bounds = array<i64: 256, 256>}, {transform_indices = @transform_10, window_bounds = array<i64: 256, 256>}]} {
    %c0 = arith.constant 0 : index
    %c0_0 = arith.constant 0 : index
    %0 = vector.load %arg1[%c0, %c0_0] : memref<256x256xf32, #tpu.memory_space<vmem>>, vector<256x192xf32>
    %1 = arith.truncf %0 : vector<256x192xf32> to vector<256x192xbf16>
    %c0_1 = arith.constant 0 : index
    %c0_2 = arith.constant 0 : index
    %2 = vector.load %arg3[%c0_1, %c0_2] : memref<192x768xbf16, #tpu.memory_space<vmem>>, vector<192x768xbf16>
    %cst = arith.constant dense<0.000000e+00> : vector<256x768xf32>
    %3 = tpu.matmul %1, %2, %cst {dimension_numbers = #tpu.dot_dimension_numbers<[1], [0], [0], [1], [0, 0, 1, 1], [], []>} : vector<256x192xbf16>, vector<192x768xbf16>, vector<256x768xf32> -> vector<256x768xf32>
    %c0_3 = arith.constant 0 : index
    %c0_4 = arith.constant 0 : index
    %4 = vector.load %arg4[%c0_3, %c0_4] : memref<1x768xf32, #tpu.memory_space<vmem>>, vector<1x768xf32>
    %5 = vector.broadcast %4 : vector<1x768xf32> to vector<256x768xf32>
    %6 = arith.addf %3, %5 : vector<256x768xf32>
    %7 = vector.extract_strided_slice %6 {offsets = [0, 0], sizes = [256, 192], strides = [1, 1]} : vector<256x768xf32> to vector<256x192xf32>
    %cst_5 = arith.constant 0.000000e+00 : f32
    %8 = vector.broadcast %cst_5 : f32 to vector<256x192xf32>
    %9 = arith.cmpf ogt, %7, %8 : vector<256x192xf32>
    %cst_6 = arith.constant 0.00999999977 : f32
    %10 = vector.broadcast %cst_6 : f32 to vector<256x192xf32>
    %11 = arith.mulf %10, %7 : vector<256x192xf32>
    %12 = arith.select %9, %7, %11 : vector<256x192xi1>, vector<256x192xf32>
    %13 = arith.truncf %12 : vector<256x192xf32> to vector<256x192xbf16>
    %c0_7 = arith.constant 0 : index
    %c0_8 = arith.constant 0 : index
    %c0_9 = arith.constant 0 : index
    %14 = vector.load %arg5[%c0_7, %c0_8, %c0_9] : memref<3x192x192xbf16, #tpu.memory_space<vmem>>, vector<1x192x192xbf16>
    %15 = vector.shape_cast %14 : vector<1x192x192xbf16> to vector<192x192xbf16>
    %cst_10 = arith.constant dense<0.000000e+00> : vector<256x192xf32>
    %16 = tpu.matmul %13, %15, %cst_10 {dimension_numbers = #tpu.dot_dimension_numbers<[1], [0], [0], [1], [0, 0, 1, 1], [], []>} : vector<256x192xbf16>, vector<192x192xbf16>, vector<256x192xf32> -> vector<256x192xf32>
    %c0_11 = arith.constant 0 : index
    %c0_12 = arith.constant 0 : index
    %c0_13 = arith.constant 0 : index
    %17 = vector.load %arg6[%c0_11, %c0_12, %c0_13] : memref<3x1x192xf32, #tpu.memory_space<vmem>>, vector<1x1x192xf32>
    %18 = vector.shape_cast %17 : vector<1x1x192xf32> to vector<1x192xf32>
    %19 = vector.broadcast %18 : vector<1x192xf32> to vector<256x192xf32>
    %20 = arith.addf %16, %19 : vector<256x192xf32>
    %cst_14 = arith.constant 0.000000e+00 : f32
    %21 = vector.broadcast %cst_14 : f32 to vector<256x192xf32>
    %22 = arith.cmpf ogt, %20, %21 : vector<256x192xf32>
    %cst_15 = arith.constant 0.00999999977 : f32
    %23 = vector.broadcast %cst_15 : f32 to vector<256x192xf32>
    %24 = arith.mulf %23, %20 : vector<256x192xf32>
    %25 = arith.select %22, %20, %24 : vector<256x192xi1>, vector<256x192xf32>
    %26 = arith.truncf %25 : vector<256x192xf32> to vector<256x192xbf16>
    %c0_16 = arith.constant 0 : index
    %c0_17 = arith.constant 0 : index
    %c0_18 = arith.constant 0 : index
    %27 = vector.load %arg7[%c0_16, %c0_17, %c0_18] : memref<3x192x192xbf16, #tpu.memory_space<vmem>>, vector<1x192x192xbf16>
    %28 = vector.shape_cast %27 : vector<1x192x192xbf16> to vector<192x192xbf16>
    %cst_19 = arith.constant dense<0.000000e+00> : vector<256x192xf32>
    %29 = tpu.matmul %26, %28, %cst_19 {dimension_numbers = #tpu.dot_dimension_numbers<[1], [0], [0], [1], [0, 0, 1, 1], [], []>} : vector<256x192xbf16>, vector<192x192xbf16>, vector<256x192xf32> -> vector<256x192xf32>
    %c0_20 = arith.constant 0 : index
    %c0_21 = arith.constant 0 : index
    %c0_22 = arith.constant 0 : index
    %30 = vector.load %arg8[%c0_20, %c0_21, %c0_22] : memref<3x1x192xf32, #tpu.memory_space<vmem>>, vector<1x1x192xf32>
    %31 = vector.shape_cast %30 : vector<1x1x192xf32> to vector<1x192xf32>
    %32 = vector.broadcast %31 : vector<1x192xf32> to vector<256x192xf32>
    %33 = arith.addf %29, %32 : vector<256x192xf32>
    %34 = vector.extract_strided_slice %6 {offsets = [0, 256], sizes = [256, 192], strides = [1, 1]} : vector<256x768xf32> to vector<256x192xf32>
    %cst_23 = arith.constant 0.000000e+00 : f32
    %35 = vector.broadcast %cst_23 : f32 to vector<256x192xf32>
    %36 = arith.cmpf ogt, %34, %35 : vector<256x192xf32>
    %cst_24 = arith.constant 0.00999999977 : f32
    %37 = vector.broadcast %cst_24 : f32 to vector<256x192xf32>
    %38 = arith.mulf %37, %34 : vector<256x192xf32>
    %39 = arith.select %36, %34, %38 : vector<256x192xi1>, vector<256x192xf32>
    %40 = arith.truncf %39 : vector<256x192xf32> to vector<256x192xbf16>
    %c1 = arith.constant 1 : index
    %c0_25 = arith.constant 0 : index
    %c0_26 = arith.constant 0 : index
    %41 = vector.load %arg5[%c1, %c0_25, %c0_26] : memref<3x192x192xbf16, #tpu.memory_space<vmem>>, vector<1x192x192xbf16>
    %42 = vector.shape_cast %41 : vector<1x192x192xbf16> to vector<192x192xbf16>
    %cst_27 = arith.constant dense<0.000000e+00> : vector<256x192xf32>
    %43 = tpu.matmul %40, %42, %cst_27 {dimension_numbers = #tpu.dot_dimension_numbers<[1], [0], [0], [1], [0, 0, 1, 1], [], []>} : vector<256x192xbf16>, vector<192x192xbf16>, vector<256x192xf32> -> vector<256x192xf32>
    %c1_28 = arith.constant 1 : index
    %c0_29 = arith.constant 0 : index
    %c0_30 = arith.constant 0 : index
    %44 = vector.load %arg6[%c1_28, %c0_29, %c0_30] : memref<3x1x192xf32, #tpu.memory_space<vmem>>, vector<1x1x192xf32>
    %45 = vector.shape_cast %44 : vector<1x1x192xf32> to vector<1x192xf32>
    %46 = vector.broadcast %45 : vector<1x192xf32> to vector<256x192xf32>
    %47 = arith.addf %43, %46 : vector<256x192xf32>
    %cst_31 = arith.constant 0.000000e+00 : f32
    %48 = vector.broadcast %cst_31 : f32 to vector<256x192xf32>
    %49 = arith.cmpf ogt, %47, %48 : vector<256x192xf32>
    %cst_32 = arith.constant 0.00999999977 : f32
    %50 = vector.broadcast %cst_32 : f32 to vector<256x192xf32>
    %51 = arith.mulf %50, %47 : vector<256x192xf32>
    %52 = arith.select %49, %47, %51 : vector<256x192xi1>, vector<256x192xf32>
    %53 = arith.truncf %52 : vector<256x192xf32> to vector<256x192xbf16>
    %c1_33 = arith.constant 1 : index
    %c0_34 = arith.constant 0 : index
    %c0_35 = arith.constant 0 : index
    %54 = vector.load %arg7[%c1_33, %c0_34, %c0_35] : memref<3x192x192xbf16, #tpu.memory_space<vmem>>, vector<1x192x192xbf16>
    %55 = vector.shape_cast %54 : vector<1x192x192xbf16> to vector<192x192xbf16>
    %cst_36 = arith.constant dense<0.000000e+00> : vector<256x192xf32>
    %56 = tpu.matmul %53, %55, %cst_36 {dimension_numbers = #tpu.dot_dimension_numbers<[1], [0], [0], [1], [0, 0, 1, 1], [], []>} : vector<256x192xbf16>, vector<192x192xbf16>, vector<256x192xf32> -> vector<256x192xf32>
    %c1_37 = arith.constant 1 : index
    %c0_38 = arith.constant 0 : index
    %c0_39 = arith.constant 0 : index
    %57 = vector.load %arg8[%c1_37, %c0_38, %c0_39] : memref<3x1x192xf32, #tpu.memory_space<vmem>>, vector<1x1x192xf32>
    %58 = vector.shape_cast %57 : vector<1x1x192xf32> to vector<1x192xf32>
    %59 = vector.broadcast %58 : vector<1x192xf32> to vector<256x192xf32>
    %60 = arith.addf %56, %59 : vector<256x192xf32>
    %61 = vector.extract_strided_slice %6 {offsets = [0, 512], sizes = [256, 192], strides = [1, 1]} : vector<256x768xf32> to vector<256x192xf32>
    %cst_40 = arith.constant 0.000000e+00 : f32
    %62 = vector.broadcast %cst_40 : f32 to vector<256x192xf32>
    %63 = arith.cmpf ogt, %61, %62 : vector<256x192xf32>
    %cst_41 = arith.constant 0.00999999977 : f32
    %64 = vector.broadcast %cst_41 : f32 to vector<256x192xf32>
    %65 = arith.mulf %64, %61 : vector<256x192xf32>
    %66 = arith.select %63, %61, %65 : vector<256x192xi1>, vector<256x192xf32>
    %67 = arith.truncf %66 : vector<256x192xf32> to vector<256x192xbf16>
    %c2 = arith.constant 2 : index
    %c0_42 = arith.constant 0 : index
    %c0_43 = arith.constant 0 : index
    %68 = vector.load %arg5[%c2, %c0_42, %c0_43] : memref<3x192x192xbf16, #tpu.memory_space<vmem>>, vector<1x192x192xbf16>
    %69 = vector.shape_cast %68 : vector<1x192x192xbf16> to vector<192x192xbf16>
    %cst_44 = arith.constant dense<0.000000e+00> : vector<256x192xf32>
    %70 = tpu.matmul %67, %69, %cst_44 {dimension_numbers = #tpu.dot_dimension_numbers<[1], [0], [0], [1], [0, 0, 1, 1], [], []>} : vector<256x192xbf16>, vector<192x192xbf16>, vector<256x192xf32> -> vector<256x192xf32>
    %c2_45 = arith.constant 2 : index
    %c0_46 = arith.constant 0 : index
    %c0_47 = arith.constant 0 : index
    %71 = vector.load %arg6[%c2_45, %c0_46, %c0_47] : memref<3x1x192xf32, #tpu.memory_space<vmem>>, vector<1x1x192xf32>
    %72 = vector.shape_cast %71 : vector<1x1x192xf32> to vector<1x192xf32>
    %73 = vector.broadcast %72 : vector<1x192xf32> to vector<256x192xf32>
    %74 = arith.addf %70, %73 : vector<256x192xf32>
    %cst_48 = arith.constant 0.000000e+00 : f32
    %75 = vector.broadcast %cst_48 : f32 to vector<256x192xf32>
    %76 = arith.cmpf ogt, %74, %75 : vector<256x192xf32>
    %cst_49 = arith.constant 0.00999999977 : f32
    %77 = vector.broadcast %cst_49 : f32 to vector<256x192xf32>
    %78 = arith.mulf %77, %74 : vector<256x192xf32>
    %79 = arith.select %76, %74, %78 : vector<256x192xi1>, vector<256x192xf32>
    %80 = arith.truncf %79 : vector<256x192xf32> to vector<256x192xbf16>
    %c2_50 = arith.constant 2 : index
    %c0_51 = arith.constant 0 : index
    %c0_52 = arith.constant 0 : index
    %81 = vector.load %arg7[%c2_50, %c0_51, %c0_52] : memref<3x192x192xbf16, #tpu.memory_space<vmem>>, vector<1x192x192xbf16>
    %82 = vector.shape_cast %81 : vector<1x192x192xbf16> to vector<192x192xbf16>
    %cst_53 = arith.constant dense<0.000000e+00> : vector<256x192xf32>
    %83 = tpu.matmul %80, %82, %cst_53 {dimension_numbers = #tpu.dot_dimension_numbers<[1], [0], [0], [1], [0, 0, 1, 1], [], []>} : vector<256x192xbf16>, vector<192x192xbf16>, vector<256x192xf32> -> vector<256x192xf32>
    %c2_54 = arith.constant 2 : index
    %c0_55 = arith.constant 0 : index
    %c0_56 = arith.constant 0 : index
    %84 = vector.load %arg8[%c2_54, %c0_55, %c0_56] : memref<3x1x192xf32, #tpu.memory_space<vmem>>, vector<1x1x192xf32>
    %85 = vector.shape_cast %84 : vector<1x1x192xf32> to vector<1x192xf32>
    %86 = vector.broadcast %85 : vector<1x192xf32> to vector<256x192xf32>
    %87 = arith.addf %83, %86 : vector<256x192xf32>
    %c0_57 = arith.constant 0 : index
    %c0_58 = arith.constant 0 : index
    %88 = vector.load %arg2[%c0_57, %c0_58] : memref<3x64xf32, #tpu.memory_space<vmem>>, vector<3x64xf32>
    %89 = vector.extract_strided_slice %88 {offsets = [0, 0], sizes = [1, 64], strides = [1, 1]} : vector<3x64xf32> to vector<1x64xf32>
    %90 = vector.shape_cast %89 : vector<1x64xf32> to vector<1x64xf32>
    %91 = vector.broadcast %90 : vector<1x64xf32> to vector<256x64xf32>
    %92 = vector.extract_strided_slice %88 {offsets = [1, 0], sizes = [1, 64], strides = [1, 1]} : vector<3x64xf32> to vector<1x64xf32>
    %93 = vector.shape_cast %92 : vector<1x64xf32> to vector<1x64xf32>
    %94 = vector.broadcast %93 : vector<1x64xf32> to vector<256x64xf32>
    %95 = vector.extract_strided_slice %88 {offsets = [2, 0], sizes = [1, 64], strides = [1, 1]} : vector<3x64xf32> to vector<1x64xf32>
    %96 = vector.shape_cast %95 : vector<1x64xf32> to vector<1x64xf32>
    %97 = vector.broadcast %96 : vector<1x64xf32> to vector<256x64xf32>
    %98 = vector.extract_strided_slice %33 {offsets = [0, 0], sizes = [256, 64], strides = [1, 1]} : vector<256x192xf32> to vector<256x64xf32>
    %99 = vector.extract_strided_slice %60 {offsets = [0, 0], sizes = [256, 64], strides = [1, 1]} : vector<256x192xf32> to vector<256x64xf32>
    %100 = vector.extract_strided_slice %87 {offsets = [0, 0], sizes = [256, 64], strides = [1, 1]} : vector<256x192xf32> to vector<256x64xf32>
    %101 = tpu.concatenate %91, %98, %99, %100 in 1 : vector<256x64xf32>, vector<256x64xf32>, vector<256x64xf32>, vector<256x64xf32> -> vector<256x256xf32>
    %102 = arith.truncf %101 : vector<256x256xf32> to vector<256x256xbf16>
    %c0_59 = arith.constant 0 : index
    %c0_60 = arith.constant 0 : index
    %103 = vector.load %arg9[%c0_59, %c0_60] : memref<256x256xbf16, #tpu.memory_space<vmem>>, vector<256x256xbf16>
    tpu.vector_store %arg9[%c0_59, %c0_60], %102 {strides = array<i32>} : memref<256x256xbf16, #tpu.memory_space<vmem>>, vector<256x256xbf16>,
    %104 = vector.extract_strided_slice %33 {offsets = [0, 64], sizes = [256, 64], strides = [1, 1]} : vector<256x192xf32> to vector<256x64xf32>
    %105 = vector.extract_strided_slice %60 {offsets = [0, 64], sizes = [256, 64], strides = [1, 1]} : vector<256x192xf32> to vector<256x64xf32>
    %106 = vector.extract_strided_slice %87 {offsets = [0, 64], sizes = [256, 64], strides = [1, 1]} : vector<256x192xf32> to vector<256x64xf32>
    %107 = tpu.concatenate %94, %104, %105, %106 in 1 : vector<256x64xf32>, vector<256x64xf32>, vector<256x64xf32>, vector<256x64xf32> -> vector<256x256xf32>
    %108 = arith.truncf %107 : vector<256x256xf32> to vector<256x256xbf16>
    %c0_61 = arith.constant 0 : index
    %c0_62 = arith.constant 0 : index
    %109 = vector.load %arg10[%c0_61, %c0_62] : memref<256x256xbf16, #tpu.memory_space<vmem>>, vector<256x256xbf16>
    tpu.vector_store %arg10[%c0_61, %c0_62], %108 {strides = array<i32>} : memref<256x256xbf16, #tpu.memory_space<vmem>>, vector<256x256xbf16>,
    %110 = vector.extract_strided_slice %33 {offsets = [0, 128], sizes = [256, 64], strides = [1, 1]} : vector<256x192xf32> to vector<256x64xf32>
    %111 = vector.extract_strided_slice %60 {offsets = [0, 128], sizes = [256, 64], strides = [1, 1]} : vector<256x192xf32> to vector<256x64xf32>
    %112 = vector.extract_strided_slice %87 {offsets = [0, 128], sizes = [256, 64], strides = [1, 1]} : vector<256x192xf32> to vector<256x64xf32>
    %113 = tpu.concatenate %97, %110, %111, %112 in 1 : vector<256x64xf32>, vector<256x64xf32>, vector<256x64xf32>, vector<256x64xf32> -> vector<256x256xf32>
    %114 = arith.truncf %113 : vector<256x256xf32> to vector<256x256xbf16>
    %c0_63 = arith.constant 0 : index
    %c0_64 = arith.constant 0 : index
    %115 = vector.load %arg11[%c0_63, %c0_64] : memref<256x256xbf16, #tpu.memory_space<vmem>>, vector<256x256xbf16>
    tpu.vector_store %arg11[%c0_63, %c0_64], %114 {strides = array<i32>} : memref<256x256xbf16, #tpu.memory_space<vmem>>, vector<256x256xbf16>,
    return
  }
  func.func @transform_0(%arg0: i32) -> (i32, i32) {
    %c0_i32 = arith.constant 0 : i32
    %c0_i32_0 = arith.constant 0 : i32
    return %arg0, %c0_i32 : i32, i32
  }
  func.func @transform_1(%arg0: i32) -> (i32, i32) {
    %c0_i32 = arith.constant 0 : i32
    %c0_i32_0 = arith.constant 0 : i32
    %c0_i32_1 = arith.constant 0 : i32
    return %c0_i32, %c0_i32_0 : i32, i32
  }
  func.func @transform_2(%arg0: i32) -> (i32, i32) {
    %c0_i32 = arith.constant 0 : i32
    %c0_i32_0 = arith.constant 0 : i32
    %c0_i32_1 = arith.constant 0 : i32
    return %c0_i32, %c0_i32_0 : i32, i32
  }
  func.func @transform_3(%arg0: i32) -> (i32, i32) {
    %c0_i32 = arith.constant 0 : i32
    %c0_i32_0 = arith.constant 0 : i32
    %c0_i32_1 = arith.constant 0 : i32
    return %c0_i32, %c0_i32_0 : i32, i32
  }
  func.func @transform_4(%arg0: i32) -> (i32, i32, i32) {
    %c0_i32 = arith.constant 0 : i32
    %c0_i32_0 = arith.constant 0 : i32
    %c0_i32_1 = arith.constant 0 : i32
    %c0_i32_2 = arith.constant 0 : i32
    return %c0_i32, %c0_i32_0, %c0_i32_1 : i32, i32, i32
  }
  func.func @transform_5(%arg0: i32) -> (i32, i32, i32) {
    %c0_i32 = arith.constant 0 : i32
    %c0_i32_0 = arith.constant 0 : i32
    %c0_i32_1 = arith.constant 0 : i32
    %c0_i32_2 = arith.constant 0 : i32
    return %c0_i32, %c0_i32_0, %c0_i32_1 : i32, i32, i32
  }
  func.func @transform_6(%arg0: i32) -> (i32, i32, i32) {
    %c0_i32 = arith.constant 0 : i32
    %c0_i32_0 = arith.constant 0 : i32
    %c0_i32_1 = arith.constant 0 : i32
    %c0_i32_2 = arith.constant 0 : i32
    return %c0_i32, %c0_i32_0, %c0_i32_1 : i32, i32, i32
  }
  func.func @transform_7(%arg0: i32) -> (i32, i32, i32) {
    %c0_i32 = arith.constant 0 : i32
    %c0_i32_0 = arith.constant 0 : i32
    %c0_i32_1 = arith.constant 0 : i32
    %c0_i32_2 = arith.constant 0 : i32
    return %c0_i32, %c0_i32_0, %c0_i32_1 : i32, i32, i32
  }
  func.func @transform_8(%arg0: i32) -> (i32, i32) {
    %c0_i32 = arith.constant 0 : i32
    %c0_i32_0 = arith.constant 0 : i32
    return %arg0, %c0_i32 : i32, i32
  }
  func.func @transform_9(%arg0: i32) -> (i32, i32) {
    %c0_i32 = arith.constant 0 : i32
    %c0_i32_0 = arith.constant 0 : i32
    return %arg0, %c0_i32 : i32, i32
  }
  func.func @transform_10(%arg0: i32) -> (i32, i32) {
    %c0_i32 = arith.constant 0 : i32
    %c0_i32_0 = arith.constant 0 : i32
    return %arg0, %c0_i32 : i32, i32
  }
}

</mosaic_0001>

<llo_original>
// kernel: channel_ctx_fea.1
$region0: #{channel_ctx_fea.1}
  #allocation0 [shape = 'u32[]', space=smem, size = 0x4, offset = 0x4, fixed_abs, tag = 'smem constant byte address 0x4 - core index']
  #allocation1 [shape = 'u32[72,128]{1,0:T(1,128)}', space=vmem, size = 0x9000, scoped, tag = 'internal scratch']
  %s0 = inlined_call_operand.hbm [shape: f32[1024,256], index: 0, kind: input, shape index: {}]
  %s1 = inlined_call_operand.hbm [shape: f32[3,64], index: 1, kind: input, shape index: {}]
  %s2 = inlined_call_operand.hbm [shape: bf16[192,768], index: 2, kind: input, shape index: {}]
  %s3 = inlined_call_operand.hbm [shape: f32[1,768], index: 3, kind: input, shape index: {}]
  %s4 = inlined_call_operand.hbm [shape: bf16[3,192,192], index: 4, kind: input, shape index: {}]
  %s5 = inlined_call_operand.hbm [shape: f32[3,1,192], index: 5, kind: input, shape index: {}]
  %s6 = inlined_call_operand.hbm [shape: bf16[3,192,192], index: 6, kind: input, shape index: {}]
  %s7 = inlined_call_operand.hbm [shape: f32[3,1,192], index: 7, kind: input, shape index: {}]
  %s8 = inlined_call_operand.hbm [shape: bf16[1024,256], index: 8, kind: output, shape index: {0}]
  %s9 = inlined_call_operand.hbm [shape: bf16[1024,256], index: 9, kind: output, shape index: {1}]
  %s10 = inlined_call_operand.hbm [shape: bf16[1024,256], index: 10, kind: output, shape index: {2}]
  %11 = xla_tuple %s8, %s9, %s10
  %s12 = sld [smem:[#allocation0]]
  $region113: #{channel_ctx_fea.1} parent=0
    _
  %s14 = ssub.s32 1, %s12
  %s15 = scalar_select 0, %s14, %s12
  $region1: #{channel_ctx_fea.1} parent=0
    #allocation2 [shape = 'u8[524288]{0}', space=vmem, size = 0x80000, scoped, tag = 'input window, operand 0']
    #allocation3 [shape = 's32[2]{0}', space=sflag, size = 0x8, scoped, tag = 'scoped memory for channel_ctx_fea.1']
    #allocation4 [shape = 's32[2]{0}', space=sflag, size = 0x8, scoped, tag = 'scoped memory for channel_ctx_fea.1']
    #allocation5 [shape = 'u8[2048]{0}', space=vmem, size = 0x800, scoped, tag = 'input window, operand 1, single buffered']
    #allocation6 [shape = 's32[1]{0}', space=sflag, size = 0x4, scoped, tag = 'scoped memory for channel_ctx_fea.1']
    #allocation7 [shape = 'u8[294912]{0}', space=vmem, size = 0x48000, scoped, tag = 'input window, operand 2, single buffered']
    #allocation8 [shape = 'u8[3072]{0}', space=vmem, size = 0xc00, scoped, tag = 'input window, operand 3, single buffered']
    #allocation9 [shape = 's32[1]{0}', space=sflag, size = 0x4, scoped, tag = 'scoped memory for channel_ctx_fea.1']
    #allocation10 [shape = 'u8[294912]{0}', space=vmem, size = 0x48000, scoped, tag = 'input window, operand 4, single buffered']
    #allocation11 [shape = 'u8[3072]{0}', space=vmem, size = 0xc00, scoped, tag = 'input window, operand 5, single buffered']
    #allocation12 [shape = 's32[1]{0}', space=sflag, size = 0x4, scoped, tag = 'scoped memory for channel_ctx_fea.1']
    #allocation13 [shape = 'u8[294912]{0}', space=vmem, size = 0x48000, scoped, tag = 'input window, operand 6, single buffered']
    #allocation14 [shape = 'u8[3072]{0}', space=vmem, size = 0xc00, scoped, tag = 'input window, operand 7, single buffered']
    #allocation15 [shape = 's32[1]{0}', space=sflag, size = 0x4, scoped, tag = 'scoped memory for channel_ctx_fea.1']
    #allocation16 [shape = 'u8[262144]{0}', space=vmem, size = 0x40000, scoped, tag = 'output window, operand 0']
    #allocation17 [shape = 'u8[262144]{0}', space=vmem, size = 0x40000, scoped, tag = 'output window, operand 1']
    #allocation18 [shape = 's32[2]{0}', space=sflag, size = 0x8, scoped, tag = 'scoped memory for channel_ctx_fea.1']
    #allocation19 [shape = 'u8[262144]{0}', space=vmem, size = 0x40000, scoped, tag = 'output window, operand 2']
    %16 = vsyncpa [#allocation3], 0
    %s17 = scalar_lea.sflag [#allocation3], 1
    %18 = vsyncpa %s17, 0
    %19 = vsyncpa [#allocation6], 0
    %20 = vsyncpa [#allocation9], 0
    %21 = vsyncpa [#allocation12], 0
    %22 = vsyncpa [#allocation15], 0
    %23 = vsyncpa [#allocation4], 0
    %s24 = scalar_lea.sflag [#allocation4], 1
    %25 = vsyncpa %s24, 0
    %26 = vsyncpa [#allocation18], 0
    %s27 = scalar_lea.sflag [#allocation18], 1
    %28 = vsyncpa %s27, 0
    loop: start=0, step=1, limit=6
    $region2: #{channel_ctx_fea.1} parent=1 // loop_pre_header
      _
    $region3: #{channel_ctx_fea.1} parent=1 // loop_header
      %s30 = sphi 0, %s34
      %p31 = scmp.ge.s32.totalorder %s30, 6
      %s40 = sphi 0, %s42
      %s43 = sphi 0, %s40
      %s44 = sphi 0, %s43
      %s60 = sphi 0, %s44
      %s64 = sphi 0, %s64
      %s66 = sphi 0, %s64
      %s67 = sphi 0, %s66
      %s81 = sphi 0, %s67
      %s85 = sphi 0, %s85
      %s87 = sphi 0, %s85
      %s88 = sphi 0, %s87
      %s102 = sphi 0, %s88
      %s106 = sphi 0, %s106
      %s108 = sphi 0, %s106
      %s109 = sphi 0, %s108
      %s123 = sphi 0, %s109
      %s127 = sphi 0, %s127
      %s129 = sphi 0, %s127
      %s130 = sphi 0, %s129
      %s144 = sphi 0, %s130
      %s148 = sphi 0, %s148
      %s150 = sphi 0, %s148
      %s151 = sphi 0, %s150
      %s165 = sphi 0, %s151
      %s169 = sphi 0, %s169
      %s171 = sphi 0, %s169
      %s172 = sphi 0, %s171
      %s186 = sphi 0, %s172
      %s190 = sphi 0, %s190
      %s192 = sphi 0, %s190
      %s193 = sphi 0, %s192
      %s207 = sphi 0, %s193
      %s213 = sphi 0, %s215
      %s216 = sphi 0, %s213
      %s217 = sphi 0, %s216
      %s233 = sphi 0, %s217
      %s239 = sphi 0, %s241
      %s242 = sphi 0, %s239
      %s243 = sphi 0, %s242
      %s259 = sphi 0, %s243
      %s265 = sphi 0, %s267
      %s268 = sphi 0, %s265
      %s269 = sphi 0, %s268
      %s285 = sphi 0, %s269
    $region4: #{channel_ctx_fea.1} parent=1 // loop_header_branch
      %33 = sbr.rel (%p31) target = $region8
    $region5: #{channel_ctx_fea.1} parent=1 // loop_body
      %s35 = ssub.s32 %s30, 1
      %s36 = ssub.s32 %s30, 2
      %s37 = sadd.s32 %s30, 1
      %s38 = ssub.s32 %s30, %s37
      %p39 = scmp.eq.s32.totalorder %s38, 0
      %s41 = sadd.s32 %s40, 1
      %s42 = scalar_select %p39, %s40, %s41
      %p45 = pneg %p39
      %p46 = scmp.eq.s32.totalorder %s30, 3
      %p47 = por %p45, %p46
      %p48 = scmp.ne.s32.totalorder %s40, %s43
      %p49 = scmp.eq.s32.totalorder %s30, 0
      %p50 = por %p48, %p49
      %p51 = scmp.ne.s32.totalorder %s40, %s43
      %p52 = scmp.eq.s32.totalorder %s35, 3
      %p53 = por %p51, %p52
      %p54 = scmp.ne.s32.totalorder %s43, %s44
      %p55 = scmp.eq.s32.totalorder %s35, 0
      %p56 = por %p54, %p55
      %p57 = scmp.ne.s32.totalorder %s43, %s44
      %p58 = scmp.eq.s32.totalorder %s36, 3
      %p59 = por %p57, %p58
      %p61 = scmp.ne.s32.totalorder %s44, %s60
      %p62 = scmp.eq.s32.totalorder %s36, 0
      %p63 = por %p61, %p62
      %s65 = sadd.s32 %s64, 1
      %p68 = scmp.eq.s32.totalorder %s30, 3
      %p69 = scmp.ne.s32.totalorder %s64, %s66
      %p70 = scmp.eq.s32.totalorder %s30, 0
      %p71 = por %p69, %p70
      %p72 = scmp.ne.s32.totalorder %s64, %s66
      %p73 = scmp.eq.s32.totalorder %s35, 3
      %p74 = por %p72, %p73
      %p75 = scmp.ne.s32.totalorder %s66, %s67
      %p76 = scmp.eq.s32.totalorder %s35, 0
      %p77 = por %p75, %p76
      %p78 = scmp.ne.s32.totalorder %s66, %s67
      %p79 = scmp.eq.s32.totalorder %s36, 3
      %p80 = por %p78, %p79
      %p82 = scmp.ne.s32.totalorder %s67, %s81
      %p83 = scmp.eq.s32.totalorder %s36, 0
      %p84 = por %p82, %p83
      %s86 = sadd.s32 %s85, 1
      %p89 = scmp.eq.s32.totalorder %s30, 3
      %p90 = scmp.ne.s32.totalorder %s85, %s87
      %p91 = scmp.eq.s32.totalorder %s30, 0
      %p92 = por %p90, %p91
      %p93 = scmp.ne.s32.totalorder %s85, %s87
      %p94 = scmp.eq.s32.totalorder %s35, 3
      %p95 = por %p93, %p94
      %p96 = scmp.ne.s32.totalorder %s87, %s88
      %p97 = scmp.eq.s32.totalorder %s35, 0
      %p98 = por %p96, %p97
      %p99 = scmp.ne.s32.totalorder %s87, %s88
      %p100 = scmp.eq.s32.totalorder %s36, 3
      %p101 = por %p99, %p100
      %p103 = scmp.ne.s32.totalorder %s88, %s102
      %p104 = scmp.eq.s32.totalorder %s36, 0
      %p105 = por %p103, %p104
      %s107 = sadd.s32 %s106, 1
      %p110 = scmp.eq.s32.totalorder %s30, 3
      %p111 = scmp.ne.s32.totalorder %s106, %s108
      %p112 = scmp.eq.s32.totalorder %s30, 0
      %p113 = por %p111, %p112
      %p114 = scmp.ne.s32.totalorder %s106, %s108
      %p115 = scmp.eq.s32.totalorder %s35, 3
      %p116 = por %p114, %p115
      %p117 = scmp.ne.s32.totalorder %s108, %s109
      %p118 = scmp.eq.s32.totalorder %s35, 0
      %p119 = por %p117, %p118
      %p120 = scmp.ne.s32.totalorder %s108, %s109
      %p121 = scmp.eq.s32.totalorder %s36, 3
      %p122 = por %p120, %p121
      %p124 = scmp.ne.s32.totalorder %s109, %s123
      %p125 = scmp.eq.s32.totalorder %s36, 0
      %p126 = por %p124, %p125
      %s128 = sadd.s32 %s127, 1
      %p131 = scmp.eq.s32.totalorder %s30, 3
      %p132 = scmp.ne.s32.totalorder %s127, %s129
      %p133 = scmp.eq.s32.totalorder %s30, 0
      %p134 = por %p132, %p133
      %p135 = scmp.ne.s32.totalorder %s127, %s129
      %p136 = scmp.eq.s32.totalorder %s35, 3
      %p137 = por %p135, %p136
      %p138 = scmp.ne.s32.totalorder %s129, %s130
      %p139 = scmp.eq.s32.totalorder %s35, 0
      %p140 = por %p138, %p139
      %p141 = scmp.ne.s32.totalorder %s129, %s130
      %p142 = scmp.eq.s32.totalorder %s36, 3
      %p143 = por %p141, %p142
      %p145 = scmp.ne.s32.totalorder %s130, %s144
      %p146 = scmp.eq.s32.totalorder %s36, 0
      %p147 = por %p145, %p146
      %s149 = sadd.s32 %s148, 1
      %p152 = scmp.eq.s32.totalorder %s30, 3
      %p153 = scmp.ne.s32.totalorder %s148, %s150
      %p154 = scmp.eq.s32.totalorder %s30, 0
      %p155 = por %p153, %p154
      %p156 = scmp.ne.s32.totalorder %s148, %s150
      %p157 = scmp.eq.s32.totalorder %s35, 3
      %p158 = por %p156, %p157
      %p159 = scmp.ne.s32.totalorder %s150, %s151
      %p160 = scmp.eq.s32.totalorder %s35, 0
      %p161 = por %p159, %p160
      %p162 = scmp.ne.s32.totalorder %s150, %s151
      %p163 = scmp.eq.s32.totalorder %s36, 3
      %p164 = por %p162, %p163
      %p166 = scmp.ne.s32.totalorder %s151, %s165
      %p167 = scmp.eq.s32.totalorder %s36, 0
      %p168 = por %p166, %p167
      %s170 = sadd.s32 %s169, 1
      %p173 = scmp.eq.s32.totalorder %s30, 3
      %p174 = scmp.ne.s32.totalorder %s169, %s171
      %p175 = scmp.eq.s32.totalorder %s30, 0
      %p176 = por %p174, %p175
      %p177 = scmp.ne.s32.totalorder %s169, %s171
      %p178 = scmp.eq.s32.totalorder %s35, 3
      %p179 = por %p177, %p178
      %p180 = scmp.ne.s32.totalorder %s171, %s172
      %p181 = scmp.eq.s32.totalorder %s35, 0
      %p182 = por %p180, %p181
      %p183 = scmp.ne.s32.totalorder %s171, %s172
      %p184 = scmp.eq.s32.totalorder %s36, 3
      %p185 = por %p183, %p184
      %p187 = scmp.ne.s32.totalorder %s172, %s186
      %p188 = scmp.eq.s32.totalorder %s36, 0
      %p189 = por %p187, %p188
      %s191 = sadd.s32 %s190, 1
      %p194 = scmp.eq.s32.totalorder %s30, 3
      %p195 = scmp.ne.s32.totalorder %s190, %s192
      %p196 = scmp.eq.s32.totalorder %s30, 0
      %p197 = por %p195, %p196
      %p198 = scmp.ne.s32.totalorder %s190, %s192
      %p199 = scmp.eq.s32.totalorder %s35, 3
      %p200 = por %p198, %p199
      %p201 = scmp.ne.s32.totalorder %s192, %s193
      %p202 = scmp.eq.s32.totalorder %s35, 0
      %p203 = por %p201, %p202
      %p204 = scmp.ne.s32.totalorder %s192, %s193
      %p205 = scmp.eq.s32.totalorder %s36, 3
      %p206 = por %p204, %p205
      %p208 = scmp.ne.s32.totalorder %s193, %s207
      %p209 = scmp.eq.s32.totalorder %s36, 0
      %p210 = por %p208, %p209
      %s211 = ssub.s32 %s30, %s37
      %p212 = scmp.eq.s32.totalorder %s211, 0
      %s214 = sadd.s32 %s213, 1
      %s215 = scalar_select %p212, %s213, %s214
      %p218 = pneg %p212
      %p219 = scmp.eq.s32.totalorder %s30, 3
      %p220 = por %p218, %p219
      %p221 = scmp.ne.s32.totalorder %s213, %s216
      %p222 = scmp.eq.s32.totalorder %s30, 0
      %p223 = por %p221, %p222
      %p224 = scmp.ne.s32.totalorder %s213, %s216
      %p225 = scmp.eq.s32.totalorder %s35, 3
      %p226 = por %p224, %p225
      %p227 = scmp.ne.s32.totalorder %s216, %s217
      %p228 = scmp.eq.s32.totalorder %s35, 0
      %p229 = por %p227, %p228
      %p230 = scmp.ne.s32.totalorder %s216, %s217
      %p231 = scmp.eq.s32.totalorder %s36, 3
      %p232 = por %p230, %p231
      %p234 = scmp.ne.s32.totalorder %s217, %s233
      %p235 = scmp.eq.s32.totalorder %s36, 0
      %p236 = por %p234, %p235
      %s237 = ssub.s32 %s30, %s37
      %p238 = scmp.eq.s32.totalorder %s237, 0
      %s240 = sadd.s32 %s239, 1
      %s241 = scalar_select %p238, %s239, %s240
      %p244 = pneg %p238
      %p245 = scmp.eq.s32.totalorder %s30, 3
      %p246 = por %p244, %p245
      %p247 = scmp.ne.s32.totalorder %s239, %s242
      %p248 = scmp.eq.s32.totalorder %s30, 0
      %p249 = por %p247, %p248
      %p250 = scmp.ne.s32.totalorder %s239, %s242
      %p251 = scmp.eq.s32.totalorder %s35, 3
      %p252 = por %p250, %p251
      %p253 = scmp.ne.s32.totalorder %s242, %s243
      %p254 = scmp.eq.s32.totalorder %s35, 0
      %p255 = por %p253, %p254
      %p256 = scmp.ne.s32.totalorder %s242, %s243
      %p257 = scmp.eq.s32.totalorder %s36, 3
      %p258 = por %p256, %p257
      %p260 = scmp.ne.s32.totalorder %s243, %s259
      %p261 = scmp.eq.s32.totalorder %s36, 0
      %p262 = por %p260, %p261
      %s263 = ssub.s32 %s30, %s37
      %p264 = scmp.eq.s32.totalorder %s263, 0
      %s266 = sadd.s32 %s265, 1
      %s267 = scalar_select %p264, %s265, %s266
      %p270 = pneg %p264
      %p271 = scmp.eq.s32.totalorder %s30, 3
      %p272 = por %p270, %p271
      %p273 = scmp.ne.s32.totalorder %s265, %s268
      %p274 = scmp.eq.s32.totalorder %s30, 0
      %p275 = por %p273, %p274
      %p276 = scmp.ne.s32.totalorder %s265, %s268
      %p277 = scmp.eq.s32.totalorder %s35, 3
      %p278 = por %p276, %p277
      %p279 = scmp.ne.s32.totalorder %s268, %s269
      %p280 = scmp.eq.s32.totalorder %s35, 0
      %p281 = por %p279, %p280
      %p282 = scmp.ne.s32.totalorder %s268, %s269
      %p283 = scmp.eq.s32.totalorder %s36, 3
      %p284 = por %p282, %p283
      %p286 = scmp.ne.s32.totalorder %s269, %s285
      %p287 = scmp.eq.s32.totalorder %s36, 0
      %p288 = por %p286, %p287
      %p289 = scmp.le.s32.totalorder 1, %s30
      %p290 = scmp.lt.s32.totalorder %s30, 5
      %p291 = pnand %p289, %p290
      %p292 = pneg %p291
      // Predicated region
      $region9: #{channel_ctx_fea.1} parent=5 // pred_check
        _
      $region10: #{channel_ctx_fea.1} parent=5 // pred_check_branch
        %294 = sbr.rel (%p291) target = $region12
      $region11: #{channel_ctx_fea.1} parent=5 // pred_region
        %s295 = ssub.s32 %s30, 1
        // Predicated region
        $region13: #{channel_ctx_fea.1} parent=11 // pred_check
          %p296 = pneg %p77
        $region14: #{channel_ctx_fea.1} parent=11 // pred_check_branch
          %298 = sbr.rel (%p296) target = $region16
        $region15: #{channel_ctx_fea.1} parent=11 // pred_region
          %300 = vsyncadd [#allocation6], 0
          %s302 = sshll.u32 %s1, 4
          %s303 = int_to_ptr.hbm [resolvable:$true] %s302
          %s304 = sshll.u32 [#allocation5], 4
          %s305 = int_to_ptr.vmem [resolvable:$true] %s304
          %307 = dma.hbm_to_vmem [thread:$0]  %s303, 64, %s305, [#allocation6]
        $region16: #{channel_ctx_fea.1} parent=11 // pred_fallthru
          _
        // Predicated region
        $region17: #{channel_ctx_fea.1} parent=11 // pred_check
          %p308 = pneg %p98
        $region18: #{channel_ctx_fea.1} parent=11 // pred_check_branch
          %310 = sbr.rel (%p308) target = $region20
        $region19: #{channel_ctx_fea.1} parent=11 // pred_region
          %312 = vsyncadd [#allocation6], 0
          %s313 = sshll.u32 %s2, 4
          %s314 = int_to_ptr.hbm [resolvable:$true] %s313
          %s315 = sshll.u32 [#allocation7], 4
          %s316 = int_to_ptr.vmem [resolvable:$true] %s315
          %321 = dma.hbm_to_vmem [thread:$0]  %s314, 9216, %s316, [#allocation6], 384, 384, 24
        $region20: #{channel_ctx_fea.1} parent=11 // pred_fallthru
          _
        // Predicated region
        $region21: #{channel_ctx_fea.1} parent=11 // pred_check
          %p322 = pneg %p119
        $region22: #{channel_ctx_fea.1} parent=11 // pred_check_branch
          %324 = sbr.rel (%p322) target = $region24
        $region23: #{channel_ctx_fea.1} parent=11 // pred_region
          %326 = vsyncadd [#allocation9], 0
          %s328 = sshll.u32 %s3, 4
          %s329 = int_to_ptr.hbm [resolvable:$true] %s328
          %s330 = sshll.u32 [#allocation8], 4
          %s331 = int_to_ptr.vmem [resolvable:$true] %s330
          %333 = dma.hbm_to_vmem [thread:$0]  %s329, 96, %s331, [#allocation9]
        $region24: #{channel_ctx_fea.1} parent=11 // pred_fallthru
          _
        // Predicated region
        $region25: #{channel_ctx_fea.1} parent=11 // pred_check
          %p334 = pneg %p140
        $region26: #{channel_ctx_fea.1} parent=11 // pred_check_branch
          %336 = sbr.rel (%p334) target = $region28
        $region27: #{channel_ctx_fea.1} parent=11 // pred_region
          %338 = vsyncadd [#allocation9], 0
          %s339 = sshll.u32 %s4, 4
          %s340 = int_to_ptr.hbm [resolvable:$true] %s339
          %s341 = sshll.u32 [#allocation10], 4
          %s342 = int_to_ptr.vmem [resolvable:$true] %s341
          %347 = dma.hbm_to_vmem [thread:$0]  %s340, 9216, %s342, [#allocation9], 128, 128, 8
        $region28: #{channel_ctx_fea.1} parent=11 // pred_fallthru
          _
        // Predicated region
        $region29: #{channel_ctx_fea.1} parent=11 // pred_check
          %p348 = pneg %p161
        $region30: #{channel_ctx_fea.1} parent=11 // pred_check_branch
          %350 = sbr.rel (%p348) target = $region32
        $region31: #{channel_ctx_fea.1} parent=11 // pred_region
          %352 = vsyncadd [#allocation12], 0
          %s353 = sshll.u32 %s5, 4
          %s354 = int_to_ptr.hbm [resolvable:$true] %s353
          %s355 = sshll.u32 [#allocation11], 4
          %s356 = int_to_ptr.vmem [resolvable:$true] %s355
          %361 = dma.hbm_to_vmem [thread:$0]  %s354, 96, %s356, [#allocation12], 32, 32, 2
        $region32: #{channel_ctx_fea.1} parent=11 // pred_fallthru
          _
        // Predicated region
        $region33: #{channel_ctx_fea.1} parent=11 // pred_check
          %p362 = pneg %p182
        $region34: #{channel_ctx_fea.1} parent=11 // pred_check_branch
          %364 = sbr.rel (%p362) target = $region36
        $region35: #{channel_ctx_fea.1} parent=11 // pred_region
          %366 = vsyncadd [#allocation12], 0
          %s367 = sshll.u32 %s6, 4
          %s368 = int_to_ptr.hbm [resolvable:$true] %s367
          %s369 = sshll.u32 [#allocation13], 4
          %s370 = int_to_ptr.vmem [resolvable:$true] %s369
          %375 = dma.hbm_to_vmem [thread:$0]  %s368, 9216, %s370, [#allocation12], 128, 128, 8
        $region36: #{channel_ctx_fea.1} parent=11 // pred_fallthru
          _
        // Predicated region
        $region37: #{channel_ctx_fea.1} parent=11 // pred_check
          %p376 = pneg %p203
        $region38: #{channel_ctx_fea.1} parent=11 // pred_check_branch
          %378 = sbr.rel (%p376) target = $region40
        $region39: #{channel_ctx_fea.1} parent=11 // pred_region
          %380 = vsyncadd [#allocation15], 0
          %s381 = sshll.u32 %s7, 4
          %s382 = int_to_ptr.hbm [resolvable:$true] %s381
          %s383 = sshll.u32 [#allocation14], 4
          %s384 = int_to_ptr.vmem [resolvable:$true] %s383
          %389 = dma.hbm_to_vmem [thread:$0]  %s382, 96, %s384, [#allocation15], 32, 32, 2
        $region40: #{channel_ctx_fea.1} parent=11 // pred_fallthru
          _
      $region12: #{channel_ctx_fea.1} parent=5 // pred_fallthru
        _
      %p390 = scmp.lt.s32.totalorder %s30, 4
      // Predicated region
      $region41: #{channel_ctx_fea.1} parent=5 // pred_check
        %p391 = pneg %p390
      $region42: #{channel_ctx_fea.1} parent=5 // pred_check_branch
        %393 = sbr.rel (%p391) target = $region44
      $region43: #{channel_ctx_fea.1} parent=5 // pred_region
        // Predicated region
        $region45: #{channel_ctx_fea.1} parent=43 // pred_check
          %p394 = pneg %p50
        $region46: #{channel_ctx_fea.1} parent=43 // pred_check_branch
          %396 = sbr.rel (%p394) target = $region48
        $region47: #{channel_ctx_fea.1} parent=43 // pred_region
          %s397 = sand.u32 %s40, 1
          %s398 = scalar_lea.sflag [#allocation3], %s397
          %s399 = sand.u32 %s40, 1
          %s400 = smul.addr %s399, 512
          %s401 = scalar_lea.vmem [#allocation2], %s400
          %s402 = smul.u32 32, %s30
          %404 = vsyncadd %s398, 0
          %s405 = smul.addr %s402, 2
          %s406 = smul.addr %s405, 8
          %s407 = scalar_lea.hbm %s0, %s406
          %s408 = sshll.u32 %s407, 4
          %s409 = int_to_ptr.hbm [resolvable:$true] %s408
          %s410 = sshll.u32 %s401, 4
          %s411 = int_to_ptr.vmem [resolvable:$true] %s410
          %416 = dma.hbm_to_vmem [thread:$0]  %s409, 8192, %s411, %s398, 256, 256, 16
        $region48: #{channel_ctx_fea.1} parent=43 // pred_fallthru
          _
      $region44: #{channel_ctx_fea.1} parent=5 // pred_fallthru
        _
      %p417 = scmp.le.s32.totalorder 1, %s30
      %p418 = scmp.lt.s32.totalorder %s30, 5
      %p419 = pnand %p417, %p418
      %p420 = pneg %p419
      // Predicated region
      $region49: #{channel_ctx_fea.1} parent=5 // pred_check
        _
      $region50: #{channel_ctx_fea.1} parent=5 // pred_check_branch
        %422 = sbr.rel (%p419) target = $region52
      $region51: #{channel_ctx_fea.1} parent=5 // pred_region
        %s423 = ssub.s32 %s30, 1
        %s424 = sand.u32 %s43, 1
        %s425 = scalar_lea.sflag [#allocation3], %s424
        %s426 = sand.u32 %s43, 1
        %s427 = smul.addr %s426, 512
        %s428 = scalar_lea.vmem [#allocation2], %s427
        // Predicated region
        $region53: #{channel_ctx_fea.1} parent=51 // pred_check
          %p429 = pneg %p56
        $region54: #{channel_ctx_fea.1} parent=51 // pred_check_branch
          %431 = sbr.rel (%p429) target = $region56
        $region55: #{channel_ctx_fea.1} parent=51 // pred_region
          %433 = dma.done %s425, 8192
        $region56: #{channel_ctx_fea.1} parent=51 // pred_fallthru
          _
        // Predicated region
        $region57: #{channel_ctx_fea.1} parent=51 // pred_check
          %p434 = pneg %p77
        $region58: #{channel_ctx_fea.1} parent=51 // pred_check_branch
          %436 = sbr.rel (%p434) target = $region60
        $region59: #{channel_ctx_fea.1} parent=51 // pred_region
          %438 = dma.done [#allocation6], 64
        $region60: #{channel_ctx_fea.1} parent=51 // pred_fallthru
          _
        // Predicated region
        $region61: #{channel_ctx_fea.1} parent=51 // pred_check
          %p439 = pneg %p98
        $region62: #{channel_ctx_fea.1} parent=51 // pred_check_branch
          %441 = sbr.rel (%p439) target = $region64
        $region63: #{channel_ctx_fea.1} parent=51 // pred_region
          %443 = dma.done [#allocation6], 9216
        $region64: #{channel_ctx_fea.1} parent=51 // pred_fallthru
          _
        // Predicated region
        $region65: #{channel_ctx_fea.1} parent=51 // pred_check
          %p444 = pneg %p119
        $region66: #{channel_ctx_fea.1} parent=51 // pred_check_branch
          %446 = sbr.rel (%p444) target = $region68
        $region67: #{channel_ctx_fea.1} parent=51 // pred_region
          %448 = dma.done [#allocation9], 96
        $region68: #{channel_ctx_fea.1} parent=51 // pred_fallthru
          _
        // Predicated region
        $region69: #{channel_ctx_fea.1} parent=51 // pred_check
          %p449 = pneg %p140
        $region70: #{channel_ctx_fea.1} parent=51 // pred_check_branch
          %451 = sbr.rel (%p449) target = $region72
        $region71: #{channel_ctx_fea.1} parent=51 // pred_region
          %453 = dma.done [#allocation9], 9216
        $region72: #{channel_ctx_fea.1} parent=51 // pred_fallthru
          _
        // Predicated region
        $region73: #{channel_ctx_fea.1} parent=51 // pred_check
          %p454 = pneg %p161
        $region74: #{channel_ctx_fea.1} parent=51 // pred_check_branch
          %456 = sbr.rel (%p454) target = $region76
        $region75: #{channel_ctx_fea.1} parent=51 // pred_region
          %458 = dma.done [#allocation12], 96
        $region76: #{channel_ctx_fea.1} parent=51 // pred_fallthru
          _
        // Predicated region
        $region77: #{channel_ctx_fea.1} parent=51 // pred_check
          %p459 = pneg %p182
        $region78: #{channel_ctx_fea.1} parent=51 // pred_check_branch
          %461 = sbr.rel (%p459) target = $region80
        $region79: #{channel_ctx_fea.1} parent=51 // pred_region
          %463 = dma.done [#allocation12], 9216
        $region80: #{channel_ctx_fea.1} parent=51 // pred_fallthru
          _
        // Predicated region
        $region81: #{channel_ctx_fea.1} parent=51 // pred_check
          %p464 = pneg %p203
        $region82: #{channel_ctx_fea.1} parent=51 // pred_check_branch
          %466 = sbr.rel (%p464) target = $region84
        $region83: #{channel_ctx_fea.1} parent=51 // pred_region
          %468 = dma.done [#allocation15], 96
        $region84: #{channel_ctx_fea.1} parent=51 // pred_fallthru
          _
        %s469 = sand.u32 %s43, 1
        %s470 = scalar_lea.sflag [#allocation3], %s469
        %s471 = sand.u32 %s43, 1
        %s472 = smul.addr %s471, 512
        %s473 = scalar_lea.vmem [#allocation2], %s472
        %p474 = pneg %p56
        %p475 = pneg %p53
        %p476 = pneg %p77
        %p477 = pneg %p74
        %p478 = pneg %p98
        %p479 = pneg %p95
        %p480 = pneg %p119
        %p481 = pneg %p116
        %p482 = pneg %p140
        %p483 = pneg %p137
        %p484 = pneg %p161
        %p485 = pneg %p158
        %p486 = pneg %p182
        %p487 = pneg %p179
        %p488 = pneg %p203
        %p489 = pneg %p200
        %p490 = pneg %p229
        %p491 = pneg %p226
        %s492 = sand.u32 %s216, 1
        %s493 = scalar_lea.sflag [#allocation4], %s492
        %s494 = sand.u32 %s216, 1
        %s495 = smul.addr %s494, 256
        %s496 = scalar_lea.vmem [#allocation16], %s495
        %p497 = pneg %p255
        %p498 = pneg %p252
        %s499 = sand.u32 %s35, 1
        %s500 = scalar_lea.sflag [#allocation18], %s499
        %s501 = sand.u32 %s242, 1
        %s502 = smul.addr %s501, 256
        %s503 = scalar_lea.vmem [#allocation17], %s502
        %p504 = pneg %p281
        %p505 = pneg %p278
        %s506 = sand.u32 %s35, 1
        %s507 = scalar_lea.sflag [#allocation18], %s506
        %s508 = sand.u32 %s268, 1
        %s509 = smul.addr %s508, 256
        %s510 = scalar_lea.vmem [#allocation19], %s509
        %s511 = smul.u32 32, %s35
        %s512 = smul.u32 32, %s35
        %s513 = smul.u32 32, %s35
        %s514 = smul.u32 32, %s35
        %v516 = vld [vmem:[%s428] sm:$0xff]
        %v517 = vld [vmem:[%s428 + $0x8] sm:$0xff]
        %v518 = vld [vmem:[%s428 + $0x10] sm:$0xff]
        %v519 = vld [vmem:[%s428 + $0x18] sm:$0xff]
        %v520 = vld [vmem:[%s428 + $0x20] sm:$0xff]
        %v521 = vld [vmem:[%s428 + $0x28] sm:$0xff]
        %v522 = vld [vmem:[%s428 + $0x30] sm:$0xff]
        %v523 = vld [vmem:[%s428 + $0x38] sm:$0xff]
        %v524 = vld [vmem:[%s428 + $0x40] sm:$0xff]
        %v525 = vld [vmem:[%s428 + $0x48] sm:$0xff]
        %v526 = vld [vmem:[%s428 + $0x50] sm:$0xff]
        %v527 = vld [vmem:[%s428 + $0x58] sm:$0xff]
        %v528 = vld [vmem:[%s428 + $0x60] sm:$0xff]
        %v529 = vld [vmem:[%s428 + $0x68] sm:$0xff]
        %v530 = vld [vmem:[%s428 + $0x70] sm:$0xff]
        %v531 = vld [vmem:[%s428 + $0x78] sm:$0xff]
        %v532 = vld [vmem:[%s428 + $0x80] sm:$0xff]
        %v533 = vld [vmem:[%s428 + $0x88] sm:$0xff]
        %v534 = vld [vmem:[%s428 + $0x90] sm:$0xff]
        %v535 = vld [vmem:[%s428 + $0x98] sm:$0xff]
        %v536 = vld [vmem:[%s428 + $0xa0] sm:$0xff]
        %v537 = vld [vmem:[%s428 + $0xa8] sm:$0xff]
        %v538 = vld [vmem:[%s428 + $0xb0] sm:$0xff]
        %v539 = vld [vmem:[%s428 + $0xb8] sm:$0xff]
        %v540 = vld [vmem:[%s428 + $0xc0] sm:$0xff]
        %v541 = vld [vmem:[%s428 + $0xc8] sm:$0xff]
        %v542 = vld [vmem:[%s428 + $0xd0] sm:$0xff]
        %v543 = vld [vmem:[%s428 + $0xd8] sm:$0xff]
        %v544 = vld [vmem:[%s428 + $0xe0] sm:$0xff]
        %v545 = vld [vmem:[%s428 + $0xe8] sm:$0xff]
        %v546 = vld [vmem:[%s428 + $0xf0] sm:$0xff]
        %v547 = vld [vmem:[%s428 + $0xf8] sm:$0xff]
        %v548 = vld [vmem:[%s428 + $0x100] sm:$0xff]
        %v549 = vld [vmem:[%s428 + $0x108] sm:$0xff]
        %v550 = vld [vmem:[%s428 + $0x110] sm:$0xff]
        %v551 = vld [vmem:[%s428 + $0x118] sm:$0xff]
        %v552 = vld [vmem:[%s428 + $0x120] sm:$0xff]
        %v553 = vld [vmem:[%s428 + $0x128] sm:$0xff]
        %v554 = vld [vmem:[%s428 + $0x130] sm:$0xff]
        %v555 = vld [vmem:[%s428 + $0x138] sm:$0xff]
        %v556 = vld [vmem:[%s428 + $0x140] sm:$0xff]
        %v557 = vld [vmem:[%s428 + $0x148] sm:$0xff]
        %v558 = vld [vmem:[%s428 + $0x150] sm:$0xff]
        %v559 = vld [vmem:[%s428 + $0x158] sm:$0xff]
        %v560 = vld [vmem:[%s428 + $0x160] sm:$0xff]
        %v561 = vld [vmem:[%s428 + $0x168] sm:$0xff]
        %v562 = vld [vmem:[%s428 + $0x170] sm:$0xff]
        %v563 = vld [vmem:[%s428 + $0x178] sm:$0xff]
        %v564 = vld [vmem:[%s428 + $0x180] sm:$0xff]
        %v565 = vld [vmem:[%s428 + $0x188] sm:$0xff]
        %v566 = vld [vmem:[%s428 + $0x190] sm:$0xff]
        %v567 = vld [vmem:[%s428 + $0x198] sm:$0xff]
        %v568 = vld [vmem:[%s428 + $0x1a0] sm:$0xff]
        %v569 = vld [vmem:[%s428 + $0x1a8] sm:$0xff]
        %v570 = vld [vmem:[%s428 + $0x1b0] sm:$0xff]
        %v571 = vld [vmem:[%s428 + $0x1b8] sm:$0xff]
        %v572 = vld [vmem:[%s428 + $0x1c0] sm:$0xff]
        %v573 = vld [vmem:[%s428 + $0x1c8] sm:$0xff]
        %v574 = vld [vmem:[%s428 + $0x1d0] sm:$0xff]
        %v575 = vld [vmem:[%s428 + $0x1d8] sm:$0xff]
        %v576 = vld [vmem:[%s428 + $0x1e0] sm:$0xff]
        %v577 = vld [vmem:[%s428 + $0x1e8] sm:$0xff]
        %v578 = vld [vmem:[%s428 + $0x1f0] sm:$0xff]
        %v579 = vld [vmem:[%s428 + $0x1f8] sm:$0xff]
        %v580 = vpack.c.bf16 %v518, %v516
        %v581 = vpack.c.bf16 %v519, %v517
        %v582 = vpack.c.bf16 %v522, %v520
        %v583 = vpack.c.bf16 %v523, %v521
        %v584 = vpack.c.bf16 %v526, %v524
        %v585 = vpack.c.bf16 %v527, %v525
        %v586 = vpack.c.bf16 %v530, %v528
        %v587 = vpack.c.bf16 %v531, %v529
        %v588 = vpack.c.bf16 %v534, %v532
        %v589 = vpack.c.bf16 %v535, %v533
        %v590 = vpack.c.bf16 %v538, %v536
        %v591 = vpack.c.bf16 %v539, %v537
        %v592 = vpack.c.bf16 %v542, %v540
        %v593 = vpack.c.bf16 %v543, %v541
        %v594 = vpack.c.bf16 %v546, %v544
        %v595 = vpack.c.bf16 %v547, %v545
        %v596 = vpack.c.bf16 %v550, %v548
        %v597 = vpack.c.bf16 %v551, %v549
        %v598 = vpack.c.bf16 %v554, %v552
        %v599 = vpack.c.bf16 %v555, %v553
        %v600 = vpack.c.bf16 %v558, %v556
        %v601 = vpack.c.bf16 %v559, %v557
        %v602 = vpack.c.bf16 %v562, %v560
        %v603 = vpack.c.bf16 %v563, %v561
        %v604 = vpack.c.bf16 %v566, %v564
        %v605 = vpack.c.bf16 %v567, %v565
        %v606 = vpack.c.bf16 %v570, %v568
        %v607 = vpack.c.bf16 %v571, %v569
        %v608 = vpack.c.bf16 %v574, %v572
        %v609 = vpack.c.bf16 %v575, %v573
        %v610 = vpack.c.bf16 %v578, %v576
        %v611 = vpack.c.bf16 %v579, %v577
        %v612 = vld [vmem:[#allocation7] sm:$0xff]
        %v613 = vld [vmem:[#allocation7 + $0x8] sm:$0xff]
        %v614 = vld [vmem:[#allocation7 + $0x10] sm:$0xff]
        %v615 = vld [vmem:[#allocation7 + $0x18] sm:$0xff]
        %v616 = vld [vmem:[#allocation7 + $0x20] sm:$0xff]
        %v617 = vld [vmem:[#allocation7 + $0x28] sm:$0xff]
        %v618 = vld [vmem:[#allocation7 + $0x30] sm:$0xff]
        %v619 = vld [vmem:[#allocation7 + $0x38] sm:$0xff]
        %v620 = vld [vmem:[#allocation7 + $0x40] sm:$0xff]
        %v621 = vld [vmem:[#allocation7 + $0x48] sm:$0xff]
        %v622 = vld [vmem:[#allocation7 + $0x50] sm:$0xff]
        %v623 = vld [vmem:[#allocation7 + $0x58] sm:$0xff]
        %v624 = vld [vmem:[#allocation7 + $0x60] sm:$0xff]
        %v625 = vld [vmem:[#allocation7 + $0x68] sm:$0xff]
        %v626 = vld [vmem:[#allocation7 + $0x70] sm:$0xff]
        %v627 = vld [vmem:[#allocation7 + $0x78] sm:$0xff]
        %v628 = vld [vmem:[#allocation7 + $0x80] sm:$0xff]
        %v629 = vld [vmem:[#allocation7 + $0x88] sm:$0xff]
        %v630 = vld [vmem:[#allocation7 + $0x90] sm:$0xff]
        %v631 = vld [vmem:[#allocation7 + $0x98] sm:$0xff]
        %v632 = vld [vmem:[#allocation7 + $0xa0] sm:$0xff]
        %v633 = vld [vmem:[#allocation7 + $0xa8] sm:$0xff]
        %v634 = vld [vmem:[#allocation7 + $0xb0] sm:$0xff]
        %v635 = vld [vmem:[#allocation7 + $0xb8] sm:$0xff]
        %v636 = vld [vmem:[#allocation7 + $0xc0] sm:$0xff]
        %v637 = vld [vmem:[#allocation7 + $0xc8] sm:$0xff]
        %v638 = vld [vmem:[#allocation7 + $0xd0] sm:$0xff]
        %v639 = vld [vmem:[#allocation7 + $0xd8] sm:$0xff]
        %v640 = vld [vmem:[#allocation7 + $0xe0] sm:$0xff]
        %v641 = vld [vmem:[#allocation7 + $0xe8] sm:$0xff]
        %v642 = vld [vmem:[#allocation7 + $0xf0] sm:$0xff]
        %v643 = vld [vmem:[#allocation7 + $0xf8] sm:$0xff]
        %v644 = vld [vmem:[#allocation7 + $0x100] sm:$0xff]
        %v645 = vld [vmem:[#allocation7 + $0x108] sm:$0xff]
        %v646 = vld [vmem:[#allocation7 + $0x110] sm:$0xff]
        %v647 = vld [vmem:[#allocation7 + $0x118] sm:$0xff]
        %v648 = vld [vmem:[#allocation7 + $0x120] sm:$0xff]
        %v649 = vld [vmem:[#allocation7 + $0x128] sm:$0xff]
        %v650 = vld [vmem:[#allocation7 + $0x130] sm:$0xff]
        %v651 = vld [vmem:[#allocation7 + $0x138] sm:$0xff]
        %v652 = vld [vmem:[#allocation7 + $0x140] sm:$0xff]
        %v653 = vld [vmem:[#allocation7 + $0x148] sm:$0xff]
        %v654 = vld [vmem:[#allocation7 + $0x150] sm:$0xff]
        %v655 = vld [vmem:[#allocation7 + $0x158] sm:$0xff]
        %v656 = vld [vmem:[#allocation7 + $0x160] sm:$0xff]
        %v657 = vld [vmem:[#allocation7 + $0x168] sm:$0xff]
        %v658 = vld [vmem:[#allocation7 + $0x170] sm:$0xff]
        %v659 = vld [vmem:[#allocation7 + $0x178] sm:$0xff]
        %v660 = vld [vmem:[#allocation7 + $0x180] sm:$0xff]
        %v661 = vld [vmem:[#allocation7 + $0x188] sm:$0xff]
        %v662 = vld [vmem:[#allocation7 + $0x190] sm:$0xff]
        %v663 = vld [vmem:[#allocation7 + $0x198] sm:$0xff]
        %v664 = vld [vmem:[#allocation7 + $0x1a0] sm:$0xff]
        %v665 = vld [vmem:[#allocation7 + $0x1a8] sm:$0xff]
        %v666 = vld [vmem:[#allocation7 + $0x1b0] sm:$0xff]
        %v667 = vld [vmem:[#allocation7 + $0x1b8] sm:$0xff]
        %v668 = vld [vmem:[#allocation7 + $0x1c0] sm:$0xff]
        %v669 = vld [vmem:[#allocation7 + $0x1c8] sm:$0xff]
        %v670 = vld [vmem:[#allocation7 + $0x1d0] sm:$0xff]
        %v671 = vld [vmem:[#allocation7 + $0x1d8] sm:$0xff]
        %v672 = vld [vmem:[#allocation7 + $0x1e0] sm:$0xff]
        %v673 = vld [vmem:[#allocation7 + $0x1e8] sm:$0xff]
        %v674 = vld [vmem:[#allocation7 + $0x1f0] sm:$0xff]
        %v675 = vld [vmem:[#allocation7 + $0x1f8] sm:$0xff]
        %v676 = vld [vmem:[#allocation7 + $0x200] sm:$0xff]
        %v677 = vld [vmem:[#allocation7 + $0x208] sm:$0xff]
        %v678 = vld [vmem:[#allocation7 + $0x210] sm:$0xff]
        %v679 = vld [vmem:[#allocation7 + $0x218] sm:$0xff]
        %v680 = vld [vmem:[#allocation7 + $0x220] sm:$0xff]
        %v681 = vld [vmem:[#allocation7 + $0x228] sm:$0xff]
        %v682 = vld [vmem:[#allocation7 + $0x230] sm:$0xff]
        %v683 = vld [vmem:[#allocation7 + $0x238] sm:$0xff]
        %v684 = vld [vmem:[#allocation8] sm:$0x3f]
        %v686 = vperm.slane %v684, 0
        %v687 = vperm.slane %v684, 1
        %v688 = vperm.slane %v684, 2
        %v689 = vperm.slane %v684, 3
        %v690 = vperm.slane %v684, 4
        %v691 = vperm.slane %v684, 5
        %v770 = vunpack.c.l.b16 %v612
        %v771 = vunpack.c.h.b16 %v612
        %v772 = vunpack.c.l.b16 %v613
        %v773 = vunpack.c.h.b16 %v613
        %v774 = vunpack.c.l.b16 %v614
        %v775 = vunpack.c.h.b16 %v614
        %v776 = vunpack.c.l.b16 %v615
        %v777 = vunpack.c.h.b16 %v615
        %v778 = vunpack.c.l.b16 %v616
        %v779 = vunpack.c.h.b16 %v616
        %v780 = vunpack.c.l.b16 %v617
        %v781 = vunpack.c.h.b16 %v617
        %v782 = vunpack.c.l.b16 %v618
        %v783 = vunpack.c.h.b16 %v618
        %v784 = vunpack.c.l.b16 %v619
        %v785 = vunpack.c.h.b16 %v619
        %v786 = vunpack.c.l.b16 %v620
        %v787 = vunpack.c.h.b16 %v620
        %v788 = vunpack.c.l.b16 %v621
        %v789 = vunpack.c.h.b16 %v621
        %v790 = vunpack.c.l.b16 %v622
        %v791 = vunpack.c.h.b16 %v622
        %v792 = vunpack.c.l.b16 %v623
        %v793 = vunpack.c.h.b16 %v623
        %v794 = vunpack.c.l.b16 %v624
        %v795 = vunpack.c.h.b16 %v624
        %v796 = vunpack.c.l.b16 %v625
        %v797 = vunpack.c.h.b16 %v625
        %v798 = vunpack.c.l.b16 %v626
        %v799 = vunpack.c.h.b16 %v626
        %v800 = vunpack.c.l.b16 %v627
        %v801 = vunpack.c.h.b16 %v627
        %v802 = vunpack.c.l.b16 %v628
        %v803 = vunpack.c.h.b16 %v628
        %v804 = vunpack.c.l.b16 %v629
        %v805 = vunpack.c.h.b16 %v629
        %v806 = vunpack.c.l.b16 %v630
        %v807 = vunpack.c.h.b16 %v630
        %v808 = vunpack.c.l.b16 %v631
        %v809 = vunpack.c.h.b16 %v631
        %v810 = vunpack.c.l.b16 %v632
        %v811 = vunpack.c.h.b16 %v632
        %v812 = vunpack.c.l.b16 %v633
        %v813 = vunpack.c.h.b16 %v633
        %v814 = vunpack.c.l.b16 %v634
        %v815 = vunpack.c.h.b16 %v634
        %v816 = vunpack.c.l.b16 %v635
        %v817 = vunpack.c.h.b16 %v635
        %v818 = vunpack.c.l.b16 %v636
        %v819 = vunpack.c.h.b16 %v636
        %v820 = vunpack.c.l.b16 %v637
        %v821 = vunpack.c.h.b16 %v637
        %v822 = vunpack.c.l.b16 %v638
        %v823 = vunpack.c.h.b16 %v638
        %v824 = vunpack.c.l.b16 %v639
        %v825 = vunpack.c.h.b16 %v639
        %v826 = vunpack.c.l.b16 %v640
        %v827 = vunpack.c.h.b16 %v640
        %v828 = vunpack.c.l.b16 %v641
        %v829 = vunpack.c.h.b16 %v641
        %v830 = vunpack.c.l.b16 %v642
        %v831 = vunpack.c.h.b16 %v642
        %v832 = vunpack.c.l.b16 %v643
        %v833 = vunpack.c.h.b16 %v643
        %v834 = vunpack.c.l.b16 %v644
        %v835 = vunpack.c.h.b16 %v644
        %v836 = vunpack.c.l.b16 %v645
        %v837 = vunpack.c.h.b16 %v645
        %v838 = vunpack.c.l.b16 %v646
        %v839 = vunpack.c.h.b16 %v646
        %v840 = vunpack.c.l.b16 %v647
        %v841 = vunpack.c.h.b16 %v647
        %v842 = vunpack.c.l.b16 %v648
        %v843 = vunpack.c.h.b16 %v648
        %v844 = vunpack.c.l.b16 %v649
        %v845 = vunpack.c.h.b16 %v649
        %v846 = vunpack.c.l.b16 %v650
        %v847 = vunpack.c.h.b16 %v650
        %v848 = vunpack.c.l.b16 %v651
        %v849 = vunpack.c.h.b16 %v651
        %v850 = vunpack.c.l.b16 %v652
        %v851 = vunpack.c.h.b16 %v652
        %v852 = vunpack.c.l.b16 %v653
        %v853 = vunpack.c.h.b16 %v653
        %v854 = vunpack.c.l.b16 %v654
        %v855 = vunpack.c.h.b16 %v654
        %v856 = vunpack.c.l.b16 %v655
        %v857 = vunpack.c.h.b16 %v655
        %v858 = vunpack.c.l.b16 %v656
        %v859 = vunpack.c.h.b16 %v656
        %v860 = vunpack.c.l.b16 %v657
        %v861 = vunpack.c.h.b16 %v657
        %v862 = vunpack.c.l.b16 %v658
        %v863 = vunpack.c.h.b16 %v658
        %v864 = vunpack.c.l.b16 %v659
        %v865 = vunpack.c.h.b16 %v659
        %v866 = vunpack.c.l.b16 %v660
        %v867 = vunpack.c.h.b16 %v660
        %v868 = vunpack.c.l.b16 %v661
        %v869 = vunpack.c.h.b16 %v661
        %v870 = vunpack.c.l.b16 %v662
        %v871 = vunpack.c.h.b16 %v662
        %v872 = vunpack.c.l.b16 %v663
        %v873 = vunpack.c.h.b16 %v663
        %v874 = vunpack.c.l.b16 %v664
        %v875 = vunpack.c.h.b16 %v664
        %v876 = vunpack.c.l.b16 %v665
        %v877 = vunpack.c.h.b16 %v665
        %v878 = vunpack.c.l.b16 %v666
        %v879 = vunpack.c.h.b16 %v666
        %v880 = vunpack.c.l.b16 %v667
        %v881 = vunpack.c.h.b16 %v667
        %v882 = vunpack.c.l.b16 %v668
        %v883 = vunpack.c.h.b16 %v668
        %v884 = vunpack.c.l.b16 %v669
        %v885 = vunpack.c.h.b16 %v669
        %v886 = vunpack.c.l.b16 %v670
        %v887 = vunpack.c.h.b16 %v670
        %v888 = vunpack.c.l.b16 %v671
        %v889 = vunpack.c.h.b16 %v671
        %v890 = vunpack.c.l.b16 %v672
        %v891 = vunpack.c.h.b16 %v672
        %v892 = vunpack.c.l.b16 %v673
        %v893 = vunpack.c.h.b16 %v673
        %v894 = vunpack.c.l.b16 %v674
        %v895 = vunpack.c.h.b16 %v674
        %v896 = vunpack.c.l.b16 %v675
        %v897 = vunpack.c.h.b16 %v675
        %v898 = vunpack.c.l.b16 %v676
        %v899 = vunpack.c.h.b16 %v676
        %v900 = vunpack.c.l.b16 %v677
        %v901 = vunpack.c.h.b16 %v677
        %v902 = vunpack.c.l.b16 %v678
        %v903 = vunpack.c.h.b16 %v678
        %v904 = vunpack.c.l.b16 %v679
        %v905 = vunpack.c.h.b16 %v679
        %v906 = vunpack.c.l.b16 %v680
        %v907 = vunpack.c.h.b16 %v680
        %v908 = vunpack.c.l.b16 %v681
        %v909 = vunpack.c.h.b16 %v681
        %v910 = vunpack.c.l.b16 %v682
        %v911 = vunpack.c.h.b16 %v682
        %v912 = vunpack.c.l.b16 %v683
        %v913 = vunpack.c.h.b16 %v683
        %v914 = vpack.c.b16 %v776, %v770
        %v915 = vpack.c.b16 %v777, %v771
        %v916 = vpack.c.b16 %v778, %v772
        %v917 = vpack.c.b16 %v779, %v773
        %v918 = vpack.c.b16 %v780, %v774
        %v919 = vpack.c.b16 %v781, %v775
        %v920 = vpack.c.b16 %v788, %v782
        %v921 = vpack.c.b16 %v789, %v783
        %v922 = vpack.c.b16 %v790, %v784
        %v923 = vpack.c.b16 %v791, %v785
        %v924 = vpack.c.b16 %v792, %v786
        %v925 = vpack.c.b16 %v793, %v787
        %v926 = vpack.c.b16 %v800, %v794
        %v927 = vpack.c.b16 %v801, %v795
        %v928 = vpack.c.b16 %v802, %v796
        %v929 = vpack.c.b16 %v803, %v797
        %v930 = vpack.c.b16 %v804, %v798
        %v931 = vpack.c.b16 %v805, %v799
        %v932 = vpack.c.b16 %v812, %v806
        %v933 = vpack.c.b16 %v813, %v807
        %v934 = vpack.c.b16 %v814, %v808
        %v935 = vpack.c.b16 %v815, %v809
        %v936 = vpack.c.b16 %v816, %v810
        %v937 = vpack.c.b16 %v817, %v811
        %v938 = vpack.c.b16 %v824, %v818
        %v939 = vpack.c.b16 %v825, %v819
        %v940 = vpack.c.b16 %v826, %v820
        %v941 = vpack.c.b16 %v827, %v821
        %v942 = vpack.c.b16 %v828, %v822
        %v943 = vpack.c.b16 %v829, %v823
        %v944 = vpack.c.b16 %v836, %v830
        %v945 = vpack.c.b16 %v837, %v831
        %v946 = vpack.c.b16 %v838, %v832
        %v947 = vpack.c.b16 %v839, %v833
        %v948 = vpack.c.b16 %v840, %v834
        %v949 = vpack.c.b16 %v841, %v835
        %v950 = vpack.c.b16 %v848, %v842
        %v951 = vpack.c.b16 %v849, %v843
        %v952 = vpack.c.b16 %v850, %v844
        %v953 = vpack.c.b16 %v851, %v845
        %v954 = vpack.c.b16 %v852, %v846
        %v955 = vpack.c.b16 %v853, %v847
        %v956 = vpack.c.b16 %v860, %v854
        %v957 = vpack.c.b16 %v861, %v855
        %v958 = vpack.c.b16 %v862, %v856
        %v959 = vpack.c.b16 %v863, %v857
        %v960 = vpack.c.b16 %v864, %v858
        %v961 = vpack.c.b16 %v865, %v859
        %v962 = vpack.c.b16 %v872, %v866
        %v963 = vpack.c.b16 %v873, %v867
        %v964 = vpack.c.b16 %v874, %v868
        %v965 = vpack.c.b16 %v875, %v869
        %v966 = vpack.c.b16 %v876, %v870
        %v967 = vpack.c.b16 %v877, %v871
        %v968 = vpack.c.b16 %v884, %v878
        %v969 = vpack.c.b16 %v885, %v879
        %v970 = vpack.c.b16 %v886, %v880
        %v971 = vpack.c.b16 %v887, %v881
        %v972 = vpack.c.b16 %v888, %v882
        %v973 = vpack.c.b16 %v889, %v883
        %v974 = vpack.c.b16 %v896, %v890
        %v975 = vpack.c.b16 %v897, %v891
        %v976 = vpack.c.b16 %v898, %v892
        %v977 = vpack.c.b16 %v899, %v893
        %v978 = vpack.c.b16 %v900, %v894
        %v979 = vpack.c.b16 %v901, %v895
        %v980 = vpack.c.b16 %v908, %v902
        %v981 = vpack.c.b16 %v909, %v903
        %v982 = vpack.c.b16 %v910, %v904
        %v983 = vpack.c.b16 %v911, %v905
        %v984 = vpack.c.b16 %v912, %v906
        %v985 = vpack.c.b16 %v913, %v907
        %vm1058 = vcmask 523264
        %v1060 = vsel %vm1058, %v581, 0
        %v1063 = vsel %vm1058, %v583, 0
        %v1066 = vsel %vm1058, %v585, 0
        %v1069 = vsel %vm1058, %v587, 0
        %v1072 = vsel %vm1058, %v589, 0
        %v1075 = vsel %vm1058, %v591, 0
        %v1078 = vsel %vm1058, %v593, 0
        %v1081 = vsel %vm1058, %v595, 0
        %v1084 = vsel %vm1058, %v597, 0
        %v1087 = vsel %vm1058, %v599, 0
        %v1090 = vsel %vm1058, %v601, 0
        %v1093 = vsel %vm1058, %v603, 0
        %v1096 = vsel %vm1058, %v605, 0
        %v1099 = vsel %vm1058, %v607, 0
        %v1102 = vsel %vm1058, %v609, 0
        %v1105 = vsel %vm1058, %v611, 0
        %1107 = vmatpush.bf16.msra.mxu0 %v956
        %1108 = vmatpush.bf16.msra.mxu0 %v950
        %1109 = vmatpush.bf16.msra.mxu0 %v944
        %1110 = vmatpush.bf16.msra.mxu0 %v938
        %1111 = vmatpush.bf16.msra.mxu0 %v932
        %1112 = vmatpush.bf16.msra.mxu0 %v926
        %1113 = vmatpush.bf16.msra.mxu0 %v920
        %1114 = vmatpush.bf16.msra.mxu0 %v914
        %1115 = vmatmul.bf16.gmra.mxu0 %v580
        %v1116 = vpop.f32.mrf.mxu0
        %v1117 = vadd.f32 %v686, %v1116
        %v1118 = vpop.f32.mrf.mxu0
        %v1119 = vadd.f32 %v686, %v1118
        %1120 = vmatmul.bf16.gmra.mxu0 %v582
        %v1121 = vpop.f32.mrf.mxu0
        %v1122 = vadd.f32 %v686, %v1121
        %v1123 = vpop.f32.mrf.mxu0
        %v1124 = vadd.f32 %v686, %v1123
        %1125 = vmatmul.bf16.gmra.mxu0 %v584
        %v1126 = vpop.f32.mrf.mxu0
        %v1127 = vadd.f32 %v686, %v1126
        %v1128 = vpop.f32.mrf.mxu0
        %v1129 = vadd.f32 %v686, %v1128
        %1130 = vmatmul.bf16.gmra.mxu0 %v586
        %v1131 = vpop.f32.mrf.mxu0
        %v1132 = vadd.f32 %v686, %v1131
        %v1133 = vpop.f32.mrf.mxu0
        %v1134 = vadd.f32 %v686, %v1133
        %1135 = vmatmul.bf16.gmra.mxu0 %v588
        %v1136 = vpop.f32.mrf.mxu0
        %v1137 = vadd.f32 %v686, %v1136
        %v1138 = vpop.f32.mrf.mxu0
        %v1139 = vadd.f32 %v686, %v1138
        %1140 = vmatmul.bf16.gmra.mxu0 %v590
        %v1141 = vpop.f32.mrf.mxu0
        %v1142 = vadd.f32 %v686, %v1141
        %v1143 = vpop.f32.mrf.mxu0
        %v1144 = vadd.f32 %v686, %v1143
        %1145 = vmatmul.bf16.gmra.mxu0 %v592
        %v1146 = vpop.f32.mrf.mxu0
        %v1147 = vadd.f32 %v686, %v1146
        %v1148 = vpop.f32.mrf.mxu0
        %v1149 = vadd.f32 %v686, %v1148
        %1150 = vmatmul.bf16.gmra.mxu0 %v594
        %v1151 = vpop.f32.mrf.mxu0
        %v1152 = vadd.f32 %v686, %v1151
        %v1153 = vpop.f32.mrf.mxu0
        %v1154 = vadd.f32 %v686, %v1153
        %1155 = vmatmul.bf16.gmra.mxu0 %v596
        %v1156 = vpop.f32.mrf.mxu0
        %v1157 = vadd.f32 %v686, %v1156
        %v1158 = vpop.f32.mrf.mxu0
        %v1159 = vadd.f32 %v686, %v1158
        %1160 = vmatmul.bf16.gmra.mxu0 %v598
        %v1161 = vpop.f32.mrf.mxu0
        %v1162 = vadd.f32 %v686, %v1161
        %v1163 = vpop.f32.mrf.mxu0
        %v1164 = vadd.f32 %v686, %v1163
        %1165 = vmatmul.bf16.gmra.mxu0 %v600
        %v1166 = vpop.f32.mrf.mxu0
        %v1167 = vadd.f32 %v686, %v1166
        %v1168 = vpop.f32.mrf.mxu0
        %v1169 = vadd.f32 %v686, %v1168
        %1170 = vmatmul.bf16.gmra.mxu0 %v602
        %v1171 = vpop.f32.mrf.mxu0
        %v1172 = vadd.f32 %v686, %v1171
        %v1173 = vpop.f32.mrf.mxu0
        %v1174 = vadd.f32 %v686, %v1173
        %1175 = vmatmul.bf16.gmra.mxu0 %v604
        %v1176 = vpop.f32.mrf.mxu0
        %v1177 = vadd.f32 %v686, %v1176
        %v1178 = vpop.f32.mrf.mxu0
        %v1179 = vadd.f32 %v686, %v1178
        %1180 = vmatmul.bf16.gmra.mxu0 %v606
        %v1181 = vpop.f32.mrf.mxu0
        %v1182 = vadd.f32 %v686, %v1181
        %v1183 = vpop.f32.mrf.mxu0
        %v1184 = vadd.f32 %v686, %v1183
        %1185 = vmatmul.bf16.gmra.mxu0 %v608
        %v1186 = vpop.f32.mrf.mxu0
        %v1187 = vadd.f32 %v686, %v1186
        %v1188 = vpop.f32.mrf.mxu0
        %v1189 = vadd.f32 %v686, %v1188
        %1190 = vmatmul.bf16.gmra.mxu0 %v610
        %v1191 = vpop.f32.mrf.mxu0
        %v1192 = vadd.f32 %v686, %v1191
        %v1193 = vpop.f32.mrf.mxu0
        %v1194 = vadd.f32 %v686, %v1193
        %1195 = vdwg.mxu0
        %1196 = vmatpush.bf16.msra.mxu0 0
        %1197 = vmatpush.bf16.msra.mxu0 0
        %1198 = vmatpush.bf16.msra.mxu0 0
        %1199 = vmatpush.bf16.msra.mxu0 0
        %1200 = vmatpush.bf16.msra.mxu0 %v980
        %1201 = vmatpush.bf16.msra.mxu0 %v974
        %1202 = vmatpush.bf16.msra.mxu0 %v968
        %1203 = vmatpush.bf16.msra.mxu0 %v962
        %1204 = vmatmul.bf16.gmra.mxu0 %v1060
        %v1205 = vpop.f32.mrf.mxu0
        %v1206 = vadd.f32 %v1117, %v1205
        %v1207 = vpop.f32.mrf.mxu0
        %v1208 = vadd.f32 %v1119, %v1207
        %1209 = vmatmul.bf16.gmra.mxu0 %v1063
        %v1210 = vpop.f32.mrf.mxu0
        %v1211 = vadd.f32 %v1122, %v1210
        %v1212 = vpop.f32.mrf.mxu0
        %v1213 = vadd.f32 %v1124, %v1212
        %1214 = vmatmul.bf16.gmra.mxu0 %v1066
        %v1215 = vpop.f32.mrf.mxu0
        %v1216 = vadd.f32 %v1127, %v1215
        %v1217 = vpop.f32.mrf.mxu0
        %v1218 = vadd.f32 %v1129, %v1217
        %1219 = vmatmul.bf16.gmra.mxu0 %v1069
        %v1220 = vpop.f32.mrf.mxu0
        %v1221 = vadd.f32 %v1132, %v1220
        %v1222 = vpop.f32.mrf.mxu0
        %v1223 = vadd.f32 %v1134, %v1222
        %1224 = vmatmul.bf16.gmra.mxu0 %v1072
        %v1225 = vpop.f32.mrf.mxu0
        %v1226 = vadd.f32 %v1137, %v1225
        %v1227 = vpop.f32.mrf.mxu0
        %v1228 = vadd.f32 %v1139, %v1227
        %1229 = vmatmul.bf16.gmra.mxu0 %v1075
        %v1230 = vpop.f32.mrf.mxu0
        %v1231 = vadd.f32 %v1142, %v1230
        %v1232 = vpop.f32.mrf.mxu0
        %v1233 = vadd.f32 %v1144, %v1232
        %1234 = vmatmul.bf16.gmra.mxu0 %v1078
        %v1235 = vpop.f32.mrf.mxu0
        %v1236 = vadd.f32 %v1147, %v1235
        %v1237 = vpop.f32.mrf.mxu0
        %v1238 = vadd.f32 %v1149, %v1237
        %1239 = vmatmul.bf16.gmra.mxu0 %v1081
        %v1240 = vpop.f32.mrf.mxu0
        %v1241 = vadd.f32 %v1152, %v1240
        %v1242 = vpop.f32.mrf.mxu0
        %v1243 = vadd.f32 %v1154, %v1242
        %1244 = vmatmul.bf16.gmra.mxu0 %v1084
        %v1245 = vpop.f32.mrf.mxu0
        %v1246 = vadd.f32 %v1157, %v1245
        %v1247 = vpop.f32.mrf.mxu0
        %v1248 = vadd.f32 %v1159, %v1247
        %1249 = vmatmul.bf16.gmra.mxu0 %v1087
        %v1250 = vpop.f32.mrf.mxu0
        %v1251 = vadd.f32 %v1162, %v1250
        %v1252 = vpop.f32.mrf.mxu0
        %v1253 = vadd.f32 %v1164, %v1252
        %1254 = vmatmul.bf16.gmra.mxu0 %v1090
        %v1255 = vpop.f32.mrf.mxu0
        %v1256 = vadd.f32 %v1167, %v1255
        %v1257 = vpop.f32.mrf.mxu0
        %v1258 = vadd.f32 %v1169, %v1257
        %1259 = vmatmul.bf16.gmra.mxu0 %v1093
        %v1260 = vpop.f32.mrf.mxu0
        %v1261 = vadd.f32 %v1172, %v1260
        %v1262 = vpop.f32.mrf.mxu0
        %v1263 = vadd.f32 %v1174, %v1262
        %1264 = vmatmul.bf16.gmra.mxu0 %v1096
        %v1265 = vpop.f32.mrf.mxu0
        %v1266 = vadd.f32 %v1177, %v1265
        %v1267 = vpop.f32.mrf.mxu0
        %v1268 = vadd.f32 %v1179, %v1267
        %1269 = vmatmul.bf16.gmra.mxu0 %v1099
        %v1270 = vpop.f32.mrf.mxu0
        %v1271 = vadd.f32 %v1182, %v1270
        %v1272 = vpop.f32.mrf.mxu0
        %v1273 = vadd.f32 %v1184, %v1272
        %1274 = vmatmul.bf16.gmra.mxu0 %v1102
        %v1275 = vpop.f32.mrf.mxu0
        %v1276 = vadd.f32 %v1187, %v1275
        %v1277 = vpop.f32.mrf.mxu0
        %v1278 = vadd.f32 %v1189, %v1277
        %1279 = vmatmul.bf16.gmra.mxu0 %v1105
        %v1280 = vpop.f32.mrf.mxu0
        %v1281 = vadd.f32 %v1192, %v1280
        %v1282 = vpop.f32.mrf.mxu0
        %v1283 = vadd.f32 %v1194, %v1282
        %1284 = vdwg.mxu0
        %1285 = vmatpush.bf16.msra.mxu0 %v957
        %1286 = vmatpush.bf16.msra.mxu0 %v951
        %1287 = vmatpush.bf16.msra.mxu0 %v945
        %1288 = vmatpush.bf16.msra.mxu0 %v939
        %1289 = vmatpush.bf16.msra.mxu0 %v933
        %1290 = vmatpush.bf16.msra.mxu0 %v927
        %1291 = vmatpush.bf16.msra.mxu0 %v921
        %1292 = vmatpush.bf16.msra.mxu0 %v915
        %1293 = vmatmul.bf16.gmra.mxu0 %v580
        %v1294 = vpop.f32.mrf.mxu0
        %v1295 = vadd.f32 %v687, %v1294
        %v1296 = vpop.f32.mrf.mxu0
        %v1297 = vadd.f32 %v687, %v1296
        %1298 = vmatmul.bf16.gmra.mxu0 %v582
        %v1299 = vpop.f32.mrf.mxu0
        %v1300 = vadd.f32 %v687, %v1299
        %v1301 = vpop.f32.mrf.mxu0
        %v1302 = vadd.f32 %v687, %v1301
        %1303 = vmatmul.bf16.gmra.mxu0 %v584
        %v1304 = vpop.f32.mrf.mxu0
        %v1305 = vadd.f32 %v687, %v1304
        %v1306 = vpop.f32.mrf.mxu0
        %v1307 = vadd.f32 %v687, %v1306
        %1308 = vmatmul.bf16.gmra.mxu0 %v586
        %v1309 = vpop.f32.mrf.mxu0
        %v1310 = vadd.f32 %v687, %v1309
        %v1311 = vpop.f32.mrf.mxu0
        %v1312 = vadd.f32 %v687, %v1311
        %1313 = vmatmul.bf16.gmra.mxu0 %v588
        %v1314 = vpop.f32.mrf.mxu0
        %v1315 = vadd.f32 %v687, %v1314
        %v1316 = vpop.f32.mrf.mxu0
        %v1317 = vadd.f32 %v687, %v1316
        %1318 = vmatmul.bf16.gmra.mxu0 %v590
        %v1319 = vpop.f32.mrf.mxu0
        %v1320 = vadd.f32 %v687, %v1319
        %v1321 = vpop.f32.mrf.mxu0
        %v1322 = vadd.f32 %v687, %v1321
        %1323 = vmatmul.bf16.gmra.mxu0 %v592
        %v1324 = vpop.f32.mrf.mxu0
        %v1325 = vadd.f32 %v687, %v1324
        %v1326 = vpop.f32.mrf.mxu0
        %v1327 = vadd.f32 %v687, %v1326
        %1328 = vmatmul.bf16.gmra.mxu0 %v594
        %v1329 = vpop.f32.mrf.mxu0
        %v1330 = vadd.f32 %v687, %v1329
        %v1331 = vpop.f32.mrf.mxu0
        %v1332 = vadd.f32 %v687, %v1331
        %1333 = vmatmul.bf16.gmra.mxu0 %v596
        %v1334 = vpop.f32.mrf.mxu0
        %v1335 = vadd.f32 %v687, %v1334
        %v1336 = vpop.f32.mrf.mxu0
        %v1337 = vadd.f32 %v687, %v1336
        %1338 = vmatmul.bf16.gmra.mxu0 %v598
        %v1339 = vpop.f32.mrf.mxu0
        %v1340 = vadd.f32 %v687, %v1339
        %v1341 = vpop.f32.mrf.mxu0
        %v1342 = vadd.f32 %v687, %v1341
        %1343 = vmatmul.bf16.gmra.mxu0 %v600
        %v1344 = vpop.f32.mrf.mxu0
        %v1345 = vadd.f32 %v687, %v1344
        %v1346 = vpop.f32.mrf.mxu0
        %v1347 = vadd.f32 %v687, %v1346
        %1348 = vmatmul.bf16.gmra.mxu0 %v602
        %v1349 = vpop.f32.mrf.mxu0
        %v1350 = vadd.f32 %v687, %v1349
        %v1351 = vpop.f32.mrf.mxu0
        %v1352 = vadd.f32 %v687, %v1351
        %1353 = vmatmul.bf16.gmra.mxu0 %v604
        %v1354 = vpop.f32.mrf.mxu0
        %v1355 = vadd.f32 %v687, %v1354
        %v1356 = vpop.f32.mrf.mxu0
        %v1357 = vadd.f32 %v687, %v1356
        %1358 = vmatmul.bf16.gmra.mxu0 %v606
        %v1359 = vpop.f32.mrf.mxu0
        %v1360 = vadd.f32 %v687, %v1359
        %v1361 = vpop.f32.mrf.mxu0
        %v1362 = vadd.f32 %v687, %v1361
        %1363 = vmatmul.bf16.gmra.mxu0 %v608
        %v1364 = vpop.f32.mrf.mxu0
        %v1365 = vadd.f32 %v687, %v1364
        %v1366 = vpop.f32.mrf.mxu0
        %v1367 = vadd.f32 %v687, %v1366
        %1368 = vmatmul.bf16.gmra.mxu0 %v610
        %v1369 = vpop.f32.mrf.mxu0
        %v1370 = vadd.f32 %v687, %v1369
        %v1371 = vpop.f32.mrf.mxu0
        %v1372 = vadd.f32 %v687, %v1371
        %1373 = vdwg.mxu0
        %1374 = vmatpush.bf16.msra.mxu0 0
        %1375 = vmatpush.bf16.msra.mxu0 0
        %1376 = vmatpush.bf16.msra.mxu0 0
        %1377 = vmatpush.bf16.msra.mxu0 0
        %1378 = vmatpush.bf16.msra.mxu0 %v981
        %1379 = vmatpush.bf16.msra.mxu0 %v975
        %1380 = vmatpush.bf16.msra.mxu0 %v969
        %1381 = vmatpush.bf16.msra.mxu0 %v963
        %1382 = vmatmul.bf16.gmra.mxu0 %v1060
        %v1383 = vpop.f32.mrf.mxu0
        %v1384 = vadd.f32 %v1295, %v1383
        %v1385 = vpop.f32.mrf.mxu0
        %v1386 = vadd.f32 %v1297, %v1385
        %1387 = vmatmul.bf16.gmra.mxu0 %v1063
        %v1388 = vpop.f32.mrf.mxu0
        %v1389 = vadd.f32 %v1300, %v1388
        %v1390 = vpop.f32.mrf.mxu0
        %v1391 = vadd.f32 %v1302, %v1390
        %1392 = vmatmul.bf16.gmra.mxu0 %v1066
        %v1393 = vpop.f32.mrf.mxu0
        %v1394 = vadd.f32 %v1305, %v1393
        %v1395 = vpop.f32.mrf.mxu0
        %v1396 = vadd.f32 %v1307, %v1395
        %1397 = vmatmul.bf16.gmra.mxu0 %v1069
        %v1398 = vpop.f32.mrf.mxu0
        %v1399 = vadd.f32 %v1310, %v1398
        %v1400 = vpop.f32.mrf.mxu0
        %v1401 = vadd.f32 %v1312, %v1400
        %1402 = vmatmul.bf16.gmra.mxu0 %v1072
        %v1403 = vpop.f32.mrf.mxu0
        %v1404 = vadd.f32 %v1315, %v1403
        %v1405 = vpop.f32.mrf.mxu0
        %v1406 = vadd.f32 %v1317, %v1405
        %1407 = vmatmul.bf16.gmra.mxu0 %v1075
        %v1408 = vpop.f32.mrf.mxu0
        %v1409 = vadd.f32 %v1320, %v1408
        %v1410 = vpop.f32.mrf.mxu0
        %v1411 = vadd.f32 %v1322, %v1410
        %1412 = vmatmul.bf16.gmra.mxu0 %v1078
        %v1413 = vpop.f32.mrf.mxu0
        %v1414 = vadd.f32 %v1325, %v1413
        %v1415 = vpop.f32.mrf.mxu0
        %v1416 = vadd.f32 %v1327, %v1415
        %1417 = vmatmul.bf16.gmra.mxu0 %v1081
        %v1418 = vpop.f32.mrf.mxu0
        %v1419 = vadd.f32 %v1330, %v1418
        %v1420 = vpop.f32.mrf.mxu0
        %v1421 = vadd.f32 %v1332, %v1420
        %1422 = vmatmul.bf16.gmra.mxu0 %v1084
        %v1423 = vpop.f32.mrf.mxu0
        %v1424 = vadd.f32 %v1335, %v1423
        %v1425 = vpop.f32.mrf.mxu0
        %v1426 = vadd.f32 %v1337, %v1425
        %1427 = vmatmul.bf16.gmra.mxu0 %v1087
        %v1428 = vpop.f32.mrf.mxu0
        %v1429 = vadd.f32 %v1340, %v1428
        %v1430 = vpop.f32.mrf.mxu0
        %v1431 = vadd.f32 %v1342, %v1430
        %1432 = vmatmul.bf16.gmra.mxu0 %v1090
        %v1433 = vpop.f32.mrf.mxu0
        %v1434 = vadd.f32 %v1345, %v1433
        %v1435 = vpop.f32.mrf.mxu0
        %v1436 = vadd.f32 %v1347, %v1435
        %1437 = vmatmul.bf16.gmra.mxu0 %v1093
        %v1438 = vpop.f32.mrf.mxu0
        %v1439 = vadd.f32 %v1350, %v1438
        %v1440 = vpop.f32.mrf.mxu0
        %v1441 = vadd.f32 %v1352, %v1440
        %1442 = vmatmul.bf16.gmra.mxu0 %v1096
        %v1443 = vpop.f32.mrf.mxu0
        %v1444 = vadd.f32 %v1355, %v1443
        %v1445 = vpop.f32.mrf.mxu0
        %v1446 = vadd.f32 %v1357, %v1445
        %1447 = vmatmul.bf16.gmra.mxu0 %v1099
        %v1448 = vpop.f32.mrf.mxu0
        %v1449 = vadd.f32 %v1360, %v1448
        %v1450 = vpop.f32.mrf.mxu0
        %v1451 = vadd.f32 %v1362, %v1450
        %1452 = vmatmul.bf16.gmra.mxu0 %v1102
        %v1453 = vpop.f32.mrf.mxu0
        %v1454 = vadd.f32 %v1365, %v1453
        %v1455 = vpop.f32.mrf.mxu0
        %v1456 = vadd.f32 %v1367, %v1455
        %1457 = vmatmul.bf16.gmra.mxu0 %v1105
        %v1458 = vpop.f32.mrf.mxu0
        %v1459 = vadd.f32 %v1370, %v1458
        %v1460 = vpop.f32.mrf.mxu0
        %v1461 = vadd.f32 %v1372, %v1460
        %1462 = vdwg.mxu0
        %1463 = vmatpush.bf16.msra.mxu0 %v958
        %1464 = vmatpush.bf16.msra.mxu0 %v952
        %1465 = vmatpush.bf16.msra.mxu0 %v946
        %1466 = vmatpush.bf16.msra.mxu0 %v940
        %1467 = vmatpush.bf16.msra.mxu0 %v934
        %1468 = vmatpush.bf16.msra.mxu0 %v928
        %1469 = vmatpush.bf16.msra.mxu0 %v922
        %1470 = vmatpush.bf16.msra.mxu0 %v916
        %1471 = vmatmul.bf16.gmra.mxu0 %v580
        %v1472 = vpop.f32.mrf.mxu0
        %v1473 = vadd.f32 %v688, %v1472
        %v1474 = vpop.f32.mrf.mxu0
        %v1475 = vadd.f32 %v688, %v1474
        %1476 = vmatmul.bf16.gmra.mxu0 %v582
        %v1477 = vpop.f32.mrf.mxu0
        %v1478 = vadd.f32 %v688, %v1477
        %v1479 = vpop.f32.mrf.mxu0
        %v1480 = vadd.f32 %v688, %v1479
        %1481 = vmatmul.bf16.gmra.mxu0 %v584
        %v1482 = vpop.f32.mrf.mxu0
        %v1483 = vadd.f32 %v688, %v1482
        %v1484 = vpop.f32.mrf.mxu0
        %v1485 = vadd.f32 %v688, %v1484
        %1486 = vmatmul.bf16.gmra.mxu0 %v586
        %v1487 = vpop.f32.mrf.mxu0
        %v1488 = vadd.f32 %v688, %v1487
        %v1489 = vpop.f32.mrf.mxu0
        %v1490 = vadd.f32 %v688, %v1489
        %1491 = vmatmul.bf16.gmra.mxu0 %v588
        %v1492 = vpop.f32.mrf.mxu0
        %v1493 = vadd.f32 %v688, %v1492
        %v1494 = vpop.f32.mrf.mxu0
        %v1495 = vadd.f32 %v688, %v1494
        %1496 = vmatmul.bf16.gmra.mxu0 %v590
        %v1497 = vpop.f32.mrf.mxu0
        %v1498 = vadd.f32 %v688, %v1497
        %v1499 = vpop.f32.mrf.mxu0
        %v1500 = vadd.f32 %v688, %v1499
        %1501 = vmatmul.bf16.gmra.mxu0 %v592
        %v1502 = vpop.f32.mrf.mxu0
        %v1503 = vadd.f32 %v688, %v1502
        %v1504 = vpop.f32.mrf.mxu0
        %v1505 = vadd.f32 %v688, %v1504
        %1506 = vmatmul.bf16.gmra.mxu0 %v594
        %v1507 = vpop.f32.mrf.mxu0
        %v1508 = vadd.f32 %v688, %v1507
        %v1509 = vpop.f32.mrf.mxu0
        %v1510 = vadd.f32 %v688, %v1509
        %1511 = vmatmul.bf16.gmra.mxu0 %v596
        %v1512 = vpop.f32.mrf.mxu0
        %v1513 = vadd.f32 %v688, %v1512
        %v1514 = vpop.f32.mrf.mxu0
        %v1515 = vadd.f32 %v688, %v1514
        %1516 = vmatmul.bf16.gmra.mxu0 %v598
        %v1517 = vpop.f32.mrf.mxu0
        %v1518 = vadd.f32 %v688, %v1517
        %v1519 = vpop.f32.mrf.mxu0
        %v1520 = vadd.f32 %v688, %v1519
        %1521 = vmatmul.bf16.gmra.mxu0 %v600
        %v1522 = vpop.f32.mrf.mxu0
        %v1523 = vadd.f32 %v688, %v1522
        %v1524 = vpop.f32.mrf.mxu0
        %v1525 = vadd.f32 %v688, %v1524
        %1526 = vmatmul.bf16.gmra.mxu0 %v602
        %v1527 = vpop.f32.mrf.mxu0
        %v1528 = vadd.f32 %v688, %v1527
        %v1529 = vpop.f32.mrf.mxu0
        %v1530 = vadd.f32 %v688, %v1529
        %1531 = vmatmul.bf16.gmra.mxu0 %v604
        %v1532 = vpop.f32.mrf.mxu0
        %v1533 = vadd.f32 %v688, %v1532
        %v1534 = vpop.f32.mrf.mxu0
        %v1535 = vadd.f32 %v688, %v1534
        %1536 = vmatmul.bf16.gmra.mxu0 %v606
        %v1537 = vpop.f32.mrf.mxu0
        %v1538 = vadd.f32 %v688, %v1537
        %v1539 = vpop.f32.mrf.mxu0
        %v1540 = vadd.f32 %v688, %v1539
        %1541 = vmatmul.bf16.gmra.mxu0 %v608
        %v1542 = vpop.f32.mrf.mxu0
        %v1543 = vadd.f32 %v688, %v1542
        %v1544 = vpop.f32.mrf.mxu0
        %v1545 = vadd.f32 %v688, %v1544
        %1546 = vmatmul.bf16.gmra.mxu0 %v610
        %v1547 = vpop.f32.mrf.mxu0
        %v1548 = vadd.f32 %v688, %v1547
        %v1549 = vpop.f32.mrf.mxu0
        %v1550 = vadd.f32 %v688, %v1549
        %1551 = vdwg.mxu0
        %1552 = vmatpush.bf16.msra.mxu0 0
        %1553 = vmatpush.bf16.msra.mxu0 0
        %1554 = vmatpush.bf16.msra.mxu0 0
        %1555 = vmatpush.bf16.msra.mxu0 0
        %1556 = vmatpush.bf16.msra.mxu0 %v982
        %1557 = vmatpush.bf16.msra.mxu0 %v976
        %1558 = vmatpush.bf16.msra.mxu0 %v970
        %1559 = vmatpush.bf16.msra.mxu0 %v964
        %1560 = vmatmul.bf16.gmra.mxu0 %v1060
        %v1561 = vpop.f32.mrf.mxu0
        %v1562 = vadd.f32 %v1473, %v1561
        %v1563 = vpop.f32.mrf.mxu0
        %v1564 = vadd.f32 %v1475, %v1563
        %1565 = vmatmul.bf16.gmra.mxu0 %v1063
        %v1566 = vpop.f32.mrf.mxu0
        %v1567 = vadd.f32 %v1478, %v1566
        %v1568 = vpop.f32.mrf.mxu0
        %v1569 = vadd.f32 %v1480, %v1568
        %1570 = vmatmul.bf16.gmra.mxu0 %v1066
        %v1571 = vpop.f32.mrf.mxu0
        %v1572 = vadd.f32 %v1483, %v1571
        %v1573 = vpop.f32.mrf.mxu0
        %v1574 = vadd.f32 %v1485, %v1573
        %1575 = vmatmul.bf16.gmra.mxu0 %v1069
        %v1576 = vpop.f32.mrf.mxu0
        %v1577 = vadd.f32 %v1488, %v1576
        %v1578 = vpop.f32.mrf.mxu0
        %v1579 = vadd.f32 %v1490, %v1578
        %1580 = vmatmul.bf16.gmra.mxu0 %v1072
        %v1581 = vpop.f32.mrf.mxu0
        %v1582 = vadd.f32 %v1493, %v1581
        %v1583 = vpop.f32.mrf.mxu0
        %v1584 = vadd.f32 %v1495, %v1583
        %1585 = vmatmul.bf16.gmra.mxu0 %v1075
        %v1586 = vpop.f32.mrf.mxu0
        %v1587 = vadd.f32 %v1498, %v1586
        %v1588 = vpop.f32.mrf.mxu0
        %v1589 = vadd.f32 %v1500, %v1588
        %1590 = vmatmul.bf16.gmra.mxu0 %v1078
        %v1591 = vpop.f32.mrf.mxu0
        %v1592 = vadd.f32 %v1503, %v1591
        %v1593 = vpop.f32.mrf.mxu0
        %v1594 = vadd.f32 %v1505, %v1593
        %1595 = vmatmul.bf16.gmra.mxu0 %v1081
        %v1596 = vpop.f32.mrf.mxu0
        %v1597 = vadd.f32 %v1508, %v1596
        %v1598 = vpop.f32.mrf.mxu0
        %v1599 = vadd.f32 %v1510, %v1598
        %1600 = vmatmul.bf16.gmra.mxu0 %v1084
        %v1601 = vpop.f32.mrf.mxu0
        %v1602 = vadd.f32 %v1513, %v1601
        %v1603 = vpop.f32.mrf.mxu0
        %v1604 = vadd.f32 %v1515, %v1603
        %1605 = vmatmul.bf16.gmra.mxu0 %v1087
        %v1606 = vpop.f32.mrf.mxu0
        %v1607 = vadd.f32 %v1518, %v1606
        %v1608 = vpop.f32.mrf.mxu0
        %v1609 = vadd.f32 %v1520, %v1608
        %1610 = vmatmul.bf16.gmra.mxu0 %v1090
        %v1611 = vpop.f32.mrf.mxu0
        %v1612 = vadd.f32 %v1523, %v1611
        %v1613 = vpop.f32.mrf.mxu0
        %v1614 = vadd.f32 %v1525, %v1613
        %1615 = vmatmul.bf16.gmra.mxu0 %v1093
        %v1616 = vpop.f32.mrf.mxu0
        %v1617 = vadd.f32 %v1528, %v1616
        %v1618 = vpop.f32.mrf.mxu0
        %v1619 = vadd.f32 %v1530, %v1618
        %1620 = vmatmul.bf16.gmra.mxu0 %v1096
        %v1621 = vpop.f32.mrf.mxu0
        %v1622 = vadd.f32 %v1533, %v1621
        %v1623 = vpop.f32.mrf.mxu0
        %v1624 = vadd.f32 %v1535, %v1623
        %1625 = vmatmul.bf16.gmra.mxu0 %v1099
        %v1626 = vpop.f32.mrf.mxu0
        %v1627 = vadd.f32 %v1538, %v1626
        %v1628 = vpop.f32.mrf.mxu0
        %v1629 = vadd.f32 %v1540, %v1628
        %1630 = vmatmul.bf16.gmra.mxu0 %v1102
        %v1631 = vpop.f32.mrf.mxu0
        %v1632 = vadd.f32 %v1543, %v1631
        %v1633 = vpop.f32.mrf.mxu0
        %v1634 = vadd.f32 %v1545, %v1633
        %1635 = vmatmul.bf16.gmra.mxu0 %v1105
        %v1636 = vpop.f32.mrf.mxu0
        %v1637 = vadd.f32 %v1548, %v1636
        %v1638 = vpop.f32.mrf.mxu0
        %v1639 = vadd.f32 %v1550, %v1638
        %1640 = vdwg.mxu0
        %1641 = vmatpush.bf16.msra.mxu0 %v959
        %1642 = vmatpush.bf16.msra.mxu0 %v953
        %1643 = vmatpush.bf16.msra.mxu0 %v947
        %1644 = vmatpush.bf16.msra.mxu0 %v941
        %1645 = vmatpush.bf16.msra.mxu0 %v935
        %1646 = vmatpush.bf16.msra.mxu0 %v929
        %1647 = vmatpush.bf16.msra.mxu0 %v923
        %1648 = vmatpush.bf16.msra.mxu0 %v917
        %1649 = vmatmul.bf16.gmra.mxu0 %v580
        %v1650 = vpop.f32.mrf.mxu0
        %v1651 = vadd.f32 %v689, %v1650
        %v1652 = vpop.f32.mrf.mxu0
        %v1653 = vadd.f32 %v689, %v1652
        %1654 = vmatmul.bf16.gmra.mxu0 %v582
        %v1655 = vpop.f32.mrf.mxu0
        %v1656 = vadd.f32 %v689, %v1655
        %v1657 = vpop.f32.mrf.mxu0
        %v1658 = vadd.f32 %v689, %v1657
        %1659 = vmatmul.bf16.gmra.mxu0 %v584
        %v1660 = vpop.f32.mrf.mxu0
        %v1661 = vadd.f32 %v689, %v1660
        %v1662 = vpop.f32.mrf.mxu0
        %v1663 = vadd.f32 %v689, %v1662
        %1664 = vmatmul.bf16.gmra.mxu0 %v586
        %v1665 = vpop.f32.mrf.mxu0
        %v1666 = vadd.f32 %v689, %v1665
        %v1667 = vpop.f32.mrf.mxu0
        %v1668 = vadd.f32 %v689, %v1667
        %1669 = vmatmul.bf16.gmra.mxu0 %v588
        %v1670 = vpop.f32.mrf.mxu0
        %v1671 = vadd.f32 %v689, %v1670
        %v1672 = vpop.f32.mrf.mxu0
        %v1673 = vadd.f32 %v689, %v1672
        %1674 = vmatmul.bf16.gmra.mxu0 %v590
        %v1675 = vpop.f32.mrf.mxu0
        %v1676 = vadd.f32 %v689, %v1675
        %v1677 = vpop.f32.mrf.mxu0
        %v1678 = vadd.f32 %v689, %v1677
        %1679 = vmatmul.bf16.gmra.mxu0 %v592
        %v1680 = vpop.f32.mrf.mxu0
        %v1681 = vadd.f32 %v689, %v1680
        %v1682 = vpop.f32.mrf.mxu0
        %v1683 = vadd.f32 %v689, %v1682
        %1684 = vmatmul.bf16.gmra.mxu0 %v594
        %v1685 = vpop.f32.mrf.mxu0
        %v1686 = vadd.f32 %v689, %v1685
        %v1687 = vpop.f32.mrf.mxu0
        %v1688 = vadd.f32 %v689, %v1687
        %1689 = vmatmul.bf16.gmra.mxu0 %v596
        %v1690 = vpop.f32.mrf.mxu0
        %v1691 = vadd.f32 %v689, %v1690
        %v1692 = vpop.f32.mrf.mxu0
        %v1693 = vadd.f32 %v689, %v1692
        %1694 = vmatmul.bf16.gmra.mxu0 %v598
        %v1695 = vpop.f32.mrf.mxu0
        %v1696 = vadd.f32 %v689, %v1695
        %v1697 = vpop.f32.mrf.mxu0
        %v1698 = vadd.f32 %v689, %v1697
        %1699 = vmatmul.bf16.gmra.mxu0 %v600
        %v1700 = vpop.f32.mrf.mxu0
        %v1701 = vadd.f32 %v689, %v1700
        %v1702 = vpop.f32.mrf.mxu0
        %v1703 = vadd.f32 %v689, %v1702
        %1704 = vmatmul.bf16.gmra.mxu0 %v602
        %v1705 = vpop.f32.mrf.mxu0
        %v1706 = vadd.f32 %v689, %v1705
        %v1707 = vpop.f32.mrf.mxu0
        %v1708 = vadd.f32 %v689, %v1707
        %1709 = vmatmul.bf16.gmra.mxu0 %v604
        %v1710 = vpop.f32.mrf.mxu0
        %v1711 = vadd.f32 %v689, %v1710
        %v1712 = vpop.f32.mrf.mxu0
        %v1713 = vadd.f32 %v689, %v1712
        %1714 = vmatmul.bf16.gmra.mxu0 %v606
        %v1715 = vpop.f32.mrf.mxu0
        %v1716 = vadd.f32 %v689, %v1715
        %v1717 = vpop.f32.mrf.mxu0
        %v1718 = vadd.f32 %v689, %v1717
        %1719 = vmatmul.bf16.gmra.mxu0 %v608
        %v1720 = vpop.f32.mrf.mxu0
        %v1721 = vadd.f32 %v689, %v1720
        %v1722 = vpop.f32.mrf.mxu0
        %v1723 = vadd.f32 %v689, %v1722
        %1724 = vmatmul.bf16.gmra.mxu0 %v610
        %v1725 = vpop.f32.mrf.mxu0
        %v1726 = vadd.f32 %v689, %v1725
        %v1727 = vpop.f32.mrf.mxu0
        %v1728 = vadd.f32 %v689, %v1727
        %1729 = vdwg.mxu0
        %1730 = vmatpush.bf16.msra.mxu0 0
        %1731 = vmatpush.bf16.msra.mxu0 0
        %1732 = vmatpush.bf16.msra.mxu0 0
        %1733 = vmatpush.bf16.msra.mxu0 0
        %1734 = vmatpush.bf16.msra.mxu0 %v983
        %1735 = vmatpush.bf16.msra.mxu0 %v977
        %1736 = vmatpush.bf16.msra.mxu0 %v971
        %1737 = vmatpush.bf16.msra.mxu0 %v965
        %1738 = vmatmul.bf16.gmra.mxu0 %v1060
        %v1739 = vpop.f32.mrf.mxu0
        %v1740 = vadd.f32 %v1651, %v1739
        %v1741 = vpop.f32.mrf.mxu0
        %v1742 = vadd.f32 %v1653, %v1741
        %1743 = vmatmul.bf16.gmra.mxu0 %v1063
        %v1744 = vpop.f32.mrf.mxu0
        %v1745 = vadd.f32 %v1656, %v1744
        %v1746 = vpop.f32.mrf.mxu0
        %v1747 = vadd.f32 %v1658, %v1746
        %1748 = vmatmul.bf16.gmra.mxu0 %v1066
        %v1749 = vpop.f32.mrf.mxu0
        %v1750 = vadd.f32 %v1661, %v1749
        %v1751 = vpop.f32.mrf.mxu0
        %v1752 = vadd.f32 %v1663, %v1751
        %1753 = vmatmul.bf16.gmra.mxu0 %v1069
        %v1754 = vpop.f32.mrf.mxu0
        %v1755 = vadd.f32 %v1666, %v1754
        %v1756 = vpop.f32.mrf.mxu0
        %v1757 = vadd.f32 %v1668, %v1756
        %1758 = vmatmul.bf16.gmra.mxu0 %v1072
        %v1759 = vpop.f32.mrf.mxu0
        %v1760 = vadd.f32 %v1671, %v1759
        %v1761 = vpop.f32.mrf.mxu0
        %v1762 = vadd.f32 %v1673, %v1761
        %1763 = vmatmul.bf16.gmra.mxu0 %v1075
        %v1764 = vpop.f32.mrf.mxu0
        %v1765 = vadd.f32 %v1676, %v1764
        %v1766 = vpop.f32.mrf.mxu0
        %v1767 = vadd.f32 %v1678, %v1766
        %1768 = vmatmul.bf16.gmra.mxu0 %v1078
        %v1769 = vpop.f32.mrf.mxu0
        %v1770 = vadd.f32 %v1681, %v1769
        %v1771 = vpop.f32.mrf.mxu0
        %v1772 = vadd.f32 %v1683, %v1771
        %1773 = vmatmul.bf16.gmra.mxu0 %v1081
        %v1774 = vpop.f32.mrf.mxu0
        %v1775 = vadd.f32 %v1686, %v1774
        %v1776 = vpop.f32.mrf.mxu0
        %v1777 = vadd.f32 %v1688, %v1776
        %1778 = vmatmul.bf16.gmra.mxu0 %v1084
        %v1779 = vpop.f32.mrf.mxu0
        %v1780 = vadd.f32 %v1691, %v1779
        %v1781 = vpop.f32.mrf.mxu0
        %v1782 = vadd.f32 %v1693, %v1781
        %1783 = vmatmul.bf16.gmra.mxu0 %v1087
        %v1784 = vpop.f32.mrf.mxu0
        %v1785 = vadd.f32 %v1696, %v1784
        %v1786 = vpop.f32.mrf.mxu0
        %v1787 = vadd.f32 %v1698, %v1786
        %1788 = vmatmul.bf16.gmra.mxu0 %v1090
        %v1789 = vpop.f32.mrf.mxu0
        %v1790 = vadd.f32 %v1701, %v1789
        %v1791 = vpop.f32.mrf.mxu0
        %v1792 = vadd.f32 %v1703, %v1791
        %1793 = vmatmul.bf16.gmra.mxu0 %v1093
        %v1794 = vpop.f32.mrf.mxu0
        %v1795 = vadd.f32 %v1706, %v1794
        %v1796 = vpop.f32.mrf.mxu0
        %v1797 = vadd.f32 %v1708, %v1796
        %1798 = vmatmul.bf16.gmra.mxu0 %v1096
        %v1799 = vpop.f32.mrf.mxu0
        %v1800 = vadd.f32 %v1711, %v1799
        %v1801 = vpop.f32.mrf.mxu0
        %v1802 = vadd.f32 %v1713, %v1801
        %1803 = vmatmul.bf16.gmra.mxu0 %v1099
        %v1804 = vpop.f32.mrf.mxu0
        %v1805 = vadd.f32 %v1716, %v1804
        %v1806 = vpop.f32.mrf.mxu0
        %v1807 = vadd.f32 %v1718, %v1806
        %1808 = vmatmul.bf16.gmra.mxu0 %v1102
        %v1809 = vpop.f32.mrf.mxu0
        %v1810 = vadd.f32 %v1721, %v1809
        %v1811 = vpop.f32.mrf.mxu0
        %v1812 = vadd.f32 %v1723, %v1811
        %1813 = vmatmul.bf16.gmra.mxu0 %v1105
        %v1814 = vpop.f32.mrf.mxu0
        %v1815 = vadd.f32 %v1726, %v1814
        %v1816 = vpop.f32.mrf.mxu0
        %v1817 = vadd.f32 %v1728, %v1816
        %1818 = vdwg.mxu0
        %1819 = vmatpush.bf16.msra.mxu0 %v960
        %1820 = vmatpush.bf16.msra.mxu0 %v954
        %1821 = vmatpush.bf16.msra.mxu0 %v948
        %1822 = vmatpush.bf16.msra.mxu0 %v942
        %1823 = vmatpush.bf16.msra.mxu0 %v936
        %1824 = vmatpush.bf16.msra.mxu0 %v930
        %1825 = vmatpush.bf16.msra.mxu0 %v924
        %1826 = vmatpush.bf16.msra.mxu0 %v918
        %1827 = vmatmul.bf16.gmra.mxu0 %v580
        %v1828 = vpop.f32.mrf.mxu0
        %v1829 = vadd.f32 %v690, %v1828
        %v1830 = vpop.f32.mrf.mxu0
        %v1831 = vadd.f32 %v690, %v1830
        %1832 = vmatmul.bf16.gmra.mxu0 %v582
        %v1833 = vpop.f32.mrf.mxu0
        %v1834 = vadd.f32 %v690, %v1833
        %v1835 = vpop.f32.mrf.mxu0
        %v1836 = vadd.f32 %v690, %v1835
        %1837 = vmatmul.bf16.gmra.mxu0 %v584
        %v1838 = vpop.f32.mrf.mxu0
        %v1839 = vadd.f32 %v690, %v1838
        %v1840 = vpop.f32.mrf.mxu0
        %v1841 = vadd.f32 %v690, %v1840
        %1842 = vmatmul.bf16.gmra.mxu0 %v586
        %v1843 = vpop.f32.mrf.mxu0
        %v1844 = vadd.f32 %v690, %v1843
        %v1845 = vpop.f32.mrf.mxu0
        %v1846 = vadd.f32 %v690, %v1845
        %1847 = vmatmul.bf16.gmra.mxu0 %v588
        %v1848 = vpop.f32.mrf.mxu0
        %v1849 = vadd.f32 %v690, %v1848
        %v1850 = vpop.f32.mrf.mxu0
        %v1851 = vadd.f32 %v690, %v1850
        %1852 = vmatmul.bf16.gmra.mxu0 %v590
        %v1853 = vpop.f32.mrf.mxu0
        %v1854 = vadd.f32 %v690, %v1853
        %v1855 = vpop.f32.mrf.mxu0
        %v1856 = vadd.f32 %v690, %v1855
        %1857 = vmatmul.bf16.gmra.mxu0 %v592
        %v1858 = vpop.f32.mrf.mxu0
        %v1859 = vadd.f32 %v690, %v1858
        %v1860 = vpop.f32.mrf.mxu0
        %v1861 = vadd.f32 %v690, %v1860
        %1862 = vmatmul.bf16.gmra.mxu0 %v594
        %v1863 = vpop.f32.mrf.mxu0
        %v1864 = vadd.f32 %v690, %v1863
        %v1865 = vpop.f32.mrf.mxu0
        %v1866 = vadd.f32 %v690, %v1865
        %1867 = vmatmul.bf16.gmra.mxu0 %v596
        %v1868 = vpop.f32.mrf.mxu0
        %v1869 = vadd.f32 %v690, %v1868
        %v1870 = vpop.f32.mrf.mxu0
        %v1871 = vadd.f32 %v690, %v1870
        %1872 = vmatmul.bf16.gmra.mxu0 %v598
        %v1873 = vpop.f32.mrf.mxu0
        %v1874 = vadd.f32 %v690, %v1873
        %v1875 = vpop.f32.mrf.mxu0
        %v1876 = vadd.f32 %v690, %v1875
        %1877 = vmatmul.bf16.gmra.mxu0 %v600
        %v1878 = vpop.f32.mrf.mxu0
        %v1879 = vadd.f32 %v690, %v1878
        %v1880 = vpop.f32.mrf.mxu0
        %v1881 = vadd.f32 %v690, %v1880
        %1882 = vmatmul.bf16.gmra.mxu0 %v602
        %v1883 = vpop.f32.mrf.mxu0
        %v1884 = vadd.f32 %v690, %v1883
        %v1885 = vpop.f32.mrf.mxu0
        %v1886 = vadd.f32 %v690, %v1885
        %1887 = vmatmul.bf16.gmra.mxu0 %v604
        %v1888 = vpop.f32.mrf.mxu0
        %v1889 = vadd.f32 %v690, %v1888
        %v1890 = vpop.f32.mrf.mxu0
        %v1891 = vadd.f32 %v690, %v1890
        %1892 = vmatmul.bf16.gmra.mxu0 %v606
        %v1893 = vpop.f32.mrf.mxu0
        %v1894 = vadd.f32 %v690, %v1893
        %v1895 = vpop.f32.mrf.mxu0
        %v1896 = vadd.f32 %v690, %v1895
        %1897 = vmatmul.bf16.gmra.mxu0 %v608
        %v1898 = vpop.f32.mrf.mxu0
        %v1899 = vadd.f32 %v690, %v1898
        %v1900 = vpop.f32.mrf.mxu0
        %v1901 = vadd.f32 %v690, %v1900
        %1902 = vmatmul.bf16.gmra.mxu0 %v610
        %v1903 = vpop.f32.mrf.mxu0
        %v1904 = vadd.f32 %v690, %v1903
        %v1905 = vpop.f32.mrf.mxu0
        %v1906 = vadd.f32 %v690, %v1905
        %1907 = vdwg.mxu0
        %1908 = vmatpush.bf16.msra.mxu0 0
        %1909 = vmatpush.bf16.msra.mxu0 0
        %1910 = vmatpush.bf16.msra.mxu0 0
        %1911 = vmatpush.bf16.msra.mxu0 0
        %1912 = vmatpush.bf16.msra.mxu0 %v984
        %1913 = vmatpush.bf16.msra.mxu0 %v978
        %1914 = vmatpush.bf16.msra.mxu0 %v972
        %1915 = vmatpush.bf16.msra.mxu0 %v966
        %1916 = vmatmul.bf16.gmra.mxu0 %v1060
        %v1917 = vpop.f32.mrf.mxu0
        %v1918 = vadd.f32 %v1829, %v1917
        %v1919 = vpop.f32.mrf.mxu0
        %v1920 = vadd.f32 %v1831, %v1919
        %1921 = vmatmul.bf16.gmra.mxu0 %v1063
        %v1922 = vpop.f32.mrf.mxu0
        %v1923 = vadd.f32 %v1834, %v1922
        %v1924 = vpop.f32.mrf.mxu0
        %v1925 = vadd.f32 %v1836, %v1924
        %1926 = vmatmul.bf16.gmra.mxu0 %v1066
        %v1927 = vpop.f32.mrf.mxu0
        %v1928 = vadd.f32 %v1839, %v1927
        %v1929 = vpop.f32.mrf.mxu0
        %v1930 = vadd.f32 %v1841, %v1929
        %1931 = vmatmul.bf16.gmra.mxu0 %v1069
        %v1932 = vpop.f32.mrf.mxu0
        %v1933 = vadd.f32 %v1844, %v1932
        %v1934 = vpop.f32.mrf.mxu0
        %v1935 = vadd.f32 %v1846, %v1934
        %1936 = vmatmul.bf16.gmra.mxu0 %v1072
        %v1937 = vpop.f32.mrf.mxu0
        %v1938 = vadd.f32 %v1849, %v1937
        %v1939 = vpop.f32.mrf.mxu0
        %v1940 = vadd.f32 %v1851, %v1939
        %1941 = vmatmul.bf16.gmra.mxu0 %v1075
        %v1942 = vpop.f32.mrf.mxu0
        %v1943 = vadd.f32 %v1854, %v1942
        %v1944 = vpop.f32.mrf.mxu0
        %v1945 = vadd.f32 %v1856, %v1944
        %1946 = vmatmul.bf16.gmra.mxu0 %v1078
        %v1947 = vpop.f32.mrf.mxu0
        %v1948 = vadd.f32 %v1859, %v1947
        %v1949 = vpop.f32.mrf.mxu0
        %v1950 = vadd.f32 %v1861, %v1949
        %1951 = vmatmul.bf16.gmra.mxu0 %v1081
        %v1952 = vpop.f32.mrf.mxu0
        %v1953 = vadd.f32 %v1864, %v1952
        %v1954 = vpop.f32.mrf.mxu0
        %v1955 = vadd.f32 %v1866, %v1954
        %1956 = vmatmul.bf16.gmra.mxu0 %v1084
        %v1957 = vpop.f32.mrf.mxu0
        %v1958 = vadd.f32 %v1869, %v1957
        %v1959 = vpop.f32.mrf.mxu0
        %v1960 = vadd.f32 %v1871, %v1959
        %1961 = vmatmul.bf16.gmra.mxu0 %v1087
        %v1962 = vpop.f32.mrf.mxu0
        %v1963 = vadd.f32 %v1874, %v1962
        %v1964 = vpop.f32.mrf.mxu0
        %v1965 = vadd.f32 %v1876, %v1964
        %1966 = vmatmul.bf16.gmra.mxu0 %v1090
        %v1967 = vpop.f32.mrf.mxu0
        %v1968 = vadd.f32 %v1879, %v1967
        %v1969 = vpop.f32.mrf.mxu0
        %v1970 = vadd.f32 %v1881, %v1969
        %1971 = vmatmul.bf16.gmra.mxu0 %v1093
        %v1972 = vpop.f32.mrf.mxu0
        %v1973 = vadd.f32 %v1884, %v1972
        %v1974 = vpop.f32.mrf.mxu0
        %v1975 = vadd.f32 %v1886, %v1974
        %1976 = vmatmul.bf16.gmra.mxu0 %v1096
        %v1977 = vpop.f32.mrf.mxu0
        %v1978 = vadd.f32 %v1889, %v1977
        %v1979 = vpop.f32.mrf.mxu0
        %v1980 = vadd.f32 %v1891, %v1979
        %1981 = vmatmul.bf16.gmra.mxu0 %v1099
        %v1982 = vpop.f32.mrf.mxu0
        %v1983 = vadd.f32 %v1894, %v1982
        %v1984 = vpop.f32.mrf.mxu0
        %v1985 = vadd.f32 %v1896, %v1984
        %1986 = vmatmul.bf16.gmra.mxu0 %v1102
        %v1987 = vpop.f32.mrf.mxu0
        %v1988 = vadd.f32 %v1899, %v1987
        %v1989 = vpop.f32.mrf.mxu0
        %v1990 = vadd.f32 %v1901, %v1989
        %1991 = vmatmul.bf16.gmra.mxu0 %v1105
        %v1992 = vpop.f32.mrf.mxu0
        %v1993 = vadd.f32 %v1904, %v1992
        %v1994 = vpop.f32.mrf.mxu0
        %v1995 = vadd.f32 %v1906, %v1994
        %1996 = vdwg.mxu0
        %1997 = vmatpush.bf16.msra.mxu0 %v961
        %1998 = vmatpush.bf16.msra.mxu0 %v955
        %1999 = vmatpush.bf16.msra.mxu0 %v949
        %2000 = vmatpush.bf16.msra.mxu0 %v943
        %2001 = vmatpush.bf16.msra.mxu0 %v937
        %2002 = vmatpush.bf16.msra.mxu0 %v931
        %2003 = vmatpush.bf16.msra.mxu0 %v925
        %2004 = vmatpush.bf16.msra.mxu0 %v919
        %2005 = vmatmul.bf16.gmra.mxu0 %v580
        %v2006 = vpop.f32.mrf.mxu0
        %v2007 = vadd.f32 %v691, %v2006
        %v2008 = vpop.f32.mrf.mxu0
        %v2009 = vadd.f32 %v691, %v2008
        %2010 = vmatmul.bf16.gmra.mxu0 %v582
        %v2011 = vpop.f32.mrf.mxu0
        %v2012 = vadd.f32 %v691, %v2011
        %v2013 = vpop.f32.mrf.mxu0
        %v2014 = vadd.f32 %v691, %v2013
        %2015 = vmatmul.bf16.gmra.mxu0 %v584
        %v2016 = vpop.f32.mrf.mxu0
        %v2017 = vadd.f32 %v691, %v2016
        %v2018 = vpop.f32.mrf.mxu0
        %v2019 = vadd.f32 %v691, %v2018
        %2020 = vmatmul.bf16.gmra.mxu0 %v586
        %v2021 = vpop.f32.mrf.mxu0
        %v2022 = vadd.f32 %v691, %v2021
        %v2023 = vpop.f32.mrf.mxu0
        %v2024 = vadd.f32 %v691, %v2023
        %2025 = vmatmul.bf16.gmra.mxu0 %v588
        %v2026 = vpop.f32.mrf.mxu0
        %v2027 = vadd.f32 %v691, %v2026
        %v2028 = vpop.f32.mrf.mxu0
        %v2029 = vadd.f32 %v691, %v2028
        %2030 = vmatmul.bf16.gmra.mxu0 %v590
        %v2031 = vpop.f32.mrf.mxu0
        %v2032 = vadd.f32 %v691, %v2031
        %v2033 = vpop.f32.mrf.mxu0
        %v2034 = vadd.f32 %v691, %v2033
        %2035 = vmatmul.bf16.gmra.mxu0 %v592
        %v2036 = vpop.f32.mrf.mxu0
        %v2037 = vadd.f32 %v691, %v2036
        %v2038 = vpop.f32.mrf.mxu0
        %v2039 = vadd.f32 %v691, %v2038
        %2040 = vmatmul.bf16.gmra.mxu0 %v594
        %v2041 = vpop.f32.mrf.mxu0
        %v2042 = vadd.f32 %v691, %v2041
        %v2043 = vpop.f32.mrf.mxu0
        %v2044 = vadd.f32 %v691, %v2043
        %2045 = vmatmul.bf16.gmra.mxu0 %v596
        %v2046 = vpop.f32.mrf.mxu0
        %v2047 = vadd.f32 %v691, %v2046
        %v2048 = vpop.f32.mrf.mxu0
        %v2049 = vadd.f32 %v691, %v2048
        %2050 = vmatmul.bf16.gmra.mxu0 %v598
        %v2051 = vpop.f32.mrf.mxu0
        %v2052 = vadd.f32 %v691, %v2051
        %v2053 = vpop.f32.mrf.mxu0
        %v2054 = vadd.f32 %v691, %v2053
        %2055 = vmatmul.bf16.gmra.mxu0 %v600
        %v2056 = vpop.f32.mrf.mxu0
        %v2057 = vadd.f32 %v691, %v2056
        %v2058 = vpop.f32.mrf.mxu0
        %v2059 = vadd.f32 %v691, %v2058
        %2060 = vmatmul.bf16.gmra.mxu0 %v602
        %v2061 = vpop.f32.mrf.mxu0
        %v2062 = vadd.f32 %v691, %v2061
        %v2063 = vpop.f32.mrf.mxu0
        %v2064 = vadd.f32 %v691, %v2063
        %2065 = vmatmul.bf16.gmra.mxu0 %v604
        %v2066 = vpop.f32.mrf.mxu0
        %v2067 = vadd.f32 %v691, %v2066
        %v2068 = vpop.f32.mrf.mxu0
        %v2069 = vadd.f32 %v691, %v2068
        %2070 = vmatmul.bf16.gmra.mxu0 %v606
        %v2071 = vpop.f32.mrf.mxu0
        %v2072 = vadd.f32 %v691, %v2071
        %v2073 = vpop.f32.mrf.mxu0
        %v2074 = vadd.f32 %v691, %v2073
        %2075 = vmatmul.bf16.gmra.mxu0 %v608
        %v2076 = vpop.f32.mrf.mxu0
        %v2077 = vadd.f32 %v691, %v2076
        %v2078 = vpop.f32.mrf.mxu0
        %v2079 = vadd.f32 %v691, %v2078
        %2080 = vmatmul.bf16.gmra.mxu0 %v610
        %v2081 = vpop.f32.mrf.mxu0
        %v2082 = vadd.f32 %v691, %v2081
        %v2083 = vpop.f32.mrf.mxu0
        %v2084 = vadd.f32 %v691, %v2083
        %2085 = vdwg.mxu0
        %2086 = vmatpush.bf16.msra.mxu0 0
        %2087 = vmatpush.bf16.msra.mxu0 0
        %2088 = vmatpush.bf16.msra.mxu0 0
        %2089 = vmatpush.bf16.msra.mxu0 0
        %2090 = vmatpush.bf16.msra.mxu0 %v985
        %2091 = vmatpush.bf16.msra.mxu0 %v979
        %2092 = vmatpush.bf16.msra.mxu0 %v973
        %2093 = vmatpush.bf16.msra.mxu0 %v967
        %2094 = vmatmul.bf16.gmra.mxu0 %v1060
        %v2095 = vpop.f32.mrf.mxu0
        %v2096 = vadd.f32 %v2007, %v2095
        %v2097 = vpop.f32.mrf.mxu0
        %v2098 = vadd.f32 %v2009, %v2097
        %2099 = vmatmul.bf16.gmra.mxu0 %v1063
        %v2100 = vpop.f32.mrf.mxu0
        %v2101 = vadd.f32 %v2012, %v2100
        %v2102 = vpop.f32.mrf.mxu0
        %v2103 = vadd.f32 %v2014, %v2102
        %2104 = vmatmul.bf16.gmra.mxu0 %v1066
        %v2105 = vpop.f32.mrf.mxu0
        %v2106 = vadd.f32 %v2017, %v2105
        %v2107 = vpop.f32.mrf.mxu0
        %v2108 = vadd.f32 %v2019, %v2107
        %2109 = vmatmul.bf16.gmra.mxu0 %v1069
        %v2110 = vpop.f32.mrf.mxu0
        %v2111 = vadd.f32 %v2022, %v2110
        %v2112 = vpop.f32.mrf.mxu0
        %v2113 = vadd.f32 %v2024, %v2112
        %2114 = vmatmul.bf16.gmra.mxu0 %v1072
        %v2115 = vpop.f32.mrf.mxu0
        %v2116 = vadd.f32 %v2027, %v2115
        %v2117 = vpop.f32.mrf.mxu0
        %v2118 = vadd.f32 %v2029, %v2117
        %2119 = vmatmul.bf16.gmra.mxu0 %v1075
        %v2120 = vpop.f32.mrf.mxu0
        %v2121 = vadd.f32 %v2032, %v2120
        %v2122 = vpop.f32.mrf.mxu0
        %v2123 = vadd.f32 %v2034, %v2122
        %2124 = vmatmul.bf16.gmra.mxu0 %v1078
        %v2125 = vpop.f32.mrf.mxu0
        %v2126 = vadd.f32 %v2037, %v2125
        %v2127 = vpop.f32.mrf.mxu0
        %v2128 = vadd.f32 %v2039, %v2127
        %2129 = vmatmul.bf16.gmra.mxu0 %v1081
        %v2130 = vpop.f32.mrf.mxu0
        %v2131 = vadd.f32 %v2042, %v2130
        %v2132 = vpop.f32.mrf.mxu0
        %v2133 = vadd.f32 %v2044, %v2132
        %2134 = vmatmul.bf16.gmra.mxu0 %v1084
        %v2135 = vpop.f32.mrf.mxu0
        %v2136 = vadd.f32 %v2047, %v2135
        %v2137 = vpop.f32.mrf.mxu0
        %v2138 = vadd.f32 %v2049, %v2137
        %2139 = vmatmul.bf16.gmra.mxu0 %v1087
        %v2140 = vpop.f32.mrf.mxu0
        %v2141 = vadd.f32 %v2052, %v2140
        %v2142 = vpop.f32.mrf.mxu0
        %v2143 = vadd.f32 %v2054, %v2142
        %2144 = vmatmul.bf16.gmra.mxu0 %v1090
        %v2145 = vpop.f32.mrf.mxu0
        %v2146 = vadd.f32 %v2057, %v2145
        %v2147 = vpop.f32.mrf.mxu0
        %v2148 = vadd.f32 %v2059, %v2147
        %2149 = vmatmul.bf16.gmra.mxu0 %v1093
        %v2150 = vpop.f32.mrf.mxu0
        %v2151 = vadd.f32 %v2062, %v2150
        %v2152 = vpop.f32.mrf.mxu0
        %v2153 = vadd.f32 %v2064, %v2152
        %2154 = vmatmul.bf16.gmra.mxu0 %v1096
        %v2155 = vpop.f32.mrf.mxu0
        %v2156 = vadd.f32 %v2067, %v2155
        %v2157 = vpop.f32.mrf.mxu0
        %v2158 = vadd.f32 %v2069, %v2157
        %2159 = vmatmul.bf16.gmra.mxu0 %v1099
        %v2160 = vpop.f32.mrf.mxu0
        %v2161 = vadd.f32 %v2072, %v2160
        %v2162 = vpop.f32.mrf.mxu0
        %v2163 = vadd.f32 %v2074, %v2162
        %2164 = vmatmul.bf16.gmra.mxu0 %v1102
        %v2165 = vpop.f32.mrf.mxu0
        %v2166 = vadd.f32 %v2077, %v2165
        %v2167 = vpop.f32.mrf.mxu0
        %v2168 = vadd.f32 %v2079, %v2167
        %2169 = vmatmul.bf16.gmra.mxu0 %v1105
        %v2170 = vpop.f32.mrf.mxu0
        %v2171 = vadd.f32 %v2082, %v2170
        %v2172 = vpop.f32.mrf.mxu0
        %v2173 = vadd.f32 %v2084, %v2172
        %2174 = vdwg.mxu0
        %vm2175 = vcmp.gt.f32.partialorder %v1206, 0.0
        %vm2176 = vcmp.gt.f32.partialorder %v1384, 0.0
        %vm2177 = vcmp.gt.f32.partialorder %v1208, 0.0
        %vm2178 = vcmp.gt.f32.partialorder %v1386, 0.0
        %vm2179 = vcmp.gt.f32.partialorder %v1211, 0.0
        %vm2180 = vcmp.gt.f32.partialorder %v1389, 0.0
        %vm2181 = vcmp.gt.f32.partialorder %v1213, 0.0
        %vm2182 = vcmp.gt.f32.partialorder %v1391, 0.0
        %vm2183 = vcmp.gt.f32.partialorder %v1216, 0.0
        %vm2184 = vcmp.gt.f32.partialorder %v1394, 0.0
        %vm2185 = vcmp.gt.f32.partialorder %v1218, 0.0
        %vm2186 = vcmp.gt.f32.partialorder %v1396, 0.0
        %vm2187 = vcmp.gt.f32.partialorder %v1221, 0.0
        %vm2188 = vcmp.gt.f32.partialorder %v1399, 0.0
        %vm2189 = vcmp.gt.f32.partialorder %v1223, 0.0
        %vm2190 = vcmp.gt.f32.partialorder %v1401, 0.0
        %vm2191 = vcmp.gt.f32.partialorder %v1226, 0.0
        %vm2192 = vcmp.gt.f32.partialorder %v1404, 0.0
        %vm2193 = vcmp.gt.f32.partialorder %v1228, 0.0
        %vm2194 = vcmp.gt.f32.partialorder %v1406, 0.0
        %vm2195 = vcmp.gt.f32.partialorder %v1231, 0.0
        %vm2196 = vcmp.gt.f32.partialorder %v1409, 0.0
        %vm2197 = vcmp.gt.f32.partialorder %v1233, 0.0
        %vm2198 = vcmp.gt.f32.partialorder %v1411, 0.0
        %vm2199 = vcmp.gt.f32.partialorder %v1236, 0.0
        %vm2200 = vcmp.gt.f32.partialorder %v1414, 0.0
        %vm2201 = vcmp.gt.f32.partialorder %v1238, 0.0
        %vm2202 = vcmp.gt.f32.partialorder %v1416, 0.0
        %vm2203 = vcmp.gt.f32.partialorder %v1241, 0.0
        %vm2204 = vcmp.gt.f32.partialorder %v1419, 0.0
        %vm2205 = vcmp.gt.f32.partialorder %v1243, 0.0
        %vm2206 = vcmp.gt.f32.partialorder %v1421, 0.0
        %vm2207 = vcmp.gt.f32.partialorder %v1246, 0.0
        %vm2208 = vcmp.gt.f32.partialorder %v1424, 0.0
        %vm2209 = vcmp.gt.f32.partialorder %v1248, 0.0
        %vm2210 = vcmp.gt.f32.partialorder %v1426, 0.0
        %vm2211 = vcmp.gt.f32.partialorder %v1251, 0.0
        %vm2212 = vcmp.gt.f32.partialorder %v1429, 0.0
        %vm2213 = vcmp.gt.f32.partialorder %v1253, 0.0
        %vm2214 = vcmp.gt.f32.partialorder %v1431, 0.0
        %vm2215 = vcmp.gt.f32.partialorder %v1256, 0.0
        %vm2216 = vcmp.gt.f32.partialorder %v1434, 0.0
        %vm2217 = vcmp.gt.f32.partialorder %v1258, 0.0
        %vm2218 = vcmp.gt.f32.partialorder %v1436, 0.0
        %vm2219 = vcmp.gt.f32.partialorder %v1261, 0.0
        %vm2220 = vcmp.gt.f32.partialorder %v1439, 0.0
        %vm2221 = vcmp.gt.f32.partialorder %v1263, 0.0
        %vm2222 = vcmp.gt.f32.partialorder %v1441, 0.0
        %vm2223 = vcmp.gt.f32.partialorder %v1266, 0.0
        %vm2224 = vcmp.gt.f32.partialorder %v1444, 0.0
        %vm2225 = vcmp.gt.f32.partialorder %v1268, 0.0
        %vm2226 = vcmp.gt.f32.partialorder %v1446, 0.0
        %vm2227 = vcmp.gt.f32.partialorder %v1271, 0.0
        %vm2228 = vcmp.gt.f32.partialorder %v1449, 0.0
        %vm2229 = vcmp.gt.f32.partialorder %v1273, 0.0
        %vm2230 = vcmp.gt.f32.partialorder %v1451, 0.0
        %vm2231 = vcmp.gt.f32.partialorder %v1276, 0.0
        %vm2232 = vcmp.gt.f32.partialorder %v1454, 0.0
        %vm2233 = vcmp.gt.f32.partialorder %v1278, 0.0
        %vm2234 = vcmp.gt.f32.partialorder %v1456, 0.0
        %vm2235 = vcmp.gt.f32.partialorder %v1281, 0.0
        %vm2236 = vcmp.gt.f32.partialorder %v1459, 0.0
        %vm2237 = vcmp.gt.f32.partialorder %v1283, 0.0
        %vm2238 = vcmp.gt.f32.partialorder %v1461, 0.0
        %v2239 = vmul.f32 %v1206, 0.01
        %v2240 = vmul.f32 %v1384, 0.01
        %v2241 = vmul.f32 %v1208, 0.01
        %v2242 = vmul.f32 %v1386, 0.01
        %v2243 = vmul.f32 %v1211, 0.01
        %v2244 = vmul.f32 %v1389, 0.01
        %v2245 = vmul.f32 %v1213, 0.01
        %v2246 = vmul.f32 %v1391, 0.01
        %v2247 = vmul.f32 %v1216, 0.01
        %v2248 = vmul.f32 %v1394, 0.01
        %v2249 = vmul.f32 %v1218, 0.01
        %v2250 = vmul.f32 %v1396, 0.01
        %v2251 = vmul.f32 %v1221, 0.01
        %v2252 = vmul.f32 %v1399, 0.01
        %v2253 = vmul.f32 %v1223, 0.01
        %v2254 = vmul.f32 %v1401, 0.01
        %v2255 = vmul.f32 %v1226, 0.01
        %v2256 = vmul.f32 %v1404, 0.01
        %v2257 = vmul.f32 %v1228, 0.01
        %v2258 = vmul.f32 %v1406, 0.01
        %v2259 = vmul.f32 %v1231, 0.01
        %v2260 = vmul.f32 %v1409, 0.01
        %v2261 = vmul.f32 %v1233, 0.01
        %v2262 = vmul.f32 %v1411, 0.01
        %v2263 = vmul.f32 %v1236, 0.01
        %v2264 = vmul.f32 %v1414, 0.01
        %v2265 = vmul.f32 %v1238, 0.01
        %v2266 = vmul.f32 %v1416, 0.01
        %v2267 = vmul.f32 %v1241, 0.01
        %v2268 = vmul.f32 %v1419, 0.01
        %v2269 = vmul.f32 %v1243, 0.01
        %v2270 = vmul.f32 %v1421, 0.01
        %v2271 = vmul.f32 %v1246, 0.01
        %v2272 = vmul.f32 %v1424, 0.01
        %v2273 = vmul.f32 %v1248, 0.01
        %v2274 = vmul.f32 %v1426, 0.01
        %v2275 = vmul.f32 %v1251, 0.01
        %v2276 = vmul.f32 %v1429, 0.01
        %v2277 = vmul.f32 %v1253, 0.01
        %v2278 = vmul.f32 %v1431, 0.01
        %v2279 = vmul.f32 %v1256, 0.01
        %v2280 = vmul.f32 %v1434, 0.01
        %v2281 = vmul.f32 %v1258, 0.01
        %v2282 = vmul.f32 %v1436, 0.01
        %v2283 = vmul.f32 %v1261, 0.01
        %v2284 = vmul.f32 %v1439, 0.01
        %v2285 = vmul.f32 %v1263, 0.01
        %v2286 = vmul.f32 %v1441, 0.01
        %v2287 = vmul.f32 %v1266, 0.01
        %v2288 = vmul.f32 %v1444, 0.01
        %v2289 = vmul.f32 %v1268, 0.01
        %v2290 = vmul.f32 %v1446, 0.01
        %v2291 = vmul.f32 %v1271, 0.01
        %v2292 = vmul.f32 %v1449, 0.01
        %v2293 = vmul.f32 %v1273, 0.01
        %v2294 = vmul.f32 %v1451, 0.01
        %v2295 = vmul.f32 %v1276, 0.01
        %v2296 = vmul.f32 %v1454, 0.01
        %v2297 = vmul.f32 %v1278, 0.01
        %v2298 = vmul.f32 %v1456, 0.01
        %v2299 = vmul.f32 %v1281, 0.01
        %v2300 = vmul.f32 %v1459, 0.01
        %v2301 = vmul.f32 %v1283, 0.01
        %v2302 = vmul.f32 %v1461, 0.01
        %v2303 = vsel %vm2175, %v1206, %v2239
        %v2304 = vsel %vm2176, %v1384, %v2240
        %v2305 = vsel %vm2177, %v1208, %v2241
        %v2306 = vsel %vm2178, %v1386, %v2242
        %v2307 = vsel %vm2179, %v1211, %v2243
        %v2308 = vsel %vm2180, %v1389, %v2244
        %v2309 = vsel %vm2181, %v1213, %v2245
        %v2310 = vsel %vm2182, %v1391, %v2246
        %v2311 = vsel %vm2183, %v1216, %v2247
        %v2312 = vsel %vm2184, %v1394, %v2248
        %v2313 = vsel %vm2185, %v1218, %v2249
        %v2314 = vsel %vm2186, %v1396, %v2250
        %v2315 = vsel %vm2187, %v1221, %v2251
        %v2316 = vsel %vm2188, %v1399, %v2252
        %v2317 = vsel %vm2189, %v1223, %v2253
        %v2318 = vsel %vm2190, %v1401, %v2254
        %v2319 = vsel %vm2191, %v1226, %v2255
        %v2320 = vsel %vm2192, %v1404, %v2256
        %v2321 = vsel %vm2193, %v1228, %v2257
        %v2322 = vsel %vm2194, %v1406, %v2258
        %v2323 = vsel %vm2195, %v1231, %v2259
        %v2324 = vsel %vm2196, %v1409, %v2260
        %v2325 = vsel %vm2197, %v1233, %v2261
        %v2326 = vsel %vm2198, %v1411, %v2262
        %v2327 = vsel %vm2199, %v1236, %v2263
        %v2328 = vsel %vm2200, %v1414, %v2264
        %v2329 = vsel %vm2201, %v1238, %v2265
        %v2330 = vsel %vm2202, %v1416, %v2266
        %v2331 = vsel %vm2203, %v1241, %v2267
        %v2332 = vsel %vm2204, %v1419, %v2268
        %v2333 = vsel %vm2205, %v1243, %v2269
        %v2334 = vsel %vm2206, %v1421, %v2270
        %v2335 = vsel %vm2207, %v1246, %v2271
        %v2336 = vsel %vm2208, %v1424, %v2272
        %v2337 = vsel %vm2209, %v1248, %v2273
        %v2338 = vsel %vm2210, %v1426, %v2274
        %v2339 = vsel %vm2211, %v1251, %v2275
        %v2340 = vsel %vm2212, %v1429, %v2276
        %v2341 = vsel %vm2213, %v1253, %v2277
        %v2342 = vsel %vm2214, %v1431, %v2278
        %v2343 = vsel %vm2215, %v1256, %v2279
        %v2344 = vsel %vm2216, %v1434, %v2280
        %v2345 = vsel %vm2217, %v1258, %v2281
        %v2346 = vsel %vm2218, %v1436, %v2282
        %v2347 = vsel %vm2219, %v1261, %v2283
        %v2348 = vsel %vm2220, %v1439, %v2284
        %v2349 = vsel %vm2221, %v1263, %v2285
        %v2350 = vsel %vm2222, %v1441, %v2286
        %v2351 = vsel %vm2223, %v1266, %v2287
        %v2352 = vsel %vm2224, %v1444, %v2288
        %v2353 = vsel %vm2225, %v1268, %v2289
        %v2354 = vsel %vm2226, %v1446, %v2290
        %v2355 = vsel %vm2227, %v1271, %v2291
        %v2356 = vsel %vm2228, %v1449, %v2292
        %v2357 = vsel %vm2229, %v1273, %v2293
        %v2358 = vsel %vm2230, %v1451, %v2294
        %v2359 = vsel %vm2231, %v1276, %v2295
        %v2360 = vsel %vm2232, %v1454, %v2296
        %v2361 = vsel %vm2233, %v1278, %v2297
        %v2362 = vsel %vm2234, %v1456, %v2298
        %v2363 = vsel %vm2235, %v1281, %v2299
        %v2364 = vsel %vm2236, %v1459, %v2300
        %v2365 = vsel %vm2237, %v1283, %v2301
        %v2366 = vsel %vm2238, %v1461, %v2302
        %v2367 = vpack.c.bf16 %v2305, %v2303
        %v2368 = vpack.c.bf16 %v2306, %v2304
        %v2369 = vpack.c.bf16 %v2309, %v2307
        %v2370 = vpack.c.bf16 %v2310, %v2308
        %v2371 = vpack.c.bf16 %v2313, %v2311
        %v2372 = vpack.c.bf16 %v2314, %v2312
        %v2373 = vpack.c.bf16 %v2317, %v2315
        %v2374 = vpack.c.bf16 %v2318, %v2316
        %v2375 = vpack.c.bf16 %v2321, %v2319
        %v2376 = vpack.c.bf16 %v2322, %v2320
        %v2377 = vpack.c.bf16 %v2325, %v2323
        %v2378 = vpack.c.bf16 %v2326, %v2324
        %v2379 = vpack.c.bf16 %v2329, %v2327
        %v2380 = vpack.c.bf16 %v2330, %v2328
        %v2381 = vpack.c.bf16 %v2333, %v2331
        %v2382 = vpack.c.bf16 %v2334, %v2332
        %v2383 = vpack.c.bf16 %v2337, %v2335
        %v2384 = vpack.c.bf16 %v2338, %v2336
        %v2385 = vpack.c.bf16 %v2341, %v2339
        %v2386 = vpack.c.bf16 %v2342, %v2340
        %v2387 = vpack.c.bf16 %v2345, %v2343
        %v2388 = vpack.c.bf16 %v2346, %v2344
        %v2389 = vpack.c.bf16 %v2349, %v2347
        %v2390 = vpack.c.bf16 %v2350, %v2348
        %v2391 = vpack.c.bf16 %v2353, %v2351
        %v2392 = vpack.c.bf16 %v2354, %v2352
        %v2393 = vpack.c.bf16 %v2357, %v2355
        %v2394 = vpack.c.bf16 %v2358, %v2356
        %v2395 = vpack.c.bf16 %v2361, %v2359
        %v2396 = vpack.c.bf16 %v2362, %v2360
        %v2397 = vpack.c.bf16 %v2365, %v2363
        %v2398 = vpack.c.bf16 %v2366, %v2364
        %v2399 = vld [vmem:[#allocation10] sm:$0xff]
        %v2400 = vld [vmem:[#allocation10 + $0x8] sm:$0xff]
        %v2401 = vld [vmem:[#allocation10 + $0x10] sm:$0xff]
        %v2402 = vld [vmem:[#allocation10 + $0x18] sm:$0xff]
        %v2403 = vld [vmem:[#allocation10 + $0x20] sm:$0xff]
        %v2404 = vld [vmem:[#allocation10 + $0x28] sm:$0xff]
        %v2405 = vld [vmem:[#allocation10 + $0x30] sm:$0xff]
        %v2406 = vld [vmem:[#allocation10 + $0x38] sm:$0xff]
        %v2407 = vld [vmem:[#allocation10 + $0x40] sm:$0xff]
        %v2408 = vld [vmem:[#allocation10 + $0x48] sm:$0xff]
        %v2409 = vld [vmem:[#allocation10 + $0x50] sm:$0xff]
        %v2410 = vld [vmem:[#allocation10 + $0x58] sm:$0xff]
        %v2411 = vld [vmem:[#allocation10 + $0x60] sm:$0xff]
        %v2412 = vld [vmem:[#allocation10 + $0x68] sm:$0xff]
        %v2413 = vld [vmem:[#allocation10 + $0x70] sm:$0xff]
        %v2414 = vld [vmem:[#allocation10 + $0x78] sm:$0xff]
        %v2415 = vld [vmem:[#allocation10 + $0x80] sm:$0xff]
        %v2416 = vld [vmem:[#allocation10 + $0x88] sm:$0xff]
        %v2417 = vld [vmem:[#allocation10 + $0x90] sm:$0xff]
        %v2418 = vld [vmem:[#allocation10 + $0x98] sm:$0xff]
        %v2419 = vld [vmem:[#allocation10 + $0xa0] sm:$0xff]
        %v2420 = vld [vmem:[#allocation10 + $0xa8] sm:$0xff]
        %v2421 = vld [vmem:[#allocation10 + $0xb0] sm:$0xff]
        %v2422 = vld [vmem:[#allocation10 + $0xb8] sm:$0xff]
        %v2423 = vld [vmem:[#allocation11] sm:$0x3]
        %v2425 = vperm.slane %v2423, 0
        %v2426 = vperm.slane %v2423, 1
        %v2453 = vunpack.c.l.b16 %v2399
        %v2454 = vunpack.c.h.b16 %v2399
        %v2455 = vunpack.c.l.b16 %v2400
        %v2456 = vunpack.c.h.b16 %v2400
        %v2457 = vunpack.c.l.b16 %v2401
        %v2458 = vunpack.c.h.b16 %v2401
        %v2459 = vunpack.c.l.b16 %v2402
        %v2460 = vunpack.c.h.b16 %v2402
        %v2461 = vunpack.c.l.b16 %v2403
        %v2462 = vunpack.c.h.b16 %v2403
        %v2463 = vunpack.c.l.b16 %v2404
        %v2464 = vunpack.c.h.b16 %v2404
        %v2465 = vunpack.c.l.b16 %v2405
        %v2466 = vunpack.c.h.b16 %v2405
        %v2467 = vunpack.c.l.b16 %v2406
        %v2468 = vunpack.c.h.b16 %v2406
        %v2469 = vunpack.c.l.b16 %v2407
        %v2470 = vunpack.c.h.b16 %v2407
        %v2471 = vunpack.c.l.b16 %v2408
        %v2472 = vunpack.c.h.b16 %v2408
        %v2473 = vunpack.c.l.b16 %v2409
        %v2474 = vunpack.c.h.b16 %v2409
        %v2475 = vunpack.c.l.b16 %v2410
        %v2476 = vunpack.c.h.b16 %v2410
        %v2477 = vunpack.c.l.b16 %v2411
        %v2478 = vunpack.c.h.b16 %v2411
        %v2479 = vunpack.c.l.b16 %v2412
        %v2480 = vunpack.c.h.b16 %v2412
        %v2481 = vunpack.c.l.b16 %v2413
        %v2482 = vunpack.c.h.b16 %v2413
        %v2483 = vunpack.c.l.b16 %v2414
        %v2484 = vunpack.c.h.b16 %v2414
        %v2485 = vunpack.c.l.b16 %v2415
        %v2486 = vunpack.c.h.b16 %v2415
        %v2487 = vunpack.c.l.b16 %v2416
        %v2488 = vunpack.c.h.b16 %v2416
        %v2489 = vunpack.c.l.b16 %v2417
        %v2490 = vunpack.c.h.b16 %v2417
        %v2491 = vunpack.c.l.b16 %v2418
        %v2492 = vunpack.c.h.b16 %v2418
        %v2493 = vunpack.c.l.b16 %v2419
        %v2494 = vunpack.c.h.b16 %v2419
        %v2495 = vunpack.c.l.b16 %v2420
        %v2496 = vunpack.c.h.b16 %v2420
        %v2497 = vunpack.c.l.b16 %v2421
        %v2498 = vunpack.c.h.b16 %v2421
        %v2499 = vunpack.c.l.b16 %v2422
        %v2500 = vunpack.c.h.b16 %v2422
        %v2501 = vpack.c.b16 %v2455, %v2453
        %v2502 = vpack.c.b16 %v2456, %v2454
        %v2503 = vpack.c.b16 %v2459, %v2457
        %v2504 = vpack.c.b16 %v2460, %v2458
        %v2505 = vpack.c.b16 %v2463, %v2461
        %v2506 = vpack.c.b16 %v2464, %v2462
        %v2507 = vpack.c.b16 %v2467, %v2465
        %v2508 = vpack.c.b16 %v2468, %v2466
        %v2509 = vpack.c.b16 %v2471, %v2469
        %v2510 = vpack.c.b16 %v2472, %v2470
        %v2511 = vpack.c.b16 %v2475, %v2473
        %v2512 = vpack.c.b16 %v2476, %v2474
        %v2513 = vpack.c.b16 %v2479, %v2477
        %v2514 = vpack.c.b16 %v2480, %v2478
        %v2515 = vpack.c.b16 %v2483, %v2481
        %v2516 = vpack.c.b16 %v2484, %v2482
        %v2517 = vpack.c.b16 %v2487, %v2485
        %v2518 = vpack.c.b16 %v2488, %v2486
        %v2519 = vpack.c.b16 %v2491, %v2489
        %v2520 = vpack.c.b16 %v2492, %v2490
        %v2521 = vpack.c.b16 %v2495, %v2493
        %v2522 = vpack.c.b16 %v2496, %v2494
        %v2523 = vpack.c.b16 %v2499, %v2497
        %v2524 = vpack.c.b16 %v2500, %v2498
        %v2550 = vsel %vm1058, %v2368, 0
        %v2553 = vsel %vm1058, %v2370, 0
        %v2556 = vsel %vm1058, %v2372, 0
        %v2559 = vsel %vm1058, %v2374, 0
        %v2562 = vsel %vm1058, %v2376, 0
        %v2565 = vsel %vm1058, %v2378, 0
        %v2568 = vsel %vm1058, %v2380, 0
        %v2571 = vsel %vm1058, %v2382, 0
        %v2574 = vsel %vm1058, %v2384, 0
        %v2577 = vsel %vm1058, %v2386, 0
        %v2580 = vsel %vm1058, %v2388, 0
        %v2583 = vsel %vm1058, %v2390, 0
        %v2586 = vsel %vm1058, %v2392, 0
        %v2589 = vsel %vm1058, %v2394, 0
        %v2592 = vsel %vm1058, %v2396, 0
        %v2595 = vsel %vm1058, %v2398, 0
        %2597 = vmatpush.bf16.msra.mxu0 %v2515
        %2598 = vmatpush.bf16.msra.mxu0 %v2513
        %2599 = vmatpush.bf16.msra.mxu0 %v2511
        %2600 = vmatpush.bf16.msra.mxu0 %v2509
        %2601 = vmatpush.bf16.msra.mxu0 %v2507
        %2602 = vmatpush.bf16.msra.mxu0 %v2505
        %2603 = vmatpush.bf16.msra.mxu0 %v2503
        %2604 = vmatpush.bf16.msra.mxu0 %v2501
        %2605 = vmatmul.bf16.gmra.mxu0 %v2367
        %v2606 = vpop.f32.mrf.mxu0
        %v2607 = vadd.f32 %v2425, %v2606
        %v2608 = vpop.f32.mrf.mxu0
        %v2609 = vadd.f32 %v2425, %v2608
        %2610 = vmatmul.bf16.gmra.mxu0 %v2369
        %v2611 = vpop.f32.mrf.mxu0
        %v2612 = vadd.f32 %v2425, %v2611
        %v2613 = vpop.f32.mrf.mxu0
        %v2614 = vadd.f32 %v2425, %v2613
        %2615 = vmatmul.bf16.gmra.mxu0 %v2371
        %v2616 = vpop.f32.mrf.mxu0
        %v2617 = vadd.f32 %v2425, %v2616
        %v2618 = vpop.f32.mrf.mxu0
        %v2619 = vadd.f32 %v2425, %v2618
        %2620 = vmatmul.bf16.gmra.mxu0 %v2373
        %v2621 = vpop.f32.mrf.mxu0
        %v2622 = vadd.f32 %v2425, %v2621
        %v2623 = vpop.f32.mrf.mxu0
        %v2624 = vadd.f32 %v2425, %v2623
        %2625 = vmatmul.bf16.gmra.mxu0 %v2375
        %v2626 = vpop.f32.mrf.mxu0
        %v2627 = vadd.f32 %v2425, %v2626
        %v2628 = vpop.f32.mrf.mxu0
        %v2629 = vadd.f32 %v2425, %v2628
        %2630 = vmatmul.bf16.gmra.mxu0 %v2377
        %v2631 = vpop.f32.mrf.mxu0
        %v2632 = vadd.f32 %v2425, %v2631
        %v2633 = vpop.f32.mrf.mxu0
        %v2634 = vadd.f32 %v2425, %v2633
        %2635 = vmatmul.bf16.gmra.mxu0 %v2379
        %v2636 = vpop.f32.mrf.mxu0
        %v2637 = vadd.f32 %v2425, %v2636
        %v2638 = vpop.f32.mrf.mxu0
        %v2639 = vadd.f32 %v2425, %v2638
        %2640 = vmatmul.bf16.gmra.mxu0 %v2381
        %v2641 = vpop.f32.mrf.mxu0
        %v2642 = vadd.f32 %v2425, %v2641
        %v2643 = vpop.f32.mrf.mxu0
        %v2644 = vadd.f32 %v2425, %v2643
        %2645 = vmatmul.bf16.gmra.mxu0 %v2383
        %v2646 = vpop.f32.mrf.mxu0
        %v2647 = vadd.f32 %v2425, %v2646
        %v2648 = vpop.f32.mrf.mxu0
        %v2649 = vadd.f32 %v2425, %v2648
        %2650 = vmatmul.bf16.gmra.mxu0 %v2385
        %v2651 = vpop.f32.mrf.mxu0
        %v2652 = vadd.f32 %v2425, %v2651
        %v2653 = vpop.f32.mrf.mxu0
        %v2654 = vadd.f32 %v2425, %v2653
        %2655 = vmatmul.bf16.gmra.mxu0 %v2387
        %v2656 = vpop.f32.mrf.mxu0
        %v2657 = vadd.f32 %v2425, %v2656
        %v2658 = vpop.f32.mrf.mxu0
        %v2659 = vadd.f32 %v2425, %v2658
        %2660 = vmatmul.bf16.gmra.mxu0 %v2389
        %v2661 = vpop.f32.mrf.mxu0
        %v2662 = vadd.f32 %v2425, %v2661
        %v2663 = vpop.f32.mrf.mxu0
        %v2664 = vadd.f32 %v2425, %v2663
        %2665 = vmatmul.bf16.gmra.mxu0 %v2391
        %v2666 = vpop.f32.mrf.mxu0
        %v2667 = vadd.f32 %v2425, %v2666
        %v2668 = vpop.f32.mrf.mxu0
        %v2669 = vadd.f32 %v2425, %v2668
        %2670 = vmatmul.bf16.gmra.mxu0 %v2393
        %v2671 = vpop.f32.mrf.mxu0
        %v2672 = vadd.f32 %v2425, %v2671
        %v2673 = vpop.f32.mrf.mxu0
        %v2674 = vadd.f32 %v2425, %v2673
        %2675 = vmatmul.bf16.gmra.mxu0 %v2395
        %v2676 = vpop.f32.mrf.mxu0
        %v2677 = vadd.f32 %v2425, %v2676
        %v2678 = vpop.f32.mrf.mxu0
        %v2679 = vadd.f32 %v2425, %v2678
        %2680 = vmatmul.bf16.gmra.mxu0 %v2397
        %v2681 = vpop.f32.mrf.mxu0
        %v2682 = vadd.f32 %v2425, %v2681
        %v2683 = vpop.f32.mrf.mxu0
        %v2684 = vadd.f32 %v2425, %v2683
        %2685 = vdwg.mxu0
        %2686 = vmatpush.bf16.msra.mxu0 0
        %2687 = vmatpush.bf16.msra.mxu0 0
        %2688 = vmatpush.bf16.msra.mxu0 0
        %2689 = vmatpush.bf16.msra.mxu0 0
        %2690 = vmatpush.bf16.msra.mxu0 %v2523
        %2691 = vmatpush.bf16.msra.mxu0 %v2521
        %2692 = vmatpush.bf16.msra.mxu0 %v2519
        %2693 = vmatpush.bf16.msra.mxu0 %v2517
        %2694 = vmatmul.bf16.gmra.mxu0 %v2550
        %v2695 = vpop.f32.mrf.mxu0
        %v2696 = vadd.f32 %v2607, %v2695
        %v2697 = vpop.f32.mrf.mxu0
        %v2698 = vadd.f32 %v2609, %v2697
        %2699 = vmatmul.bf16.gmra.mxu0 %v2553
        %v2700 = vpop.f32.mrf.mxu0
        %v2701 = vadd.f32 %v2612, %v2700
        %v2702 = vpop.f32.mrf.mxu0
        %v2703 = vadd.f32 %v2614, %v2702
        %2704 = vmatmul.bf16.gmra.mxu0 %v2556
        %v2705 = vpop.f32.mrf.mxu0
        %v2706 = vadd.f32 %v2617, %v2705
        %v2707 = vpop.f32.mrf.mxu0
        %v2708 = vadd.f32 %v2619, %v2707
        %2709 = vmatmul.bf16.gmra.mxu0 %v2559
        %v2710 = vpop.f32.mrf.mxu0
        %v2711 = vadd.f32 %v2622, %v2710
        %v2712 = vpop.f32.mrf.mxu0
        %v2713 = vadd.f32 %v2624, %v2712
        %2714 = vmatmul.bf16.gmra.mxu0 %v2562
        %v2715 = vpop.f32.mrf.mxu0
        %v2716 = vadd.f32 %v2627, %v2715
        %v2717 = vpop.f32.mrf.mxu0
        %v2718 = vadd.f32 %v2629, %v2717
        %2719 = vmatmul.bf16.gmra.mxu0 %v2565
        %v2720 = vpop.f32.mrf.mxu0
        %v2721 = vadd.f32 %v2632, %v2720
        %v2722 = vpop.f32.mrf.mxu0
        %v2723 = vadd.f32 %v2634, %v2722
        %2724 = vmatmul.bf16.gmra.mxu0 %v2568
        %v2725 = vpop.f32.mrf.mxu0
        %v2726 = vadd.f32 %v2637, %v2725
        %v2727 = vpop.f32.mrf.mxu0
        %v2728 = vadd.f32 %v2639, %v2727
        %2729 = vmatmul.bf16.gmra.mxu0 %v2571
        %v2730 = vpop.f32.mrf.mxu0
        %v2731 = vadd.f32 %v2642, %v2730
        %v2732 = vpop.f32.mrf.mxu0
        %v2733 = vadd.f32 %v2644, %v2732
        %2734 = vmatmul.bf16.gmra.mxu0 %v2574
        %v2735 = vpop.f32.mrf.mxu0
        %v2736 = vadd.f32 %v2647, %v2735
        %v2737 = vpop.f32.mrf.mxu0
        %v2738 = vadd.f32 %v2649, %v2737
        %2739 = vmatmul.bf16.gmra.mxu0 %v2577
        %v2740 = vpop.f32.mrf.mxu0
        %v2741 = vadd.f32 %v2652, %v2740
        %v2742 = vpop.f32.mrf.mxu0
        %v2743 = vadd.f32 %v2654, %v2742
        %2744 = vmatmul.bf16.gmra.mxu0 %v2580
        %v2745 = vpop.f32.mrf.mxu0
        %v2746 = vadd.f32 %v2657, %v2745
        %v2747 = vpop.f32.mrf.mxu0
        %v2748 = vadd.f32 %v2659, %v2747
        %2749 = vmatmul.bf16.gmra.mxu0 %v2583
        %v2750 = vpop.f32.mrf.mxu0
        %v2751 = vadd.f32 %v2662, %v2750
        %v2752 = vpop.f32.mrf.mxu0
        %v2753 = vadd.f32 %v2664, %v2752
        %2754 = vmatmul.bf16.gmra.mxu0 %v2586
        %v2755 = vpop.f32.mrf.mxu0
        %v2756 = vadd.f32 %v2667, %v2755
        %v2757 = vpop.f32.mrf.mxu0
        %v2758 = vadd.f32 %v2669, %v2757
        %2759 = vmatmul.bf16.gmra.mxu0 %v2589
        %v2760 = vpop.f32.mrf.mxu0
        %v2761 = vadd.f32 %v2672, %v2760
        %v2762 = vpop.f32.mrf.mxu0
        %v2763 = vadd.f32 %v2674, %v2762
        %2764 = vmatmul.bf16.gmra.mxu0 %v2592
        %v2765 = vpop.f32.mrf.mxu0
        %v2766 = vadd.f32 %v2677, %v2765
        %v2767 = vpop.f32.mrf.mxu0
        %v2768 = vadd.f32 %v2679, %v2767
        %2769 = vmatmul.bf16.gmra.mxu0 %v2595
        %v2770 = vpop.f32.mrf.mxu0
        %v2771 = vadd.f32 %v2682, %v2770
        %v2772 = vpop.f32.mrf.mxu0
        %v2773 = vadd.f32 %v2684, %v2772
        %2774 = vdwg.mxu0
        %2775 = vmatpush.bf16.msra.mxu0 %v2516
        %2776 = vmatpush.bf16.msra.mxu0 %v2514
        %2777 = vmatpush.bf16.msra.mxu0 %v2512
        %2778 = vmatpush.bf16.msra.mxu0 %v2510
        %2779 = vmatpush.bf16.msra.mxu0 %v2508
        %2780 = vmatpush.bf16.msra.mxu0 %v2506
        %2781 = vmatpush.bf16.msra.mxu0 %v2504
        %2782 = vmatpush.bf16.msra.mxu0 %v2502
        %2783 = vmatmul.bf16.gmra.mxu0 %v2367
        %v2784 = vpop.f32.mrf.mxu0
        %v2785 = vadd.f32 %v2426, %v2784
        %v2786 = vpop.f32.mrf.mxu0
        %v2787 = vadd.f32 %v2426, %v2786
        %2788 = vmatmul.bf16.gmra.mxu0 %v2369
        %v2789 = vpop.f32.mrf.mxu0
        %v2790 = vadd.f32 %v2426, %v2789
        %v2791 = vpop.f32.mrf.mxu0
        %v2792 = vadd.f32 %v2426, %v2791
        %2793 = vmatmul.bf16.gmra.mxu0 %v2371
        %v2794 = vpop.f32.mrf.mxu0
        %v2795 = vadd.f32 %v2426, %v2794
        %v2796 = vpop.f32.mrf.mxu0
        %v2797 = vadd.f32 %v2426, %v2796
        %2798 = vmatmul.bf16.gmra.mxu0 %v2373
        %v2799 = vpop.f32.mrf.mxu0
        %v2800 = vadd.f32 %v2426, %v2799
        %v2801 = vpop.f32.mrf.mxu0
        %v2802 = vadd.f32 %v2426, %v2801
        %2803 = vmatmul.bf16.gmra.mxu0 %v2375
        %v2804 = vpop.f32.mrf.mxu0
        %v2805 = vadd.f32 %v2426, %v2804
        %v2806 = vpop.f32.mrf.mxu0
        %v2807 = vadd.f32 %v2426, %v2806
        %2808 = vmatmul.bf16.gmra.mxu0 %v2377
        %v2809 = vpop.f32.mrf.mxu0
        %v2810 = vadd.f32 %v2426, %v2809
        %v2811 = vpop.f32.mrf.mxu0
        %v2812 = vadd.f32 %v2426, %v2811
        %2813 = vmatmul.bf16.gmra.mxu0 %v2379
        %v2814 = vpop.f32.mrf.mxu0
        %v2815 = vadd.f32 %v2426, %v2814
        %v2816 = vpop.f32.mrf.mxu0
        %v2817 = vadd.f32 %v2426, %v2816
        %2818 = vmatmul.bf16.gmra.mxu0 %v2381
        %v2819 = vpop.f32.mrf.mxu0
        %v2820 = vadd.f32 %v2426, %v2819
        %v2821 = vpop.f32.mrf.mxu0
        %v2822 = vadd.f32 %v2426, %v2821
        %2823 = vmatmul.bf16.gmra.mxu0 %v2383
        %v2824 = vpop.f32.mrf.mxu0
        %v2825 = vadd.f32 %v2426, %v2824
        %v2826 = vpop.f32.mrf.mxu0
        %v2827 = vadd.f32 %v2426, %v2826
        %2828 = vmatmul.bf16.gmra.mxu0 %v2385
        %v2829 = vpop.f32.mrf.mxu0
        %v2830 = vadd.f32 %v2426, %v2829
        %v2831 = vpop.f32.mrf.mxu0
        %v2832 = vadd.f32 %v2426, %v2831
        %2833 = vmatmul.bf16.gmra.mxu0 %v2387
        %v2834 = vpop.f32.mrf.mxu0
        %v2835 = vadd.f32 %v2426, %v2834
        %v2836 = vpop.f32.mrf.mxu0
        %v2837 = vadd.f32 %v2426, %v2836
        %2838 = vmatmul.bf16.gmra.mxu0 %v2389
        %v2839 = vpop.f32.mrf.mxu0
        %v2840 = vadd.f32 %v2426, %v2839
        %v2841 = vpop.f32.mrf.mxu0
        %v2842 = vadd.f32 %v2426, %v2841
        %2843 = vmatmul.bf16.gmra.mxu0 %v2391
        %v2844 = vpop.f32.mrf.mxu0
        %v2845 = vadd.f32 %v2426, %v2844
        %v2846 = vpop.f32.mrf.mxu0
        %v2847 = vadd.f32 %v2426, %v2846
        %2848 = vmatmul.bf16.gmra.mxu0 %v2393
        %v2849 = vpop.f32.mrf.mxu0
        %v2850 = vadd.f32 %v2426, %v2849
        %v2851 = vpop.f32.mrf.mxu0
        %v2852 = vadd.f32 %v2426, %v2851
        %2853 = vmatmul.bf16.gmra.mxu0 %v2395
        %v2854 = vpop.f32.mrf.mxu0
        %v2855 = vadd.f32 %v2426, %v2854
        %v2856 = vpop.f32.mrf.mxu0
        %v2857 = vadd.f32 %v2426, %v2856
        %2858 = vmatmul.bf16.gmra.mxu0 %v2397
        %v2859 = vpop.f32.mrf.mxu0
        %v2860 = vadd.f32 %v2426, %v2859
        %v2861 = vpop.f32.mrf.mxu0
        %v2862 = vadd.f32 %v2426, %v2861
        %2863 = vdwg.mxu0
        %2864 = vmatpush.bf16.msra.mxu0 0
        %2865 = vmatpush.bf16.msra.mxu0 0
        %2866 = vmatpush.bf16.msra.mxu0 0
        %2867 = vmatpush.bf16.msra.mxu0 0
        %2868 = vmatpush.bf16.msra.mxu0 %v2524
        %2869 = vmatpush.bf16.msra.mxu0 %v2522
        %2870 = vmatpush.bf16.msra.mxu0 %v2520
        %2871 = vmatpush.bf16.msra.mxu0 %v2518
        %2872 = vmatmul.bf16.gmra.mxu0 %v2550
        %v2873 = vpop.f32.mrf.mxu0
        %v2874 = vadd.f32 %v2785, %v2873
        %v2875 = vpop.f32.mrf.mxu0
        %v2876 = vadd.f32 %v2787, %v2875
        %2877 = vmatmul.bf16.gmra.mxu0 %v2553
        %v2878 = vpop.f32.mrf.mxu0
        %v2879 = vadd.f32 %v2790, %v2878
        %v2880 = vpop.f32.mrf.mxu0
        %v2881 = vadd.f32 %v2792, %v2880
        %2882 = vmatmul.bf16.gmra.mxu0 %v2556
        %v2883 = vpop.f32.mrf.mxu0
        %v2884 = vadd.f32 %v2795, %v2883
        %v2885 = vpop.f32.mrf.mxu0
        %v2886 = vadd.f32 %v2797, %v2885
        %2887 = vmatmul.bf16.gmra.mxu0 %v2559
        %v2888 = vpop.f32.mrf.mxu0
        %v2889 = vadd.f32 %v2800, %v2888
        %v2890 = vpop.f32.mrf.mxu0
        %v2891 = vadd.f32 %v2802, %v2890
        %2892 = vmatmul.bf16.gmra.mxu0 %v2562
        %v2893 = vpop.f32.mrf.mxu0
        %v2894 = vadd.f32 %v2805, %v2893
        %v2895 = vpop.f32.mrf.mxu0
        %v2896 = vadd.f32 %v2807, %v2895
        %2897 = vmatmul.bf16.gmra.mxu0 %v2565
        %v2898 = vpop.f32.mrf.mxu0
        %v2899 = vadd.f32 %v2810, %v2898
        %v2900 = vpop.f32.mrf.mxu0
        %v2901 = vadd.f32 %v2812, %v2900
        %2902 = vmatmul.bf16.gmra.mxu0 %v2568
        %v2903 = vpop.f32.mrf.mxu0
        %v2904 = vadd.f32 %v2815, %v2903
        %v2905 = vpop.f32.mrf.mxu0
        %v2906 = vadd.f32 %v2817, %v2905
        %2907 = vmatmul.bf16.gmra.mxu0 %v2571
        %v2908 = vpop.f32.mrf.mxu0
        %v2909 = vadd.f32 %v2820, %v2908
        %v2910 = vpop.f32.mrf.mxu0
        %v2911 = vadd.f32 %v2822, %v2910
        %2912 = vmatmul.bf16.gmra.mxu0 %v2574
        %v2913 = vpop.f32.mrf.mxu0
        %v2914 = vadd.f32 %v2825, %v2913
        %v2915 = vpop.f32.mrf.mxu0
        %v2916 = vadd.f32 %v2827, %v2915
        %2917 = vmatmul.bf16.gmra.mxu0 %v2577
        %v2918 = vpop.f32.mrf.mxu0
        %v2919 = vadd.f32 %v2830, %v2918
        %v2920 = vpop.f32.mrf.mxu0
        %v2921 = vadd.f32 %v2832, %v2920
        %2922 = vmatmul.bf16.gmra.mxu0 %v2580
        %v2923 = vpop.f32.mrf.mxu0
        %v2924 = vadd.f32 %v2835, %v2923
        %v2925 = vpop.f32.mrf.mxu0
        %v2926 = vadd.f32 %v2837, %v2925
        %2927 = vmatmul.bf16.gmra.mxu0 %v2583
        %v2928 = vpop.f32.mrf.mxu0
        %v2929 = vadd.f32 %v2840, %v2928
        %v2930 = vpop.f32.mrf.mxu0
        %v2931 = vadd.f32 %v2842, %v2930
        %2932 = vmatmul.bf16.gmra.mxu0 %v2586
        %v2933 = vpop.f32.mrf.mxu0
        %v2934 = vadd.f32 %v2845, %v2933
        %v2935 = vpop.f32.mrf.mxu0
        %v2936 = vadd.f32 %v2847, %v2935
        %2937 = vmatmul.bf16.gmra.mxu0 %v2589
        %v2938 = vpop.f32.mrf.mxu0
        %v2939 = vadd.f32 %v2850, %v2938
        %v2940 = vpop.f32.mrf.mxu0
        %v2941 = vadd.f32 %v2852, %v2940
        %2942 = vmatmul.bf16.gmra.mxu0 %v2592
        %v2943 = vpop.f32.mrf.mxu0
        %v2944 = vadd.f32 %v2855, %v2943
        %v2945 = vpop.f32.mrf.mxu0
        %v2946 = vadd.f32 %v2857, %v2945
        %2947 = vmatmul.bf16.gmra.mxu0 %v2595
        %v2948 = vpop.f32.mrf.mxu0
        %v2949 = vadd.f32 %v2860, %v2948
        %v2950 = vpop.f32.mrf.mxu0
        %v2951 = vadd.f32 %v2862, %v2950
        %2952 = vdwg.mxu0
        %vm2953 = vcmp.gt.f32.partialorder %v2696, 0.0
        %vm2954 = vcmp.gt.f32.partialorder %v2874, 0.0
        %vm2955 = vcmp.gt.f32.partialorder %v2698, 0.0
        %vm2956 = vcmp.gt.f32.partialorder %v2876, 0.0
        %vm2957 = vcmp.gt.f32.partialorder %v2701, 0.0
        %vm2958 = vcmp.gt.f32.partialorder %v2879, 0.0
        %vm2959 = vcmp.gt.f32.partialorder %v2703, 0.0
        %vm2960 = vcmp.gt.f32.partialorder %v2881, 0.0
        %vm2961 = vcmp.gt.f32.partialorder %v2706, 0.0
        %vm2962 = vcmp.gt.f32.partialorder %v2884, 0.0
        %vm2963 = vcmp.gt.f32.partialorder %v2708, 0.0
        %vm2964 = vcmp.gt.f32.partialorder %v2886, 0.0
        %vm2965 = vcmp.gt.f32.partialorder %v2711, 0.0
        %vm2966 = vcmp.gt.f32.partialorder %v2889, 0.0
        %vm2967 = vcmp.gt.f32.partialorder %v2713, 0.0
        %vm2968 = vcmp.gt.f32.partialorder %v2891, 0.0
        %vm2969 = vcmp.gt.f32.partialorder %v2716, 0.0
        %vm2970 = vcmp.gt.f32.partialorder %v2894, 0.0
        %vm2971 = vcmp.gt.f32.partialorder %v2718, 0.0
        %vm2972 = vcmp.gt.f32.partialorder %v2896, 0.0
        %vm2973 = vcmp.gt.f32.partialorder %v2721, 0.0
        %vm2974 = vcmp.gt.f32.partialorder %v2899, 0.0
        %vm2975 = vcmp.gt.f32.partialorder %v2723, 0.0
        %vm2976 = vcmp.gt.f32.partialorder %v2901, 0.0
        %vm2977 = vcmp.gt.f32.partialorder %v2726, 0.0
        %vm2978 = vcmp.gt.f32.partialorder %v2904, 0.0
        %vm2979 = vcmp.gt.f32.partialorder %v2728, 0.0
        %vm2980 = vcmp.gt.f32.partialorder %v2906, 0.0
        %vm2981 = vcmp.gt.f32.partialorder %v2731, 0.0
        %vm2982 = vcmp.gt.f32.partialorder %v2909, 0.0
        %vm2983 = vcmp.gt.f32.partialorder %v2733, 0.0
        %vm2984 = vcmp.gt.f32.partialorder %v2911, 0.0
        %vm2985 = vcmp.gt.f32.partialorder %v2736, 0.0
        %vm2986 = vcmp.gt.f32.partialorder %v2914, 0.0
        %vm2987 = vcmp.gt.f32.partialorder %v2738, 0.0
        %vm2988 = vcmp.gt.f32.partialorder %v2916, 0.0
        %vm2989 = vcmp.gt.f32.partialorder %v2741, 0.0
        %vm2990 = vcmp.gt.f32.partialorder %v2919, 0.0
        %vm2991 = vcmp.gt.f32.partialorder %v2743, 0.0
        %vm2992 = vcmp.gt.f32.partialorder %v2921, 0.0
        %vm2993 = vcmp.gt.f32.partialorder %v2746, 0.0
        %vm2994 = vcmp.gt.f32.partialorder %v2924, 0.0
        %vm2995 = vcmp.gt.f32.partialorder %v2748, 0.0
        %vm2996 = vcmp.gt.f32.partialorder %v2926, 0.0
        %vm2997 = vcmp.gt.f32.partialorder %v2751, 0.0
        %vm2998 = vcmp.gt.f32.partialorder %v2929, 0.0
        %vm2999 = vcmp.gt.f32.partialorder %v2753, 0.0
        %vm3000 = vcmp.gt.f32.partialorder %v2931, 0.0
        %vm3001 = vcmp.gt.f32.partialorder %v2756, 0.0
        %vm3002 = vcmp.gt.f32.partialorder %v2934, 0.0
        %vm3003 = vcmp.gt.f32.partialorder %v2758, 0.0
        %vm3004 = vcmp.gt.f32.partialorder %v2936, 0.0
        %vm3005 = vcmp.gt.f32.partialorder %v2761, 0.0
        %vm3006 = vcmp.gt.f32.partialorder %v2939, 0.0
        %vm3007 = vcmp.gt.f32.partialorder %v2763, 0.0
        %vm3008 = vcmp.gt.f32.partialorder %v2941, 0.0
        %vm3009 = vcmp.gt.f32.partialorder %v2766, 0.0
        %vm3010 = vcmp.gt.f32.partialorder %v2944, 0.0
        %vm3011 = vcmp.gt.f32.partialorder %v2768, 0.0
        %vm3012 = vcmp.gt.f32.partialorder %v2946, 0.0
        %vm3013 = vcmp.gt.f32.partialorder %v2771, 0.0
        %vm3014 = vcmp.gt.f32.partialorder %v2949, 0.0
        %vm3015 = vcmp.gt.f32.partialorder %v2773, 0.0
        %vm3016 = vcmp.gt.f32.partialorder %v2951, 0.0
        %v3017 = vmul.f32 %v2696, 0.01
        %v3018 = vmul.f32 %v2874, 0.01
        %v3019 = vmul.f32 %v2698, 0.01
        %v3020 = vmul.f32 %v2876, 0.01
        %v3021 = vmul.f32 %v2701, 0.01
        %v3022 = vmul.f32 %v2879, 0.01
        %v3023 = vmul.f32 %v2703, 0.01
        %v3024 = vmul.f32 %v2881, 0.01
        %v3025 = vmul.f32 %v2706, 0.01
        %v3026 = vmul.f32 %v2884, 0.01
        %v3027 = vmul.f32 %v2708, 0.01
        %v3028 = vmul.f32 %v2886, 0.01
        %v3029 = vmul.f32 %v2711, 0.01
        %v3030 = vmul.f32 %v2889, 0.01
        %v3031 = vmul.f32 %v2713, 0.01
        %v3032 = vmul.f32 %v2891, 0.01
        %v3033 = vmul.f32 %v2716, 0.01
        %v3034 = vmul.f32 %v2894, 0.01
        %v3035 = vmul.f32 %v2718, 0.01
        %v3036 = vmul.f32 %v2896, 0.01
        %v3037 = vmul.f32 %v2721, 0.01
        %v3038 = vmul.f32 %v2899, 0.01
        %v3039 = vmul.f32 %v2723, 0.01
        %v3040 = vmul.f32 %v2901, 0.01
        %v3041 = vmul.f32 %v2726, 0.01
        %v3042 = vmul.f32 %v2904, 0.01
        %v3043 = vmul.f32 %v2728, 0.01
        %v3044 = vmul.f32 %v2906, 0.01
        %v3045 = vmul.f32 %v2731, 0.01
        %v3046 = vmul.f32 %v2909, 0.01
        %v3047 = vmul.f32 %v2733, 0.01
        %v3048 = vmul.f32 %v2911, 0.01
        %v3049 = vmul.f32 %v2736, 0.01
        %v3050 = vmul.f32 %v2914, 0.01
        %v3051 = vmul.f32 %v2738, 0.01
        %v3052 = vmul.f32 %v2916, 0.01
        %v3053 = vmul.f32 %v2741, 0.01
        %v3054 = vmul.f32 %v2919, 0.01
        %v3055 = vmul.f32 %v2743, 0.01
        %v3056 = vmul.f32 %v2921, 0.01
        %v3057 = vmul.f32 %v2746, 0.01
        %v3058 = vmul.f32 %v2924, 0.01
        %v3059 = vmul.f32 %v2748, 0.01
        %v3060 = vmul.f32 %v2926, 0.01
        %v3061 = vmul.f32 %v2751, 0.01
        %v3062 = vmul.f32 %v2929, 0.01
        %v3063 = vmul.f32 %v2753, 0.01
        %v3064 = vmul.f32 %v2931, 0.01
        %v3065 = vmul.f32 %v2756, 0.01
        %v3066 = vmul.f32 %v2934, 0.01
        %v3067 = vmul.f32 %v2758, 0.01
        %v3068 = vmul.f32 %v2936, 0.01
        %v3069 = vmul.f32 %v2761, 0.01
        %v3070 = vmul.f32 %v2939, 0.01
        %v3071 = vmul.f32 %v2763, 0.01
        %v3072 = vmul.f32 %v2941, 0.01
        %v3073 = vmul.f32 %v2766, 0.01
        %v3074 = vmul.f32 %v2944, 0.01
        %v3075 = vmul.f32 %v2768, 0.01
        %v3076 = vmul.f32 %v2946, 0.01
        %v3077 = vmul.f32 %v2771, 0.01
        %v3078 = vmul.f32 %v2949, 0.01
        %v3079 = vmul.f32 %v2773, 0.01
        %v3080 = vmul.f32 %v2951, 0.01
        %v3081 = vsel %vm2953, %v2696, %v3017
        %v3082 = vsel %vm2954, %v2874, %v3018
        %v3083 = vsel %vm2955, %v2698, %v3019
        %v3084 = vsel %vm2956, %v2876, %v3020
        %v3085 = vsel %vm2957, %v2701, %v3021
        %v3086 = vsel %vm2958, %v2879, %v3022
        %v3087 = vsel %vm2959, %v2703, %v3023
        %v3088 = vsel %vm2960, %v2881, %v3024
        %v3089 = vsel %vm2961, %v2706, %v3025
        %v3090 = vsel %vm2962, %v2884, %v3026
        %v3091 = vsel %vm2963, %v2708, %v3027
        %v3092 = vsel %vm2964, %v2886, %v3028
        %v3093 = vsel %vm2965, %v2711, %v3029
        %v3094 = vsel %vm2966, %v2889, %v3030
        %v3095 = vsel %vm2967, %v2713, %v3031
        %v3096 = vsel %vm2968, %v2891, %v3032
        %v3097 = vsel %vm2969, %v2716, %v3033
        %v3098 = vsel %vm2970, %v2894, %v3034
        %v3099 = vsel %vm2971, %v2718, %v3035
        %v3100 = vsel %vm2972, %v2896, %v3036
        %v3101 = vsel %vm2973, %v2721, %v3037
        %v3102 = vsel %vm2974, %v2899, %v3038
        %v3103 = vsel %vm2975, %v2723, %v3039
        %v3104 = vsel %vm2976, %v2901, %v3040
        %v3105 = vsel %vm2977, %v2726, %v3041
        %v3106 = vsel %vm2978, %v2904, %v3042
        %v3107 = vsel %vm2979, %v2728, %v3043
        %v3108 = vsel %vm2980, %v2906, %v3044
        %v3109 = vsel %vm2981, %v2731, %v3045
        %v3110 = vsel %vm2982, %v2909, %v3046
        %v3111 = vsel %vm2983, %v2733, %v3047
        %v3112 = vsel %vm2984, %v2911, %v3048
        %v3113 = vsel %vm2985, %v2736, %v3049
        %v3114 = vsel %vm2986, %v2914, %v3050
        %v3115 = vsel %vm2987, %v2738, %v3051
        %v3116 = vsel %vm2988, %v2916, %v3052
        %v3117 = vsel %vm2989, %v2741, %v3053
        %v3118 = vsel %vm2990, %v2919, %v3054
        %v3119 = vsel %vm2991, %v2743, %v3055
        %v3120 = vsel %vm2992, %v2921, %v3056
        %v3121 = vsel %vm2993, %v2746, %v3057
        %v3122 = vsel %vm2994, %v2924, %v3058
        %v3123 = vsel %vm2995, %v2748, %v3059
        %v3124 = vsel %vm2996, %v2926, %v3060
        %v3125 = vsel %vm2997, %v2751, %v3061
        %v3126 = vsel %vm2998, %v2929, %v3062
        %v3127 = vsel %vm2999, %v2753, %v3063
        %v3128 = vsel %vm3000, %v2931, %v3064
        %v3129 = vsel %vm3001, %v2756, %v3065
        %v3130 = vsel %vm3002, %v2934, %v3066
        %v3131 = vsel %vm3003, %v2758, %v3067
        %v3132 = vsel %vm3004, %v2936, %v3068
        %v3133 = vsel %vm3005, %v2761, %v3069
        %v3134 = vsel %vm3006, %v2939, %v3070
        %v3135 = vsel %vm3007, %v2763, %v3071
        %v3136 = vsel %vm3008, %v2941, %v3072
        %v3137 = vsel %vm3009, %v2766, %v3073
        %v3138 = vsel %vm3010, %v2944, %v3074
        %v3139 = vsel %vm3011, %v2768, %v3075
        %v3140 = vsel %vm3012, %v2946, %v3076
        %v3141 = vsel %vm3013, %v2771, %v3077
        %v3142 = vsel %vm3014, %v2949, %v3078
        %v3143 = vsel %vm3015, %v2773, %v3079
        %v3144 = vsel %vm3016, %v2951, %v3080
        %v3145 = vpack.c.bf16 %v3083, %v3081
        %v3146 = vpack.c.bf16 %v3084, %v3082
        %v3147 = vpack.c.bf16 %v3087, %v3085
        %v3148 = vpack.c.bf16 %v3088, %v3086
        %v3149 = vpack.c.bf16 %v3091, %v3089
        %v3150 = vpack.c.bf16 %v3092, %v3090
        %v3151 = vpack.c.bf16 %v3095, %v3093
        %v3152 = vpack.c.bf16 %v3096, %v3094
        %v3153 = vpack.c.bf16 %v3099, %v3097
        %v3154 = vpack.c.bf16 %v3100, %v3098
        %v3155 = vpack.c.bf16 %v3103, %v3101
        %v3156 = vpack.c.bf16 %v3104, %v3102
        %v3157 = vpack.c.bf16 %v3107, %v3105
        %v3158 = vpack.c.bf16 %v3108, %v3106
        %v3159 = vpack.c.bf16 %v3111, %v3109
        %v3160 = vpack.c.bf16 %v3112, %v3110
        %v3161 = vpack.c.bf16 %v3115, %v3113
        %v3162 = vpack.c.bf16 %v3116, %v3114
        %v3163 = vpack.c.bf16 %v3119, %v3117
        %v3164 = vpack.c.bf16 %v3120, %v3118
        %v3165 = vpack.c.bf16 %v3123, %v3121
        %v3166 = vpack.c.bf16 %v3124, %v3122
        %v3167 = vpack.c.bf16 %v3127, %v3125
        %v3168 = vpack.c.bf16 %v3128, %v3126
        %v3169 = vpack.c.bf16 %v3131, %v3129
        %v3170 = vpack.c.bf16 %v3132, %v3130
        %v3171 = vpack.c.bf16 %v3135, %v3133
        %v3172 = vpack.c.bf16 %v3136, %v3134
        %v3173 = vpack.c.bf16 %v3139, %v3137
        %v3174 = vpack.c.bf16 %v3140, %v3138
        %v3175 = vpack.c.bf16 %v3143, %v3141
        %v3176 = vpack.c.bf16 %v3144, %v3142
        %v3177 = vld [vmem:[#allocation13] sm:$0xff]
        %v3178 = vld [vmem:[#allocation13 + $0x8] sm:$0xff]
        %v3179 = vld [vmem:[#allocation13 + $0x10] sm:$0xff]
        %v3180 = vld [vmem:[#allocation13 + $0x18] sm:$0xff]
        %v3181 = vld [vmem:[#allocation13 + $0x20] sm:$0xff]
        %v3182 = vld [vmem:[#allocation13 + $0x28] sm:$0xff]
        %v3183 = vld [vmem:[#allocation13 + $0x30] sm:$0xff]
        %v3184 = vld [vmem:[#allocation13 + $0x38] sm:$0xff]
        %v3185 = vld [vmem:[#allocation13 + $0x40] sm:$0xff]
        %v3186 = vld [vmem:[#allocation13 + $0x48] sm:$0xff]
        %v3187 = vld [vmem:[#allocation13 + $0x50] sm:$0xff]
        %v3188 = vld [vmem:[#allocation13 + $0x58] sm:$0xff]
        %v3189 = vld [vmem:[#allocation13 + $0x60] sm:$0xff]
        %v3190 = vld [vmem:[#allocation13 + $0x68] sm:$0xff]
        %v3191 = vld [vmem:[#allocation13 + $0x70] sm:$0xff]
        %v3192 = vld [vmem:[#allocation13 + $0x78] sm:$0xff]
        %v3193 = vld [vmem:[#allocation13 + $0x80] sm:$0xff]
        %v3194 = vld [vmem:[#allocation13 + $0x88] sm:$0xff]
        %v3195 = vld [vmem:[#allocation13 + $0x90] sm:$0xff]
        %v3196 = vld [vmem:[#allocation13 + $0x98] sm:$0xff]
        %v3197 = vld [vmem:[#allocation13 + $0xa0] sm:$0xff]
        %v3198 = vld [vmem:[#allocation13 + $0xa8] sm:$0xff]
        %v3199 = vld [vmem:[#allocation13 + $0xb0] sm:$0xff]
        %v3200 = vld [vmem:[#allocation13 + $0xb8] sm:$0xff]
        %v3201 = vld [vmem:[#allocation14] sm:$0x3]
        %v3203 = vperm.slane %v3201, 0
        %v3204 = vperm.slane %v3201, 1
        %v3231 = vunpack.c.l.b16 %v3177
        %v3232 = vunpack.c.h.b16 %v3177
        %v3233 = vunpack.c.l.b16 %v3178
        %v3234 = vunpack.c.h.b16 %v3178
        %v3235 = vunpack.c.l.b16 %v3179
        %v3236 = vunpack.c.h.b16 %v3179
        %v3237 = vunpack.c.l.b16 %v3180
        %v3238 = vunpack.c.h.b16 %v3180
        %v3239 = vunpack.c.l.b16 %v3181
        %v3240 = vunpack.c.h.b16 %v3181
        %v3241 = vunpack.c.l.b16 %v3182
        %v3242 = vunpack.c.h.b16 %v3182
        %v3243 = vunpack.c.l.b16 %v3183
        %v3244 = vunpack.c.h.b16 %v3183
        %v3245 = vunpack.c.l.b16 %v3184
        %v3246 = vunpack.c.h.b16 %v3184
        %v3247 = vunpack.c.l.b16 %v3185
        %v3248 = vunpack.c.h.b16 %v3185
        %v3249 = vunpack.c.l.b16 %v3186
        %v3250 = vunpack.c.h.b16 %v3186
        %v3251 = vunpack.c.l.b16 %v3187
        %v3252 = vunpack.c.h.b16 %v3187
        %v3253 = vunpack.c.l.b16 %v3188
        %v3254 = vunpack.c.h.b16 %v3188
        %v3255 = vunpack.c.l.b16 %v3189
        %v3256 = vunpack.c.h.b16 %v3189
        %v3257 = vunpack.c.l.b16 %v3190
        %v3258 = vunpack.c.h.b16 %v3190
        %v3259 = vunpack.c.l.b16 %v3191
        %v3260 = vunpack.c.h.b16 %v3191
        %v3261 = vunpack.c.l.b16 %v3192
        %v3262 = vunpack.c.h.b16 %v3192
        %v3263 = vunpack.c.l.b16 %v3193
        %v3264 = vunpack.c.h.b16 %v3193
        %v3265 = vunpack.c.l.b16 %v3194
        %v3266 = vunpack.c.h.b16 %v3194
        %v3267 = vunpack.c.l.b16 %v3195
        %v3268 = vunpack.c.h.b16 %v3195
        %v3269 = vunpack.c.l.b16 %v3196
        %v3270 = vunpack.c.h.b16 %v3196
        %v3271 = vunpack.c.l.b16 %v3197
        %v3272 = vunpack.c.h.b16 %v3197
        %v3273 = vunpack.c.l.b16 %v3198
        %v3274 = vunpack.c.h.b16 %v3198
        %v3275 = vunpack.c.l.b16 %v3199
        %v3276 = vunpack.c.h.b16 %v3199
        %v3277 = vunpack.c.l.b16 %v3200
        %v3278 = vunpack.c.h.b16 %v3200
        %v3279 = vpack.c.b16 %v3233, %v3231
        %v3280 = vpack.c.b16 %v3234, %v3232
        %v3281 = vpack.c.b16 %v3237, %v3235
        %v3282 = vpack.c.b16 %v3238, %v3236
        %v3283 = vpack.c.b16 %v3241, %v3239
        %v3284 = vpack.c.b16 %v3242, %v3240
        %v3285 = vpack.c.b16 %v3245, %v3243
        %v3286 = vpack.c.b16 %v3246, %v3244
        %v3287 = vpack.c.b16 %v3249, %v3247
        %v3288 = vpack.c.b16 %v3250, %v3248
        %v3289 = vpack.c.b16 %v3253, %v3251
        %v3290 = vpack.c.b16 %v3254, %v3252
        %v3291 = vpack.c.b16 %v3257, %v3255
        %v3292 = vpack.c.b16 %v3258, %v3256
        %v3293 = vpack.c.b16 %v3261, %v3259
        %v3294 = vpack.c.b16 %v3262, %v3260
        %v3295 = vpack.c.b16 %v3265, %v3263
        %v3296 = vpack.c.b16 %v3266, %v3264
        %v3297 = vpack.c.b16 %v3269, %v3267
        %v3298 = vpack.c.b16 %v3270, %v3268
        %v3299 = vpack.c.b16 %v3273, %v3271
        %v3300 = vpack.c.b16 %v3274, %v3272
        %v3301 = vpack.c.b16 %v3277, %v3275
        %v3302 = vpack.c.b16 %v3278, %v3276
        %v3328 = vsel %vm1058, %v3146, 0
        %v3331 = vsel %vm1058, %v3148, 0
        %v3334 = vsel %vm1058, %v3150, 0
        %v3337 = vsel %vm1058, %v3152, 0
        %v3340 = vsel %vm1058, %v3154, 0
        %v3343 = vsel %vm1058, %v3156, 0
        %v3346 = vsel %vm1058, %v3158, 0
        %v3349 = vsel %vm1058, %v3160, 0
        %v3352 = vsel %vm1058, %v3162, 0
        %v3355 = vsel %vm1058, %v3164, 0
        %v3358 = vsel %vm1058, %v3166, 0
        %v3361 = vsel %vm1058, %v3168, 0
        %v3364 = vsel %vm1058, %v3170, 0
        %v3367 = vsel %vm1058, %v3172, 0
        %v3370 = vsel %vm1058, %v3174, 0
        %v3373 = vsel %vm1058, %v3176, 0
        %3375 = vmatpush.bf16.msra.mxu0 %v3293
        %3376 = vmatpush.bf16.msra.mxu0 %v3291
        %3377 = vmatpush.bf16.msra.mxu0 %v3289
        %3378 = vmatpush.bf16.msra.mxu0 %v3287
        %3379 = vmatpush.bf16.msra.mxu0 %v3285
        %3380 = vmatpush.bf16.msra.mxu0 %v3283
        %3381 = vmatpush.bf16.msra.mxu0 %v3281
        %3382 = vmatpush.bf16.msra.mxu0 %v3279
        %3383 = vmatmul.bf16.gmra.mxu0 %v3145
        %v3384 = vpop.f32.mrf.mxu0
        %v3385 = vadd.f32 %v3203, %v3384
        %v3386 = vpop.f32.mrf.mxu0
        %v3387 = vadd.f32 %v3203, %v3386
        %3388 = vmatmul.bf16.gmra.mxu0 %v3147
        %v3389 = vpop.f32.mrf.mxu0
        %v3390 = vadd.f32 %v3203, %v3389
        %v3391 = vpop.f32.mrf.mxu0
        %v3392 = vadd.f32 %v3203, %v3391
        %3393 = vmatmul.bf16.gmra.mxu0 %v3149
        %v3394 = vpop.f32.mrf.mxu0
        %v3395 = vadd.f32 %v3203, %v3394
        %v3396 = vpop.f32.mrf.mxu0
        %v3397 = vadd.f32 %v3203, %v3396
        %3398 = vmatmul.bf16.gmra.mxu0 %v3151
        %v3399 = vpop.f32.mrf.mxu0
        %v3400 = vadd.f32 %v3203, %v3399
        %v3401 = vpop.f32.mrf.mxu0
        %v3402 = vadd.f32 %v3203, %v3401
        %3403 = vmatmul.bf16.gmra.mxu0 %v3153
        %v3404 = vpop.f32.mrf.mxu0
        %v3405 = vadd.f32 %v3203, %v3404
        %v3406 = vpop.f32.mrf.mxu0
        %v3407 = vadd.f32 %v3203, %v3406
        %3408 = vmatmul.bf16.gmra.mxu0 %v3155
        %v3409 = vpop.f32.mrf.mxu0
        %v3410 = vadd.f32 %v3203, %v3409
        %v3411 = vpop.f32.mrf.mxu0
        %v3412 = vadd.f32 %v3203, %v3411
        %3413 = vmatmul.bf16.gmra.mxu0 %v3157
        %v3414 = vpop.f32.mrf.mxu0
        %v3415 = vadd.f32 %v3203, %v3414
        %v3416 = vpop.f32.mrf.mxu0
        %v3417 = vadd.f32 %v3203, %v3416
        %3418 = vmatmul.bf16.gmra.mxu0 %v3159
        %v3419 = vpop.f32.mrf.mxu0
        %v3420 = vadd.f32 %v3203, %v3419
        %v3421 = vpop.f32.mrf.mxu0
        %v3422 = vadd.f32 %v3203, %v3421
        %3423 = vmatmul.bf16.gmra.mxu0 %v3161
        %v3424 = vpop.f32.mrf.mxu0
        %v3425 = vadd.f32 %v3203, %v3424
        %v3426 = vpop.f32.mrf.mxu0
        %v3427 = vadd.f32 %v3203, %v3426
        %3428 = vmatmul.bf16.gmra.mxu0 %v3163
        %v3429 = vpop.f32.mrf.mxu0
        %v3430 = vadd.f32 %v3203, %v3429
        %v3431 = vpop.f32.mrf.mxu0
        %v3432 = vadd.f32 %v3203, %v3431
        %3433 = vmatmul.bf16.gmra.mxu0 %v3165
        %v3434 = vpop.f32.mrf.mxu0
        %v3435 = vadd.f32 %v3203, %v3434
        %v3436 = vpop.f32.mrf.mxu0
        %v3437 = vadd.f32 %v3203, %v3436
        %3438 = vmatmul.bf16.gmra.mxu0 %v3167
        %v3439 = vpop.f32.mrf.mxu0
        %v3440 = vadd.f32 %v3203, %v3439
        %v3441 = vpop.f32.mrf.mxu0
        %v3442 = vadd.f32 %v3203, %v3441
        %3443 = vmatmul.bf16.gmra.mxu0 %v3169
        %v3444 = vpop.f32.mrf.mxu0
        %v3445 = vadd.f32 %v3203, %v3444
        %v3446 = vpop.f32.mrf.mxu0
        %v3447 = vadd.f32 %v3203, %v3446
        %3448 = vmatmul.bf16.gmra.mxu0 %v3171
        %v3449 = vpop.f32.mrf.mxu0
        %v3450 = vadd.f32 %v3203, %v3449
        %v3451 = vpop.f32.mrf.mxu0
        %v3452 = vadd.f32 %v3203, %v3451
        %3453 = vmatmul.bf16.gmra.mxu0 %v3173
        %v3454 = vpop.f32.mrf.mxu0
        %v3455 = vadd.f32 %v3203, %v3454
        %v3456 = vpop.f32.mrf.mxu0
        %v3457 = vadd.f32 %v3203, %v3456
        %3458 = vmatmul.bf16.gmra.mxu0 %v3175
        %v3459 = vpop.f32.mrf.mxu0
        %v3460 = vadd.f32 %v3203, %v3459
        %v3461 = vpop.f32.mrf.mxu0
        %v3462 = vadd.f32 %v3203, %v3461
        %3463 = vdwg.mxu0
        %3464 = vmatpush.bf16.msra.mxu0 0
        %3465 = vmatpush.bf16.msra.mxu0 0
        %3466 = vmatpush.bf16.msra.mxu0 0
        %3467 = vmatpush.bf16.msra.mxu0 0
        %3468 = vmatpush.bf16.msra.mxu0 %v3301
        %3469 = vmatpush.bf16.msra.mxu0 %v3299
        %3470 = vmatpush.bf16.msra.mxu0 %v3297
        %3471 = vmatpush.bf16.msra.mxu0 %v3295
        %3472 = vmatmul.bf16.gmra.mxu0 %v3328
        %v3473 = vpop.f32.mrf.mxu0
        %v3474 = vadd.f32 %v3385, %v3473
        %v3475 = vpop.f32.mrf.mxu0
        %v3476 = vadd.f32 %v3387, %v3475
        %3477 = vmatmul.bf16.gmra.mxu0 %v3331
        %v3478 = vpop.f32.mrf.mxu0
        %v3479 = vadd.f32 %v3390, %v3478
        %v3480 = vpop.f32.mrf.mxu0
        %v3481 = vadd.f32 %v3392, %v3480
        %3482 = vmatmul.bf16.gmra.mxu0 %v3334
        %v3483 = vpop.f32.mrf.mxu0
        %v3484 = vadd.f32 %v3395, %v3483
        %v3485 = vpop.f32.mrf.mxu0
        %v3486 = vadd.f32 %v3397, %v3485
        %3487 = vmatmul.bf16.gmra.mxu0 %v3337
        %v3488 = vpop.f32.mrf.mxu0
        %v3489 = vadd.f32 %v3400, %v3488
        %v3490 = vpop.f32.mrf.mxu0
        %v3491 = vadd.f32 %v3402, %v3490
        %3492 = vmatmul.bf16.gmra.mxu0 %v3340
        %v3493 = vpop.f32.mrf.mxu0
        %v3494 = vadd.f32 %v3405, %v3493
        %v3495 = vpop.f32.mrf.mxu0
        %v3496 = vadd.f32 %v3407, %v3495
        %3497 = vmatmul.bf16.gmra.mxu0 %v3343
        %v3498 = vpop.f32.mrf.mxu0
        %v3499 = vadd.f32 %v3410, %v3498
        %v3500 = vpop.f32.mrf.mxu0
        %v3501 = vadd.f32 %v3412, %v3500
        %3502 = vmatmul.bf16.gmra.mxu0 %v3346
        %v3503 = vpop.f32.mrf.mxu0
        %v3504 = vadd.f32 %v3415, %v3503
        %v3505 = vpop.f32.mrf.mxu0
        %v3506 = vadd.f32 %v3417, %v3505
        %3507 = vmatmul.bf16.gmra.mxu0 %v3349
        %v3508 = vpop.f32.mrf.mxu0
        %v3509 = vadd.f32 %v3420, %v3508
        %v3510 = vpop.f32.mrf.mxu0
        %v3511 = vadd.f32 %v3422, %v3510
        %3512 = vmatmul.bf16.gmra.mxu0 %v3352
        %v3513 = vpop.f32.mrf.mxu0
        %v3514 = vadd.f32 %v3425, %v3513
        %v3515 = vpop.f32.mrf.mxu0
        %v3516 = vadd.f32 %v3427, %v3515
        %3517 = vmatmul.bf16.gmra.mxu0 %v3355
        %v3518 = vpop.f32.mrf.mxu0
        %v3519 = vadd.f32 %v3430, %v3518
        %v3520 = vpop.f32.mrf.mxu0
        %v3521 = vadd.f32 %v3432, %v3520
        %3522 = vmatmul.bf16.gmra.mxu0 %v3358
        %v3523 = vpop.f32.mrf.mxu0
        %v3524 = vadd.f32 %v3435, %v3523
        %v3525 = vpop.f32.mrf.mxu0
        %v3526 = vadd.f32 %v3437, %v3525
        %3527 = vmatmul.bf16.gmra.mxu0 %v3361
        %v3528 = vpop.f32.mrf.mxu0
        %v3529 = vadd.f32 %v3440, %v3528
        %v3530 = vpop.f32.mrf.mxu0
        %v3531 = vadd.f32 %v3442, %v3530
        %3532 = vmatmul.bf16.gmra.mxu0 %v3364
        %v3533 = vpop.f32.mrf.mxu0
        %v3534 = vadd.f32 %v3445, %v3533
        %v3535 = vpop.f32.mrf.mxu0
        %v3536 = vadd.f32 %v3447, %v3535
        %3537 = vmatmul.bf16.gmra.mxu0 %v3367
        %v3538 = vpop.f32.mrf.mxu0
        %v3539 = vadd.f32 %v3450, %v3538
        %v3540 = vpop.f32.mrf.mxu0
        %v3541 = vadd.f32 %v3452, %v3540
        %3542 = vmatmul.bf16.gmra.mxu0 %v3370
        %v3543 = vpop.f32.mrf.mxu0
        %v3544 = vadd.f32 %v3455, %v3543
        %v3545 = vpop.f32.mrf.mxu0
        %v3546 = vadd.f32 %v3457, %v3545
        %3547 = vmatmul.bf16.gmra.mxu0 %v3373
        %v3548 = vpop.f32.mrf.mxu0
        %v3549 = vadd.f32 %v3460, %v3548
        %v3550 = vpop.f32.mrf.mxu0
        %v3551 = vadd.f32 %v3462, %v3550
        %3552 = vdwg.mxu0
        %3553 = vmatpush.bf16.msra.mxu0 %v3294
        %3554 = vmatpush.bf16.msra.mxu0 %v3292
        %3555 = vmatpush.bf16.msra.mxu0 %v3290
        %3556 = vmatpush.bf16.msra.mxu0 %v3288
        %3557 = vmatpush.bf16.msra.mxu0 %v3286
        %3558 = vmatpush.bf16.msra.mxu0 %v3284
        %3559 = vmatpush.bf16.msra.mxu0 %v3282
        %3560 = vmatpush.bf16.msra.mxu0 %v3280
        %3561 = vmatmul.bf16.gmra.mxu0 %v3145
        %v3562 = vpop.f32.mrf.mxu0
        %v3563 = vadd.f32 %v3204, %v3562
        %v3564 = vpop.f32.mrf.mxu0
        %v3565 = vadd.f32 %v3204, %v3564
        %3566 = vmatmul.bf16.gmra.mxu0 %v3147
        %v3567 = vpop.f32.mrf.mxu0
        %v3568 = vadd.f32 %v3204, %v3567
        %v3569 = vpop.f32.mrf.mxu0
        %v3570 = vadd.f32 %v3204, %v3569
        %3571 = vmatmul.bf16.gmra.mxu0 %v3149
        %v3572 = vpop.f32.mrf.mxu0
        %v3573 = vadd.f32 %v3204, %v3572
        %v3574 = vpop.f32.mrf.mxu0
        %v3575 = vadd.f32 %v3204, %v3574
        %3576 = vmatmul.bf16.gmra.mxu0 %v3151
        %v3577 = vpop.f32.mrf.mxu0
        %v3578 = vadd.f32 %v3204, %v3577
        %v3579 = vpop.f32.mrf.mxu0
        %v3580 = vadd.f32 %v3204, %v3579
        %3581 = vmatmul.bf16.gmra.mxu0 %v3153
        %v3582 = vpop.f32.mrf.mxu0
        %v3583 = vadd.f32 %v3204, %v3582
        %v3584 = vpop.f32.mrf.mxu0
        %v3585 = vadd.f32 %v3204, %v3584
        %3586 = vmatmul.bf16.gmra.mxu0 %v3155
        %v3587 = vpop.f32.mrf.mxu0
        %v3588 = vadd.f32 %v3204, %v3587
        %v3589 = vpop.f32.mrf.mxu0
        %v3590 = vadd.f32 %v3204, %v3589
        %3591 = vmatmul.bf16.gmra.mxu0 %v3157
        %v3592 = vpop.f32.mrf.mxu0
        %v3593 = vadd.f32 %v3204, %v3592
        %v3594 = vpop.f32.mrf.mxu0
        %v3595 = vadd.f32 %v3204, %v3594
        %3596 = vmatmul.bf16.gmra.mxu0 %v3159
        %v3597 = vpop.f32.mrf.mxu0
        %v3598 = vadd.f32 %v3204, %v3597
        %v3599 = vpop.f32.mrf.mxu0
        %v3600 = vadd.f32 %v3204, %v3599
        %3601 = vmatmul.bf16.gmra.mxu0 %v3161
        %v3602 = vpop.f32.mrf.mxu0
        %v3603 = vadd.f32 %v3204, %v3602
        %v3604 = vpop.f32.mrf.mxu0
        %v3605 = vadd.f32 %v3204, %v3604
        %3606 = vmatmul.bf16.gmra.mxu0 %v3163
        %v3607 = vpop.f32.mrf.mxu0
        %v3608 = vadd.f32 %v3204, %v3607
        %v3609 = vpop.f32.mrf.mxu0
        %v3610 = vadd.f32 %v3204, %v3609
        %3611 = vmatmul.bf16.gmra.mxu0 %v3165
        %v3612 = vpop.f32.mrf.mxu0
        %v3613 = vadd.f32 %v3204, %v3612
        %v3614 = vpop.f32.mrf.mxu0
        %v3615 = vadd.f32 %v3204, %v3614
        %3616 = vmatmul.bf16.gmra.mxu0 %v3167
        %v3617 = vpop.f32.mrf.mxu0
        %v3618 = vadd.f32 %v3204, %v3617
        %v3619 = vpop.f32.mrf.mxu0
        %v3620 = vadd.f32 %v3204, %v3619
        %3621 = vmatmul.bf16.gmra.mxu0 %v3169
        %v3622 = vpop.f32.mrf.mxu0
        %v3623 = vadd.f32 %v3204, %v3622
        %v3624 = vpop.f32.mrf.mxu0
        %v3625 = vadd.f32 %v3204, %v3624
        %3626 = vmatmul.bf16.gmra.mxu0 %v3171
        %v3627 = vpop.f32.mrf.mxu0
        %v3628 = vadd.f32 %v3204, %v3627
        %v3629 = vpop.f32.mrf.mxu0
        %v3630 = vadd.f32 %v3204, %v3629
        %3631 = vmatmul.bf16.gmra.mxu0 %v3173
        %v3632 = vpop.f32.mrf.mxu0
        %v3633 = vadd.f32 %v3204, %v3632
        %v3634 = vpop.f32.mrf.mxu0
        %v3635 = vadd.f32 %v3204, %v3634
        %3636 = vmatmul.bf16.gmra.mxu0 %v3175
        %v3637 = vpop.f32.mrf.mxu0
        %v3638 = vadd.f32 %v3204, %v3637
        %v3639 = vpop.f32.mrf.mxu0
        %v3640 = vadd.f32 %v3204, %v3639
        %3641 = vdwg.mxu0
        %3642 = vmatpush.bf16.msra.mxu0 0
        %3643 = vmatpush.bf16.msra.mxu0 0
        %3644 = vmatpush.bf16.msra.mxu0 0
        %3645 = vmatpush.bf16.msra.mxu0 0
        %3646 = vmatpush.bf16.msra.mxu0 %v3302
        %3647 = vmatpush.bf16.msra.mxu0 %v3300
        %3648 = vmatpush.bf16.msra.mxu0 %v3298
        %3649 = vmatpush.bf16.msra.mxu0 %v3296
        %3650 = vmatmul.bf16.gmra.mxu0 %v3328
        %v3651 = vpop.f32.mrf.mxu0
        %v3652 = vadd.f32 %v3563, %v3651
        %v3653 = vpop.f32.mrf.mxu0
        %v3654 = vadd.f32 %v3565, %v3653
        %3655 = vmatmul.bf16.gmra.mxu0 %v3331
        %v3656 = vpop.f32.mrf.mxu0
        %v3657 = vadd.f32 %v3568, %v3656
        %v3658 = vpop.f32.mrf.mxu0
        %v3659 = vadd.f32 %v3570, %v3658
        %3660 = vmatmul.bf16.gmra.mxu0 %v3334
        %v3661 = vpop.f32.mrf.mxu0
        %v3662 = vadd.f32 %v3573, %v3661
        %v3663 = vpop.f32.mrf.mxu0
        %v3664 = vadd.f32 %v3575, %v3663
        %3665 = vmatmul.bf16.gmra.mxu0 %v3337
        %v3666 = vpop.f32.mrf.mxu0
        %v3667 = vadd.f32 %v3578, %v3666
        %v3668 = vpop.f32.mrf.mxu0
        %v3669 = vadd.f32 %v3580, %v3668
        %3670 = vmatmul.bf16.gmra.mxu0 %v3340
        %v3671 = vpop.f32.mrf.mxu0
        %v3672 = vadd.f32 %v3583, %v3671
        %v3673 = vpop.f32.mrf.mxu0
        %v3674 = vadd.f32 %v3585, %v3673
        %3675 = vmatmul.bf16.gmra.mxu0 %v3343
        %v3676 = vpop.f32.mrf.mxu0
        %v3677 = vadd.f32 %v3588, %v3676
        %v3678 = vpop.f32.mrf.mxu0
        %v3679 = vadd.f32 %v3590, %v3678
        %3680 = vmatmul.bf16.gmra.mxu0 %v3346
        %v3681 = vpop.f32.mrf.mxu0
        %v3682 = vadd.f32 %v3593, %v3681
        %v3683 = vpop.f32.mrf.mxu0
        %v3684 = vadd.f32 %v3595, %v3683
        %3685 = vmatmul.bf16.gmra.mxu0 %v3349
        %v3686 = vpop.f32.mrf.mxu0
        %v3687 = vadd.f32 %v3598, %v3686
        %v3688 = vpop.f32.mrf.mxu0
        %v3689 = vadd.f32 %v3600, %v3688
        %3690 = vmatmul.bf16.gmra.mxu0 %v3352
        %v3691 = vpop.f32.mrf.mxu0
        %v3692 = vadd.f32 %v3603, %v3691
        %v3693 = vpop.f32.mrf.mxu0
        %v3694 = vadd.f32 %v3605, %v3693
        %3695 = vmatmul.bf16.gmra.mxu0 %v3355
        %v3696 = vpop.f32.mrf.mxu0
        %v3697 = vadd.f32 %v3608, %v3696
        %v3698 = vpop.f32.mrf.mxu0
        %v3699 = vadd.f32 %v3610, %v3698
        %3700 = vmatmul.bf16.gmra.mxu0 %v3358
        %v3701 = vpop.f32.mrf.mxu0
        %v3702 = vadd.f32 %v3613, %v3701
        %v3703 = vpop.f32.mrf.mxu0
        %v3704 = vadd.f32 %v3615, %v3703
        %3705 = vmatmul.bf16.gmra.mxu0 %v3361
        %v3706 = vpop.f32.mrf.mxu0
        %v3707 = vadd.f32 %v3618, %v3706
        %v3708 = vpop.f32.mrf.mxu0
        %v3709 = vadd.f32 %v3620, %v3708
        %3710 = vmatmul.bf16.gmra.mxu0 %v3364
        %v3711 = vpop.f32.mrf.mxu0
        %v3712 = vadd.f32 %v3623, %v3711
        %v3713 = vpop.f32.mrf.mxu0
        %v3714 = vadd.f32 %v3625, %v3713
        %3715 = vmatmul.bf16.gmra.mxu0 %v3367
        %v3716 = vpop.f32.mrf.mxu0
        %v3717 = vadd.f32 %v3628, %v3716
        %v3718 = vpop.f32.mrf.mxu0
        %v3719 = vadd.f32 %v3630, %v3718
        %3720 = vmatmul.bf16.gmra.mxu0 %v3370
        %v3721 = vpop.f32.mrf.mxu0
        %v3722 = vadd.f32 %v3633, %v3721
        %v3723 = vpop.f32.mrf.mxu0
        %v3724 = vadd.f32 %v3635, %v3723
        %3725 = vmatmul.bf16.gmra.mxu0 %v3373
        %v3726 = vpop.f32.mrf.mxu0
        %v3727 = vadd.f32 %v3638, %v3726
        %v3728 = vpop.f32.mrf.mxu0
        %v3729 = vadd.f32 %v3640, %v3728
        %3730 = vdwg.mxu0
        %vm3731 = vcmp.gt.f32.partialorder %v1562, 0.0
        %vm3732 = vcmp.gt.f32.partialorder %v1740, 0.0
        %vm3733 = vcmp.gt.f32.partialorder %v1564, 0.0
        %vm3734 = vcmp.gt.f32.partialorder %v1742, 0.0
        %vm3735 = vcmp.gt.f32.partialorder %v1567, 0.0
        %vm3736 = vcmp.gt.f32.partialorder %v1745, 0.0
        %vm3737 = vcmp.gt.f32.partialorder %v1569, 0.0
        %vm3738 = vcmp.gt.f32.partialorder %v1747, 0.0
        %vm3739 = vcmp.gt.f32.partialorder %v1572, 0.0
        %vm3740 = vcmp.gt.f32.partialorder %v1750, 0.0
        %vm3741 = vcmp.gt.f32.partialorder %v1574, 0.0
        %vm3742 = vcmp.gt.f32.partialorder %v1752, 0.0
        %vm3743 = vcmp.gt.f32.partialorder %v1577, 0.0
        %vm3744 = vcmp.gt.f32.partialorder %v1755, 0.0
        %vm3745 = vcmp.gt.f32.partialorder %v1579, 0.0
        %vm3746 = vcmp.gt.f32.partialorder %v1757, 0.0
        %vm3747 = vcmp.gt.f32.partialorder %v1582, 0.0
        %vm3748 = vcmp.gt.f32.partialorder %v1760, 0.0
        %vm3749 = vcmp.gt.f32.partialorder %v1584, 0.0
        %vm3750 = vcmp.gt.f32.partialorder %v1762, 0.0
        %vm3751 = vcmp.gt.f32.partialorder %v1587, 0.0
        %vm3752 = vcmp.gt.f32.partialorder %v1765, 0.0
        %vm3753 = vcmp.gt.f32.partialorder %v1589, 0.0
        %vm3754 = vcmp.gt.f32.partialorder %v1767, 0.0
        %vm3755 = vcmp.gt.f32.partialorder %v1592, 0.0
        %vm3756 = vcmp.gt.f32.partialorder %v1770, 0.0
        %vm3757 = vcmp.gt.f32.partialorder %v1594, 0.0
        %vm3758 = vcmp.gt.f32.partialorder %v1772, 0.0
        %vm3759 = vcmp.gt.f32.partialorder %v1597, 0.0
        %vm3760 = vcmp.gt.f32.partialorder %v1775, 0.0
        %vm3761 = vcmp.gt.f32.partialorder %v1599, 0.0
        %vm3762 = vcmp.gt.f32.partialorder %v1777, 0.0
        %vm3763 = vcmp.gt.f32.partialorder %v1602, 0.0
        %vm3764 = vcmp.gt.f32.partialorder %v1780, 0.0
        %vm3765 = vcmp.gt.f32.partialorder %v1604, 0.0
        %vm3766 = vcmp.gt.f32.partialorder %v1782, 0.0
        %vm3767 = vcmp.gt.f32.partialorder %v1607, 0.0
        %vm3768 = vcmp.gt.f32.partialorder %v1785, 0.0
        %vm3769 = vcmp.gt.f32.partialorder %v1609, 0.0
        %vm3770 = vcmp.gt.f32.partialorder %v1787, 0.0
        %vm3771 = vcmp.gt.f32.partialorder %v1612, 0.0
        %vm3772 = vcmp.gt.f32.partialorder %v1790, 0.0
        %vm3773 = vcmp.gt.f32.partialorder %v1614, 0.0
        %vm3774 = vcmp.gt.f32.partialorder %v1792, 0.0
        %vm3775 = vcmp.gt.f32.partialorder %v1617, 0.0
        %vm3776 = vcmp.gt.f32.partialorder %v1795, 0.0
        %vm3777 = vcmp.gt.f32.partialorder %v1619, 0.0
        %vm3778 = vcmp.gt.f32.partialorder %v1797, 0.0
        %vm3779 = vcmp.gt.f32.partialorder %v1622, 0.0
        %vm3780 = vcmp.gt.f32.partialorder %v1800, 0.0
        %vm3781 = vcmp.gt.f32.partialorder %v1624, 0.0
        %vm3782 = vcmp.gt.f32.partialorder %v1802, 0.0
        %vm3783 = vcmp.gt.f32.partialorder %v1627, 0.0
        %vm3784 = vcmp.gt.f32.partialorder %v1805, 0.0
        %vm3785 = vcmp.gt.f32.partialorder %v1629, 0.0
        %vm3786 = vcmp.gt.f32.partialorder %v1807, 0.0
        %vm3787 = vcmp.gt.f32.partialorder %v1632, 0.0
        %vm3788 = vcmp.gt.f32.partialorder %v1810, 0.0
        %vm3789 = vcmp.gt.f32.partialorder %v1634, 0.0
        %vm3790 = vcmp.gt.f32.partialorder %v1812, 0.0
        %vm3791 = vcmp.gt.f32.partialorder %v1637, 0.0
        %vm3792 = vcmp.gt.f32.partialorder %v1815, 0.0
        %vm3793 = vcmp.gt.f32.partialorder %v1639, 0.0
        %vm3794 = vcmp.gt.f32.partialorder %v1817, 0.0
        %v3795 = vmul.f32 %v1562, 0.01
        %v3796 = vmul.f32 %v1740, 0.01
        %v3797 = vmul.f32 %v1564, 0.01
        %v3798 = vmul.f32 %v1742, 0.01
        %v3799 = vmul.f32 %v1567, 0.01
        %v3800 = vmul.f32 %v1745, 0.01
        %v3801 = vmul.f32 %v1569, 0.01
        %v3802 = vmul.f32 %v1747, 0.01
        %v3803 = vmul.f32 %v1572, 0.01
        %v3804 = vmul.f32 %v1750, 0.01
        %v3805 = vmul.f32 %v1574, 0.01
        %v3806 = vmul.f32 %v1752, 0.01
        %v3807 = vmul.f32 %v1577, 0.01
        %v3808 = vmul.f32 %v1755, 0.01
        %v3809 = vmul.f32 %v1579, 0.01
        %v3810 = vmul.f32 %v1757, 0.01
        %v3811 = vmul.f32 %v1582, 0.01
        %v3812 = vmul.f32 %v1760, 0.01
        %v3813 = vmul.f32 %v1584, 0.01
        %v3814 = vmul.f32 %v1762, 0.01
        %v3815 = vmul.f32 %v1587, 0.01
        %v3816 = vmul.f32 %v1765, 0.01
        %v3817 = vmul.f32 %v1589, 0.01
        %v3818 = vmul.f32 %v1767, 0.01
        %v3819 = vmul.f32 %v1592, 0.01
        %v3820 = vmul.f32 %v1770, 0.01
        %v3821 = vmul.f32 %v1594, 0.01
        %v3822 = vmul.f32 %v1772, 0.01
        %v3823 = vmul.f32 %v1597, 0.01
        %v3824 = vmul.f32 %v1775, 0.01
        %v3825 = vmul.f32 %v1599, 0.01
        %v3826 = vmul.f32 %v1777, 0.01
        %v3827 = vmul.f32 %v1602, 0.01
        %v3828 = vmul.f32 %v1780, 0.01
        %v3829 = vmul.f32 %v1604, 0.01
        %v3830 = vmul.f32 %v1782, 0.01
        %v3831 = vmul.f32 %v1607, 0.01
        %v3832 = vmul.f32 %v1785, 0.01
        %v3833 = vmul.f32 %v1609, 0.01
        %v3834 = vmul.f32 %v1787, 0.01
        %v3835 = vmul.f32 %v1612, 0.01
        %v3836 = vmul.f32 %v1790, 0.01
        %v3837 = vmul.f32 %v1614, 0.01
        %v3838 = vmul.f32 %v1792, 0.01
        %v3839 = vmul.f32 %v1617, 0.01
        %v3840 = vmul.f32 %v1795, 0.01
        %v3841 = vmul.f32 %v1619, 0.01
        %v3842 = vmul.f32 %v1797, 0.01
        %v3843 = vmul.f32 %v1622, 0.01
        %v3844 = vmul.f32 %v1800, 0.01
        %v3845 = vmul.f32 %v1624, 0.01
        %v3846 = vmul.f32 %v1802, 0.01
        %v3847 = vmul.f32 %v1627, 0.01
        %v3848 = vmul.f32 %v1805, 0.01
        %v3849 = vmul.f32 %v1629, 0.01
        %v3850 = vmul.f32 %v1807, 0.01
        %v3851 = vmul.f32 %v1632, 0.01
        %v3852 = vmul.f32 %v1810, 0.01
        %v3853 = vmul.f32 %v1634, 0.01
        %v3854 = vmul.f32 %v1812, 0.01
        %v3855 = vmul.f32 %v1637, 0.01
        %v3856 = vmul.f32 %v1815, 0.01
        %v3857 = vmul.f32 %v1639, 0.01
        %v3858 = vmul.f32 %v1817, 0.01
        %v3859 = vsel %vm3731, %v1562, %v3795
        %v3860 = vsel %vm3732, %v1740, %v3796
        %v3861 = vsel %vm3733, %v1564, %v3797
        %v3862 = vsel %vm3734, %v1742, %v3798
        %v3863 = vsel %vm3735, %v1567, %v3799
        %v3864 = vsel %vm3736, %v1745, %v3800
        %v3865 = vsel %vm3737, %v1569, %v3801
        %v3866 = vsel %vm3738, %v1747, %v3802
        %v3867 = vsel %vm3739, %v1572, %v3803
        %v3868 = vsel %vm3740, %v1750, %v3804
        %v3869 = vsel %vm3741, %v1574, %v3805
        %v3870 = vsel %vm3742, %v1752, %v3806
        %v3871 = vsel %vm3743, %v1577, %v3807
        %v3872 = vsel %vm3744, %v1755, %v3808
        %v3873 = vsel %vm3745, %v1579, %v3809
        %v3874 = vsel %vm3746, %v1757, %v3810
        %v3875 = vsel %vm3747, %v1582, %v3811
        %v3876 = vsel %vm3748, %v1760, %v3812
        %v3877 = vsel %vm3749, %v1584, %v3813
        %v3878 = vsel %vm3750, %v1762, %v3814
        %v3879 = vsel %vm3751, %v1587, %v3815
        %v3880 = vsel %vm3752, %v1765, %v3816
        %v3881 = vsel %vm3753, %v1589, %v3817
        %v3882 = vsel %vm3754, %v1767, %v3818
        %v3883 = vsel %vm3755, %v1592, %v3819
        %v3884 = vsel %vm3756, %v1770, %v3820
        %v3885 = vsel %vm3757, %v1594, %v3821
        %v3886 = vsel %vm3758, %v1772, %v3822
        %v3887 = vsel %vm3759, %v1597, %v3823
        %v3888 = vsel %vm3760, %v1775, %v3824
        %v3889 = vsel %vm3761, %v1599, %v3825
        %v3890 = vsel %vm3762, %v1777, %v3826
        %v3891 = vsel %vm3763, %v1602, %v3827
        %v3892 = vsel %vm3764, %v1780, %v3828
        %v3893 = vsel %vm3765, %v1604, %v3829
        %v3894 = vsel %vm3766, %v1782, %v3830
        %v3895 = vsel %vm3767, %v1607, %v3831
        %v3896 = vsel %vm3768, %v1785, %v3832
        %v3897 = vsel %vm3769, %v1609, %v3833
        %v3898 = vsel %vm3770, %v1787, %v3834
        %v3899 = vsel %vm3771, %v1612, %v3835
        %v3900 = vsel %vm3772, %v1790, %v3836
        %v3901 = vsel %vm3773, %v1614, %v3837
        %v3902 = vsel %vm3774, %v1792, %v3838
        %v3903 = vsel %vm3775, %v1617, %v3839
        %v3904 = vsel %vm3776, %v1795, %v3840
        %v3905 = vsel %vm3777, %v1619, %v3841
        %v3906 = vsel %vm3778, %v1797, %v3842
        %v3907 = vsel %vm3779, %v1622, %v3843
        %v3908 = vsel %vm3780, %v1800, %v3844
        %v3909 = vsel %vm3781, %v1624, %v3845
        %v3910 = vsel %vm3782, %v1802, %v3846
        %v3911 = vsel %vm3783, %v1627, %v3847
        %v3912 = vsel %vm3784, %v1805, %v3848
        %v3913 = vsel %vm3785, %v1629, %v3849
        %v3914 = vsel %vm3786, %v1807, %v3850
        %v3915 = vsel %vm3787, %v1632, %v3851
        %v3916 = vsel %vm3788, %v1810, %v3852
        %v3917 = vsel %vm3789, %v1634, %v3853
        %v3918 = vsel %vm3790, %v1812, %v3854
        %v3919 = vsel %vm3791, %v1637, %v3855
        %v3920 = vsel %vm3792, %v1815, %v3856
        %v3921 = vsel %vm3793, %v1639, %v3857
        %v3922 = vsel %vm3794, %v1817, %v3858
        %v3923 = vpack.c.bf16 %v3861, %v3859
        %v3924 = vpack.c.bf16 %v3862, %v3860
        %v3925 = vpack.c.bf16 %v3865, %v3863
        %v3926 = vpack.c.bf16 %v3866, %v3864
        %v3927 = vpack.c.bf16 %v3869, %v3867
        %v3928 = vpack.c.bf16 %v3870, %v3868
        %v3929 = vpack.c.bf16 %v3873, %v3871
        %v3930 = vpack.c.bf16 %v3874, %v3872
        %v3931 = vpack.c.bf16 %v3877, %v3875
        %v3932 = vpack.c.bf16 %v3878, %v3876
        %v3933 = vpack.c.bf16 %v3881, %v3879
        %v3934 = vpack.c.bf16 %v3882, %v3880
        %v3935 = vpack.c.bf16 %v3885, %v3883
        %v3936 = vpack.c.bf16 %v3886, %v3884
        %v3937 = vpack.c.bf16 %v3889, %v3887
        %v3938 = vpack.c.bf16 %v3890, %v3888
        %v3939 = vpack.c.bf16 %v3893, %v3891
        %v3940 = vpack.c.bf16 %v3894, %v3892
        %v3941 = vpack.c.bf16 %v3897, %v3895
        %v3942 = vpack.c.bf16 %v3898, %v3896
        %v3943 = vpack.c.bf16 %v3901, %v3899
        %v3944 = vpack.c.bf16 %v3902, %v3900
        %v3945 = vpack.c.bf16 %v3905, %v3903
        %v3946 = vpack.c.bf16 %v3906, %v3904
        %v3947 = vpack.c.bf16 %v3909, %v3907
        %v3948 = vpack.c.bf16 %v3910, %v3908
        %v3949 = vpack.c.bf16 %v3913, %v3911
        %v3950 = vpack.c.bf16 %v3914, %v3912
        %v3951 = vpack.c.bf16 %v3917, %v3915
        %v3952 = vpack.c.bf16 %v3918, %v3916
        %v3953 = vpack.c.bf16 %v3921, %v3919
        %v3954 = vpack.c.bf16 %v3922, %v3920
        %s3955 = scalar_lea.vmem [#allocation10], 192
        %v3956 = vld [vmem:[%s3955] sm:$0xff]
        %v3957 = vld [vmem:[%s3955 + $0x8] sm:$0xff]
        %v3958 = vld [vmem:[%s3955 + $0x10] sm:$0xff]
        %v3959 = vld [vmem:[%s3955 + $0x18] sm:$0xff]
        %v3960 = vld [vmem:[%s3955 + $0x20] sm:$0xff]
        %v3961 = vld [vmem:[%s3955 + $0x28] sm:$0xff]
        %v3962 = vld [vmem:[%s3955 + $0x30] sm:$0xff]
        %v3963 = vld [vmem:[%s3955 + $0x38] sm:$0xff]
        %v3964 = vld [vmem:[%s3955 + $0x40] sm:$0xff]
        %v3965 = vld [vmem:[%s3955 + $0x48] sm:$0xff]
        %v3966 = vld [vmem:[%s3955 + $0x50] sm:$0xff]
        %v3967 = vld [vmem:[%s3955 + $0x58] sm:$0xff]
        %v3968 = vld [vmem:[%s3955 + $0x60] sm:$0xff]
        %v3969 = vld [vmem:[%s3955 + $0x68] sm:$0xff]
        %v3970 = vld [vmem:[%s3955 + $0x70] sm:$0xff]
        %v3971 = vld [vmem:[%s3955 + $0x78] sm:$0xff]
        %v3972 = vld [vmem:[%s3955 + $0x80] sm:$0xff]
        %v3973 = vld [vmem:[%s3955 + $0x88] sm:$0xff]
        %v3974 = vld [vmem:[%s3955 + $0x90] sm:$0xff]
        %v3975 = vld [vmem:[%s3955 + $0x98] sm:$0xff]
        %v3976 = vld [vmem:[%s3955 + $0xa0] sm:$0xff]
        %v3977 = vld [vmem:[%s3955 + $0xa8] sm:$0xff]
        %v3978 = vld [vmem:[%s3955 + $0xb0] sm:$0xff]
        %v3979 = vld [vmem:[%s3955 + $0xb8] sm:$0xff]
        %s3980 = scalar_lea.vmem [#allocation11], 2
        %v3981 = vld [vmem:[%s3980] sm:$0x3]
        %v3983 = vperm.slane %v3981, 0
        %v3984 = vperm.slane %v3981, 1
        %v4011 = vunpack.c.l.b16 %v3956
        %v4012 = vunpack.c.h.b16 %v3956
        %v4013 = vunpack.c.l.b16 %v3957
        %v4014 = vunpack.c.h.b16 %v3957
        %v4015 = vunpack.c.l.b16 %v3958
        %v4016 = vunpack.c.h.b16 %v3958
        %v4017 = vunpack.c.l.b16 %v3959
        %v4018 = vunpack.c.h.b16 %v3959
        %v4019 = vunpack.c.l.b16 %v3960
        %v4020 = vunpack.c.h.b16 %v3960
        %v4021 = vunpack.c.l.b16 %v3961
        %v4022 = vunpack.c.h.b16 %v3961
        %v4023 = vunpack.c.l.b16 %v3962
        %v4024 = vunpack.c.h.b16 %v3962
        %v4025 = vunpack.c.l.b16 %v3963
        %v4026 = vunpack.c.h.b16 %v3963
        %v4027 = vunpack.c.l.b16 %v3964
        %v4028 = vunpack.c.h.b16 %v3964
        %v4029 = vunpack.c.l.b16 %v3965
        %v4030 = vunpack.c.h.b16 %v3965
        %v4031 = vunpack.c.l.b16 %v3966
        %v4032 = vunpack.c.h.b16 %v3966
        %v4033 = vunpack.c.l.b16 %v3967
        %v4034 = vunpack.c.h.b16 %v3967
        %v4035 = vunpack.c.l.b16 %v3968
        %v4036 = vunpack.c.h.b16 %v3968
        %v4037 = vunpack.c.l.b16 %v3969
        %v4038 = vunpack.c.h.b16 %v3969
        %v4039 = vunpack.c.l.b16 %v3970
        %v4040 = vunpack.c.h.b16 %v3970
        %v4041 = vunpack.c.l.b16 %v3971
        %v4042 = vunpack.c.h.b16 %v3971
        %v4043 = vunpack.c.l.b16 %v3972
        %v4044 = vunpack.c.h.b16 %v3972
        %v4045 = vunpack.c.l.b16 %v3973
        %v4046 = vunpack.c.h.b16 %v3973
        %v4047 = vunpack.c.l.b16 %v3974
        %v4048 = vunpack.c.h.b16 %v3974
        %v4049 = vunpack.c.l.b16 %v3975
        %v4050 = vunpack.c.h.b16 %v3975
        %v4051 = vunpack.c.l.b16 %v3976
        %v4052 = vunpack.c.h.b16 %v3976
        %v4053 = vunpack.c.l.b16 %v3977
        %v4054 = vunpack.c.h.b16 %v3977
        %v4055 = vunpack.c.l.b16 %v3978
        %v4056 = vunpack.c.h.b16 %v3978
        %v4057 = vunpack.c.l.b16 %v3979
        %v4058 = vunpack.c.h.b16 %v3979
        %v4059 = vpack.c.b16 %v4013, %v4011
        %v4060 = vpack.c.b16 %v4014, %v4012
        %v4061 = vpack.c.b16 %v4017, %v4015
        %v4062 = vpack.c.b16 %v4018, %v4016
        %v4063 = vpack.c.b16 %v4021, %v4019
        %v4064 = vpack.c.b16 %v4022, %v4020
        %v4065 = vpack.c.b16 %v4025, %v4023
        %v4066 = vpack.c.b16 %v4026, %v4024
        %v4067 = vpack.c.b16 %v4029, %v4027
        %v4068 = vpack.c.b16 %v4030, %v4028
        %v4069 = vpack.c.b16 %v4033, %v4031
        %v4070 = vpack.c.b16 %v4034, %v4032
        %v4071 = vpack.c.b16 %v4037, %v4035
        %v4072 = vpack.c.b16 %v4038, %v4036
        %v4073 = vpack.c.b16 %v4041, %v4039
        %v4074 = vpack.c.b16 %v4042, %v4040
        %v4075 = vpack.c.b16 %v4045, %v4043
        %v4076 = vpack.c.b16 %v4046, %v4044
        %v4077 = vpack.c.b16 %v4049, %v4047
        %v4078 = vpack.c.b16 %v4050, %v4048
        %v4079 = vpack.c.b16 %v4053, %v4051
        %v4080 = vpack.c.b16 %v4054, %v4052
        %v4081 = vpack.c.b16 %v4057, %v4055
        %v4082 = vpack.c.b16 %v4058, %v4056
        %v4108 = vsel %vm1058, %v3924, 0
        %v4111 = vsel %vm1058, %v3926, 0
        %v4114 = vsel %vm1058, %v3928, 0
        %v4117 = vsel %vm1058, %v3930, 0
        %v4120 = vsel %vm1058, %v3932, 0
        %v4123 = vsel %vm1058, %v3934, 0
        %v4126 = vsel %vm1058, %v3936, 0
        %v4129 = vsel %vm1058, %v3938, 0
        %v4132 = vsel %vm1058, %v3940, 0
        %v4135 = vsel %vm1058, %v3942, 0
        %v4138 = vsel %vm1058, %v3944, 0
        %v4141 = vsel %vm1058, %v3946, 0
        %v4144 = vsel %vm1058, %v3948, 0
        %v4147 = vsel %vm1058, %v3950, 0
        %v4150 = vsel %vm1058, %v3952, 0
        %v4153 = vsel %vm1058, %v3954, 0
        %4155 = vmatpush.bf16.msra.mxu0 %v4073
        %4156 = vmatpush.bf16.msra.mxu0 %v4071
        %4157 = vmatpush.bf16.msra.mxu0 %v4069
        %4158 = vmatpush.bf16.msra.mxu0 %v4067
        %4159 = vmatpush.bf16.msra.mxu0 %v4065
        %4160 = vmatpush.bf16.msra.mxu0 %v4063
        %4161 = vmatpush.bf16.msra.mxu0 %v4061
        %4162 = vmatpush.bf16.msra.mxu0 %v4059
        %4163 = vmatmul.bf16.gmra.mxu0 %v3923
        %v4164 = vpop.f32.mrf.mxu0
        %v4165 = vadd.f32 %v3983, %v4164
        %v4166 = vpop.f32.mrf.mxu0
        %v4167 = vadd.f32 %v3983, %v4166
        %4168 = vmatmul.bf16.gmra.mxu0 %v3925
        %v4169 = vpop.f32.mrf.mxu0
        %v4170 = vadd.f32 %v3983, %v4169
        %v4171 = vpop.f32.mrf.mxu0
        %v4172 = vadd.f32 %v3983, %v4171
        %4173 = vmatmul.bf16.gmra.mxu0 %v3927
        %v4174 = vpop.f32.mrf.mxu0
        %v4175 = vadd.f32 %v3983, %v4174
        %v4176 = vpop.f32.mrf.mxu0
        %v4177 = vadd.f32 %v3983, %v4176
        %4178 = vmatmul.bf16.gmra.mxu0 %v3929
        %v4179 = vpop.f32.mrf.mxu0
        %v4180 = vadd.f32 %v3983, %v4179
        %v4181 = vpop.f32.mrf.mxu0
        %v4182 = vadd.f32 %v3983, %v4181
        %4183 = vmatmul.bf16.gmra.mxu0 %v3931
        %v4184 = vpop.f32.mrf.mxu0
        %v4185 = vadd.f32 %v3983, %v4184
        %v4186 = vpop.f32.mrf.mxu0
        %v4187 = vadd.f32 %v3983, %v4186
        %4188 = vmatmul.bf16.gmra.mxu0 %v3933
        %v4189 = vpop.f32.mrf.mxu0
        %v4190 = vadd.f32 %v3983, %v4189
        %v4191 = vpop.f32.mrf.mxu0
        %v4192 = vadd.f32 %v3983, %v4191
        %4193 = vmatmul.bf16.gmra.mxu0 %v3935
        %v4194 = vpop.f32.mrf.mxu0
        %v4195 = vadd.f32 %v3983, %v4194
        %v4196 = vpop.f32.mrf.mxu0
        %v4197 = vadd.f32 %v3983, %v4196
        %4198 = vmatmul.bf16.gmra.mxu0 %v3937
        %v4199 = vpop.f32.mrf.mxu0
        %v4200 = vadd.f32 %v3983, %v4199
        %v4201 = vpop.f32.mrf.mxu0
        %v4202 = vadd.f32 %v3983, %v4201
        %4203 = vmatmul.bf16.gmra.mxu0 %v3939
        %v4204 = vpop.f32.mrf.mxu0
        %v4205 = vadd.f32 %v3983, %v4204
        %v4206 = vpop.f32.mrf.mxu0
        %v4207 = vadd.f32 %v3983, %v4206
        %4208 = vmatmul.bf16.gmra.mxu0 %v3941
        %v4209 = vpop.f32.mrf.mxu0
        %v4210 = vadd.f32 %v3983, %v4209
        %v4211 = vpop.f32.mrf.mxu0
        %v4212 = vadd.f32 %v3983, %v4211
        %4213 = vmatmul.bf16.gmra.mxu0 %v3943
        %v4214 = vpop.f32.mrf.mxu0
        %v4215 = vadd.f32 %v3983, %v4214
        %v4216 = vpop.f32.mrf.mxu0
        %v4217 = vadd.f32 %v3983, %v4216
        %4218 = vmatmul.bf16.gmra.mxu0 %v3945
        %v4219 = vpop.f32.mrf.mxu0
        %v4220 = vadd.f32 %v3983, %v4219
        %v4221 = vpop.f32.mrf.mxu0
        %v4222 = vadd.f32 %v3983, %v4221
        %4223 = vmatmul.bf16.gmra.mxu0 %v3947
        %v4224 = vpop.f32.mrf.mxu0
        %v4225 = vadd.f32 %v3983, %v4224
        %v4226 = vpop.f32.mrf.mxu0
        %v4227 = vadd.f32 %v3983, %v4226
        %4228 = vmatmul.bf16.gmra.mxu0 %v3949
        %v4229 = vpop.f32.mrf.mxu0
        %v4230 = vadd.f32 %v3983, %v4229
        %v4231 = vpop.f32.mrf.mxu0
        %v4232 = vadd.f32 %v3983, %v4231
        %4233 = vmatmul.bf16.gmra.mxu0 %v3951
        %v4234 = vpop.f32.mrf.mxu0
        %v4235 = vadd.f32 %v3983, %v4234
        %v4236 = vpop.f32.mrf.mxu0
        %v4237 = vadd.f32 %v3983, %v4236
        %4238 = vmatmul.bf16.gmra.mxu0 %v3953
        %v4239 = vpop.f32.mrf.mxu0
        %v4240 = vadd.f32 %v3983, %v4239
        %v4241 = vpop.f32.mrf.mxu0
        %v4242 = vadd.f32 %v3983, %v4241
        %4243 = vdwg.mxu0
        %4244 = vmatpush.bf16.msra.mxu0 0
        %4245 = vmatpush.bf16.msra.mxu0 0
        %4246 = vmatpush.bf16.msra.mxu0 0
        %4247 = vmatpush.bf16.msra.mxu0 0
        %4248 = vmatpush.bf16.msra.mxu0 %v4081
        %4249 = vmatpush.bf16.msra.mxu0 %v4079
        %4250 = vmatpush.bf16.msra.mxu0 %v4077
        %4251 = vmatpush.bf16.msra.mxu0 %v4075
        %4252 = vmatmul.bf16.gmra.mxu0 %v4108
        %v4253 = vpop.f32.mrf.mxu0
        %v4254 = vadd.f32 %v4165, %v4253
        %v4255 = vpop.f32.mrf.mxu0
        %v4256 = vadd.f32 %v4167, %v4255
        %4257 = vmatmul.bf16.gmra.mxu0 %v4111
        %v4258 = vpop.f32.mrf.mxu0
        %v4259 = vadd.f32 %v4170, %v4258
        %v4260 = vpop.f32.mrf.mxu0
        %v4261 = vadd.f32 %v4172, %v4260
        %4262 = vmatmul.bf16.gmra.mxu0 %v4114
        %v4263 = vpop.f32.mrf.mxu0
        %v4264 = vadd.f32 %v4175, %v4263
        %v4265 = vpop.f32.mrf.mxu0
        %v4266 = vadd.f32 %v4177, %v4265
        %4267 = vmatmul.bf16.gmra.mxu0 %v4117
        %v4268 = vpop.f32.mrf.mxu0
        %v4269 = vadd.f32 %v4180, %v4268
        %v4270 = vpop.f32.mrf.mxu0
        %v4271 = vadd.f32 %v4182, %v4270
        %4272 = vmatmul.bf16.gmra.mxu0 %v4120
        %v4273 = vpop.f32.mrf.mxu0
        %v4274 = vadd.f32 %v4185, %v4273
        %v4275 = vpop.f32.mrf.mxu0
        %v4276 = vadd.f32 %v4187, %v4275
        %4277 = vmatmul.bf16.gmra.mxu0 %v4123
        %v4278 = vpop.f32.mrf.mxu0
        %v4279 = vadd.f32 %v4190, %v4278
        %v4280 = vpop.f32.mrf.mxu0
        %v4281 = vadd.f32 %v4192, %v4280
        %4282 = vmatmul.bf16.gmra.mxu0 %v4126
        %v4283 = vpop.f32.mrf.mxu0
        %v4284 = vadd.f32 %v4195, %v4283
        %v4285 = vpop.f32.mrf.mxu0
        %v4286 = vadd.f32 %v4197, %v4285
        %4287 = vmatmul.bf16.gmra.mxu0 %v4129
        %v4288 = vpop.f32.mrf.mxu0
        %v4289 = vadd.f32 %v4200, %v4288
        %v4290 = vpop.f32.mrf.mxu0
        %v4291 = vadd.f32 %v4202, %v4290
        %4292 = vmatmul.bf16.gmra.mxu0 %v4132
        %v4293 = vpop.f32.mrf.mxu0
        %v4294 = vadd.f32 %v4205, %v4293
        %v4295 = vpop.f32.mrf.mxu0
        %v4296 = vadd.f32 %v4207, %v4295
        %4297 = vmatmul.bf16.gmra.mxu0 %v4135
        %v4298 = vpop.f32.mrf.mxu0
        %v4299 = vadd.f32 %v4210, %v4298
        %v4300 = vpop.f32.mrf.mxu0
        %v4301 = vadd.f32 %v4212, %v4300
        %4302 = vmatmul.bf16.gmra.mxu0 %v4138
        %v4303 = vpop.f32.mrf.mxu0
        %v4304 = vadd.f32 %v4215, %v4303
        %v4305 = vpop.f32.mrf.mxu0
        %v4306 = vadd.f32 %v4217, %v4305
        %4307 = vmatmul.bf16.gmra.mxu0 %v4141
        %v4308 = vpop.f32.mrf.mxu0
        %v4309 = vadd.f32 %v4220, %v4308
        %v4310 = vpop.f32.mrf.mxu0
        %v4311 = vadd.f32 %v4222, %v4310
        %4312 = vmatmul.bf16.gmra.mxu0 %v4144
        %v4313 = vpop.f32.mrf.mxu0
        %v4314 = vadd.f32 %v4225, %v4313
        %v4315 = vpop.f32.mrf.mxu0
        %v4316 = vadd.f32 %v4227, %v4315
        %4317 = vmatmul.bf16.gmra.mxu0 %v4147
        %v4318 = vpop.f32.mrf.mxu0
        %v4319 = vadd.f32 %v4230, %v4318
        %v4320 = vpop.f32.mrf.mxu0
        %v4321 = vadd.f32 %v4232, %v4320
        %4322 = vmatmul.bf16.gmra.mxu0 %v4150
        %v4323 = vpop.f32.mrf.mxu0
        %v4324 = vadd.f32 %v4235, %v4323
        %v4325 = vpop.f32.mrf.mxu0
        %v4326 = vadd.f32 %v4237, %v4325
        %4327 = vmatmul.bf16.gmra.mxu0 %v4153
        %v4328 = vpop.f32.mrf.mxu0
        %v4329 = vadd.f32 %v4240, %v4328
        %v4330 = vpop.f32.mrf.mxu0
        %v4331 = vadd.f32 %v4242, %v4330
        %4332 = vdwg.mxu0
        %4333 = vmatpush.bf16.msra.mxu0 %v4074
        %4334 = vmatpush.bf16.msra.mxu0 %v4072
        %4335 = vmatpush.bf16.msra.mxu0 %v4070
        %4336 = vmatpush.bf16.msra.mxu0 %v4068
        %4337 = vmatpush.bf16.msra.mxu0 %v4066
        %4338 = vmatpush.bf16.msra.mxu0 %v4064
        %4339 = vmatpush.bf16.msra.mxu0 %v4062
        %4340 = vmatpush.bf16.msra.mxu0 %v4060
        %4341 = vmatmul.bf16.gmra.mxu0 %v3923
        %v4342 = vpop.f32.mrf.mxu0
        %v4343 = vadd.f32 %v3984, %v4342
        %v4344 = vpop.f32.mrf.mxu0
        %v4345 = vadd.f32 %v3984, %v4344
        %4346 = vmatmul.bf16.gmra.mxu0 %v3925
        %v4347 = vpop.f32.mrf.mxu0
        %v4348 = vadd.f32 %v3984, %v4347
        %v4349 = vpop.f32.mrf.mxu0
        %v4350 = vadd.f32 %v3984, %v4349
        %4351 = vmatmul.bf16.gmra.mxu0 %v3927
        %v4352 = vpop.f32.mrf.mxu0
        %v4353 = vadd.f32 %v3984, %v4352
        %v4354 = vpop.f32.mrf.mxu0
        %v4355 = vadd.f32 %v3984, %v4354
        %4356 = vmatmul.bf16.gmra.mxu0 %v3929
        %v4357 = vpop.f32.mrf.mxu0
        %v4358 = vadd.f32 %v3984, %v4357
        %v4359 = vpop.f32.mrf.mxu0
        %v4360 = vadd.f32 %v3984, %v4359
        %4361 = vmatmul.bf16.gmra.mxu0 %v3931
        %v4362 = vpop.f32.mrf.mxu0
        %v4363 = vadd.f32 %v3984, %v4362
        %v4364 = vpop.f32.mrf.mxu0
        %v4365 = vadd.f32 %v3984, %v4364
        %4366 = vmatmul.bf16.gmra.mxu0 %v3933
        %v4367 = vpop.f32.mrf.mxu0
        %v4368 = vadd.f32 %v3984, %v4367
        %v4369 = vpop.f32.mrf.mxu0
        %v4370 = vadd.f32 %v3984, %v4369
        %4371 = vmatmul.bf16.gmra.mxu0 %v3935
        %v4372 = vpop.f32.mrf.mxu0
        %v4373 = vadd.f32 %v3984, %v4372
        %v4374 = vpop.f32.mrf.mxu0
        %v4375 = vadd.f32 %v3984, %v4374
        %4376 = vmatmul.bf16.gmra.mxu0 %v3937
        %v4377 = vpop.f32.mrf.mxu0
        %v4378 = vadd.f32 %v3984, %v4377
        %v4379 = vpop.f32.mrf.mxu0
        %v4380 = vadd.f32 %v3984, %v4379
        %4381 = vmatmul.bf16.gmra.mxu0 %v3939
        %v4382 = vpop.f32.mrf.mxu0
        %v4383 = vadd.f32 %v3984, %v4382
        %v4384 = vpop.f32.mrf.mxu0
        %v4385 = vadd.f32 %v3984, %v4384
        %4386 = vmatmul.bf16.gmra.mxu0 %v3941
        %v4387 = vpop.f32.mrf.mxu0
        %v4388 = vadd.f32 %v3984, %v4387
        %v4389 = vpop.f32.mrf.mxu0
        %v4390 = vadd.f32 %v3984, %v4389
        %4391 = vmatmul.bf16.gmra.mxu0 %v3943
        %v4392 = vpop.f32.mrf.mxu0
        %v4393 = vadd.f32 %v3984, %v4392
        %v4394 = vpop.f32.mrf.mxu0
        %v4395 = vadd.f32 %v3984, %v4394
        %4396 = vmatmul.bf16.gmra.mxu0 %v3945
        %v4397 = vpop.f32.mrf.mxu0
        %v4398 = vadd.f32 %v3984, %v4397
        %v4399 = vpop.f32.mrf.mxu0
        %v4400 = vadd.f32 %v3984, %v4399
        %4401 = vmatmul.bf16.gmra.mxu0 %v3947
        %v4402 = vpop.f32.mrf.mxu0
        %v4403 = vadd.f32 %v3984, %v4402
        %v4404 = vpop.f32.mrf.mxu0
        %v4405 = vadd.f32 %v3984, %v4404
        %4406 = vmatmul.bf16.gmra.mxu0 %v3949
        %v4407 = vpop.f32.mrf.mxu0
        %v4408 = vadd.f32 %v3984, %v4407
        %v4409 = vpop.f32.mrf.mxu0
        %v4410 = vadd.f32 %v3984, %v4409
        %4411 = vmatmul.bf16.gmra.mxu0 %v3951
        %v4412 = vpop.f32.mrf.mxu0
        %v4413 = vadd.f32 %v3984, %v4412
        %v4414 = vpop.f32.mrf.mxu0
        %v4415 = vadd.f32 %v3984, %v4414
        %4416 = vmatmul.bf16.gmra.mxu0 %v3953
        %v4417 = vpop.f32.mrf.mxu0
        %v4418 = vadd.f32 %v3984, %v4417
        %v4419 = vpop.f32.mrf.mxu0
        %v4420 = vadd.f32 %v3984, %v4419
        %4421 = vdwg.mxu0
        %4422 = vmatpush.bf16.msra.mxu0 0
        %4423 = vmatpush.bf16.msra.mxu0 0
        %4424 = vmatpush.bf16.msra.mxu0 0
        %4425 = vmatpush.bf16.msra.mxu0 0
        %4426 = vmatpush.bf16.msra.mxu0 %v4082
        %4427 = vmatpush.bf16.msra.mxu0 %v4080
        %4428 = vmatpush.bf16.msra.mxu0 %v4078
        %4429 = vmatpush.bf16.msra.mxu0 %v4076
        %4430 = vmatmul.bf16.gmra.mxu0 %v4108
        %v4431 = vpop.f32.mrf.mxu0
        %v4432 = vadd.f32 %v4343, %v4431
        %v4433 = vpop.f32.mrf.mxu0
        %v4434 = vadd.f32 %v4345, %v4433
        %4435 = vmatmul.bf16.gmra.mxu0 %v4111
        %v4436 = vpop.f32.mrf.mxu0
        %v4437 = vadd.f32 %v4348, %v4436
        %v4438 = vpop.f32.mrf.mxu0
        %v4439 = vadd.f32 %v4350, %v4438
        %4440 = vmatmul.bf16.gmra.mxu0 %v4114
        %v4441 = vpop.f32.mrf.mxu0
        %v4442 = vadd.f32 %v4353, %v4441
        %v4443 = vpop.f32.mrf.mxu0
        %v4444 = vadd.f32 %v4355, %v4443
        %4445 = vmatmul.bf16.gmra.mxu0 %v4117
        %v4446 = vpop.f32.mrf.mxu0
        %v4447 = vadd.f32 %v4358, %v4446
        %v4448 = vpop.f32.mrf.mxu0
        %v4449 = vadd.f32 %v4360, %v4448
        %4450 = vmatmul.bf16.gmra.mxu0 %v4120
        %v4451 = vpop.f32.mrf.mxu0
        %v4452 = vadd.f32 %v4363, %v4451
        %v4453 = vpop.f32.mrf.mxu0
        %v4454 = vadd.f32 %v4365, %v4453
        %4455 = vmatmul.bf16.gmra.mxu0 %v4123
        %v4456 = vpop.f32.mrf.mxu0
        %v4457 = vadd.f32 %v4368, %v4456
        %v4458 = vpop.f32.mrf.mxu0
        %v4459 = vadd.f32 %v4370, %v4458
        %4460 = vmatmul.bf16.gmra.mxu0 %v4126
        %v4461 = vpop.f32.mrf.mxu0
        %v4462 = vadd.f32 %v4373, %v4461
        %v4463 = vpop.f32.mrf.mxu0
        %v4464 = vadd.f32 %v4375, %v4463
        %4465 = vmatmul.bf16.gmra.mxu0 %v4129
        %v4466 = vpop.f32.mrf.mxu0
        %v4467 = vadd.f32 %v4378, %v4466
        %v4468 = vpop.f32.mrf.mxu0
        %v4469 = vadd.f32 %v4380, %v4468
        %4470 = vmatmul.bf16.gmra.mxu0 %v4132
        %v4471 = vpop.f32.mrf.mxu0
        %v4472 = vadd.f32 %v4383, %v4471
        %v4473 = vpop.f32.mrf.mxu0
        %v4474 = vadd.f32 %v4385, %v4473
        %4475 = vmatmul.bf16.gmra.mxu0 %v4135
        %v4476 = vpop.f32.mrf.mxu0
        %v4477 = vadd.f32 %v4388, %v4476
        %v4478 = vpop.f32.mrf.mxu0
        %v4479 = vadd.f32 %v4390, %v4478
        %4480 = vmatmul.bf16.gmra.mxu0 %v4138
        %v4481 = vpop.f32.mrf.mxu0
        %v4482 = vadd.f32 %v4393, %v4481
        %v4483 = vpop.f32.mrf.mxu0
        %v4484 = vadd.f32 %v4395, %v4483
        %4485 = vmatmul.bf16.gmra.mxu0 %v4141
        %v4486 = vpop.f32.mrf.mxu0
        %v4487 = vadd.f32 %v4398, %v4486
        %v4488 = vpop.f32.mrf.mxu0
        %v4489 = vadd.f32 %v4400, %v4488
        %4490 = vmatmul.bf16.gmra.mxu0 %v4144
        %v4491 = vpop.f32.mrf.mxu0
        %v4492 = vadd.f32 %v4403, %v4491
        %v4493 = vpop.f32.mrf.mxu0
        %v4494 = vadd.f32 %v4405, %v4493
        %4495 = vmatmul.bf16.gmra.mxu0 %v4147
        %v4496 = vpop.f32.mrf.mxu0
        %v4497 = vadd.f32 %v4408, %v4496
        %v4498 = vpop.f32.mrf.mxu0
        %v4499 = vadd.f32 %v4410, %v4498
        %4500 = vmatmul.bf16.gmra.mxu0 %v4150
        %v4501 = vpop.f32.mrf.mxu0
        %v4502 = vadd.f32 %v4413, %v4501
        %v4503 = vpop.f32.mrf.mxu0
        %v4504 = vadd.f32 %v4415, %v4503
        %4505 = vmatmul.bf16.gmra.mxu0 %v4153
        %v4506 = vpop.f32.mrf.mxu0
        %v4507 = vadd.f32 %v4418, %v4506
        %v4508 = vpop.f32.mrf.mxu0
        %v4509 = vadd.f32 %v4420, %v4508
        %4510 = vdwg.mxu0
        %vm4511 = vcmp.gt.f32.partialorder %v4254, 0.0
        %vm4512 = vcmp.gt.f32.partialorder %v4432, 0.0
        %vm4513 = vcmp.gt.f32.partialorder %v4256, 0.0
        %vm4514 = vcmp.gt.f32.partialorder %v4434, 0.0
        %vm4515 = vcmp.gt.f32.partialorder %v4259, 0.0
        %vm4516 = vcmp.gt.f32.partialorder %v4437, 0.0
        %vm4517 = vcmp.gt.f32.partialorder %v4261, 0.0
        %vm4518 = vcmp.gt.f32.partialorder %v4439, 0.0
        %vm4519 = vcmp.gt.f32.partialorder %v4264, 0.0
        %vm4520 = vcmp.gt.f32.partialorder %v4442, 0.0
        %vm4521 = vcmp.gt.f32.partialorder %v4266, 0.0
        %vm4522 = vcmp.gt.f32.partialorder %v4444, 0.0
        %vm4523 = vcmp.gt.f32.partialorder %v4269, 0.0
        %vm4524 = vcmp.gt.f32.partialorder %v4447, 0.0
        %vm4525 = vcmp.gt.f32.partialorder %v4271, 0.0
        %vm4526 = vcmp.gt.f32.partialorder %v4449, 0.0
        %vm4527 = vcmp.gt.f32.partialorder %v4274, 0.0
        %vm4528 = vcmp.gt.f32.partialorder %v4452, 0.0
        %vm4529 = vcmp.gt.f32.partialorder %v4276, 0.0
        %vm4530 = vcmp.gt.f32.partialorder %v4454, 0.0
        %vm4531 = vcmp.gt.f32.partialorder %v4279, 0.0
        %vm4532 = vcmp.gt.f32.partialorder %v4457, 0.0
        %vm4533 = vcmp.gt.f32.partialorder %v4281, 0.0
        %vm4534 = vcmp.gt.f32.partialorder %v4459, 0.0
        %vm4535 = vcmp.gt.f32.partialorder %v4284, 0.0
        %vm4536 = vcmp.gt.f32.partialorder %v4462, 0.0
        %vm4537 = vcmp.gt.f32.partialorder %v4286, 0.0
        %vm4538 = vcmp.gt.f32.partialorder %v4464, 0.0
        %vm4539 = vcmp.gt.f32.partialorder %v4289, 0.0
        %vm4540 = vcmp.gt.f32.partialorder %v4467, 0.0
        %vm4541 = vcmp.gt.f32.partialorder %v4291, 0.0
        %vm4542 = vcmp.gt.f32.partialorder %v4469, 0.0
        %vm4543 = vcmp.gt.f32.partialorder %v4294, 0.0
        %vm4544 = vcmp.gt.f32.partialorder %v4472, 0.0
        %vm4545 = vcmp.gt.f32.partialorder %v4296, 0.0
        %vm4546 = vcmp.gt.f32.partialorder %v4474, 0.0
        %vm4547 = vcmp.gt.f32.partialorder %v4299, 0.0
        %vm4548 = vcmp.gt.f32.partialorder %v4477, 0.0
        %vm4549 = vcmp.gt.f32.partialorder %v4301, 0.0
        %vm4550 = vcmp.gt.f32.partialorder %v4479, 0.0
        %vm4551 = vcmp.gt.f32.partialorder %v4304, 0.0
        %vm4552 = vcmp.gt.f32.partialorder %v4482, 0.0
        %vm4553 = vcmp.gt.f32.partialorder %v4306, 0.0
        %vm4554 = vcmp.gt.f32.partialorder %v4484, 0.0
        %vm4555 = vcmp.gt.f32.partialorder %v4309, 0.0
        %vm4556 = vcmp.gt.f32.partialorder %v4487, 0.0
        %vm4557 = vcmp.gt.f32.partialorder %v4311, 0.0
        %vm4558 = vcmp.gt.f32.partialorder %v4489, 0.0
        %vm4559 = vcmp.gt.f32.partialorder %v4314, 0.0
        %vm4560 = vcmp.gt.f32.partialorder %v4492, 0.0
        %vm4561 = vcmp.gt.f32.partialorder %v4316, 0.0
        %vm4562 = vcmp.gt.f32.partialorder %v4494, 0.0
        %vm4563 = vcmp.gt.f32.partialorder %v4319, 0.0
        %vm4564 = vcmp.gt.f32.partialorder %v4497, 0.0
        %vm4565 = vcmp.gt.f32.partialorder %v4321, 0.0
        %vm4566 = vcmp.gt.f32.partialorder %v4499, 0.0
        %vm4567 = vcmp.gt.f32.partialorder %v4324, 0.0
        %vm4568 = vcmp.gt.f32.partialorder %v4502, 0.0
        %vm4569 = vcmp.gt.f32.partialorder %v4326, 0.0
        %vm4570 = vcmp.gt.f32.partialorder %v4504, 0.0
        %vm4571 = vcmp.gt.f32.partialorder %v4329, 0.0
        %vm4572 = vcmp.gt.f32.partialorder %v4507, 0.0
        %vm4573 = vcmp.gt.f32.partialorder %v4331, 0.0
        %vm4574 = vcmp.gt.f32.partialorder %v4509, 0.0
        %v4575 = vmul.f32 %v4254, 0.01
        %v4576 = vmul.f32 %v4432, 0.01
        %v4577 = vmul.f32 %v4256, 0.01
        %v4578 = vmul.f32 %v4434, 0.01
        %v4579 = vmul.f32 %v4259, 0.01
        %v4580 = vmul.f32 %v4437, 0.01
        %v4581 = vmul.f32 %v4261, 0.01
        %v4582 = vmul.f32 %v4439, 0.01
        %v4583 = vmul.f32 %v4264, 0.01
        %v4584 = vmul.f32 %v4442, 0.01
        %v4585 = vmul.f32 %v4266, 0.01
        %v4586 = vmul.f32 %v4444, 0.01
        %v4587 = vmul.f32 %v4269, 0.01
        %v4588 = vmul.f32 %v4447, 0.01
        %v4589 = vmul.f32 %v4271, 0.01
        %v4590 = vmul.f32 %v4449, 0.01
        %v4591 = vmul.f32 %v4274, 0.01
        %v4592 = vmul.f32 %v4452, 0.01
        %v4593 = vmul.f32 %v4276, 0.01
        %v4594 = vmul.f32 %v4454, 0.01
        %v4595 = vmul.f32 %v4279, 0.01
        %v4596 = vmul.f32 %v4457, 0.01
        %v4597 = vmul.f32 %v4281, 0.01
        %v4598 = vmul.f32 %v4459, 0.01
        %v4599 = vmul.f32 %v4284, 0.01
        %v4600 = vmul.f32 %v4462, 0.01
        %v4601 = vmul.f32 %v4286, 0.01
        %v4602 = vmul.f32 %v4464, 0.01
        %v4603 = vmul.f32 %v4289, 0.01
        %v4604 = vmul.f32 %v4467, 0.01
        %v4605 = vmul.f32 %v4291, 0.01
        %v4606 = vmul.f32 %v4469, 0.01
        %v4607 = vmul.f32 %v4294, 0.01
        %v4608 = vmul.f32 %v4472, 0.01
        %v4609 = vmul.f32 %v4296, 0.01
        %v4610 = vmul.f32 %v4474, 0.01
        %v4611 = vmul.f32 %v4299, 0.01
        %v4612 = vmul.f32 %v4477, 0.01
        %v4613 = vmul.f32 %v4301, 0.01
        %v4614 = vmul.f32 %v4479, 0.01
        %v4615 = vmul.f32 %v4304, 0.01
        %v4616 = vmul.f32 %v4482, 0.01
        %v4617 = vmul.f32 %v4306, 0.01
        %v4618 = vmul.f32 %v4484, 0.01
        %v4619 = vmul.f32 %v4309, 0.01
        %v4620 = vmul.f32 %v4487, 0.01
        %v4621 = vmul.f32 %v4311, 0.01
        %v4622 = vmul.f32 %v4489, 0.01
        %v4623 = vmul.f32 %v4314, 0.01
        %v4624 = vmul.f32 %v4492, 0.01
        %v4625 = vmul.f32 %v4316, 0.01
        %v4626 = vmul.f32 %v4494, 0.01
        %v4627 = vmul.f32 %v4319, 0.01
        %v4628 = vmul.f32 %v4497, 0.01
        %v4629 = vmul.f32 %v4321, 0.01
        %v4630 = vmul.f32 %v4499, 0.01
        %v4631 = vmul.f32 %v4324, 0.01
        %v4632 = vmul.f32 %v4502, 0.01
        %v4633 = vmul.f32 %v4326, 0.01
        %v4634 = vmul.f32 %v4504, 0.01
        %v4635 = vmul.f32 %v4329, 0.01
        %v4636 = vmul.f32 %v4507, 0.01
        %v4637 = vmul.f32 %v4331, 0.01
        %v4638 = vmul.f32 %v4509, 0.01
        %v4639 = vsel %vm4511, %v4254, %v4575
        %v4640 = vsel %vm4512, %v4432, %v4576
        %v4641 = vsel %vm4513, %v4256, %v4577
        %v4642 = vsel %vm4514, %v4434, %v4578
        %v4643 = vsel %vm4515, %v4259, %v4579
        %v4644 = vsel %vm4516, %v4437, %v4580
        %v4645 = vsel %vm4517, %v4261, %v4581
        %v4646 = vsel %vm4518, %v4439, %v4582
        %v4647 = vsel %vm4519, %v4264, %v4583
        %v4648 = vsel %vm4520, %v4442, %v4584
        %v4649 = vsel %vm4521, %v4266, %v4585
        %v4650 = vsel %vm4522, %v4444, %v4586
        %v4651 = vsel %vm4523, %v4269, %v4587
        %v4652 = vsel %vm4524, %v4447, %v4588
        %v4653 = vsel %vm4525, %v4271, %v4589
        %v4654 = vsel %vm4526, %v4449, %v4590
        %v4655 = vsel %vm4527, %v4274, %v4591
        %v4656 = vsel %vm4528, %v4452, %v4592
        %v4657 = vsel %vm4529, %v4276, %v4593
        %v4658 = vsel %vm4530, %v4454, %v4594
        %v4659 = vsel %vm4531, %v4279, %v4595
        %v4660 = vsel %vm4532, %v4457, %v4596
        %v4661 = vsel %vm4533, %v4281, %v4597
        %v4662 = vsel %vm4534, %v4459, %v4598
        %v4663 = vsel %vm4535, %v4284, %v4599
        %v4664 = vsel %vm4536, %v4462, %v4600
        %v4665 = vsel %vm4537, %v4286, %v4601
        %v4666 = vsel %vm4538, %v4464, %v4602
        %v4667 = vsel %vm4539, %v4289, %v4603
        %v4668 = vsel %vm4540, %v4467, %v4604
        %v4669 = vsel %vm4541, %v4291, %v4605
        %v4670 = vsel %vm4542, %v4469, %v4606
        %v4671 = vsel %vm4543, %v4294, %v4607
        %v4672 = vsel %vm4544, %v4472, %v4608
        %v4673 = vsel %vm4545, %v4296, %v4609
        %v4674 = vsel %vm4546, %v4474, %v4610
        %v4675 = vsel %vm4547, %v4299, %v4611
        %v4676 = vsel %vm4548, %v4477, %v4612
        %v4677 = vsel %vm4549, %v4301, %v4613
        %v4678 = vsel %vm4550, %v4479, %v4614
        %v4679 = vsel %vm4551, %v4304, %v4615
        %v4680 = vsel %vm4552, %v4482, %v4616
        %v4681 = vsel %vm4553, %v4306, %v4617
        %v4682 = vsel %vm4554, %v4484, %v4618
        %v4683 = vsel %vm4555, %v4309, %v4619
        %v4684 = vsel %vm4556, %v4487, %v4620
        %v4685 = vsel %vm4557, %v4311, %v4621
        %v4686 = vsel %vm4558, %v4489, %v4622
        %v4687 = vsel %vm4559, %v4314, %v4623
        %v4688 = vsel %vm4560, %v4492, %v4624
        %v4689 = vsel %vm4561, %v4316, %v4625
        %v4690 = vsel %vm4562, %v4494, %v4626
        %v4691 = vsel %vm4563, %v4319, %v4627
        %v4692 = vsel %vm4564, %v4497, %v4628
        %v4693 = vsel %vm4565, %v4321, %v4629
        %v4694 = vsel %vm4566, %v4499, %v4630
        %v4695 = vsel %vm4567, %v4324, %v4631
        %v4696 = vsel %vm4568, %v4502, %v4632
        %v4697 = vsel %vm4569, %v4326, %v4633
        %v4698 = vsel %vm4570, %v4504, %v4634
        %v4699 = vsel %vm4571, %v4329, %v4635
        %v4700 = vsel %vm4572, %v4507, %v4636
        %v4701 = vsel %vm4573, %v4331, %v4637
        %v4702 = vsel %vm4574, %v4509, %v4638
        %v4703 = vpack.c.bf16 %v4641, %v4639
        %v4704 = vpack.c.bf16 %v4642, %v4640
        %v4705 = vpack.c.bf16 %v4645, %v4643
        %v4706 = vpack.c.bf16 %v4646, %v4644
        %v4707 = vpack.c.bf16 %v4649, %v4647
        %v4708 = vpack.c.bf16 %v4650, %v4648
        %v4709 = vpack.c.bf16 %v4653, %v4651
        %v4710 = vpack.c.bf16 %v4654, %v4652
        %v4711 = vpack.c.bf16 %v4657, %v4655
        %v4712 = vpack.c.bf16 %v4658, %v4656
        %v4713 = vpack.c.bf16 %v4661, %v4659
        %v4714 = vpack.c.bf16 %v4662, %v4660
        %v4715 = vpack.c.bf16 %v4665, %v4663
        %v4716 = vpack.c.bf16 %v4666, %v4664
        %v4717 = vpack.c.bf16 %v4669, %v4667
        %v4718 = vpack.c.bf16 %v4670, %v4668
        %v4719 = vpack.c.bf16 %v4673, %v4671
        %v4720 = vpack.c.bf16 %v4674, %v4672
        %v4721 = vpack.c.bf16 %v4677, %v4675
        %v4722 = vpack.c.bf16 %v4678, %v4676
        %v4723 = vpack.c.bf16 %v4681, %v4679
        %v4724 = vpack.c.bf16 %v4682, %v4680
        %v4725 = vpack.c.bf16 %v4685, %v4683
        %v4726 = vpack.c.bf16 %v4686, %v4684
        %v4727 = vpack.c.bf16 %v4689, %v4687
        %v4728 = vpack.c.bf16 %v4690, %v4688
        %v4729 = vpack.c.bf16 %v4693, %v4691
        %v4730 = vpack.c.bf16 %v4694, %v4692
        %v4731 = vpack.c.bf16 %v4697, %v4695
        %v4732 = vpack.c.bf16 %v4698, %v4696
        %v4733 = vpack.c.bf16 %v4701, %v4699
        %v4734 = vpack.c.bf16 %v4702, %v4700
        %s4735 = scalar_lea.vmem [#allocation13], 192
        %v4736 = vld [vmem:[%s4735] sm:$0xff]
        %v4737 = vld [vmem:[%s4735 + $0x8] sm:$0xff]
        %v4738 = vld [vmem:[%s4735 + $0x10] sm:$0xff]
        %v4739 = vld [vmem:[%s4735 + $0x18] sm:$0xff]
        %v4740 = vld [vmem:[%s4735 + $0x20] sm:$0xff]
        %v4741 = vld [vmem:[%s4735 + $0x28] sm:$0xff]
        %v4742 = vld [vmem:[%s4735 + $0x30] sm:$0xff]
        %v4743 = vld [vmem:[%s4735 + $0x38] sm:$0xff]
        %v4744 = vld [vmem:[%s4735 + $0x40] sm:$0xff]
        %v4745 = vld [vmem:[%s4735 + $0x48] sm:$0xff]
        %v4746 = vld [vmem:[%s4735 + $0x50] sm:$0xff]
        %v4747 = vld [vmem:[%s4735 + $0x58] sm:$0xff]
        %v4748 = vld [vmem:[%s4735 + $0x60] sm:$0xff]
        %v4749 = vld [vmem:[%s4735 + $0x68] sm:$0xff]
        %v4750 = vld [vmem:[%s4735 + $0x70] sm:$0xff]
        %v4751 = vld [vmem:[%s4735 + $0x78] sm:$0xff]
        %v4752 = vld [vmem:[%s4735 + $0x80] sm:$0xff]
        %v4753 = vld [vmem:[%s4735 + $0x88] sm:$0xff]
        %v4754 = vld [vmem:[%s4735 + $0x90] sm:$0xff]
        %v4755 = vld [vmem:[%s4735 + $0x98] sm:$0xff]
        %v4756 = vld [vmem:[%s4735 + $0xa0] sm:$0xff]
        %v4757 = vld [vmem:[%s4735 + $0xa8] sm:$0xff]
        %v4758 = vld [vmem:[%s4735 + $0xb0] sm:$0xff]
        %v4759 = vld [vmem:[%s4735 + $0xb8] sm:$0xff]
        %s4760 = scalar_lea.vmem [#allocation14], 2
        %v4761 = vld [vmem:[%s4760] sm:$0x3]
        %v4763 = vperm.slane %v4761, 0
        %v4764 = vperm.slane %v4761, 1
        %v4791 = vunpack.c.l.b16 %v4736
        %v4792 = vunpack.c.h.b16 %v4736
        %v4793 = vunpack.c.l.b16 %v4737
        %v4794 = vunpack.c.h.b16 %v4737
        %v4795 = vunpack.c.l.b16 %v4738
        %v4796 = vunpack.c.h.b16 %v4738
        %v4797 = vunpack.c.l.b16 %v4739
        %v4798 = vunpack.c.h.b16 %v4739
        %v4799 = vunpack.c.l.b16 %v4740
        %v4800 = vunpack.c.h.b16 %v4740
        %v4801 = vunpack.c.l.b16 %v4741
        %v4802 = vunpack.c.h.b16 %v4741
        %v4803 = vunpack.c.l.b16 %v4742
        %v4804 = vunpack.c.h.b16 %v4742
        %v4805 = vunpack.c.l.b16 %v4743
        %v4806 = vunpack.c.h.b16 %v4743
        %v4807 = vunpack.c.l.b16 %v4744
        %v4808 = vunpack.c.h.b16 %v4744
        %v4809 = vunpack.c.l.b16 %v4745
        %v4810 = vunpack.c.h.b16 %v4745
        %v4811 = vunpack.c.l.b16 %v4746
        %v4812 = vunpack.c.h.b16 %v4746
        %v4813 = vunpack.c.l.b16 %v4747
        %v4814 = vunpack.c.h.b16 %v4747
        %v4815 = vunpack.c.l.b16 %v4748
        %v4816 = vunpack.c.h.b16 %v4748
        %v4817 = vunpack.c.l.b16 %v4749
        %v4818 = vunpack.c.h.b16 %v4749
        %v4819 = vunpack.c.l.b16 %v4750
        %v4820 = vunpack.c.h.b16 %v4750
        %v4821 = vunpack.c.l.b16 %v4751
        %v4822 = vunpack.c.h.b16 %v4751
        %v4823 = vunpack.c.l.b16 %v4752
        %v4824 = vunpack.c.h.b16 %v4752
        %v4825 = vunpack.c.l.b16 %v4753
        %v4826 = vunpack.c.h.b16 %v4753
        %v4827 = vunpack.c.l.b16 %v4754
        %v4828 = vunpack.c.h.b16 %v4754
        %v4829 = vunpack.c.l.b16 %v4755
        %v4830 = vunpack.c.h.b16 %v4755
        %v4831 = vunpack.c.l.b16 %v4756
        %v4832 = vunpack.c.h.b16 %v4756
        %v4833 = vunpack.c.l.b16 %v4757
        %v4834 = vunpack.c.h.b16 %v4757
        %v4835 = vunpack.c.l.b16 %v4758
        %v4836 = vunpack.c.h.b16 %v4758
        %v4837 = vunpack.c.l.b16 %v4759
        %v4838 = vunpack.c.h.b16 %v4759
        %v4839 = vpack.c.b16 %v4793, %v4791
        %v4840 = vpack.c.b16 %v4794, %v4792
        %v4841 = vpack.c.b16 %v4797, %v4795
        %v4842 = vpack.c.b16 %v4798, %v4796
        %v4843 = vpack.c.b16 %v4801, %v4799
        %v4844 = vpack.c.b16 %v4802, %v4800
        %v4845 = vpack.c.b16 %v4805, %v4803
        %v4846 = vpack.c.b16 %v4806, %v4804
        %v4847 = vpack.c.b16 %v4809, %v4807
        %v4848 = vpack.c.b16 %v4810, %v4808
        %v4849 = vpack.c.b16 %v4813, %v4811
        %v4850 = vpack.c.b16 %v4814, %v4812
        %v4851 = vpack.c.b16 %v4817, %v4815
        %v4852 = vpack.c.b16 %v4818, %v4816
        %v4853 = vpack.c.b16 %v4821, %v4819
        %v4854 = vpack.c.b16 %v4822, %v4820
        %v4855 = vpack.c.b16 %v4825, %v4823
        %v4856 = vpack.c.b16 %v4826, %v4824
        %v4857 = vpack.c.b16 %v4829, %v4827
        %v4858 = vpack.c.b16 %v4830, %v4828
        %v4859 = vpack.c.b16 %v4833, %v4831
        %v4860 = vpack.c.b16 %v4834, %v4832
        %v4861 = vpack.c.b16 %v4837, %v4835
        %v4862 = vpack.c.b16 %v4838, %v4836
        %v4888 = vsel %vm1058, %v4704, 0
        %v4891 = vsel %vm1058, %v4706, 0
        %v4894 = vsel %vm1058, %v4708, 0
        %v4897 = vsel %vm1058, %v4710, 0
        %v4900 = vsel %vm1058, %v4712, 0
        %v4903 = vsel %vm1058, %v4714, 0
        %v4906 = vsel %vm1058, %v4716, 0
        %v4909 = vsel %vm1058, %v4718, 0
        %v4912 = vsel %vm1058, %v4720, 0
        %v4915 = vsel %vm1058, %v4722, 0
        %v4918 = vsel %vm1058, %v4724, 0
        %v4921 = vsel %vm1058, %v4726, 0
        %v4924 = vsel %vm1058, %v4728, 0
        %v4927 = vsel %vm1058, %v4730, 0
        %v4930 = vsel %vm1058, %v4732, 0
        %v4933 = vsel %vm1058, %v4734, 0
        %4935 = vmatpush.bf16.msra.mxu0 %v4853
        %4936 = vmatpush.bf16.msra.mxu0 %v4851
        %4937 = vmatpush.bf16.msra.mxu0 %v4849
        %4938 = vmatpush.bf16.msra.mxu0 %v4847
        %4939 = vmatpush.bf16.msra.mxu0 %v4845
        %4940 = vmatpush.bf16.msra.mxu0 %v4843
        %4941 = vmatpush.bf16.msra.mxu0 %v4841
        %4942 = vmatpush.bf16.msra.mxu0 %v4839
        %4943 = vmatmul.bf16.gmra.mxu0 %v4703
        %v4944 = vpop.f32.mrf.mxu0
        %v4945 = vadd.f32 %v4763, %v4944
        %v4946 = vpop.f32.mrf.mxu0
        %v4947 = vadd.f32 %v4763, %v4946
        %4948 = vmatmul.bf16.gmra.mxu0 %v4705
        %v4949 = vpop.f32.mrf.mxu0
        %v4950 = vadd.f32 %v4763, %v4949
        %v4951 = vpop.f32.mrf.mxu0
        %v4952 = vadd.f32 %v4763, %v4951
        %4953 = vmatmul.bf16.gmra.mxu0 %v4707
        %v4954 = vpop.f32.mrf.mxu0
        %v4955 = vadd.f32 %v4763, %v4954
        %v4956 = vpop.f32.mrf.mxu0
        %v4957 = vadd.f32 %v4763, %v4956
        %4958 = vmatmul.bf16.gmra.mxu0 %v4709
        %v4959 = vpop.f32.mrf.mxu0
        %v4960 = vadd.f32 %v4763, %v4959
        %v4961 = vpop.f32.mrf.mxu0
        %v4962 = vadd.f32 %v4763, %v4961
        %4963 = vmatmul.bf16.gmra.mxu0 %v4711
        %v4964 = vpop.f32.mrf.mxu0
        %v4965 = vadd.f32 %v4763, %v4964
        %v4966 = vpop.f32.mrf.mxu0
        %v4967 = vadd.f32 %v4763, %v4966
        %4968 = vmatmul.bf16.gmra.mxu0 %v4713
        %v4969 = vpop.f32.mrf.mxu0
        %v4970 = vadd.f32 %v4763, %v4969
        %v4971 = vpop.f32.mrf.mxu0
        %v4972 = vadd.f32 %v4763, %v4971
        %4973 = vmatmul.bf16.gmra.mxu0 %v4715
        %v4974 = vpop.f32.mrf.mxu0
        %v4975 = vadd.f32 %v4763, %v4974
        %v4976 = vpop.f32.mrf.mxu0
        %v4977 = vadd.f32 %v4763, %v4976
        %4978 = vmatmul.bf16.gmra.mxu0 %v4717
        %v4979 = vpop.f32.mrf.mxu0
        %v4980 = vadd.f32 %v4763, %v4979
        %v4981 = vpop.f32.mrf.mxu0
        %v4982 = vadd.f32 %v4763, %v4981
        %4983 = vmatmul.bf16.gmra.mxu0 %v4719
        %v4984 = vpop.f32.mrf.mxu0
        %v4985 = vadd.f32 %v4763, %v4984
        %v4986 = vpop.f32.mrf.mxu0
        %v4987 = vadd.f32 %v4763, %v4986
        %4988 = vmatmul.bf16.gmra.mxu0 %v4721
        %v4989 = vpop.f32.mrf.mxu0
        %v4990 = vadd.f32 %v4763, %v4989
        %v4991 = vpop.f32.mrf.mxu0
        %v4992 = vadd.f32 %v4763, %v4991
        %4993 = vmatmul.bf16.gmra.mxu0 %v4723
        %v4994 = vpop.f32.mrf.mxu0
        %v4995 = vadd.f32 %v4763, %v4994
        %v4996 = vpop.f32.mrf.mxu0
        %v4997 = vadd.f32 %v4763, %v4996
        %4998 = vmatmul.bf16.gmra.mxu0 %v4725
        %v4999 = vpop.f32.mrf.mxu0
        %v5000 = vadd.f32 %v4763, %v4999
        %v5001 = vpop.f32.mrf.mxu0
        %v5002 = vadd.f32 %v4763, %v5001
        %5003 = vmatmul.bf16.gmra.mxu0 %v4727
        %v5004 = vpop.f32.mrf.mxu0
        %v5005 = vadd.f32 %v4763, %v5004
        %v5006 = vpop.f32.mrf.mxu0
        %v5007 = vadd.f32 %v4763, %v5006
        %5008 = vmatmul.bf16.gmra.mxu0 %v4729
        %v5009 = vpop.f32.mrf.mxu0
        %v5010 = vadd.f32 %v4763, %v5009
        %v5011 = vpop.f32.mrf.mxu0
        %v5012 = vadd.f32 %v4763, %v5011
        %5013 = vmatmul.bf16.gmra.mxu0 %v4731
        %v5014 = vpop.f32.mrf.mxu0
        %v5015 = vadd.f32 %v4763, %v5014
        %v5016 = vpop.f32.mrf.mxu0
        %v5017 = vadd.f32 %v4763, %v5016
        %5018 = vmatmul.bf16.gmra.mxu0 %v4733
        %v5019 = vpop.f32.mrf.mxu0
        %v5020 = vadd.f32 %v4763, %v5019
        %v5021 = vpop.f32.mrf.mxu0
        %v5022 = vadd.f32 %v4763, %v5021
        %5023 = vdwg.mxu0
        %5024 = vmatpush.bf16.msra.mxu0 0
        %5025 = vmatpush.bf16.msra.mxu0 0
        %5026 = vmatpush.bf16.msra.mxu0 0
        %5027 = vmatpush.bf16.msra.mxu0 0
        %5028 = vmatpush.bf16.msra.mxu0 %v4861
        %5029 = vmatpush.bf16.msra.mxu0 %v4859
        %5030 = vmatpush.bf16.msra.mxu0 %v4857
        %5031 = vmatpush.bf16.msra.mxu0 %v4855
        %5032 = vmatmul.bf16.gmra.mxu0 %v4888
        %v5033 = vpop.f32.mrf.mxu0
        %v5034 = vadd.f32 %v4945, %v5033
        %v5035 = vpop.f32.mrf.mxu0
        %v5036 = vadd.f32 %v4947, %v5035
        %5037 = vmatmul.bf16.gmra.mxu0 %v4891
        %v5038 = vpop.f32.mrf.mxu0
        %v5039 = vadd.f32 %v4950, %v5038
        %v5040 = vpop.f32.mrf.mxu0
        %v5041 = vadd.f32 %v4952, %v5040
        %5042 = vmatmul.bf16.gmra.mxu0 %v4894
        %v5043 = vpop.f32.mrf.mxu0
        %v5044 = vadd.f32 %v4955, %v5043
        %v5045 = vpop.f32.mrf.mxu0
        %v5046 = vadd.f32 %v4957, %v5045
        %5047 = vmatmul.bf16.gmra.mxu0 %v4897
        %v5048 = vpop.f32.mrf.mxu0
        %v5049 = vadd.f32 %v4960, %v5048
        %v5050 = vpop.f32.mrf.mxu0
        %v5051 = vadd.f32 %v4962, %v5050
        %5052 = vmatmul.bf16.gmra.mxu0 %v4900
        %v5053 = vpop.f32.mrf.mxu0
        %v5054 = vadd.f32 %v4965, %v5053
        %v5055 = vpop.f32.mrf.mxu0
        %v5056 = vadd.f32 %v4967, %v5055
        %5057 = vmatmul.bf16.gmra.mxu0 %v4903
        %v5058 = vpop.f32.mrf.mxu0
        %v5059 = vadd.f32 %v4970, %v5058
        %v5060 = vpop.f32.mrf.mxu0
        %v5061 = vadd.f32 %v4972, %v5060
        %5062 = vmatmul.bf16.gmra.mxu0 %v4906
        %v5063 = vpop.f32.mrf.mxu0
        %v5064 = vadd.f32 %v4975, %v5063
        %v5065 = vpop.f32.mrf.mxu0
        %v5066 = vadd.f32 %v4977, %v5065
        %5067 = vmatmul.bf16.gmra.mxu0 %v4909
        %v5068 = vpop.f32.mrf.mxu0
        %v5069 = vadd.f32 %v4980, %v5068
        %v5070 = vpop.f32.mrf.mxu0
        %v5071 = vadd.f32 %v4982, %v5070
        %5072 = vmatmul.bf16.gmra.mxu0 %v4912
        %v5073 = vpop.f32.mrf.mxu0
        %v5074 = vadd.f32 %v4985, %v5073
        %v5075 = vpop.f32.mrf.mxu0
        %v5076 = vadd.f32 %v4987, %v5075
        %5077 = vmatmul.bf16.gmra.mxu0 %v4915
        %v5078 = vpop.f32.mrf.mxu0
        %v5079 = vadd.f32 %v4990, %v5078
        %v5080 = vpop.f32.mrf.mxu0
        %v5081 = vadd.f32 %v4992, %v5080
        %5082 = vmatmul.bf16.gmra.mxu0 %v4918
        %v5083 = vpop.f32.mrf.mxu0
        %v5084 = vadd.f32 %v4995, %v5083
        %v5085 = vpop.f32.mrf.mxu0
        %v5086 = vadd.f32 %v4997, %v5085
        %5087 = vmatmul.bf16.gmra.mxu0 %v4921
        %v5088 = vpop.f32.mrf.mxu0
        %v5089 = vadd.f32 %v5000, %v5088
        %v5090 = vpop.f32.mrf.mxu0
        %v5091 = vadd.f32 %v5002, %v5090
        %5092 = vmatmul.bf16.gmra.mxu0 %v4924
        %v5093 = vpop.f32.mrf.mxu0
        %v5094 = vadd.f32 %v5005, %v5093
        %v5095 = vpop.f32.mrf.mxu0
        %v5096 = vadd.f32 %v5007, %v5095
        %5097 = vmatmul.bf16.gmra.mxu0 %v4927
        %v5098 = vpop.f32.mrf.mxu0
        %v5099 = vadd.f32 %v5010, %v5098
        %v5100 = vpop.f32.mrf.mxu0
        %v5101 = vadd.f32 %v5012, %v5100
        %5102 = vmatmul.bf16.gmra.mxu0 %v4930
        %v5103 = vpop.f32.mrf.mxu0
        %v5104 = vadd.f32 %v5015, %v5103
        %v5105 = vpop.f32.mrf.mxu0
        %v5106 = vadd.f32 %v5017, %v5105
        %5107 = vmatmul.bf16.gmra.mxu0 %v4933
        %v5108 = vpop.f32.mrf.mxu0
        %v5109 = vadd.f32 %v5020, %v5108
        %v5110 = vpop.f32.mrf.mxu0
        %v5111 = vadd.f32 %v5022, %v5110
        %5112 = vdwg.mxu0
        %5113 = vmatpush.bf16.msra.mxu0 %v4854
        %5114 = vmatpush.bf16.msra.mxu0 %v4852
        %5115 = vmatpush.bf16.msra.mxu0 %v4850
        %5116 = vmatpush.bf16.msra.mxu0 %v4848
        %5117 = vmatpush.bf16.msra.mxu0 %v4846
        %5118 = vmatpush.bf16.msra.mxu0 %v4844
        %5119 = vmatpush.bf16.msra.mxu0 %v4842
        %5120 = vmatpush.bf16.msra.mxu0 %v4840
        %5121 = vmatmul.bf16.gmra.mxu0 %v4703
        %v5122 = vpop.f32.mrf.mxu0
        %v5123 = vadd.f32 %v4764, %v5122
        %v5124 = vpop.f32.mrf.mxu0
        %v5125 = vadd.f32 %v4764, %v5124
        %5126 = vmatmul.bf16.gmra.mxu0 %v4705
        %v5127 = vpop.f32.mrf.mxu0
        %v5128 = vadd.f32 %v4764, %v5127
        %v5129 = vpop.f32.mrf.mxu0
        %v5130 = vadd.f32 %v4764, %v5129
        %5131 = vmatmul.bf16.gmra.mxu0 %v4707
        %v5132 = vpop.f32.mrf.mxu0
        %v5133 = vadd.f32 %v4764, %v5132
        %v5134 = vpop.f32.mrf.mxu0
        %v5135 = vadd.f32 %v4764, %v5134
        %5136 = vmatmul.bf16.gmra.mxu0 %v4709
        %v5137 = vpop.f32.mrf.mxu0
        %v5138 = vadd.f32 %v4764, %v5137
        %v5139 = vpop.f32.mrf.mxu0
        %v5140 = vadd.f32 %v4764, %v5139
        %5141 = vmatmul.bf16.gmra.mxu0 %v4711
        %v5142 = vpop.f32.mrf.mxu0
        %v5143 = vadd.f32 %v4764, %v5142
        %v5144 = vpop.f32.mrf.mxu0
        %v5145 = vadd.f32 %v4764, %v5144
        %5146 = vmatmul.bf16.gmra.mxu0 %v4713
        %v5147 = vpop.f32.mrf.mxu0
        %v5148 = vadd.f32 %v4764, %v5147
        %v5149 = vpop.f32.mrf.mxu0
        %v5150 = vadd.f32 %v4764, %v5149
        %5151 = vmatmul.bf16.gmra.mxu0 %v4715
        %v5152 = vpop.f32.mrf.mxu0
        %v5153 = vadd.f32 %v4764, %v5152
        %v5154 = vpop.f32.mrf.mxu0
        %v5155 = vadd.f32 %v4764, %v5154
        %5156 = vmatmul.bf16.gmra.mxu0 %v4717
        %v5157 = vpop.f32.mrf.mxu0
        %v5158 = vadd.f32 %v4764, %v5157
        %v5159 = vpop.f32.mrf.mxu0
        %v5160 = vadd.f32 %v4764, %v5159
        %5161 = vmatmul.bf16.gmra.mxu0 %v4719
        %v5162 = vpop.f32.mrf.mxu0
        %v5163 = vadd.f32 %v4764, %v5162
        %v5164 = vpop.f32.mrf.mxu0
        %v5165 = vadd.f32 %v4764, %v5164
        %5166 = vmatmul.bf16.gmra.mxu0 %v4721
        %v5167 = vpop.f32.mrf.mxu0
        %v5168 = vadd.f32 %v4764, %v5167
        %v5169 = vpop.f32.mrf.mxu0
        %v5170 = vadd.f32 %v4764, %v5169
        %5171 = vmatmul.bf16.gmra.mxu0 %v4723
        %v5172 = vpop.f32.mrf.mxu0
        %v5173 = vadd.f32 %v4764, %v5172
        %v5174 = vpop.f32.mrf.mxu0
        %v5175 = vadd.f32 %v4764, %v5174
        %5176 = vmatmul.bf16.gmra.mxu0 %v4725
        %v5177 = vpop.f32.mrf.mxu0
        %v5178 = vadd.f32 %v4764, %v5177
        %v5179 = vpop.f32.mrf.mxu0
        %v5180 = vadd.f32 %v4764, %v5179
        %5181 = vmatmul.bf16.gmra.mxu0 %v4727
        %v5182 = vpop.f32.mrf.mxu0
        %v5183 = vadd.f32 %v4764, %v5182
        %v5184 = vpop.f32.mrf.mxu0
        %v5185 = vadd.f32 %v4764, %v5184
        %5186 = vmatmul.bf16.gmra.mxu0 %v4729
        %v5187 = vpop.f32.mrf.mxu0
        %v5188 = vadd.f32 %v4764, %v5187
        %v5189 = vpop.f32.mrf.mxu0
        %v5190 = vadd.f32 %v4764, %v5189
        %5191 = vmatmul.bf16.gmra.mxu0 %v4731
        %v5192 = vpop.f32.mrf.mxu0
        %v5193 = vadd.f32 %v4764, %v5192
        %v5194 = vpop.f32.mrf.mxu0
        %v5195 = vadd.f32 %v4764, %v5194
        %5196 = vmatmul.bf16.gmra.mxu0 %v4733
        %v5197 = vpop.f32.mrf.mxu0
        %v5198 = vadd.f32 %v4764, %v5197
        %v5199 = vpop.f32.mrf.mxu0
        %v5200 = vadd.f32 %v4764, %v5199
        %5201 = vdwg.mxu0
        %5202 = vmatpush.bf16.msra.mxu0 0
        %5203 = vmatpush.bf16.msra.mxu0 0
        %5204 = vmatpush.bf16.msra.mxu0 0
        %5205 = vmatpush.bf16.msra.mxu0 0
        %5206 = vmatpush.bf16.msra.mxu0 %v4862
        %5207 = vmatpush.bf16.msra.mxu0 %v4860
        %5208 = vmatpush.bf16.msra.mxu0 %v4858
        %5209 = vmatpush.bf16.msra.mxu0 %v4856
        %5210 = vmatmul.bf16.gmra.mxu0 %v4888
        %v5211 = vpop.f32.mrf.mxu0
        %v5212 = vadd.f32 %v5123, %v5211
        %v5213 = vpop.f32.mrf.mxu0
        %v5214 = vadd.f32 %v5125, %v5213
        %5215 = vmatmul.bf16.gmra.mxu0 %v4891
        %v5216 = vpop.f32.mrf.mxu0
        %v5217 = vadd.f32 %v5128, %v5216
        %v5218 = vpop.f32.mrf.mxu0
        %v5219 = vadd.f32 %v5130, %v5218
        %5220 = vmatmul.bf16.gmra.mxu0 %v4894
        %v5221 = vpop.f32.mrf.mxu0
        %v5222 = vadd.f32 %v5133, %v5221
        %v5223 = vpop.f32.mrf.mxu0
        %v5224 = vadd.f32 %v5135, %v5223
        %5225 = vmatmul.bf16.gmra.mxu0 %v4897
        %v5226 = vpop.f32.mrf.mxu0
        %v5227 = vadd.f32 %v5138, %v5226
        %v5228 = vpop.f32.mrf.mxu0
        %v5229 = vadd.f32 %v5140, %v5228
        %5230 = vmatmul.bf16.gmra.mxu0 %v4900
        %v5231 = vpop.f32.mrf.mxu0
        %v5232 = vadd.f32 %v5143, %v5231
        %v5233 = vpop.f32.mrf.mxu0
        %v5234 = vadd.f32 %v5145, %v5233
        %5235 = vmatmul.bf16.gmra.mxu0 %v4903
        %v5236 = vpop.f32.mrf.mxu0
        %v5237 = vadd.f32 %v5148, %v5236
        %v5238 = vpop.f32.mrf.mxu0
        %v5239 = vadd.f32 %v5150, %v5238
        %5240 = vmatmul.bf16.gmra.mxu0 %v4906
        %v5241 = vpop.f32.mrf.mxu0
        %v5242 = vadd.f32 %v5153, %v5241
        %v5243 = vpop.f32.mrf.mxu0
        %v5244 = vadd.f32 %v5155, %v5243
        %5245 = vmatmul.bf16.gmra.mxu0 %v4909
        %v5246 = vpop.f32.mrf.mxu0
        %v5247 = vadd.f32 %v5158, %v5246
        %v5248 = vpop.f32.mrf.mxu0
        %v5249 = vadd.f32 %v5160, %v5248
        %5250 = vmatmul.bf16.gmra.mxu0 %v4912
        %v5251 = vpop.f32.mrf.mxu0
        %v5252 = vadd.f32 %v5163, %v5251
        %v5253 = vpop.f32.mrf.mxu0
        %v5254 = vadd.f32 %v5165, %v5253
        %5255 = vmatmul.bf16.gmra.mxu0 %v4915
        %v5256 = vpop.f32.mrf.mxu0
        %v5257 = vadd.f32 %v5168, %v5256
        %v5258 = vpop.f32.mrf.mxu0
        %v5259 = vadd.f32 %v5170, %v5258
        %5260 = vmatmul.bf16.gmra.mxu0 %v4918
        %v5261 = vpop.f32.mrf.mxu0
        %v5262 = vadd.f32 %v5173, %v5261
        %v5263 = vpop.f32.mrf.mxu0
        %v5264 = vadd.f32 %v5175, %v5263
        %5265 = vmatmul.bf16.gmra.mxu0 %v4921
        %v5266 = vpop.f32.mrf.mxu0
        %v5267 = vadd.f32 %v5178, %v5266
        %v5268 = vpop.f32.mrf.mxu0
        %v5269 = vadd.f32 %v5180, %v5268
        %5270 = vmatmul.bf16.gmra.mxu0 %v4924
        %v5271 = vpop.f32.mrf.mxu0
        %v5272 = vadd.f32 %v5183, %v5271
        %v5273 = vpop.f32.mrf.mxu0
        %v5274 = vadd.f32 %v5185, %v5273
        %5275 = vmatmul.bf16.gmra.mxu0 %v4927
        %v5276 = vpop.f32.mrf.mxu0
        %v5277 = vadd.f32 %v5188, %v5276
        %v5278 = vpop.f32.mrf.mxu0
        %v5279 = vadd.f32 %v5190, %v5278
        %5280 = vmatmul.bf16.gmra.mxu0 %v4930
        %v5281 = vpop.f32.mrf.mxu0
        %v5282 = vadd.f32 %v5193, %v5281
        %v5283 = vpop.f32.mrf.mxu0
        %v5284 = vadd.f32 %v5195, %v5283
        %5285 = vmatmul.bf16.gmra.mxu0 %v4933
        %v5286 = vpop.f32.mrf.mxu0
        %v5287 = vadd.f32 %v5198, %v5286
        %v5288 = vpop.f32.mrf.mxu0
        %v5289 = vadd.f32 %v5200, %v5288
        %5290 = vdwg.mxu0
        %vm5291 = vcmp.gt.f32.partialorder %v1918, 0.0
        %vm5292 = vcmp.gt.f32.partialorder %v2096, 0.0
        %vm5293 = vcmp.gt.f32.partialorder %v1920, 0.0
        %vm5294 = vcmp.gt.f32.partialorder %v2098, 0.0
        %vm5295 = vcmp.gt.f32.partialorder %v1923, 0.0
        %vm5296 = vcmp.gt.f32.partialorder %v2101, 0.0
        %vm5297 = vcmp.gt.f32.partialorder %v1925, 0.0
        %vm5298 = vcmp.gt.f32.partialorder %v2103, 0.0
        %vm5299 = vcmp.gt.f32.partialorder %v1928, 0.0
        %vm5300 = vcmp.gt.f32.partialorder %v2106, 0.0
        %vm5301 = vcmp.gt.f32.partialorder %v1930, 0.0
        %vm5302 = vcmp.gt.f32.partialorder %v2108, 0.0
        %vm5303 = vcmp.gt.f32.partialorder %v1933, 0.0
        %vm5304 = vcmp.gt.f32.partialorder %v2111, 0.0
        %vm5305 = vcmp.gt.f32.partialorder %v1935, 0.0
        %vm5306 = vcmp.gt.f32.partialorder %v2113, 0.0
        %vm5307 = vcmp.gt.f32.partialorder %v1938, 0.0
        %vm5308 = vcmp.gt.f32.partialorder %v2116, 0.0
        %vm5309 = vcmp.gt.f32.partialorder %v1940, 0.0
        %vm5310 = vcmp.gt.f32.partialorder %v2118, 0.0
        %vm5311 = vcmp.gt.f32.partialorder %v1943, 0.0
        %vm5312 = vcmp.gt.f32.partialorder %v2121, 0.0
        %vm5313 = vcmp.gt.f32.partialorder %v1945, 0.0
        %vm5314 = vcmp.gt.f32.partialorder %v2123, 0.0
        %vm5315 = vcmp.gt.f32.partialorder %v1948, 0.0
        %vm5316 = vcmp.gt.f32.partialorder %v2126, 0.0
        %vm5317 = vcmp.gt.f32.partialorder %v1950, 0.0
        %vm5318 = vcmp.gt.f32.partialorder %v2128, 0.0
        %vm5319 = vcmp.gt.f32.partialorder %v1953, 0.0
        %vm5320 = vcmp.gt.f32.partialorder %v2131, 0.0
        %vm5321 = vcmp.gt.f32.partialorder %v1955, 0.0
        %vm5322 = vcmp.gt.f32.partialorder %v2133, 0.0
        %vm5323 = vcmp.gt.f32.partialorder %v1958, 0.0
        %vm5324 = vcmp.gt.f32.partialorder %v2136, 0.0
        %vm5325 = vcmp.gt.f32.partialorder %v1960, 0.0
        %vm5326 = vcmp.gt.f32.partialorder %v2138, 0.0
        %vm5327 = vcmp.gt.f32.partialorder %v1963, 0.0
        %vm5328 = vcmp.gt.f32.partialorder %v2141, 0.0
        %vm5329 = vcmp.gt.f32.partialorder %v1965, 0.0
        %vm5330 = vcmp.gt.f32.partialorder %v2143, 0.0
        %vm5331 = vcmp.gt.f32.partialorder %v1968, 0.0
        %vm5332 = vcmp.gt.f32.partialorder %v2146, 0.0
        %vm5333 = vcmp.gt.f32.partialorder %v1970, 0.0
        %vm5334 = vcmp.gt.f32.partialorder %v2148, 0.0
        %vm5335 = vcmp.gt.f32.partialorder %v1973, 0.0
        %vm5336 = vcmp.gt.f32.partialorder %v2151, 0.0
        %vm5337 = vcmp.gt.f32.partialorder %v1975, 0.0
        %vm5338 = vcmp.gt.f32.partialorder %v2153, 0.0
        %vm5339 = vcmp.gt.f32.partialorder %v1978, 0.0
        %vm5340 = vcmp.gt.f32.partialorder %v2156, 0.0
        %vm5341 = vcmp.gt.f32.partialorder %v1980, 0.0
        %vm5342 = vcmp.gt.f32.partialorder %v2158, 0.0
        %vm5343 = vcmp.gt.f32.partialorder %v1983, 0.0
        %vm5344 = vcmp.gt.f32.partialorder %v2161, 0.0
        %vm5345 = vcmp.gt.f32.partialorder %v1985, 0.0
        %vm5346 = vcmp.gt.f32.partialorder %v2163, 0.0
        %vm5347 = vcmp.gt.f32.partialorder %v1988, 0.0
        %vm5348 = vcmp.gt.f32.partialorder %v2166, 0.0
        %vm5349 = vcmp.gt.f32.partialorder %v1990, 0.0
        %vm5350 = vcmp.gt.f32.partialorder %v2168, 0.0
        %vm5351 = vcmp.gt.f32.partialorder %v1993, 0.0
        %vm5352 = vcmp.gt.f32.partialorder %v2171, 0.0
        %vm5353 = vcmp.gt.f32.partialorder %v1995, 0.0
        %vm5354 = vcmp.gt.f32.partialorder %v2173, 0.0
        %v5355 = vmul.f32 %v1918, 0.01
        %v5356 = vmul.f32 %v2096, 0.01
        %v5357 = vmul.f32 %v1920, 0.01
        %v5358 = vmul.f32 %v2098, 0.01
        %v5359 = vmul.f32 %v1923, 0.01
        %v5360 = vmul.f32 %v2101, 0.01
        %v5361 = vmul.f32 %v1925, 0.01
        %v5362 = vmul.f32 %v2103, 0.01
        %v5363 = vmul.f32 %v1928, 0.01
        %v5364 = vmul.f32 %v2106, 0.01
        %v5365 = vmul.f32 %v1930, 0.01
        %v5366 = vmul.f32 %v2108, 0.01
        %v5367 = vmul.f32 %v1933, 0.01
        %v5368 = vmul.f32 %v2111, 0.01
        %v5369 = vmul.f32 %v1935, 0.01
        %v5370 = vmul.f32 %v2113, 0.01
        %v5371 = vmul.f32 %v1938, 0.01
        %v5372 = vmul.f32 %v2116, 0.01
        %v5373 = vmul.f32 %v1940, 0.01
        %v5374 = vmul.f32 %v2118, 0.01
        %v5375 = vmul.f32 %v1943, 0.01
        %v5376 = vmul.f32 %v2121, 0.01
        %v5377 = vmul.f32 %v1945, 0.01
        %v5378 = vmul.f32 %v2123, 0.01
        %v5379 = vmul.f32 %v1948, 0.01
        %v5380 = vmul.f32 %v2126, 0.01
        %v5381 = vmul.f32 %v1950, 0.01
        %v5382 = vmul.f32 %v2128, 0.01
        %v5383 = vmul.f32 %v1953, 0.01
        %v5384 = vmul.f32 %v2131, 0.01
        %v5385 = vmul.f32 %v1955, 0.01
        %v5386 = vmul.f32 %v2133, 0.01
        %v5387 = vmul.f32 %v1958, 0.01
        %v5388 = vmul.f32 %v2136, 0.01
        %v5389 = vmul.f32 %v1960, 0.01
        %v5390 = vmul.f32 %v2138, 0.01
        %v5391 = vmul.f32 %v1963, 0.01
        %v5392 = vmul.f32 %v2141, 0.01
        %v5393 = vmul.f32 %v1965, 0.01
        %v5394 = vmul.f32 %v2143, 0.01
        %v5395 = vmul.f32 %v1968, 0.01
        %v5396 = vmul.f32 %v2146, 0.01
        %v5397 = vmul.f32 %v1970, 0.01
        %v5398 = vmul.f32 %v2148, 0.01
        %v5399 = vmul.f32 %v1973, 0.01
        %v5400 = vmul.f32 %v2151, 0.01
        %v5401 = vmul.f32 %v1975, 0.01
        %v5402 = vmul.f32 %v2153, 0.01
        %v5403 = vmul.f32 %v1978, 0.01
        %v5404 = vmul.f32 %v2156, 0.01
        %v5405 = vmul.f32 %v1980, 0.01
        %v5406 = vmul.f32 %v2158, 0.01
        %v5407 = vmul.f32 %v1983, 0.01
        %v5408 = vmul.f32 %v2161, 0.01
        %v5409 = vmul.f32 %v1985, 0.01
        %v5410 = vmul.f32 %v2163, 0.01
        %v5411 = vmul.f32 %v1988, 0.01
        %v5412 = vmul.f32 %v2166, 0.01
        %v5413 = vmul.f32 %v1990, 0.01
        %v5414 = vmul.f32 %v2168, 0.01
        %v5415 = vmul.f32 %v1993, 0.01
        %v5416 = vmul.f32 %v2171, 0.01
        %v5417 = vmul.f32 %v1995, 0.01
        %v5418 = vmul.f32 %v2173, 0.01
        %v5419 = vsel %vm5291, %v1918, %v5355
        %v5420 = vsel %vm5292, %v2096, %v5356
        %v5421 = vsel %vm5293, %v1920, %v5357
        %v5422 = vsel %vm5294, %v2098, %v5358
        %v5423 = vsel %vm5295, %v1923, %v5359
        %v5424 = vsel %vm5296, %v2101, %v5360
        %v5425 = vsel %vm5297, %v1925, %v5361
        %v5426 = vsel %vm5298, %v2103, %v5362
        %v5427 = vsel %vm5299, %v1928, %v5363
        %v5428 = vsel %vm5300, %v2106, %v5364
        %v5429 = vsel %vm5301, %v1930, %v5365
        %v5430 = vsel %vm5302, %v2108, %v5366
        %v5431 = vsel %vm5303, %v1933, %v5367
        %v5432 = vsel %vm5304, %v2111, %v5368
        %v5433 = vsel %vm5305, %v1935, %v5369
        %v5434 = vsel %vm5306, %v2113, %v5370
        %v5435 = vsel %vm5307, %v1938, %v5371
        %v5436 = vsel %vm5308, %v2116, %v5372
        %v5437 = vsel %vm5309, %v1940, %v5373
        %v5438 = vsel %vm5310, %v2118, %v5374
        %v5439 = vsel %vm5311, %v1943, %v5375
        %v5440 = vsel %vm5312, %v2121, %v5376
        %v5441 = vsel %vm5313, %v1945, %v5377
        %v5442 = vsel %vm5314, %v2123, %v5378
        %v5443 = vsel %vm5315, %v1948, %v5379
        %v5444 = vsel %vm5316, %v2126, %v5380
        %v5445 = vsel %vm5317, %v1950, %v5381
        %v5446 = vsel %vm5318, %v2128, %v5382
        %v5447 = vsel %vm5319, %v1953, %v5383
        %v5448 = vsel %vm5320, %v2131, %v5384
        %v5449 = vsel %vm5321, %v1955, %v5385
        %v5450 = vsel %vm5322, %v2133, %v5386
        %v5451 = vsel %vm5323, %v1958, %v5387
        %v5452 = vsel %vm5324, %v2136, %v5388
        %v5453 = vsel %vm5325, %v1960, %v5389
        %v5454 = vsel %vm5326, %v2138, %v5390
        %v5455 = vsel %vm5327, %v1963, %v5391
        %v5456 = vsel %vm5328, %v2141, %v5392
        %v5457 = vsel %vm5329, %v1965, %v5393
        %v5458 = vsel %vm5330, %v2143, %v5394
        %v5459 = vsel %vm5331, %v1968, %v5395
        %v5460 = vsel %vm5332, %v2146, %v5396
        %v5461 = vsel %vm5333, %v1970, %v5397
        %v5462 = vsel %vm5334, %v2148, %v5398
        %v5463 = vsel %vm5335, %v1973, %v5399
        %v5464 = vsel %vm5336, %v2151, %v5400
        %v5465 = vsel %vm5337, %v1975, %v5401
        %v5466 = vsel %vm5338, %v2153, %v5402
        %v5467 = vsel %vm5339, %v1978, %v5403
        %v5468 = vsel %vm5340, %v2156, %v5404
        %v5469 = vsel %vm5341, %v1980, %v5405
        %v5470 = vsel %vm5342, %v2158, %v5406
        %v5471 = vsel %vm5343, %v1983, %v5407
        %v5472 = vsel %vm5344, %v2161, %v5408
        %v5473 = vsel %vm5345, %v1985, %v5409
        %v5474 = vsel %vm5346, %v2163, %v5410
        %v5475 = vsel %vm5347, %v1988, %v5411
        %v5476 = vsel %vm5348, %v2166, %v5412
        %v5477 = vsel %vm5349, %v1990, %v5413
        %v5478 = vsel %vm5350, %v2168, %v5414
        %v5479 = vsel %vm5351, %v1993, %v5415
        %v5480 = vsel %vm5352, %v2171, %v5416
        %v5481 = vsel %vm5353, %v1995, %v5417
        %v5482 = vsel %vm5354, %v2173, %v5418
        %v5483 = vpack.c.bf16 %v5421, %v5419
        %v5484 = vpack.c.bf16 %v5422, %v5420
        %v5485 = vpack.c.bf16 %v5425, %v5423
        %v5486 = vpack.c.bf16 %v5426, %v5424
        %v5487 = vpack.c.bf16 %v5429, %v5427
        %v5488 = vpack.c.bf16 %v5430, %v5428
        %v5489 = vpack.c.bf16 %v5433, %v5431
        %v5490 = vpack.c.bf16 %v5434, %v5432
        %v5491 = vpack.c.bf16 %v5437, %v5435
        %v5492 = vpack.c.bf16 %v5438, %v5436
        %v5493 = vpack.c.bf16 %v5441, %v5439
        %v5494 = vpack.c.bf16 %v5442, %v5440
        %v5495 = vpack.c.bf16 %v5445, %v5443
        %v5496 = vpack.c.bf16 %v5446, %v5444
        %v5497 = vpack.c.bf16 %v5449, %v5447
        %v5498 = vpack.c.bf16 %v5450, %v5448
        %v5499 = vpack.c.bf16 %v5453, %v5451
        %v5500 = vpack.c.bf16 %v5454, %v5452
        %v5501 = vpack.c.bf16 %v5457, %v5455
        %v5502 = vpack.c.bf16 %v5458, %v5456
        %v5503 = vpack.c.bf16 %v5461, %v5459
        %v5504 = vpack.c.bf16 %v5462, %v5460
        %v5505 = vpack.c.bf16 %v5465, %v5463
        %v5506 = vpack.c.bf16 %v5466, %v5464
        %v5507 = vpack.c.bf16 %v5469, %v5467
        %v5508 = vpack.c.bf16 %v5470, %v5468
        %v5509 = vpack.c.bf16 %v5473, %v5471
        %v5510 = vpack.c.bf16 %v5474, %v5472
        %v5511 = vpack.c.bf16 %v5477, %v5475
        %v5512 = vpack.c.bf16 %v5478, %v5476
        %v5513 = vpack.c.bf16 %v5481, %v5479
        %v5514 = vpack.c.bf16 %v5482, %v5480
        %s5515 = scalar_lea.vmem [#allocation10], 384
        %v5516 = vld [vmem:[%s5515] sm:$0xff]
        %v5517 = vld [vmem:[%s5515 + $0x8] sm:$0xff]
        %v5518 = vld [vmem:[%s5515 + $0x10] sm:$0xff]
        %v5519 = vld [vmem:[%s5515 + $0x18] sm:$0xff]
        %v5520 = vld [vmem:[%s5515 + $0x20] sm:$0xff]
        %v5521 = vld [vmem:[%s5515 + $0x28] sm:$0xff]
        %v5522 = vld [vmem:[%s5515 + $0x30] sm:$0xff]
        %v5523 = vld [vmem:[%s5515 + $0x38] sm:$0xff]
        %v5524 = vld [vmem:[%s5515 + $0x40] sm:$0xff]
        %v5525 = vld [vmem:[%s5515 + $0x48] sm:$0xff]
        %v5526 = vld [vmem:[%s5515 + $0x50] sm:$0xff]
        %v5527 = vld [vmem:[%s5515 + $0x58] sm:$0xff]
        %v5528 = vld [vmem:[%s5515 + $0x60] sm:$0xff]
        %v5529 = vld [vmem:[%s5515 + $0x68] sm:$0xff]
        %v5530 = vld [vmem:[%s5515 + $0x70] sm:$0xff]
        %v5531 = vld [vmem:[%s5515 + $0x78] sm:$0xff]
        %v5532 = vld [vmem:[%s5515 + $0x80] sm:$0xff]
        %v5533 = vld [vmem:[%s5515 + $0x88] sm:$0xff]
        %v5534 = vld [vmem:[%s5515 + $0x90] sm:$0xff]
        %v5535 = vld [vmem:[%s5515 + $0x98] sm:$0xff]
        %v5536 = vld [vmem:[%s5515 + $0xa0] sm:$0xff]
        %v5537 = vld [vmem:[%s5515 + $0xa8] sm:$0xff]
        %v5538 = vld [vmem:[%s5515 + $0xb0] sm:$0xff]
        %v5539 = vld [vmem:[%s5515 + $0xb8] sm:$0xff]
        %s5540 = scalar_lea.vmem [#allocation11], 4
        %v5541 = vld [vmem:[%s5540] sm:$0x3]
        %v5543 = vperm.slane %v5541, 0
        %v5544 = vperm.slane %v5541, 1
        %v5571 = vunpack.c.l.b16 %v5516
        %v5572 = vunpack.c.h.b16 %v5516
        %v5573 = vunpack.c.l.b16 %v5517
        %v5574 = vunpack.c.h.b16 %v5517
        %v5575 = vunpack.c.l.b16 %v5518
        %v5576 = vunpack.c.h.b16 %v5518
        %v5577 = vunpack.c.l.b16 %v5519
        %v5578 = vunpack.c.h.b16 %v5519
        %v5579 = vunpack.c.l.b16 %v5520
        %v5580 = vunpack.c.h.b16 %v5520
        %v5581 = vunpack.c.l.b16 %v5521
        %v5582 = vunpack.c.h.b16 %v5521
        %v5583 = vunpack.c.l.b16 %v5522
        %v5584 = vunpack.c.h.b16 %v5522
        %v5585 = vunpack.c.l.b16 %v5523
        %v5586 = vunpack.c.h.b16 %v5523
        %v5587 = vunpack.c.l.b16 %v5524
        %v5588 = vunpack.c.h.b16 %v5524
        %v5589 = vunpack.c.l.b16 %v5525
        %v5590 = vunpack.c.h.b16 %v5525
        %v5591 = vunpack.c.l.b16 %v5526
        %v5592 = vunpack.c.h.b16 %v5526
        %v5593 = vunpack.c.l.b16 %v5527
        %v5594 = vunpack.c.h.b16 %v5527
        %v5595 = vunpack.c.l.b16 %v5528
        %v5596 = vunpack.c.h.b16 %v5528
        %v5597 = vunpack.c.l.b16 %v5529
        %v5598 = vunpack.c.h.b16 %v5529
        %v5599 = vunpack.c.l.b16 %v5530
        %v5600 = vunpack.c.h.b16 %v5530
        %v5601 = vunpack.c.l.b16 %v5531
        %v5602 = vunpack.c.h.b16 %v5531
        %v5603 = vunpack.c.l.b16 %v5532
        %v5604 = vunpack.c.h.b16 %v5532
        %v5605 = vunpack.c.l.b16 %v5533
        %v5606 = vunpack.c.h.b16 %v5533
        %v5607 = vunpack.c.l.b16 %v5534
        %v5608 = vunpack.c.h.b16 %v5534
        %v5609 = vunpack.c.l.b16 %v5535
        %v5610 = vunpack.c.h.b16 %v5535
        %v5611 = vunpack.c.l.b16 %v5536
        %v5612 = vunpack.c.h.b16 %v5536
        %v5613 = vunpack.c.l.b16 %v5537
        %v5614 = vunpack.c.h.b16 %v5537
        %v5615 = vunpack.c.l.b16 %v5538
        %v5616 = vunpack.c.h.b16 %v5538
        %v5617 = vunpack.c.l.b16 %v5539
        %v5618 = vunpack.c.h.b16 %v5539
        %v5619 = vpack.c.b16 %v5573, %v5571
        %v5620 = vpack.c.b16 %v5574, %v5572
        %v5621 = vpack.c.b16 %v5577, %v5575
        %v5622 = vpack.c.b16 %v5578, %v5576
        %v5623 = vpack.c.b16 %v5581, %v5579
        %v5624 = vpack.c.b16 %v5582, %v5580
        %v5625 = vpack.c.b16 %v5585, %v5583
        %v5626 = vpack.c.b16 %v5586, %v5584
        %v5627 = vpack.c.b16 %v5589, %v5587
        %v5628 = vpack.c.b16 %v5590, %v5588
        %v5629 = vpack.c.b16 %v5593, %v5591
        %v5630 = vpack.c.b16 %v5594, %v5592
        %v5631 = vpack.c.b16 %v5597, %v5595
        %v5632 = vpack.c.b16 %v5598, %v5596
        %v5633 = vpack.c.b16 %v5601, %v5599
        %v5634 = vpack.c.b16 %v5602, %v5600
        %v5635 = vpack.c.b16 %v5605, %v5603
        %v5636 = vpack.c.b16 %v5606, %v5604
        %v5637 = vpack.c.b16 %v5609, %v5607
        %v5638 = vpack.c.b16 %v5610, %v5608
        %v5639 = vpack.c.b16 %v5613, %v5611
        %v5640 = vpack.c.b16 %v5614, %v5612
        %v5641 = vpack.c.b16 %v5617, %v5615
        %v5642 = vpack.c.b16 %v5618, %v5616
        %v5668 = vsel %vm1058, %v5484, 0
        %v5671 = vsel %vm1058, %v5486, 0
        %v5674 = vsel %vm1058, %v5488, 0
        %v5677 = vsel %vm1058, %v5490, 0
        %v5680 = vsel %vm1058, %v5492, 0
        %v5683 = vsel %vm1058, %v5494, 0
        %v5686 = vsel %vm1058, %v5496, 0
        %v5689 = vsel %vm1058, %v5498, 0
        %v5692 = vsel %vm1058, %v5500, 0
        %v5695 = vsel %vm1058, %v5502, 0
        %v5698 = vsel %vm1058, %v5504, 0
        %v5701 = vsel %vm1058, %v5506, 0
        %v5704 = vsel %vm1058, %v5508, 0
        %v5707 = vsel %vm1058, %v5510, 0
        %v5710 = vsel %vm1058, %v5512, 0
        %v5713 = vsel %vm1058, %v5514, 0
        %5715 = vmatpush.bf16.msra.mxu0 %v5633
        %5716 = vmatpush.bf16.msra.mxu0 %v5631
        %5717 = vmatpush.bf16.msra.mxu0 %v5629
        %5718 = vmatpush.bf16.msra.mxu0 %v5627
        %5719 = vmatpush.bf16.msra.mxu0 %v5625
        %5720 = vmatpush.bf16.msra.mxu0 %v5623
        %5721 = vmatpush.bf16.msra.mxu0 %v5621
        %5722 = vmatpush.bf16.msra.mxu0 %v5619
        %5723 = vmatmul.bf16.gmra.mxu0 %v5483
        %v5724 = vpop.f32.mrf.mxu0
        %v5725 = vadd.f32 %v5543, %v5724
        %v5726 = vpop.f32.mrf.mxu0
        %v5727 = vadd.f32 %v5543, %v5726
        %5728 = vmatmul.bf16.gmra.mxu0 %v5485
        %v5729 = vpop.f32.mrf.mxu0
        %v5730 = vadd.f32 %v5543, %v5729
        %v5731 = vpop.f32.mrf.mxu0
        %v5732 = vadd.f32 %v5543, %v5731
        %5733 = vmatmul.bf16.gmra.mxu0 %v5487
        %v5734 = vpop.f32.mrf.mxu0
        %v5735 = vadd.f32 %v5543, %v5734
        %v5736 = vpop.f32.mrf.mxu0
        %v5737 = vadd.f32 %v5543, %v5736
        %5738 = vmatmul.bf16.gmra.mxu0 %v5489
        %v5739 = vpop.f32.mrf.mxu0
        %v5740 = vadd.f32 %v5543, %v5739
        %v5741 = vpop.f32.mrf.mxu0
        %v5742 = vadd.f32 %v5543, %v5741
        %5743 = vmatmul.bf16.gmra.mxu0 %v5491
        %v5744 = vpop.f32.mrf.mxu0
        %v5745 = vadd.f32 %v5543, %v5744
        %v5746 = vpop.f32.mrf.mxu0
        %v5747 = vadd.f32 %v5543, %v5746
        %5748 = vmatmul.bf16.gmra.mxu0 %v5493
        %v5749 = vpop.f32.mrf.mxu0
        %v5750 = vadd.f32 %v5543, %v5749
        %v5751 = vpop.f32.mrf.mxu0
        %v5752 = vadd.f32 %v5543, %v5751
        %5753 = vmatmul.bf16.gmra.mxu0 %v5495
        %v5754 = vpop.f32.mrf.mxu0
        %v5755 = vadd.f32 %v5543, %v5754
        %v5756 = vpop.f32.mrf.mxu0
        %v5757 = vadd.f32 %v5543, %v5756
        %5758 = vmatmul.bf16.gmra.mxu0 %v5497
        %v5759 = vpop.f32.mrf.mxu0
        %v5760 = vadd.f32 %v5543, %v5759
        %v5761 = vpop.f32.mrf.mxu0
        %v5762 = vadd.f32 %v5543, %v5761
        %5763 = vmatmul.bf16.gmra.mxu0 %v5499
        %v5764 = vpop.f32.mrf.mxu0
        %v5765 = vadd.f32 %v5543, %v5764
        %v5766 = vpop.f32.mrf.mxu0
        %v5767 = vadd.f32 %v5543, %v5766
        %5768 = vmatmul.bf16.gmra.mxu0 %v5501
        %v5769 = vpop.f32.mrf.mxu0
        %v5770 = vadd.f32 %v5543, %v5769
        %v5771 = vpop.f32.mrf.mxu0
        %v5772 = vadd.f32 %v5543, %v5771
        %5773 = vmatmul.bf16.gmra.mxu0 %v5503
        %v5774 = vpop.f32.mrf.mxu0
        %v5775 = vadd.f32 %v5543, %v5774
        %v5776 = vpop.f32.mrf.mxu0
        %v5777 = vadd.f32 %v5543, %v5776
        %5778 = vmatmul.bf16.gmra.mxu0 %v5505
        %v5779 = vpop.f32.mrf.mxu0
        %v5780 = vadd.f32 %v5543, %v5779
        %v5781 = vpop.f32.mrf.mxu0
        %v5782 = vadd.f32 %v5543, %v5781
        %5783 = vmatmul.bf16.gmra.mxu0 %v5507
        %v5784 = vpop.f32.mrf.mxu0
        %v5785 = vadd.f32 %v5543, %v5784
        %v5786 = vpop.f32.mrf.mxu0
        %v5787 = vadd.f32 %v5543, %v5786
        %5788 = vmatmul.bf16.gmra.mxu0 %v5509
        %v5789 = vpop.f32.mrf.mxu0
        %v5790 = vadd.f32 %v5543, %v5789
        %v5791 = vpop.f32.mrf.mxu0
        %v5792 = vadd.f32 %v5543, %v5791
        %5793 = vmatmul.bf16.gmra.mxu0 %v5511
        %v5794 = vpop.f32.mrf.mxu0
        %v5795 = vadd.f32 %v5543, %v5794
        %v5796 = vpop.f32.mrf.mxu0
        %v5797 = vadd.f32 %v5543, %v5796
        %5798 = vmatmul.bf16.gmra.mxu0 %v5513
        %v5799 = vpop.f32.mrf.mxu0
        %v5800 = vadd.f32 %v5543, %v5799
        %v5801 = vpop.f32.mrf.mxu0
        %v5802 = vadd.f32 %v5543, %v5801
        %5803 = vdwg.mxu0
        %5804 = vmatpush.bf16.msra.mxu0 0
        %5805 = vmatpush.bf16.msra.mxu0 0
        %5806 = vmatpush.bf16.msra.mxu0 0
        %5807 = vmatpush.bf16.msra.mxu0 0
        %5808 = vmatpush.bf16.msra.mxu0 %v5641
        %5809 = vmatpush.bf16.msra.mxu0 %v5639
        %5810 = vmatpush.bf16.msra.mxu0 %v5637
        %5811 = vmatpush.bf16.msra.mxu0 %v5635
        %5812 = vmatmul.bf16.gmra.mxu0 %v5668
        %v5813 = vpop.f32.mrf.mxu0
        %v5814 = vadd.f32 %v5725, %v5813
        %v5815 = vpop.f32.mrf.mxu0
        %v5816 = vadd.f32 %v5727, %v5815
        %5817 = vmatmul.bf16.gmra.mxu0 %v5671
        %v5818 = vpop.f32.mrf.mxu0
        %v5819 = vadd.f32 %v5730, %v5818
        %v5820 = vpop.f32.mrf.mxu0
        %v5821 = vadd.f32 %v5732, %v5820
        %5822 = vmatmul.bf16.gmra.mxu0 %v5674
        %v5823 = vpop.f32.mrf.mxu0
        %v5824 = vadd.f32 %v5735, %v5823
        %v5825 = vpop.f32.mrf.mxu0
        %v5826 = vadd.f32 %v5737, %v5825
        %5827 = vmatmul.bf16.gmra.mxu0 %v5677
        %v5828 = vpop.f32.mrf.mxu0
        %v5829 = vadd.f32 %v5740, %v5828
        %v5830 = vpop.f32.mrf.mxu0
        %v5831 = vadd.f32 %v5742, %v5830
        %5832 = vmatmul.bf16.gmra.mxu0 %v5680
        %v5833 = vpop.f32.mrf.mxu0
        %v5834 = vadd.f32 %v5745, %v5833
        %v5835 = vpop.f32.mrf.mxu0
        %v5836 = vadd.f32 %v5747, %v5835
        %5837 = vmatmul.bf16.gmra.mxu0 %v5683
        %v5838 = vpop.f32.mrf.mxu0
        %v5839 = vadd.f32 %v5750, %v5838
        %v5840 = vpop.f32.mrf.mxu0
        %v5841 = vadd.f32 %v5752, %v5840
        %5842 = vmatmul.bf16.gmra.mxu0 %v5686
        %v5843 = vpop.f32.mrf.mxu0
        %v5844 = vadd.f32 %v5755, %v5843
        %v5845 = vpop.f32.mrf.mxu0
        %v5846 = vadd.f32 %v5757, %v5845
        %5847 = vmatmul.bf16.gmra.mxu0 %v5689
        %v5848 = vpop.f32.mrf.mxu0
        %v5849 = vadd.f32 %v5760, %v5848
        %v5850 = vpop.f32.mrf.mxu0
        %v5851 = vadd.f32 %v5762, %v5850
        %5852 = vmatmul.bf16.gmra.mxu0 %v5692
        %v5853 = vpop.f32.mrf.mxu0
        %v5854 = vadd.f32 %v5765, %v5853
        %v5855 = vpop.f32.mrf.mxu0
        %v5856 = vadd.f32 %v5767, %v5855
        %5857 = vmatmul.bf16.gmra.mxu0 %v5695
        %v5858 = vpop.f32.mrf.mxu0
        %v5859 = vadd.f32 %v5770, %v5858
        %v5860 = vpop.f32.mrf.mxu0
        %v5861 = vadd.f32 %v5772, %v5860
        %5862 = vmatmul.bf16.gmra.mxu0 %v5698
        %v5863 = vpop.f32.mrf.mxu0
        %v5864 = vadd.f32 %v5775, %v5863
        %v5865 = vpop.f32.mrf.mxu0
        %v5866 = vadd.f32 %v5777, %v5865
        %5867 = vmatmul.bf16.gmra.mxu0 %v5701
        %v5868 = vpop.f32.mrf.mxu0
        %v5869 = vadd.f32 %v5780, %v5868
        %v5870 = vpop.f32.mrf.mxu0
        %v5871 = vadd.f32 %v5782, %v5870
        %5872 = vmatmul.bf16.gmra.mxu0 %v5704
        %v5873 = vpop.f32.mrf.mxu0
        %v5874 = vadd.f32 %v5785, %v5873
        %v5875 = vpop.f32.mrf.mxu0
        %v5876 = vadd.f32 %v5787, %v5875
        %5877 = vmatmul.bf16.gmra.mxu0 %v5707
        %v5878 = vpop.f32.mrf.mxu0
        %v5879 = vadd.f32 %v5790, %v5878
        %v5880 = vpop.f32.mrf.mxu0
        %v5881 = vadd.f32 %v5792, %v5880
        %5882 = vmatmul.bf16.gmra.mxu0 %v5710
        %v5883 = vpop.f32.mrf.mxu0
        %v5884 = vadd.f32 %v5795, %v5883
        %v5885 = vpop.f32.mrf.mxu0
        %v5886 = vadd.f32 %v5797, %v5885
        %5887 = vmatmul.bf16.gmra.mxu0 %v5713
        %v5888 = vpop.f32.mrf.mxu0
        %v5889 = vadd.f32 %v5800, %v5888
        %v5890 = vpop.f32.mrf.mxu0
        %v5891 = vadd.f32 %v5802, %v5890
        %5892 = vdwg.mxu0
        %5893 = vmatpush.bf16.msra.mxu0 %v5634
        %5894 = vmatpush.bf16.msra.mxu0 %v5632
        %5895 = vmatpush.bf16.msra.mxu0 %v5630
        %5896 = vmatpush.bf16.msra.mxu0 %v5628
        %5897 = vmatpush.bf16.msra.mxu0 %v5626
        %5898 = vmatpush.bf16.msra.mxu0 %v5624
        %5899 = vmatpush.bf16.msra.mxu0 %v5622
        %5900 = vmatpush.bf16.msra.mxu0 %v5620
        %5901 = vmatmul.bf16.gmra.mxu0 %v5483
        %v5902 = vpop.f32.mrf.mxu0
        %v5903 = vadd.f32 %v5544, %v5902
        %v5904 = vpop.f32.mrf.mxu0
        %v5905 = vadd.f32 %v5544, %v5904
        %5906 = vmatmul.bf16.gmra.mxu0 %v5485
        %v5907 = vpop.f32.mrf.mxu0
        %v5908 = vadd.f32 %v5544, %v5907
        %v5909 = vpop.f32.mrf.mxu0
        %v5910 = vadd.f32 %v5544, %v5909
        %5911 = vmatmul.bf16.gmra.mxu0 %v5487
        %v5912 = vpop.f32.mrf.mxu0
        %v5913 = vadd.f32 %v5544, %v5912
        %v5914 = vpop.f32.mrf.mxu0
        %v5915 = vadd.f32 %v5544, %v5914
        %5916 = vmatmul.bf16.gmra.mxu0 %v5489
        %v5917 = vpop.f32.mrf.mxu0
        %v5918 = vadd.f32 %v5544, %v5917
        %v5919 = vpop.f32.mrf.mxu0
        %v5920 = vadd.f32 %v5544, %v5919
        %5921 = vmatmul.bf16.gmra.mxu0 %v5491
        %v5922 = vpop.f32.mrf.mxu0
        %v5923 = vadd.f32 %v5544, %v5922
        %v5924 = vpop.f32.mrf.mxu0
        %v5925 = vadd.f32 %v5544, %v5924
        %5926 = vmatmul.bf16.gmra.mxu0 %v5493
        %v5927 = vpop.f32.mrf.mxu0
        %v5928 = vadd.f32 %v5544, %v5927
        %v5929 = vpop.f32.mrf.mxu0
        %v5930 = vadd.f32 %v5544, %v5929
        %5931 = vmatmul.bf16.gmra.mxu0 %v5495
        %v5932 = vpop.f32.mrf.mxu0
        %v5933 = vadd.f32 %v5544, %v5932
        %v5934 = vpop.f32.mrf.mxu0
        %v5935 = vadd.f32 %v5544, %v5934
        %5936 = vmatmul.bf16.gmra.mxu0 %v5497
        %v5937 = vpop.f32.mrf.mxu0
        %v5938 = vadd.f32 %v5544, %v5937
        %v5939 = vpop.f32.mrf.mxu0
        %v5940 = vadd.f32 %v5544, %v5939
        %5941 = vmatmul.bf16.gmra.mxu0 %v5499
        %v5942 = vpop.f32.mrf.mxu0
        %v5943 = vadd.f32 %v5544, %v5942
        %v5944 = vpop.f32.mrf.mxu0
        %v5945 = vadd.f32 %v5544, %v5944
        %5946 = vmatmul.bf16.gmra.mxu0 %v5501
        %v5947 = vpop.f32.mrf.mxu0
        %v5948 = vadd.f32 %v5544, %v5947
        %v5949 = vpop.f32.mrf.mxu0
        %v5950 = vadd.f32 %v5544, %v5949
        %5951 = vmatmul.bf16.gmra.mxu0 %v5503
        %v5952 = vpop.f32.mrf.mxu0
        %v5953 = vadd.f32 %v5544, %v5952
        %v5954 = vpop.f32.mrf.mxu0
        %v5955 = vadd.f32 %v5544, %v5954
        %5956 = vmatmul.bf16.gmra.mxu0 %v5505
        %v5957 = vpop.f32.mrf.mxu0
        %v5958 = vadd.f32 %v5544, %v5957
        %v5959 = vpop.f32.mrf.mxu0
        %v5960 = vadd.f32 %v5544, %v5959
        %5961 = vmatmul.bf16.gmra.mxu0 %v5507
        %v5962 = vpop.f32.mrf.mxu0
        %v5963 = vadd.f32 %v5544, %v5962
        %v5964 = vpop.f32.mrf.mxu0
        %v5965 = vadd.f32 %v5544, %v5964
        %5966 = vmatmul.bf16.gmra.mxu0 %v5509
        %v5967 = vpop.f32.mrf.mxu0
        %v5968 = vadd.f32 %v5544, %v5967
        %v5969 = vpop.f32.mrf.mxu0
        %v5970 = vadd.f32 %v5544, %v5969
        %5971 = vmatmul.bf16.gmra.mxu0 %v5511
        %v5972 = vpop.f32.mrf.mxu0
        %v5973 = vadd.f32 %v5544, %v5972
        %v5974 = vpop.f32.mrf.mxu0
        %v5975 = vadd.f32 %v5544, %v5974
        %5976 = vmatmul.bf16.gmra.mxu0 %v5513
        %v5977 = vpop.f32.mrf.mxu0
        %v5978 = vadd.f32 %v5544, %v5977
        %v5979 = vpop.f32.mrf.mxu0
        %v5980 = vadd.f32 %v5544, %v5979
        %5981 = vdwg.mxu0
        %5982 = vmatpush.bf16.msra.mxu0 0
        %5983 = vmatpush.bf16.msra.mxu0 0
        %5984 = vmatpush.bf16.msra.mxu0 0
        %5985 = vmatpush.bf16.msra.mxu0 0
        %5986 = vmatpush.bf16.msra.mxu0 %v5642
        %5987 = vmatpush.bf16.msra.mxu0 %v5640
        %5988 = vmatpush.bf16.msra.mxu0 %v5638
        %5989 = vmatpush.bf16.msra.mxu0 %v5636
        %5990 = vmatmul.bf16.gmra.mxu0 %v5668
        %v5991 = vpop.f32.mrf.mxu0
        %v5992 = vadd.f32 %v5903, %v5991
        %v5993 = vpop.f32.mrf.mxu0
        %v5994 = vadd.f32 %v5905, %v5993
        %5995 = vmatmul.bf16.gmra.mxu0 %v5671
        %v5996 = vpop.f32.mrf.mxu0
        %v5997 = vadd.f32 %v5908, %v5996
        %v5998 = vpop.f32.mrf.mxu0
        %v5999 = vadd.f32 %v5910, %v5998
        %6000 = vmatmul.bf16.gmra.mxu0 %v5674
        %v6001 = vpop.f32.mrf.mxu0
        %v6002 = vadd.f32 %v5913, %v6001
        %v6003 = vpop.f32.mrf.mxu0
        %v6004 = vadd.f32 %v5915, %v6003
        %6005 = vmatmul.bf16.gmra.mxu0 %v5677
        %v6006 = vpop.f32.mrf.mxu0
        %v6007 = vadd.f32 %v5918, %v6006
        %v6008 = vpop.f32.mrf.mxu0
        %v6009 = vadd.f32 %v5920, %v6008
        %6010 = vmatmul.bf16.gmra.mxu0 %v5680
        %v6011 = vpop.f32.mrf.mxu0
        %v6012 = vadd.f32 %v5923, %v6011
        %v6013 = vpop.f32.mrf.mxu0
        %v6014 = vadd.f32 %v5925, %v6013
        %6015 = vmatmul.bf16.gmra.mxu0 %v5683
        %v6016 = vpop.f32.mrf.mxu0
        %v6017 = vadd.f32 %v5928, %v6016
        %v6018 = vpop.f32.mrf.mxu0
        %v6019 = vadd.f32 %v5930, %v6018
        %6020 = vmatmul.bf16.gmra.mxu0 %v5686
        %v6021 = vpop.f32.mrf.mxu0
        %v6022 = vadd.f32 %v5933, %v6021
        %v6023 = vpop.f32.mrf.mxu0
        %v6024 = vadd.f32 %v5935, %v6023
        %6025 = vmatmul.bf16.gmra.mxu0 %v5689
        %v6026 = vpop.f32.mrf.mxu0
        %v6027 = vadd.f32 %v5938, %v6026
        %v6028 = vpop.f32.mrf.mxu0
        %v6029 = vadd.f32 %v5940, %v6028
        %6030 = vmatmul.bf16.gmra.mxu0 %v5692
        %v6031 = vpop.f32.mrf.mxu0
        %v6032 = vadd.f32 %v5943, %v6031
        %v6033 = vpop.f32.mrf.mxu0
        %v6034 = vadd.f32 %v5945, %v6033
        %6035 = vmatmul.bf16.gmra.mxu0 %v5695
        %v6036 = vpop.f32.mrf.mxu0
        %v6037 = vadd.f32 %v5948, %v6036
        %v6038 = vpop.f32.mrf.mxu0
        %v6039 = vadd.f32 %v5950, %v6038
        %6040 = vmatmul.bf16.gmra.mxu0 %v5698
        %v6041 = vpop.f32.mrf.mxu0
        %v6042 = vadd.f32 %v5953, %v6041
        %v6043 = vpop.f32.mrf.mxu0
        %v6044 = vadd.f32 %v5955, %v6043
        %6045 = vmatmul.bf16.gmra.mxu0 %v5701
        %v6046 = vpop.f32.mrf.mxu0
        %v6047 = vadd.f32 %v5958, %v6046
        %v6048 = vpop.f32.mrf.mxu0
        %v6049 = vadd.f32 %v5960, %v6048
        %6050 = vmatmul.bf16.gmra.mxu0 %v5704
        %v6051 = vpop.f32.mrf.mxu0
        %v6052 = vadd.f32 %v5963, %v6051
        %v6053 = vpop.f32.mrf.mxu0
        %v6054 = vadd.f32 %v5965, %v6053
        %6055 = vmatmul.bf16.gmra.mxu0 %v5707
        %v6056 = vpop.f32.mrf.mxu0
        %v6057 = vadd.f32 %v5968, %v6056
        %v6058 = vpop.f32.mrf.mxu0
        %v6059 = vadd.f32 %v5970, %v6058
        %6060 = vmatmul.bf16.gmra.mxu0 %v5710
        %v6061 = vpop.f32.mrf.mxu0
        %v6062 = vadd.f32 %v5973, %v6061
        %v6063 = vpop.f32.mrf.mxu0
        %v6064 = vadd.f32 %v5975, %v6063
        %6065 = vmatmul.bf16.gmra.mxu0 %v5713
        %v6066 = vpop.f32.mrf.mxu0
        %v6067 = vadd.f32 %v5978, %v6066
        %v6068 = vpop.f32.mrf.mxu0
        %v6069 = vadd.f32 %v5980, %v6068
        %6070 = vdwg.mxu0
        %vm6071 = vcmp.gt.f32.partialorder %v5814, 0.0
        %vm6072 = vcmp.gt.f32.partialorder %v5992, 0.0
        %vm6073 = vcmp.gt.f32.partialorder %v5816, 0.0
        %vm6074 = vcmp.gt.f32.partialorder %v5994, 0.0
        %vm6075 = vcmp.gt.f32.partialorder %v5819, 0.0
        %vm6076 = vcmp.gt.f32.partialorder %v5997, 0.0
        %vm6077 = vcmp.gt.f32.partialorder %v5821, 0.0
        %vm6078 = vcmp.gt.f32.partialorder %v5999, 0.0
        %vm6079 = vcmp.gt.f32.partialorder %v5824, 0.0
        %vm6080 = vcmp.gt.f32.partialorder %v6002, 0.0
        %vm6081 = vcmp.gt.f32.partialorder %v5826, 0.0
        %vm6082 = vcmp.gt.f32.partialorder %v6004, 0.0
        %vm6083 = vcmp.gt.f32.partialorder %v5829, 0.0
        %vm6084 = vcmp.gt.f32.partialorder %v6007, 0.0
        %vm6085 = vcmp.gt.f32.partialorder %v5831, 0.0
        %vm6086 = vcmp.gt.f32.partialorder %v6009, 0.0
        %vm6087 = vcmp.gt.f32.partialorder %v5834, 0.0
        %vm6088 = vcmp.gt.f32.partialorder %v6012, 0.0
        %vm6089 = vcmp.gt.f32.partialorder %v5836, 0.0
        %vm6090 = vcmp.gt.f32.partialorder %v6014, 0.0
        %vm6091 = vcmp.gt.f32.partialorder %v5839, 0.0
        %vm6092 = vcmp.gt.f32.partialorder %v6017, 0.0
        %vm6093 = vcmp.gt.f32.partialorder %v5841, 0.0
        %vm6094 = vcmp.gt.f32.partialorder %v6019, 0.0
        %vm6095 = vcmp.gt.f32.partialorder %v5844, 0.0
        %vm6096 = vcmp.gt.f32.partialorder %v6022, 0.0
        %vm6097 = vcmp.gt.f32.partialorder %v5846, 0.0
        %vm6098 = vcmp.gt.f32.partialorder %v6024, 0.0
        %vm6099 = vcmp.gt.f32.partialorder %v5849, 0.0
        %vm6100 = vcmp.gt.f32.partialorder %v6027, 0.0
        %vm6101 = vcmp.gt.f32.partialorder %v5851, 0.0
        %vm6102 = vcmp.gt.f32.partialorder %v6029, 0.0
        %vm6103 = vcmp.gt.f32.partialorder %v5854, 0.0
        %vm6104 = vcmp.gt.f32.partialorder %v6032, 0.0
        %vm6105 = vcmp.gt.f32.partialorder %v5856, 0.0
        %vm6106 = vcmp.gt.f32.partialorder %v6034, 0.0
        %vm6107 = vcmp.gt.f32.partialorder %v5859, 0.0
        %vm6108 = vcmp.gt.f32.partialorder %v6037, 0.0
        %vm6109 = vcmp.gt.f32.partialorder %v5861, 0.0
        %vm6110 = vcmp.gt.f32.partialorder %v6039, 0.0
        %vm6111 = vcmp.gt.f32.partialorder %v5864, 0.0
        %vm6112 = vcmp.gt.f32.partialorder %v6042, 0.0
        %vm6113 = vcmp.gt.f32.partialorder %v5866, 0.0
        %vm6114 = vcmp.gt.f32.partialorder %v6044, 0.0
        %vm6115 = vcmp.gt.f32.partialorder %v5869, 0.0
        %vm6116 = vcmp.gt.f32.partialorder %v6047, 0.0
        %vm6117 = vcmp.gt.f32.partialorder %v5871, 0.0
        %vm6118 = vcmp.gt.f32.partialorder %v6049, 0.0
        %vm6119 = vcmp.gt.f32.partialorder %v5874, 0.0
        %vm6120 = vcmp.gt.f32.partialorder %v6052, 0.0
        %vm6121 = vcmp.gt.f32.partialorder %v5876, 0.0
        %vm6122 = vcmp.gt.f32.partialorder %v6054, 0.0
        %vm6123 = vcmp.gt.f32.partialorder %v5879, 0.0
        %vm6124 = vcmp.gt.f32.partialorder %v6057, 0.0
        %vm6125 = vcmp.gt.f32.partialorder %v5881, 0.0
        %vm6126 = vcmp.gt.f32.partialorder %v6059, 0.0
        %vm6127 = vcmp.gt.f32.partialorder %v5884, 0.0
        %vm6128 = vcmp.gt.f32.partialorder %v6062, 0.0
        %vm6129 = vcmp.gt.f32.partialorder %v5886, 0.0
        %vm6130 = vcmp.gt.f32.partialorder %v6064, 0.0
        %vm6131 = vcmp.gt.f32.partialorder %v5889, 0.0
        %vm6132 = vcmp.gt.f32.partialorder %v6067, 0.0
        %vm6133 = vcmp.gt.f32.partialorder %v5891, 0.0
        %vm6134 = vcmp.gt.f32.partialorder %v6069, 0.0
        %v6135 = vmul.f32 %v5814, 0.01
        %v6136 = vmul.f32 %v5992, 0.01
        %v6137 = vmul.f32 %v5816, 0.01
        %v6138 = vmul.f32 %v5994, 0.01
        %v6139 = vmul.f32 %v5819, 0.01
        %v6140 = vmul.f32 %v5997, 0.01
        %v6141 = vmul.f32 %v5821, 0.01
        %v6142 = vmul.f32 %v5999, 0.01
        %v6143 = vmul.f32 %v5824, 0.01
        %v6144 = vmul.f32 %v6002, 0.01
        %v6145 = vmul.f32 %v5826, 0.01
        %v6146 = vmul.f32 %v6004, 0.01
        %v6147 = vmul.f32 %v5829, 0.01
        %v6148 = vmul.f32 %v6007, 0.01
        %v6149 = vmul.f32 %v5831, 0.01
        %v6150 = vmul.f32 %v6009, 0.01
        %v6151 = vmul.f32 %v5834, 0.01
        %v6152 = vmul.f32 %v6012, 0.01
        %v6153 = vmul.f32 %v5836, 0.01
        %v6154 = vmul.f32 %v6014, 0.01
        %v6155 = vmul.f32 %v5839, 0.01
        %v6156 = vmul.f32 %v6017, 0.01
        %v6157 = vmul.f32 %v5841, 0.01
        %v6158 = vmul.f32 %v6019, 0.01
        %v6159 = vmul.f32 %v5844, 0.01
        %v6160 = vmul.f32 %v6022, 0.01
        %v6161 = vmul.f32 %v5846, 0.01
        %v6162 = vmul.f32 %v6024, 0.01
        %v6163 = vmul.f32 %v5849, 0.01
        %v6164 = vmul.f32 %v6027, 0.01
        %v6165 = vmul.f32 %v5851, 0.01
        %v6166 = vmul.f32 %v6029, 0.01
        %v6167 = vmul.f32 %v5854, 0.01
        %v6168 = vmul.f32 %v6032, 0.01
        %v6169 = vmul.f32 %v5856, 0.01
        %v6170 = vmul.f32 %v6034, 0.01
        %v6171 = vmul.f32 %v5859, 0.01
        %v6172 = vmul.f32 %v6037, 0.01
        %v6173 = vmul.f32 %v5861, 0.01
        %v6174 = vmul.f32 %v6039, 0.01
        %v6175 = vmul.f32 %v5864, 0.01
        %v6176 = vmul.f32 %v6042, 0.01
        %v6177 = vmul.f32 %v5866, 0.01
        %v6178 = vmul.f32 %v6044, 0.01
        %v6179 = vmul.f32 %v5869, 0.01
        %v6180 = vmul.f32 %v6047, 0.01
        %v6181 = vmul.f32 %v5871, 0.01
        %v6182 = vmul.f32 %v6049, 0.01
        %v6183 = vmul.f32 %v5874, 0.01
        %v6184 = vmul.f32 %v6052, 0.01
        %v6185 = vmul.f32 %v5876, 0.01
        %v6186 = vmul.f32 %v6054, 0.01
        %v6187 = vmul.f32 %v5879, 0.01
        %v6188 = vmul.f32 %v6057, 0.01
        %v6189 = vmul.f32 %v5881, 0.01
        %v6190 = vmul.f32 %v6059, 0.01
        %v6191 = vmul.f32 %v5884, 0.01
        %v6192 = vmul.f32 %v6062, 0.01
        %v6193 = vmul.f32 %v5886, 0.01
        %v6194 = vmul.f32 %v6064, 0.01
        %v6195 = vmul.f32 %v5889, 0.01
        %v6196 = vmul.f32 %v6067, 0.01
        %v6197 = vmul.f32 %v5891, 0.01
        %v6198 = vmul.f32 %v6069, 0.01
        %v6199 = vsel %vm6071, %v5814, %v6135
        %v6200 = vsel %vm6072, %v5992, %v6136
        %v6201 = vsel %vm6073, %v5816, %v6137
        %v6202 = vsel %vm6074, %v5994, %v6138
        %v6203 = vsel %vm6075, %v5819, %v6139
        %v6204 = vsel %vm6076, %v5997, %v6140
        %v6205 = vsel %vm6077, %v5821, %v6141
        %v6206 = vsel %vm6078, %v5999, %v6142
        %v6207 = vsel %vm6079, %v5824, %v6143
        %v6208 = vsel %vm6080, %v6002, %v6144
        %v6209 = vsel %vm6081, %v5826, %v6145
        %v6210 = vsel %vm6082, %v6004, %v6146
        %v6211 = vsel %vm6083, %v5829, %v6147
        %v6212 = vsel %vm6084, %v6007, %v6148
        %v6213 = vsel %vm6085, %v5831, %v6149
        %v6214 = vsel %vm6086, %v6009, %v6150
        %v6215 = vsel %vm6087, %v5834, %v6151
        %v6216 = vsel %vm6088, %v6012, %v6152
        %v6217 = vsel %vm6089, %v5836, %v6153
        %v6218 = vsel %vm6090, %v6014, %v6154
        %v6219 = vsel %vm6091, %v5839, %v6155
        %v6220 = vsel %vm6092, %v6017, %v6156
        %v6221 = vsel %vm6093, %v5841, %v6157
        %v6222 = vsel %vm6094, %v6019, %v6158
        %v6223 = vsel %vm6095, %v5844, %v6159
        %v6224 = vsel %vm6096, %v6022, %v6160
        %v6225 = vsel %vm6097, %v5846, %v6161
        %v6226 = vsel %vm6098, %v6024, %v6162
        %v6227 = vsel %vm6099, %v5849, %v6163
        %v6228 = vsel %vm6100, %v6027, %v6164
        %v6229 = vsel %vm6101, %v5851, %v6165
        %v6230 = vsel %vm6102, %v6029, %v6166
        %v6231 = vsel %vm6103, %v5854, %v6167
        %v6232 = vsel %vm6104, %v6032, %v6168
        %v6233 = vsel %vm6105, %v5856, %v6169
        %v6234 = vsel %vm6106, %v6034, %v6170
        %v6235 = vsel %vm6107, %v5859, %v6171
        %v6236 = vsel %vm6108, %v6037, %v6172
        %v6237 = vsel %vm6109, %v5861, %v6173
        %v6238 = vsel %vm6110, %v6039, %v6174
        %v6239 = vsel %vm6111, %v5864, %v6175
        %v6240 = vsel %vm6112, %v6042, %v6176
        %v6241 = vsel %vm6113, %v5866, %v6177
        %v6242 = vsel %vm6114, %v6044, %v6178
        %v6243 = vsel %vm6115, %v5869, %v6179
        %v6244 = vsel %vm6116, %v6047, %v6180
        %v6245 = vsel %vm6117, %v5871, %v6181
        %v6246 = vsel %vm6118, %v6049, %v6182
        %v6247 = vsel %vm6119, %v5874, %v6183
        %v6248 = vsel %vm6120, %v6052, %v6184
        %v6249 = vsel %vm6121, %v5876, %v6185
        %v6250 = vsel %vm6122, %v6054, %v6186
        %v6251 = vsel %vm6123, %v5879, %v6187
        %v6252 = vsel %vm6124, %v6057, %v6188
        %v6253 = vsel %vm6125, %v5881, %v6189
        %v6254 = vsel %vm6126, %v6059, %v6190
        %v6255 = vsel %vm6127, %v5884, %v6191
        %v6256 = vsel %vm6128, %v6062, %v6192
        %v6257 = vsel %vm6129, %v5886, %v6193
        %v6258 = vsel %vm6130, %v6064, %v6194
        %v6259 = vsel %vm6131, %v5889, %v6195
        %v6260 = vsel %vm6132, %v6067, %v6196
        %v6261 = vsel %vm6133, %v5891, %v6197
        %v6262 = vsel %vm6134, %v6069, %v6198
        %v6263 = vpack.c.bf16 %v6201, %v6199
        %v6264 = vpack.c.bf16 %v6202, %v6200
        %v6265 = vpack.c.bf16 %v6205, %v6203
        %v6266 = vpack.c.bf16 %v6206, %v6204
        %v6267 = vpack.c.bf16 %v6209, %v6207
        %v6268 = vpack.c.bf16 %v6210, %v6208
        %v6269 = vpack.c.bf16 %v6213, %v6211
        %v6270 = vpack.c.bf16 %v6214, %v6212
        %v6271 = vpack.c.bf16 %v6217, %v6215
        %v6272 = vpack.c.bf16 %v6218, %v6216
        %v6273 = vpack.c.bf16 %v6221, %v6219
        %v6274 = vpack.c.bf16 %v6222, %v6220
        %v6275 = vpack.c.bf16 %v6225, %v6223
        %v6276 = vpack.c.bf16 %v6226, %v6224
        %v6277 = vpack.c.bf16 %v6229, %v6227
        %v6278 = vpack.c.bf16 %v6230, %v6228
        %v6279 = vpack.c.bf16 %v6233, %v6231
        %v6280 = vpack.c.bf16 %v6234, %v6232
        %v6281 = vpack.c.bf16 %v6237, %v6235
        %v6282 = vpack.c.bf16 %v6238, %v6236
        %v6283 = vpack.c.bf16 %v6241, %v6239
        %v6284 = vpack.c.bf16 %v6242, %v6240
        %v6285 = vpack.c.bf16 %v6245, %v6243
        %v6286 = vpack.c.bf16 %v6246, %v6244
        %v6287 = vpack.c.bf16 %v6249, %v6247
        %v6288 = vpack.c.bf16 %v6250, %v6248
        %v6289 = vpack.c.bf16 %v6253, %v6251
        %v6290 = vpack.c.bf16 %v6254, %v6252
        %v6291 = vpack.c.bf16 %v6257, %v6255
        %v6292 = vpack.c.bf16 %v6258, %v6256
        %v6293 = vpack.c.bf16 %v6261, %v6259
        %v6294 = vpack.c.bf16 %v6262, %v6260
        %s6295 = scalar_lea.vmem [#allocation13], 384
        %v6296 = vld [vmem:[%s6295] sm:$0xff]
        %v6297 = vld [vmem:[%s6295 + $0x8] sm:$0xff]
        %v6298 = vld [vmem:[%s6295 + $0x10] sm:$0xff]
        %v6299 = vld [vmem:[%s6295 + $0x18] sm:$0xff]
        %v6300 = vld [vmem:[%s6295 + $0x20] sm:$0xff]
        %v6301 = vld [vmem:[%s6295 + $0x28] sm:$0xff]
        %v6302 = vld [vmem:[%s6295 + $0x30] sm:$0xff]
        %v6303 = vld [vmem:[%s6295 + $0x38] sm:$0xff]
        %v6304 = vld [vmem:[%s6295 + $0x40] sm:$0xff]
        %v6305 = vld [vmem:[%s6295 + $0x48] sm:$0xff]
        %v6306 = vld [vmem:[%s6295 + $0x50] sm:$0xff]
        %v6307 = vld [vmem:[%s6295 + $0x58] sm:$0xff]
        %v6308 = vld [vmem:[%s6295 + $0x60] sm:$0xff]
        %v6309 = vld [vmem:[%s6295 + $0x68] sm:$0xff]
        %v6310 = vld [vmem:[%s6295 + $0x70] sm:$0xff]
        %v6311 = vld [vmem:[%s6295 + $0x78] sm:$0xff]
        %v6312 = vld [vmem:[%s6295 + $0x80] sm:$0xff]
        %v6313 = vld [vmem:[%s6295 + $0x88] sm:$0xff]
        %v6314 = vld [vmem:[%s6295 + $0x90] sm:$0xff]
        %v6315 = vld [vmem:[%s6295 + $0x98] sm:$0xff]
        %v6316 = vld [vmem:[%s6295 + $0xa0] sm:$0xff]
        %v6317 = vld [vmem:[%s6295 + $0xa8] sm:$0xff]
        %v6318 = vld [vmem:[%s6295 + $0xb0] sm:$0xff]
        %v6319 = vld [vmem:[%s6295 + $0xb8] sm:$0xff]
        %s6320 = scalar_lea.vmem [#allocation14], 4
        %v6321 = vld [vmem:[%s6320] sm:$0x3]
        %v6323 = vperm.slane %v6321, 0
        %v6324 = vperm.slane %v6321, 1
        %v6351 = vunpack.c.l.b16 %v6296
        %v6352 = vunpack.c.h.b16 %v6296
        %v6353 = vunpack.c.l.b16 %v6297
        %v6354 = vunpack.c.h.b16 %v6297
        %v6355 = vunpack.c.l.b16 %v6298
        %v6356 = vunpack.c.h.b16 %v6298
        %v6357 = vunpack.c.l.b16 %v6299
        %v6358 = vunpack.c.h.b16 %v6299
        %v6359 = vunpack.c.l.b16 %v6300
        %v6360 = vunpack.c.h.b16 %v6300
        %v6361 = vunpack.c.l.b16 %v6301
        %v6362 = vunpack.c.h.b16 %v6301
        %v6363 = vunpack.c.l.b16 %v6302
        %v6364 = vunpack.c.h.b16 %v6302
        %v6365 = vunpack.c.l.b16 %v6303
        %v6366 = vunpack.c.h.b16 %v6303
        %v6367 = vunpack.c.l.b16 %v6304
        %v6368 = vunpack.c.h.b16 %v6304
        %v6369 = vunpack.c.l.b16 %v6305
        %v6370 = vunpack.c.h.b16 %v6305
        %v6371 = vunpack.c.l.b16 %v6306
        %v6372 = vunpack.c.h.b16 %v6306
        %v6373 = vunpack.c.l.b16 %v6307
        %v6374 = vunpack.c.h.b16 %v6307
        %v6375 = vunpack.c.l.b16 %v6308
        %v6376 = vunpack.c.h.b16 %v6308
        %v6377 = vunpack.c.l.b16 %v6309
        %v6378 = vunpack.c.h.b16 %v6309
        %v6379 = vunpack.c.l.b16 %v6310
        %v6380 = vunpack.c.h.b16 %v6310
        %v6381 = vunpack.c.l.b16 %v6311
        %v6382 = vunpack.c.h.b16 %v6311
        %v6383 = vunpack.c.l.b16 %v6312
        %v6384 = vunpack.c.h.b16 %v6312
        %v6385 = vunpack.c.l.b16 %v6313
        %v6386 = vunpack.c.h.b16 %v6313
        %v6387 = vunpack.c.l.b16 %v6314
        %v6388 = vunpack.c.h.b16 %v6314
        %v6389 = vunpack.c.l.b16 %v6315
        %v6390 = vunpack.c.h.b16 %v6315
        %v6391 = vunpack.c.l.b16 %v6316
        %v6392 = vunpack.c.h.b16 %v6316
        %v6393 = vunpack.c.l.b16 %v6317
        %v6394 = vunpack.c.h.b16 %v6317
        %v6395 = vunpack.c.l.b16 %v6318
        %v6396 = vunpack.c.h.b16 %v6318
        %v6397 = vunpack.c.l.b16 %v6319
        %v6398 = vunpack.c.h.b16 %v6319
        %v6399 = vpack.c.b16 %v6353, %v6351
        %v6400 = vpack.c.b16 %v6354, %v6352
        %v6401 = vpack.c.b16 %v6357, %v6355
        %v6402 = vpack.c.b16 %v6358, %v6356
        %v6403 = vpack.c.b16 %v6361, %v6359
        %v6404 = vpack.c.b16 %v6362, %v6360
        %v6405 = vpack.c.b16 %v6365, %v6363
        %v6406 = vpack.c.b16 %v6366, %v6364
        %v6407 = vpack.c.b16 %v6369, %v6367
        %v6408 = vpack.c.b16 %v6370, %v6368
        %v6409 = vpack.c.b16 %v6373, %v6371
        %v6410 = vpack.c.b16 %v6374, %v6372
        %v6411 = vpack.c.b16 %v6377, %v6375
        %v6412 = vpack.c.b16 %v6378, %v6376
        %v6413 = vpack.c.b16 %v6381, %v6379
        %v6414 = vpack.c.b16 %v6382, %v6380
        %v6415 = vpack.c.b16 %v6385, %v6383
        %v6416 = vpack.c.b16 %v6386, %v6384
        %v6417 = vpack.c.b16 %v6389, %v6387
        %v6418 = vpack.c.b16 %v6390, %v6388
        %v6419 = vpack.c.b16 %v6393, %v6391
        %v6420 = vpack.c.b16 %v6394, %v6392
        %v6421 = vpack.c.b16 %v6397, %v6395
        %v6422 = vpack.c.b16 %v6398, %v6396
        %v6448 = vsel %vm1058, %v6264, 0
        %v6451 = vsel %vm1058, %v6266, 0
        %v6454 = vsel %vm1058, %v6268, 0
        %v6457 = vsel %vm1058, %v6270, 0
        %v6460 = vsel %vm1058, %v6272, 0
        %v6463 = vsel %vm1058, %v6274, 0
        %v6466 = vsel %vm1058, %v6276, 0
        %v6469 = vsel %vm1058, %v6278, 0
        %v6472 = vsel %vm1058, %v6280, 0
        %v6475 = vsel %vm1058, %v6282, 0
        %v6478 = vsel %vm1058, %v6284, 0
        %v6481 = vsel %vm1058, %v6286, 0
        %v6484 = vsel %vm1058, %v6288, 0
        %v6487 = vsel %vm1058, %v6290, 0
        %v6490 = vsel %vm1058, %v6292, 0
        %v6493 = vsel %vm1058, %v6294, 0
        %6495 = vmatpush.bf16.msra.mxu0 %v6413
        %6496 = vmatpush.bf16.msra.mxu0 %v6411
        %6497 = vmatpush.bf16.msra.mxu0 %v6409
        %6498 = vmatpush.bf16.msra.mxu0 %v6407
        %6499 = vmatpush.bf16.msra.mxu0 %v6405
        %6500 = vmatpush.bf16.msra.mxu0 %v6403
        %6501 = vmatpush.bf16.msra.mxu0 %v6401
        %6502 = vmatpush.bf16.msra.mxu0 %v6399
        %6503 = vmatmul.bf16.gmra.mxu0 %v6263
        %v6504 = vpop.f32.mrf.mxu0
        %v6505 = vadd.f32 %v6323, %v6504
        %v6506 = vpop.f32.mrf.mxu0
        %v6507 = vadd.f32 %v6323, %v6506
        %6508 = vmatmul.bf16.gmra.mxu0 %v6265
        %v6509 = vpop.f32.mrf.mxu0
        %v6510 = vadd.f32 %v6323, %v6509
        %v6511 = vpop.f32.mrf.mxu0
        %v6512 = vadd.f32 %v6323, %v6511
        %6513 = vmatmul.bf16.gmra.mxu0 %v6267
        %v6514 = vpop.f32.mrf.mxu0
        %v6515 = vadd.f32 %v6323, %v6514
        %v6516 = vpop.f32.mrf.mxu0
        %v6517 = vadd.f32 %v6323, %v6516
        %6518 = vmatmul.bf16.gmra.mxu0 %v6269
        %v6519 = vpop.f32.mrf.mxu0
        %v6520 = vadd.f32 %v6323, %v6519
        %v6521 = vpop.f32.mrf.mxu0
        %v6522 = vadd.f32 %v6323, %v6521
        %6523 = vmatmul.bf16.gmra.mxu0 %v6271
        %v6524 = vpop.f32.mrf.mxu0
        %v6525 = vadd.f32 %v6323, %v6524
        %v6526 = vpop.f32.mrf.mxu0
        %v6527 = vadd.f32 %v6323, %v6526
        %6528 = vmatmul.bf16.gmra.mxu0 %v6273
        %v6529 = vpop.f32.mrf.mxu0
        %v6530 = vadd.f32 %v6323, %v6529
        %v6531 = vpop.f32.mrf.mxu0
        %v6532 = vadd.f32 %v6323, %v6531
        %6533 = vmatmul.bf16.gmra.mxu0 %v6275
        %v6534 = vpop.f32.mrf.mxu0
        %v6535 = vadd.f32 %v6323, %v6534
        %v6536 = vpop.f32.mrf.mxu0
        %v6537 = vadd.f32 %v6323, %v6536
        %6538 = vmatmul.bf16.gmra.mxu0 %v6277
        %v6539 = vpop.f32.mrf.mxu0
        %v6540 = vadd.f32 %v6323, %v6539
        %v6541 = vpop.f32.mrf.mxu0
        %v6542 = vadd.f32 %v6323, %v6541
        %6543 = vmatmul.bf16.gmra.mxu0 %v6279
        %v6544 = vpop.f32.mrf.mxu0
        %v6545 = vadd.f32 %v6323, %v6544
        %v6546 = vpop.f32.mrf.mxu0
        %v6547 = vadd.f32 %v6323, %v6546
        %6548 = vmatmul.bf16.gmra.mxu0 %v6281
        %v6549 = vpop.f32.mrf.mxu0
        %v6550 = vadd.f32 %v6323, %v6549
        %v6551 = vpop.f32.mrf.mxu0
        %v6552 = vadd.f32 %v6323, %v6551
        %6553 = vmatmul.bf16.gmra.mxu0 %v6283
        %v6554 = vpop.f32.mrf.mxu0
        %v6555 = vadd.f32 %v6323, %v6554
        %v6556 = vpop.f32.mrf.mxu0
        %v6557 = vadd.f32 %v6323, %v6556
        %6558 = vmatmul.bf16.gmra.mxu0 %v6285
        %v6559 = vpop.f32.mrf.mxu0
        %v6560 = vadd.f32 %v6323, %v6559
        %v6561 = vpop.f32.mrf.mxu0
        %v6562 = vadd.f32 %v6323, %v6561
        %6563 = vmatmul.bf16.gmra.mxu0 %v6287
        %v6564 = vpop.f32.mrf.mxu0
        %v6565 = vadd.f32 %v6323, %v6564
        %v6566 = vpop.f32.mrf.mxu0
        %v6567 = vadd.f32 %v6323, %v6566
        %6568 = vmatmul.bf16.gmra.mxu0 %v6289
        %v6569 = vpop.f32.mrf.mxu0
        %v6570 = vadd.f32 %v6323, %v6569
        %v6571 = vpop.f32.mrf.mxu0
        %v6572 = vadd.f32 %v6323, %v6571
        %6573 = vmatmul.bf16.gmra.mxu0 %v6291
        %v6574 = vpop.f32.mrf.mxu0
        %v6575 = vadd.f32 %v6323, %v6574
        %v6576 = vpop.f32.mrf.mxu0
        %v6577 = vadd.f32 %v6323, %v6576
        %6578 = vmatmul.bf16.gmra.mxu0 %v6293
        %v6579 = vpop.f32.mrf.mxu0
        %v6580 = vadd.f32 %v6323, %v6579
        %v6581 = vpop.f32.mrf.mxu0
        %v6582 = vadd.f32 %v6323, %v6581
        %6583 = vdwg.mxu0
        %6584 = vmatpush.bf16.msra.mxu0 0
        %6585 = vmatpush.bf16.msra.mxu0 0
        %6586 = vmatpush.bf16.msra.mxu0 0
        %6587 = vmatpush.bf16.msra.mxu0 0
        %6588 = vmatpush.bf16.msra.mxu0 %v6421
        %6589 = vmatpush.bf16.msra.mxu0 %v6419
        %6590 = vmatpush.bf16.msra.mxu0 %v6417
        %6591 = vmatpush.bf16.msra.mxu0 %v6415
        %6592 = vmatmul.bf16.gmra.mxu0 %v6448
        %v6593 = vpop.f32.mrf.mxu0
        %v6594 = vadd.f32 %v6505, %v6593
        %v6595 = vpop.f32.mrf.mxu0
        %v6596 = vadd.f32 %v6507, %v6595
        %6597 = vmatmul.bf16.gmra.mxu0 %v6451
        %v6598 = vpop.f32.mrf.mxu0
        %v6599 = vadd.f32 %v6510, %v6598
        %v6600 = vpop.f32.mrf.mxu0
        %v6601 = vadd.f32 %v6512, %v6600
        %6602 = vmatmul.bf16.gmra.mxu0 %v6454
        %v6603 = vpop.f32.mrf.mxu0
        %v6604 = vadd.f32 %v6515, %v6603
        %v6605 = vpop.f32.mrf.mxu0
        %v6606 = vadd.f32 %v6517, %v6605
        %6607 = vmatmul.bf16.gmra.mxu0 %v6457
        %v6608 = vpop.f32.mrf.mxu0
        %v6609 = vadd.f32 %v6520, %v6608
        %v6610 = vpop.f32.mrf.mxu0
        %v6611 = vadd.f32 %v6522, %v6610
        %6612 = vmatmul.bf16.gmra.mxu0 %v6460
        %v6613 = vpop.f32.mrf.mxu0
        %v6614 = vadd.f32 %v6525, %v6613
        %v6615 = vpop.f32.mrf.mxu0
        %v6616 = vadd.f32 %v6527, %v6615
        %6617 = vmatmul.bf16.gmra.mxu0 %v6463
        %v6618 = vpop.f32.mrf.mxu0
        %v6619 = vadd.f32 %v6530, %v6618
        %v6620 = vpop.f32.mrf.mxu0
        %v6621 = vadd.f32 %v6532, %v6620
        %6622 = vmatmul.bf16.gmra.mxu0 %v6466
        %v6623 = vpop.f32.mrf.mxu0
        %v6624 = vadd.f32 %v6535, %v6623
        %v6625 = vpop.f32.mrf.mxu0
        %v6626 = vadd.f32 %v6537, %v6625
        %6627 = vmatmul.bf16.gmra.mxu0 %v6469
        %v6628 = vpop.f32.mrf.mxu0
        %v6629 = vadd.f32 %v6540, %v6628
        %v6630 = vpop.f32.mrf.mxu0
        %v6631 = vadd.f32 %v6542, %v6630
        %6632 = vmatmul.bf16.gmra.mxu0 %v6472
        %v6633 = vpop.f32.mrf.mxu0
        %v6634 = vadd.f32 %v6545, %v6633
        %v6635 = vpop.f32.mrf.mxu0
        %v6636 = vadd.f32 %v6547, %v6635
        %6637 = vmatmul.bf16.gmra.mxu0 %v6475
        %v6638 = vpop.f32.mrf.mxu0
        %v6639 = vadd.f32 %v6550, %v6638
        %v6640 = vpop.f32.mrf.mxu0
        %v6641 = vadd.f32 %v6552, %v6640
        %6642 = vmatmul.bf16.gmra.mxu0 %v6478
        %v6643 = vpop.f32.mrf.mxu0
        %v6644 = vadd.f32 %v6555, %v6643
        %v6645 = vpop.f32.mrf.mxu0
        %v6646 = vadd.f32 %v6557, %v6645
        %6647 = vmatmul.bf16.gmra.mxu0 %v6481
        %v6648 = vpop.f32.mrf.mxu0
        %v6649 = vadd.f32 %v6560, %v6648
        %v6650 = vpop.f32.mrf.mxu0
        %v6651 = vadd.f32 %v6562, %v6650
        %6652 = vmatmul.bf16.gmra.mxu0 %v6484
        %v6653 = vpop.f32.mrf.mxu0
        %v6654 = vadd.f32 %v6565, %v6653
        %v6655 = vpop.f32.mrf.mxu0
        %v6656 = vadd.f32 %v6567, %v6655
        %6657 = vmatmul.bf16.gmra.mxu0 %v6487
        %v6658 = vpop.f32.mrf.mxu0
        %v6659 = vadd.f32 %v6570, %v6658
        %v6660 = vpop.f32.mrf.mxu0
        %v6661 = vadd.f32 %v6572, %v6660
        %6662 = vmatmul.bf16.gmra.mxu0 %v6490
        %v6663 = vpop.f32.mrf.mxu0
        %v6664 = vadd.f32 %v6575, %v6663
        %v6665 = vpop.f32.mrf.mxu0
        %v6666 = vadd.f32 %v6577, %v6665
        %6667 = vmatmul.bf16.gmra.mxu0 %v6493
        %v6668 = vpop.f32.mrf.mxu0
        %v6669 = vadd.f32 %v6580, %v6668
        %v6670 = vpop.f32.mrf.mxu0
        %v6671 = vadd.f32 %v6582, %v6670
        %6672 = vdwg.mxu0
        %6673 = vmatpush.bf16.msra.mxu0 %v6414
        %6674 = vmatpush.bf16.msra.mxu0 %v6412
        %6675 = vmatpush.bf16.msra.mxu0 %v6410
        %6676 = vmatpush.bf16.msra.mxu0 %v6408
        %6677 = vmatpush.bf16.msra.mxu0 %v6406
        %6678 = vmatpush.bf16.msra.mxu0 %v6404
        %6679 = vmatpush.bf16.msra.mxu0 %v6402
        %6680 = vmatpush.bf16.msra.mxu0 %v6400
        %6681 = vmatmul.bf16.gmra.mxu0 %v6263
        %v6682 = vpop.f32.mrf.mxu0
        %v6683 = vadd.f32 %v6324, %v6682
        %v6684 = vpop.f32.mrf.mxu0
        %v6685 = vadd.f32 %v6324, %v6684
        %6686 = vmatmul.bf16.gmra.mxu0 %v6265
        %v6687 = vpop.f32.mrf.mxu0
        %v6688 = vadd.f32 %v6324, %v6687
        %v6689 = vpop.f32.mrf.mxu0
        %v6690 = vadd.f32 %v6324, %v6689
        %6691 = vmatmul.bf16.gmra.mxu0 %v6267
        %v6692 = vpop.f32.mrf.mxu0
        %v6693 = vadd.f32 %v6324, %v6692
        %v6694 = vpop.f32.mrf.mxu0
        %v6695 = vadd.f32 %v6324, %v6694
        %6696 = vmatmul.bf16.gmra.mxu0 %v6269
        %v6697 = vpop.f32.mrf.mxu0
        %v6698 = vadd.f32 %v6324, %v6697
        %v6699 = vpop.f32.mrf.mxu0
        %v6700 = vadd.f32 %v6324, %v6699
        %6701 = vmatmul.bf16.gmra.mxu0 %v6271
        %v6702 = vpop.f32.mrf.mxu0
        %v6703 = vadd.f32 %v6324, %v6702
        %v6704 = vpop.f32.mrf.mxu0
        %v6705 = vadd.f32 %v6324, %v6704
        %6706 = vmatmul.bf16.gmra.mxu0 %v6273
        %v6707 = vpop.f32.mrf.mxu0
        %v6708 = vadd.f32 %v6324, %v6707
        %v6709 = vpop.f32.mrf.mxu0
        %v6710 = vadd.f32 %v6324, %v6709
        %6711 = vmatmul.bf16.gmra.mxu0 %v6275
        %v6712 = vpop.f32.mrf.mxu0
        %v6713 = vadd.f32 %v6324, %v6712
        %v6714 = vpop.f32.mrf.mxu0
        %v6715 = vadd.f32 %v6324, %v6714
        %6716 = vmatmul.bf16.gmra.mxu0 %v6277
        %v6717 = vpop.f32.mrf.mxu0
        %v6718 = vadd.f32 %v6324, %v6717
        %v6719 = vpop.f32.mrf.mxu0
        %v6720 = vadd.f32 %v6324, %v6719
        %6721 = vmatmul.bf16.gmra.mxu0 %v6279
        %v6722 = vpop.f32.mrf.mxu0
        %v6723 = vadd.f32 %v6324, %v6722
        %v6724 = vpop.f32.mrf.mxu0
        %v6725 = vadd.f32 %v6324, %v6724
        %6726 = vmatmul.bf16.gmra.mxu0 %v6281
        %v6727 = vpop.f32.mrf.mxu0
        %v6728 = vadd.f32 %v6324, %v6727
        %v6729 = vpop.f32.mrf.mxu0
        %v6730 = vadd.f32 %v6324, %v6729
        %6731 = vmatmul.bf16.gmra.mxu0 %v6283
        %v6732 = vpop.f32.mrf.mxu0
        %v6733 = vadd.f32 %v6324, %v6732
        %v6734 = vpop.f32.mrf.mxu0
        %v6735 = vadd.f32 %v6324, %v6734
        %6736 = vmatmul.bf16.gmra.mxu0 %v6285
        %v6737 = vpop.f32.mrf.mxu0
        %v6738 = vadd.f32 %v6324, %v6737
        %v6739 = vpop.f32.mrf.mxu0
        %v6740 = vadd.f32 %v6324, %v6739
        %6741 = vmatmul.bf16.gmra.mxu0 %v6287
        %v6742 = vpop.f32.mrf.mxu0
        %v6743 = vadd.f32 %v6324, %v6742
        %v6744 = vpop.f32.mrf.mxu0
        %v6745 = vadd.f32 %v6324, %v6744
        %6746 = vmatmul.bf16.gmra.mxu0 %v6289
        %v6747 = vpop.f32.mrf.mxu0
        %v6748 = vadd.f32 %v6324, %v6747
        %v6749 = vpop.f32.mrf.mxu0
        %v6750 = vadd.f32 %v6324, %v6749
        %6751 = vmatmul.bf16.gmra.mxu0 %v6291
        %v6752 = vpop.f32.mrf.mxu0
        %v6753 = vadd.f32 %v6324, %v6752
        %v6754 = vpop.f32.mrf.mxu0
        %v6755 = vadd.f32 %v6324, %v6754
        %6756 = vmatmul.bf16.gmra.mxu0 %v6293
        %v6757 = vpop.f32.mrf.mxu0
        %v6758 = vadd.f32 %v6324, %v6757
        %v6759 = vpop.f32.mrf.mxu0
        %v6760 = vadd.f32 %v6324, %v6759
        %6761 = vdwg.mxu0
        %6762 = vmatpush.bf16.msra.mxu0 0
        %6763 = vmatpush.bf16.msra.mxu0 0
        %6764 = vmatpush.bf16.msra.mxu0 0
        %6765 = vmatpush.bf16.msra.mxu0 0
        %6766 = vmatpush.bf16.msra.mxu0 %v6422
        %6767 = vmatpush.bf16.msra.mxu0 %v6420
        %6768 = vmatpush.bf16.msra.mxu0 %v6418
        %6769 = vmatpush.bf16.msra.mxu0 %v6416
        %6770 = vmatmul.bf16.gmra.mxu0 %v6448
        %v6771 = vpop.f32.mrf.mxu0
        %v6772 = vadd.f32 %v6683, %v6771
        %v6773 = vpop.f32.mrf.mxu0
        %v6774 = vadd.f32 %v6685, %v6773
        %6775 = vmatmul.bf16.gmra.mxu0 %v6451
        %v6776 = vpop.f32.mrf.mxu0
        %v6777 = vadd.f32 %v6688, %v6776
        %v6778 = vpop.f32.mrf.mxu0
        %v6779 = vadd.f32 %v6690, %v6778
        %6780 = vmatmul.bf16.gmra.mxu0 %v6454
        %v6781 = vpop.f32.mrf.mxu0
        %v6782 = vadd.f32 %v6693, %v6781
        %v6783 = vpop.f32.mrf.mxu0
        %v6784 = vadd.f32 %v6695, %v6783
        %6785 = vmatmul.bf16.gmra.mxu0 %v6457
        %v6786 = vpop.f32.mrf.mxu0
        %v6787 = vadd.f32 %v6698, %v6786
        %v6788 = vpop.f32.mrf.mxu0
        %v6789 = vadd.f32 %v6700, %v6788
        %6790 = vmatmul.bf16.gmra.mxu0 %v6460
        %v6791 = vpop.f32.mrf.mxu0
        %v6792 = vadd.f32 %v6703, %v6791
        %v6793 = vpop.f32.mrf.mxu0
        %v6794 = vadd.f32 %v6705, %v6793
        %6795 = vmatmul.bf16.gmra.mxu0 %v6463
        %v6796 = vpop.f32.mrf.mxu0
        %v6797 = vadd.f32 %v6708, %v6796
        %v6798 = vpop.f32.mrf.mxu0
        %v6799 = vadd.f32 %v6710, %v6798
        %6800 = vmatmul.bf16.gmra.mxu0 %v6466
        %v6801 = vpop.f32.mrf.mxu0
        %v6802 = vadd.f32 %v6713, %v6801
        %v6803 = vpop.f32.mrf.mxu0
        %v6804 = vadd.f32 %v6715, %v6803
        %6805 = vmatmul.bf16.gmra.mxu0 %v6469
        %v6806 = vpop.f32.mrf.mxu0
        %v6807 = vadd.f32 %v6718, %v6806
        %v6808 = vpop.f32.mrf.mxu0
        %v6809 = vadd.f32 %v6720, %v6808
        %6810 = vmatmul.bf16.gmra.mxu0 %v6472
        %v6811 = vpop.f32.mrf.mxu0
        %v6812 = vadd.f32 %v6723, %v6811
        %v6813 = vpop.f32.mrf.mxu0
        %v6814 = vadd.f32 %v6725, %v6813
        %6815 = vmatmul.bf16.gmra.mxu0 %v6475
        %v6816 = vpop.f32.mrf.mxu0
        %v6817 = vadd.f32 %v6728, %v6816
        %v6818 = vpop.f32.mrf.mxu0
        %v6819 = vadd.f32 %v6730, %v6818
        %6820 = vmatmul.bf16.gmra.mxu0 %v6478
        %v6821 = vpop.f32.mrf.mxu0
        %v6822 = vadd.f32 %v6733, %v6821
        %v6823 = vpop.f32.mrf.mxu0
        %v6824 = vadd.f32 %v6735, %v6823
        %6825 = vmatmul.bf16.gmra.mxu0 %v6481
        %v6826 = vpop.f32.mrf.mxu0
        %v6827 = vadd.f32 %v6738, %v6826
        %v6828 = vpop.f32.mrf.mxu0
        %v6829 = vadd.f32 %v6740, %v6828
        %6830 = vmatmul.bf16.gmra.mxu0 %v6484
        %v6831 = vpop.f32.mrf.mxu0
        %v6832 = vadd.f32 %v6743, %v6831
        %v6833 = vpop.f32.mrf.mxu0
        %v6834 = vadd.f32 %v6745, %v6833
        %6835 = vmatmul.bf16.gmra.mxu0 %v6487
        %v6836 = vpop.f32.mrf.mxu0
        %v6837 = vadd.f32 %v6748, %v6836
        %v6838 = vpop.f32.mrf.mxu0
        %v6839 = vadd.f32 %v6750, %v6838
        %6840 = vmatmul.bf16.gmra.mxu0 %v6490
        %v6841 = vpop.f32.mrf.mxu0
        %v6842 = vadd.f32 %v6753, %v6841
        %v6843 = vpop.f32.mrf.mxu0
        %v6844 = vadd.f32 %v6755, %v6843
        %6845 = vmatmul.bf16.gmra.mxu0 %v6493
        %v6846 = vpop.f32.mrf.mxu0
        %v6847 = vadd.f32 %v6758, %v6846
        %v6848 = vpop.f32.mrf.mxu0
        %v6849 = vadd.f32 %v6760, %v6848
        %6850 = vdwg.mxu0
        %v6851 = vld [vmem:[#allocation5] sm:$0x7]
        %v6852 = vperm.slane %v6851, 0
        %v6853 = vperm.slane %v6851, 1
        %v6854 = vperm.slane %v6851, 2
        %6887 = vrot.lane.b32.xlu0 %v3474, 64
        %v6888 = vpop.permute.xlu0 %6887
        %6889 = vrot.lane.b32.xlu0 %v3476, 64
        %v6890 = vpop.permute.xlu0 %6889
        %6891 = vrot.lane.b32.xlu0 %v3479, 64
        %v6892 = vpop.permute.xlu0 %6891
        %6893 = vrot.lane.b32.xlu0 %v3481, 64
        %v6894 = vpop.permute.xlu0 %6893
        %6895 = vrot.lane.b32.xlu0 %v3484, 64
        %v6896 = vpop.permute.xlu0 %6895
        %6897 = vrot.lane.b32.xlu0 %v3486, 64
        %v6898 = vpop.permute.xlu0 %6897
        %6899 = vrot.lane.b32.xlu0 %v3489, 64
        %v6900 = vpop.permute.xlu0 %6899
        %6901 = vrot.lane.b32.xlu0 %v3491, 64
        %v6902 = vpop.permute.xlu0 %6901
        %6903 = vrot.lane.b32.xlu0 %v3494, 64
        %v6904 = vpop.permute.xlu0 %6903
        %6905 = vrot.lane.b32.xlu0 %v3496, 64
        %v6906 = vpop.permute.xlu0 %6905
        %6907 = vrot.lane.b32.xlu0 %v3499, 64
        %v6908 = vpop.permute.xlu0 %6907
        %6909 = vrot.lane.b32.xlu0 %v3501, 64
        %v6910 = vpop.permute.xlu0 %6909
        %6911 = vrot.lane.b32.xlu0 %v3504, 64
        %v6912 = vpop.permute.xlu0 %6911
        %6913 = vrot.lane.b32.xlu0 %v3506, 64
        %v6914 = vpop.permute.xlu0 %6913
        %6915 = vrot.lane.b32.xlu0 %v3509, 64
        %v6916 = vpop.permute.xlu0 %6915
        %6917 = vrot.lane.b32.xlu0 %v3511, 64
        %v6918 = vpop.permute.xlu0 %6917
        %6919 = vrot.lane.b32.xlu0 %v3514, 64
        %v6920 = vpop.permute.xlu0 %6919
        %6921 = vrot.lane.b32.xlu0 %v3516, 64
        %v6922 = vpop.permute.xlu0 %6921
        %6923 = vrot.lane.b32.xlu0 %v3519, 64
        %v6924 = vpop.permute.xlu0 %6923
        %6925 = vrot.lane.b32.xlu0 %v3521, 64
        %v6926 = vpop.permute.xlu0 %6925
        %6927 = vrot.lane.b32.xlu0 %v3524, 64
        %v6928 = vpop.permute.xlu0 %6927
        %6929 = vrot.lane.b32.xlu0 %v3526, 64
        %v6930 = vpop.permute.xlu0 %6929
        %6931 = vrot.lane.b32.xlu0 %v3529, 64
        %v6932 = vpop.permute.xlu0 %6931
        %6933 = vrot.lane.b32.xlu0 %v3531, 64
        %v6934 = vpop.permute.xlu0 %6933
        %6935 = vrot.lane.b32.xlu0 %v3534, 64
        %v6936 = vpop.permute.xlu0 %6935
        %6937 = vrot.lane.b32.xlu0 %v3536, 64
        %v6938 = vpop.permute.xlu0 %6937
        %6939 = vrot.lane.b32.xlu0 %v3539, 64
        %v6940 = vpop.permute.xlu0 %6939
        %6941 = vrot.lane.b32.xlu0 %v3541, 64
        %v6942 = vpop.permute.xlu0 %6941
        %6943 = vrot.lane.b32.xlu0 %v3544, 64
        %v6944 = vpop.permute.xlu0 %6943
        %6945 = vrot.lane.b32.xlu0 %v3546, 64
        %v6946 = vpop.permute.xlu0 %6945
        %6947 = vrot.lane.b32.xlu0 %v3549, 64
        %v6948 = vpop.permute.xlu0 %6947
        %6949 = vrot.lane.b32.xlu0 %v3551, 64
        %v6950 = vpop.permute.xlu0 %6949
        %7015 = vrot.lane.b32.xlu0 %v6594, 64
        %v7016 = vpop.permute.xlu0 %7015
        %7017 = vrot.lane.b32.xlu0 %v6596, 64
        %v7018 = vpop.permute.xlu0 %7017
        %7019 = vrot.lane.b32.xlu0 %v6599, 64
        %v7020 = vpop.permute.xlu0 %7019
        %7021 = vrot.lane.b32.xlu0 %v6601, 64
        %v7022 = vpop.permute.xlu0 %7021
        %7023 = vrot.lane.b32.xlu0 %v6604, 64
        %v7024 = vpop.permute.xlu0 %7023
        %7025 = vrot.lane.b32.xlu0 %v6606, 64
        %v7026 = vpop.permute.xlu0 %7025
        %7027 = vrot.lane.b32.xlu0 %v6609, 64
        %v7028 = vpop.permute.xlu0 %7027
        %7029 = vrot.lane.b32.xlu0 %v6611, 64
        %v7030 = vpop.permute.xlu0 %7029
        %7031 = vrot.lane.b32.xlu0 %v6614, 64
        %v7032 = vpop.permute.xlu0 %7031
        %7033 = vrot.lane.b32.xlu0 %v6616, 64
        %v7034 = vpop.permute.xlu0 %7033
        %7035 = vrot.lane.b32.xlu0 %v6619, 64
        %v7036 = vpop.permute.xlu0 %7035
        %7037 = vrot.lane.b32.xlu0 %v6621, 64
        %v7038 = vpop.permute.xlu0 %7037
        %7039 = vrot.lane.b32.xlu0 %v6624, 64
        %v7040 = vpop.permute.xlu0 %7039
        %7041 = vrot.lane.b32.xlu0 %v6626, 64
        %v7042 = vpop.permute.xlu0 %7041
        %7043 = vrot.lane.b32.xlu0 %v6629, 64
        %v7044 = vpop.permute.xlu0 %7043
        %7045 = vrot.lane.b32.xlu0 %v6631, 64
        %v7046 = vpop.permute.xlu0 %7045
        %7047 = vrot.lane.b32.xlu0 %v6634, 64
        %v7048 = vpop.permute.xlu0 %7047
        %7049 = vrot.lane.b32.xlu0 %v6636, 64
        %v7050 = vpop.permute.xlu0 %7049
        %7051 = vrot.lane.b32.xlu0 %v6639, 64
        %v7052 = vpop.permute.xlu0 %7051
        %7053 = vrot.lane.b32.xlu0 %v6641, 64
        %v7054 = vpop.permute.xlu0 %7053
        %7055 = vrot.lane.b32.xlu0 %v6644, 64
        %v7056 = vpop.permute.xlu0 %7055
        %7057 = vrot.lane.b32.xlu0 %v6646, 64
        %v7058 = vpop.permute.xlu0 %7057
        %7059 = vrot.lane.b32.xlu0 %v6649, 64
        %v7060 = vpop.permute.xlu0 %7059
        %7061 = vrot.lane.b32.xlu0 %v6651, 64
        %v7062 = vpop.permute.xlu0 %7061
        %7063 = vrot.lane.b32.xlu0 %v6654, 64
        %v7064 = vpop.permute.xlu0 %7063
        %7065 = vrot.lane.b32.xlu0 %v6656, 64
        %v7066 = vpop.permute.xlu0 %7065
        %7067 = vrot.lane.b32.xlu0 %v6659, 64
        %v7068 = vpop.permute.xlu0 %7067
        %7069 = vrot.lane.b32.xlu0 %v6661, 64
        %v7070 = vpop.permute.xlu0 %7069
        %7071 = vrot.lane.b32.xlu0 %v6664, 64
        %v7072 = vpop.permute.xlu0 %7071
        %7073 = vrot.lane.b32.xlu0 %v6666, 64
        %v7074 = vpop.permute.xlu0 %7073
        %7075 = vrot.lane.b32.xlu0 %v6669, 64
        %v7076 = vpop.permute.xlu0 %7075
        %7077 = vrot.lane.b32.xlu0 %v6671, 64
        %v7078 = vpop.permute.xlu0 %7077
        %v7111 = vsel %vm1058, %v6852, %v6888
        %v7112 = vsel %vm1058, %v6852, %v6890
        %v7113 = vsel %vm1058, %v6852, %v6892
        %v7114 = vsel %vm1058, %v6852, %v6894
        %v7115 = vsel %vm1058, %v6852, %v6896
        %v7116 = vsel %vm1058, %v6852, %v6898
        %v7117 = vsel %vm1058, %v6852, %v6900
        %v7118 = vsel %vm1058, %v6852, %v6902
        %v7119 = vsel %vm1058, %v6852, %v6904
        %v7120 = vsel %vm1058, %v6852, %v6906
        %v7121 = vsel %vm1058, %v6852, %v6908
        %v7122 = vsel %vm1058, %v6852, %v6910
        %v7123 = vsel %vm1058, %v6852, %v6912
        %v7124 = vsel %vm1058, %v6852, %v6914
        %v7125 = vsel %vm1058, %v6852, %v6916
        %v7126 = vsel %vm1058, %v6852, %v6918
        %v7127 = vsel %vm1058, %v6852, %v6920
        %v7128 = vsel %vm1058, %v6852, %v6922
        %v7129 = vsel %vm1058, %v6852, %v6924
        %v7130 = vsel %vm1058, %v6852, %v6926
        %v7131 = vsel %vm1058, %v6852, %v6928
        %v7132 = vsel %vm1058, %v6852, %v6930
        %v7133 = vsel %vm1058, %v6852, %v6932
        %v7134 = vsel %vm1058, %v6852, %v6934
        %v7135 = vsel %vm1058, %v6852, %v6936
        %v7136 = vsel %vm1058, %v6852, %v6938
        %v7137 = vsel %vm1058, %v6852, %v6940
        %v7138 = vsel %vm1058, %v6852, %v6942
        %v7139 = vsel %vm1058, %v6852, %v6944
        %v7140 = vsel %vm1058, %v6852, %v6946
        %v7141 = vsel %vm1058, %v6852, %v6948
        %v7142 = vsel %vm1058, %v6852, %v6950
        %v7143 = vsel %vm1058, %v5034, %v7016
        %v7144 = vsel %vm1058, %v5036, %v7018
        %v7145 = vsel %vm1058, %v5039, %v7020
        %v7146 = vsel %vm1058, %v5041, %v7022
        %v7147 = vsel %vm1058, %v5044, %v7024
        %v7148 = vsel %vm1058, %v5046, %v7026
        %v7149 = vsel %vm1058, %v5049, %v7028
        %v7150 = vsel %vm1058, %v5051, %v7030
        %v7151 = vsel %vm1058, %v5054, %v7032
        %v7152 = vsel %vm1058, %v5056, %v7034
        %v7153 = vsel %vm1058, %v5059, %v7036
        %v7154 = vsel %vm1058, %v5061, %v7038
        %v7155 = vsel %vm1058, %v5064, %v7040
        %v7156 = vsel %vm1058, %v5066, %v7042
        %v7157 = vsel %vm1058, %v5069, %v7044
        %v7158 = vsel %vm1058, %v5071, %v7046
        %v7159 = vsel %vm1058, %v5074, %v7048
        %v7160 = vsel %vm1058, %v5076, %v7050
        %v7161 = vsel %vm1058, %v5079, %v7052
        %v7162 = vsel %vm1058, %v5081, %v7054
        %v7163 = vsel %vm1058, %v5084, %v7056
        %v7164 = vsel %vm1058, %v5086, %v7058
        %v7165 = vsel %vm1058, %v5089, %v7060
        %v7166 = vsel %vm1058, %v5091, %v7062
        %v7167 = vsel %vm1058, %v5094, %v7064
        %v7168 = vsel %vm1058, %v5096, %v7066
        %v7169 = vsel %vm1058, %v5099, %v7068
        %v7170 = vsel %vm1058, %v5101, %v7070
        %v7171 = vsel %vm1058, %v5104, %v7072
        %v7172 = vsel %vm1058, %v5106, %v7074
        %v7173 = vsel %vm1058, %v5109, %v7076
        %v7174 = vsel %vm1058, %v5111, %v7078
        %v7175 = vpack.c.bf16 %v7143, %v7111
        %v7176 = vpack.c.bf16 %v7144, %v7112
        %v7177 = vpack.c.bf16 %v7145, %v7113
        %v7178 = vpack.c.bf16 %v7146, %v7114
        %v7179 = vpack.c.bf16 %v7147, %v7115
        %v7180 = vpack.c.bf16 %v7148, %v7116
        %v7181 = vpack.c.bf16 %v7149, %v7117
        %v7182 = vpack.c.bf16 %v7150, %v7118
        %v7183 = vpack.c.bf16 %v7151, %v7119
        %v7184 = vpack.c.bf16 %v7152, %v7120
        %v7185 = vpack.c.bf16 %v7153, %v7121
        %v7186 = vpack.c.bf16 %v7154, %v7122
        %v7187 = vpack.c.bf16 %v7155, %v7123
        %v7188 = vpack.c.bf16 %v7156, %v7124
        %v7189 = vpack.c.bf16 %v7157, %v7125
        %v7190 = vpack.c.bf16 %v7158, %v7126
        %v7191 = vpack.c.bf16 %v7159, %v7127
        %v7192 = vpack.c.bf16 %v7160, %v7128
        %v7193 = vpack.c.bf16 %v7161, %v7129
        %v7194 = vpack.c.bf16 %v7162, %v7130
        %v7195 = vpack.c.bf16 %v7163, %v7131
        %v7196 = vpack.c.bf16 %v7164, %v7132
        %v7197 = vpack.c.bf16 %v7165, %v7133
        %v7198 = vpack.c.bf16 %v7166, %v7134
        %v7199 = vpack.c.bf16 %v7167, %v7135
        %v7200 = vpack.c.bf16 %v7168, %v7136
        %v7201 = vpack.c.bf16 %v7169, %v7137
        %v7202 = vpack.c.bf16 %v7170, %v7138
        %v7203 = vpack.c.bf16 %v7171, %v7139
        %v7204 = vpack.c.bf16 %v7172, %v7140
        %v7205 = vpack.c.bf16 %v7173, %v7141
        %v7206 = vpack.c.bf16 %v7174, %v7142
        %7207 = vst [vmem:[%s496] sm:$0xff] %v7175
        %7208 = vst [vmem:[%s496 + $0x8] sm:$0xff] %v7176
        %7209 = vst [vmem:[%s496 + $0x10] sm:$0xff] %v7177
        %7210 = vst [vmem:[%s496 + $0x18] sm:$0xff] %v7178
        %7211 = vst [vmem:[%s496 + $0x20] sm:$0xff] %v7179
        %7212 = vst [vmem:[%s496 + $0x28] sm:$0xff] %v7180
        %7213 = vst [vmem:[%s496 + $0x30] sm:$0xff] %v7181
        %7214 = vst [vmem:[%s496 + $0x38] sm:$0xff] %v7182
        %7215 = vst [vmem:[%s496 + $0x40] sm:$0xff] %v7183
        %7216 = vst [vmem:[%s496 + $0x48] sm:$0xff] %v7184
        %7217 = vst [vmem:[%s496 + $0x50] sm:$0xff] %v7185
        %7218 = vst [vmem:[%s496 + $0x58] sm:$0xff] %v7186
        %7219 = vst [vmem:[%s496 + $0x60] sm:$0xff] %v7187
        %7220 = vst [vmem:[%s496 + $0x68] sm:$0xff] %v7188
        %7221 = vst [vmem:[%s496 + $0x70] sm:$0xff] %v7189
        %7222 = vst [vmem:[%s496 + $0x78] sm:$0xff] %v7190
        %7223 = vst [vmem:[%s496 + $0x80] sm:$0xff] %v7191
        %7224 = vst [vmem:[%s496 + $0x88] sm:$0xff] %v7192
        %7225 = vst [vmem:[%s496 + $0x90] sm:$0xff] %v7193
        %7226 = vst [vmem:[%s496 + $0x98] sm:$0xff] %v7194
        %7227 = vst [vmem:[%s496 + $0xa0] sm:$0xff] %v7195
        %7228 = vst [vmem:[%s496 + $0xa8] sm:$0xff] %v7196
        %7229 = vst [vmem:[%s496 + $0xb0] sm:$0xff] %v7197
        %7230 = vst [vmem:[%s496 + $0xb8] sm:$0xff] %v7198
        %7231 = vst [vmem:[%s496 + $0xc0] sm:$0xff] %v7199
        %7232 = vst [vmem:[%s496 + $0xc8] sm:$0xff] %v7200
        %7233 = vst [vmem:[%s496 + $0xd0] sm:$0xff] %v7201
        %7234 = vst [vmem:[%s496 + $0xd8] sm:$0xff] %v7202
        %7235 = vst [vmem:[%s496 + $0xe0] sm:$0xff] %v7203
        %7236 = vst [vmem:[%s496 + $0xe8] sm:$0xff] %v7204
        %7237 = vst [vmem:[%s496 + $0xf0] sm:$0xff] %v7205
        %7238 = vst [vmem:[%s496 + $0xf8] sm:$0xff] %v7206
        %7271 = vrot.lane.b32.xlu0 %v5034, 64
        %v7272 = vpop.permute.xlu0 %7271
        %7273 = vrot.lane.b32.xlu0 %v5036, 64
        %v7274 = vpop.permute.xlu0 %7273
        %7275 = vrot.lane.b32.xlu0 %v5039, 64
        %v7276 = vpop.permute.xlu0 %7275
        %7277 = vrot.lane.b32.xlu0 %v5041, 64
        %v7278 = vpop.permute.xlu0 %7277
        %7279 = vrot.lane.b32.xlu0 %v5044, 64
        %v7280 = vpop.permute.xlu0 %7279
        %7281 = vrot.lane.b32.xlu0 %v5046, 64
        %v7282 = vpop.permute.xlu0 %7281
        %7283 = vrot.lane.b32.xlu0 %v5049, 64
        %v7284 = vpop.permute.xlu0 %7283
        %7285 = vrot.lane.b32.xlu0 %v5051, 64
        %v7286 = vpop.permute.xlu0 %7285
        %7287 = vrot.lane.b32.xlu0 %v5054, 64
        %v7288 = vpop.permute.xlu0 %7287
        %7289 = vrot.lane.b32.xlu0 %v5056, 64
        %v7290 = vpop.permute.xlu0 %7289
        %7291 = vrot.lane.b32.xlu0 %v5059, 64
        %v7292 = vpop.permute.xlu0 %7291
        %7293 = vrot.lane.b32.xlu0 %v5061, 64
        %v7294 = vpop.permute.xlu0 %7293
        %7295 = vrot.lane.b32.xlu0 %v5064, 64
        %v7296 = vpop.permute.xlu0 %7295
        %7297 = vrot.lane.b32.xlu0 %v5066, 64
        %v7298 = vpop.permute.xlu0 %7297
        %7299 = vrot.lane.b32.xlu0 %v5069, 64
        %v7300 = vpop.permute.xlu0 %7299
        %7301 = vrot.lane.b32.xlu0 %v5071, 64
        %v7302 = vpop.permute.xlu0 %7301
        %7303 = vrot.lane.b32.xlu0 %v5074, 64
        %v7304 = vpop.permute.xlu0 %7303
        %7305 = vrot.lane.b32.xlu0 %v5076, 64
        %v7306 = vpop.permute.xlu0 %7305
        %7307 = vrot.lane.b32.xlu0 %v5079, 64
        %v7308 = vpop.permute.xlu0 %7307
        %7309 = vrot.lane.b32.xlu0 %v5081, 64
        %v7310 = vpop.permute.xlu0 %7309
        %7311 = vrot.lane.b32.xlu0 %v5084, 64
        %v7312 = vpop.permute.xlu0 %7311
        %7313 = vrot.lane.b32.xlu0 %v5086, 64
        %v7314 = vpop.permute.xlu0 %7313
        %7315 = vrot.lane.b32.xlu0 %v5089, 64
        %v7316 = vpop.permute.xlu0 %7315
        %7317 = vrot.lane.b32.xlu0 %v5091, 64
        %v7318 = vpop.permute.xlu0 %7317
        %7319 = vrot.lane.b32.xlu0 %v5094, 64
        %v7320 = vpop.permute.xlu0 %7319
        %7321 = vrot.lane.b32.xlu0 %v5096, 64
        %v7322 = vpop.permute.xlu0 %7321
        %7323 = vrot.lane.b32.xlu0 %v5099, 64
        %v7324 = vpop.permute.xlu0 %7323
        %7325 = vrot.lane.b32.xlu0 %v5101, 64
        %v7326 = vpop.permute.xlu0 %7325
        %7327 = vrot.lane.b32.xlu0 %v5104, 64
        %v7328 = vpop.permute.xlu0 %7327
        %7329 = vrot.lane.b32.xlu0 %v5106, 64
        %v7330 = vpop.permute.xlu0 %7329
        %7331 = vrot.lane.b32.xlu0 %v5109, 64
        %v7332 = vpop.permute.xlu0 %7331
        %7333 = vrot.lane.b32.xlu0 %v5111, 64
        %v7334 = vpop.permute.xlu0 %7333
        %v7367 = vsel %vm1058, %v6853, %v3474
        %v7368 = vsel %vm1058, %v6853, %v3476
        %v7369 = vsel %vm1058, %v6853, %v3479
        %v7370 = vsel %vm1058, %v6853, %v3481
        %v7371 = vsel %vm1058, %v6853, %v3484
        %v7372 = vsel %vm1058, %v6853, %v3486
        %v7373 = vsel %vm1058, %v6853, %v3489
        %v7374 = vsel %vm1058, %v6853, %v3491
        %v7375 = vsel %vm1058, %v6853, %v3494
        %v7376 = vsel %vm1058, %v6853, %v3496
        %v7377 = vsel %vm1058, %v6853, %v3499
        %v7378 = vsel %vm1058, %v6853, %v3501
        %v7379 = vsel %vm1058, %v6853, %v3504
        %v7380 = vsel %vm1058, %v6853, %v3506
        %v7381 = vsel %vm1058, %v6853, %v3509
        %v7382 = vsel %vm1058, %v6853, %v3511
        %v7383 = vsel %vm1058, %v6853, %v3514
        %v7384 = vsel %vm1058, %v6853, %v3516
        %v7385 = vsel %vm1058, %v6853, %v3519
        %v7386 = vsel %vm1058, %v6853, %v3521
        %v7387 = vsel %vm1058, %v6853, %v3524
        %v7388 = vsel %vm1058, %v6853, %v3526
        %v7389 = vsel %vm1058, %v6853, %v3529
        %v7390 = vsel %vm1058, %v6853, %v3531
        %v7391 = vsel %vm1058, %v6853, %v3534
        %v7392 = vsel %vm1058, %v6853, %v3536
        %v7393 = vsel %vm1058, %v6853, %v3539
        %v7394 = vsel %vm1058, %v6853, %v3541
        %v7395 = vsel %vm1058, %v6853, %v3544
        %v7396 = vsel %vm1058, %v6853, %v3546
        %v7397 = vsel %vm1058, %v6853, %v3549
        %v7398 = vsel %vm1058, %v6853, %v3551
        %v7399 = vsel %vm1058, %v7272, %v6594
        %v7400 = vsel %vm1058, %v7274, %v6596
        %v7401 = vsel %vm1058, %v7276, %v6599
        %v7402 = vsel %vm1058, %v7278, %v6601
        %v7403 = vsel %vm1058, %v7280, %v6604
        %v7404 = vsel %vm1058, %v7282, %v6606
        %v7405 = vsel %vm1058, %v7284, %v6609
        %v7406 = vsel %vm1058, %v7286, %v6611
        %v7407 = vsel %vm1058, %v7288, %v6614
        %v7408 = vsel %vm1058, %v7290, %v6616
        %v7409 = vsel %vm1058, %v7292, %v6619
        %v7410 = vsel %vm1058, %v7294, %v6621
        %v7411 = vsel %vm1058, %v7296, %v6624
        %v7412 = vsel %vm1058, %v7298, %v6626
        %v7413 = vsel %vm1058, %v7300, %v6629
        %v7414 = vsel %vm1058, %v7302, %v6631
        %v7415 = vsel %vm1058, %v7304, %v6634
        %v7416 = vsel %vm1058, %v7306, %v6636
        %v7417 = vsel %vm1058, %v7308, %v6639
        %v7418 = vsel %vm1058, %v7310, %v6641
        %v7419 = vsel %vm1058, %v7312, %v6644
        %v7420 = vsel %vm1058, %v7314, %v6646
        %v7421 = vsel %vm1058, %v7316, %v6649
        %v7422 = vsel %vm1058, %v7318, %v6651
        %v7423 = vsel %vm1058, %v7320, %v6654
        %v7424 = vsel %vm1058, %v7322, %v6656
        %v7425 = vsel %vm1058, %v7324, %v6659
        %v7426 = vsel %vm1058, %v7326, %v6661
        %v7427 = vsel %vm1058, %v7328, %v6664
        %v7428 = vsel %vm1058, %v7330, %v6666
        %v7429 = vsel %vm1058, %v7332, %v6669
        %v7430 = vsel %vm1058, %v7334, %v6671
        %v7431 = vpack.c.bf16 %v7399, %v7367
        %v7432 = vpack.c.bf16 %v7400, %v7368
        %v7433 = vpack.c.bf16 %v7401, %v7369
        %v7434 = vpack.c.bf16 %v7402, %v7370
        %v7435 = vpack.c.bf16 %v7403, %v7371
        %v7436 = vpack.c.bf16 %v7404, %v7372
        %v7437 = vpack.c.bf16 %v7405, %v7373
        %v7438 = vpack.c.bf16 %v7406, %v7374
        %v7439 = vpack.c.bf16 %v7407, %v7375
        %v7440 = vpack.c.bf16 %v7408, %v7376
        %v7441 = vpack.c.bf16 %v7409, %v7377
        %v7442 = vpack.c.bf16 %v7410, %v7378
        %v7443 = vpack.c.bf16 %v7411, %v7379
        %v7444 = vpack.c.bf16 %v7412, %v7380
        %v7445 = vpack.c.bf16 %v7413, %v7381
        %v7446 = vpack.c.bf16 %v7414, %v7382
        %v7447 = vpack.c.bf16 %v7415, %v7383
        %v7448 = vpack.c.bf16 %v7416, %v7384
        %v7449 = vpack.c.bf16 %v7417, %v7385
        %v7450 = vpack.c.bf16 %v7418, %v7386
        %v7451 = vpack.c.bf16 %v7419, %v7387
        %v7452 = vpack.c.bf16 %v7420, %v7388
        %v7453 = vpack.c.bf16 %v7421, %v7389
        %v7454 = vpack.c.bf16 %v7422, %v7390
        %v7455 = vpack.c.bf16 %v7423, %v7391
        %v7456 = vpack.c.bf16 %v7424, %v7392
        %v7457 = vpack.c.bf16 %v7425, %v7393
        %v7458 = vpack.c.bf16 %v7426, %v7394
        %v7459 = vpack.c.bf16 %v7427, %v7395
        %v7460 = vpack.c.bf16 %v7428, %v7396
        %v7461 = vpack.c.bf16 %v7429, %v7397
        %v7462 = vpack.c.bf16 %v7430, %v7398
        %7463 = vst [vmem:[%s503] sm:$0xff] %v7431
        %7464 = vst [vmem:[%s503 + $0x8] sm:$0xff] %v7432
        %7465 = vst [vmem:[%s503 + $0x10] sm:$0xff] %v7433
        %7466 = vst [vmem:[%s503 + $0x18] sm:$0xff] %v7434
        %7467 = vst [vmem:[%s503 + $0x20] sm:$0xff] %v7435
        %7468 = vst [vmem:[%s503 + $0x28] sm:$0xff] %v7436
        %7469 = vst [vmem:[%s503 + $0x30] sm:$0xff] %v7437
        %7470 = vst [vmem:[%s503 + $0x38] sm:$0xff] %v7438
        %7471 = vst [vmem:[%s503 + $0x40] sm:$0xff] %v7439
        %7472 = vst [vmem:[%s503 + $0x48] sm:$0xff] %v7440
        %7473 = vst [vmem:[%s503 + $0x50] sm:$0xff] %v7441
        %7474 = vst [vmem:[%s503 + $0x58] sm:$0xff] %v7442
        %7475 = vst [vmem:[%s503 + $0x60] sm:$0xff] %v7443
        %7476 = vst [vmem:[%s503 + $0x68] sm:$0xff] %v7444
        %7477 = vst [vmem:[%s503 + $0x70] sm:$0xff] %v7445
        %7478 = vst [vmem:[%s503 + $0x78] sm:$0xff] %v7446
        %7479 = vst [vmem:[%s503 + $0x80] sm:$0xff] %v7447
        %7480 = vst [vmem:[%s503 + $0x88] sm:$0xff] %v7448
        %7481 = vst [vmem:[%s503 + $0x90] sm:$0xff] %v7449
        %7482 = vst [vmem:[%s503 + $0x98] sm:$0xff] %v7450
        %7483 = vst [vmem:[%s503 + $0xa0] sm:$0xff] %v7451
        %7484 = vst [vmem:[%s503 + $0xa8] sm:$0xff] %v7452
        %7485 = vst [vmem:[%s503 + $0xb0] sm:$0xff] %v7453
        %7486 = vst [vmem:[%s503 + $0xb8] sm:$0xff] %v7454
        %7487 = vst [vmem:[%s503 + $0xc0] sm:$0xff] %v7455
        %7488 = vst [vmem:[%s503 + $0xc8] sm:$0xff] %v7456
        %7489 = vst [vmem:[%s503 + $0xd0] sm:$0xff] %v7457
        %7490 = vst [vmem:[%s503 + $0xd8] sm:$0xff] %v7458
        %7491 = vst [vmem:[%s503 + $0xe0] sm:$0xff] %v7459
        %7492 = vst [vmem:[%s503 + $0xe8] sm:$0xff] %v7460
        %7493 = vst [vmem:[%s503 + $0xf0] sm:$0xff] %v7461
        %7494 = vst [vmem:[%s503 + $0xf8] sm:$0xff] %v7462
        %7527 = vrot.lane.b32.xlu0 %v3652, 64
        %v7528 = vpop.permute.xlu0 %7527
        %7529 = vrot.lane.b32.xlu0 %v3654, 64
        %v7530 = vpop.permute.xlu0 %7529
        %7531 = vrot.lane.b32.xlu0 %v3657, 64
        %v7532 = vpop.permute.xlu0 %7531
        %7533 = vrot.lane.b32.xlu0 %v3659, 64
        %v7534 = vpop.permute.xlu0 %7533
        %7535 = vrot.lane.b32.xlu0 %v3662, 64
        %v7536 = vpop.permute.xlu0 %7535
        %7537 = vrot.lane.b32.xlu0 %v3664, 64
        %v7538 = vpop.permute.xlu0 %7537
        %7539 = vrot.lane.b32.xlu0 %v3667, 64
        %v7540 = vpop.permute.xlu0 %7539
        %7541 = vrot.lane.b32.xlu0 %v3669, 64
        %v7542 = vpop.permute.xlu0 %7541
        %7543 = vrot.lane.b32.xlu0 %v3672, 64
        %v7544 = vpop.permute.xlu0 %7543
        %7545 = vrot.lane.b32.xlu0 %v3674, 64
        %v7546 = vpop.permute.xlu0 %7545
        %7547 = vrot.lane.b32.xlu0 %v3677, 64
        %v7548 = vpop.permute.xlu0 %7547
        %7549 = vrot.lane.b32.xlu0 %v3679, 64
        %v7550 = vpop.permute.xlu0 %7549
        %7551 = vrot.lane.b32.xlu0 %v3682, 64
        %v7552 = vpop.permute.xlu0 %7551
        %7553 = vrot.lane.b32.xlu0 %v3684, 64
        %v7554 = vpop.permute.xlu0 %7553
        %7555 = vrot.lane.b32.xlu0 %v3687, 64
        %v7556 = vpop.permute.xlu0 %7555
        %7557 = vrot.lane.b32.xlu0 %v3689, 64
        %v7558 = vpop.permute.xlu0 %7557
        %7559 = vrot.lane.b32.xlu0 %v3692, 64
        %v7560 = vpop.permute.xlu0 %7559
        %7561 = vrot.lane.b32.xlu0 %v3694, 64
        %v7562 = vpop.permute.xlu0 %7561
        %7563 = vrot.lane.b32.xlu0 %v3697, 64
        %v7564 = vpop.permute.xlu0 %7563
        %7565 = vrot.lane.b32.xlu0 %v3699, 64
        %v7566 = vpop.permute.xlu0 %7565
        %7567 = vrot.lane.b32.xlu0 %v3702, 64
        %v7568 = vpop.permute.xlu0 %7567
        %7569 = vrot.lane.b32.xlu0 %v3704, 64
        %v7570 = vpop.permute.xlu0 %7569
        %7571 = vrot.lane.b32.xlu0 %v3707, 64
        %v7572 = vpop.permute.xlu0 %7571
        %7573 = vrot.lane.b32.xlu0 %v3709, 64
        %v7574 = vpop.permute.xlu0 %7573
        %7575 = vrot.lane.b32.xlu0 %v3712, 64
        %v7576 = vpop.permute.xlu0 %7575
        %7577 = vrot.lane.b32.xlu0 %v3714, 64
        %v7578 = vpop.permute.xlu0 %7577
        %7579 = vrot.lane.b32.xlu0 %v3717, 64
        %v7580 = vpop.permute.xlu0 %7579
        %7581 = vrot.lane.b32.xlu0 %v3719, 64
        %v7582 = vpop.permute.xlu0 %7581
        %7583 = vrot.lane.b32.xlu0 %v3722, 64
        %v7584 = vpop.permute.xlu0 %7583
        %7585 = vrot.lane.b32.xlu0 %v3724, 64
        %v7586 = vpop.permute.xlu0 %7585
        %7587 = vrot.lane.b32.xlu0 %v3727, 64
        %v7588 = vpop.permute.xlu0 %7587
        %7589 = vrot.lane.b32.xlu0 %v3729, 64
        %v7590 = vpop.permute.xlu0 %7589
        %7655 = vrot.lane.b32.xlu0 %v6772, 64
        %v7656 = vpop.permute.xlu0 %7655
        %7657 = vrot.lane.b32.xlu0 %v6774, 64
        %v7658 = vpop.permute.xlu0 %7657
        %7659 = vrot.lane.b32.xlu0 %v6777, 64
        %v7660 = vpop.permute.xlu0 %7659
        %7661 = vrot.lane.b32.xlu0 %v6779, 64
        %v7662 = vpop.permute.xlu0 %7661
        %7663 = vrot.lane.b32.xlu0 %v6782, 64
        %v7664 = vpop.permute.xlu0 %7663
        %7665 = vrot.lane.b32.xlu0 %v6784, 64
        %v7666 = vpop.permute.xlu0 %7665
        %7667 = vrot.lane.b32.xlu0 %v6787, 64
        %v7668 = vpop.permute.xlu0 %7667
        %7669 = vrot.lane.b32.xlu0 %v6789, 64
        %v7670 = vpop.permute.xlu0 %7669
        %7671 = vrot.lane.b32.xlu0 %v6792, 64
        %v7672 = vpop.permute.xlu0 %7671
        %7673 = vrot.lane.b32.xlu0 %v6794, 64
        %v7674 = vpop.permute.xlu0 %7673
        %7675 = vrot.lane.b32.xlu0 %v6797, 64
        %v7676 = vpop.permute.xlu0 %7675
        %7677 = vrot.lane.b32.xlu0 %v6799, 64
        %v7678 = vpop.permute.xlu0 %7677
        %7679 = vrot.lane.b32.xlu0 %v6802, 64
        %v7680 = vpop.permute.xlu0 %7679
        %7681 = vrot.lane.b32.xlu0 %v6804, 64
        %v7682 = vpop.permute.xlu0 %7681
        %7683 = vrot.lane.b32.xlu0 %v6807, 64
        %v7684 = vpop.permute.xlu0 %7683
        %7685 = vrot.lane.b32.xlu0 %v6809, 64
        %v7686 = vpop.permute.xlu0 %7685
        %7687 = vrot.lane.b32.xlu0 %v6812, 64
        %v7688 = vpop.permute.xlu0 %7687
        %7689 = vrot.lane.b32.xlu0 %v6814, 64
        %v7690 = vpop.permute.xlu0 %7689
        %7691 = vrot.lane.b32.xlu0 %v6817, 64
        %v7692 = vpop.permute.xlu0 %7691
        %7693 = vrot.lane.b32.xlu0 %v6819, 64
        %v7694 = vpop.permute.xlu0 %7693
        %7695 = vrot.lane.b32.xlu0 %v6822, 64
        %v7696 = vpop.permute.xlu0 %7695
        %7697 = vrot.lane.b32.xlu0 %v6824, 64
        %v7698 = vpop.permute.xlu0 %7697
        %7699 = vrot.lane.b32.xlu0 %v6827, 64
        %v7700 = vpop.permute.xlu0 %7699
        %7701 = vrot.lane.b32.xlu0 %v6829, 64
        %v7702 = vpop.permute.xlu0 %7701
        %7703 = vrot.lane.b32.xlu0 %v6832, 64
        %v7704 = vpop.permute.xlu0 %7703
        %7705 = vrot.lane.b32.xlu0 %v6834, 64
        %v7706 = vpop.permute.xlu0 %7705
        %7707 = vrot.lane.b32.xlu0 %v6837, 64
        %v7708 = vpop.permute.xlu0 %7707
        %7709 = vrot.lane.b32.xlu0 %v6839, 64
        %v7710 = vpop.permute.xlu0 %7709
        %7711 = vrot.lane.b32.xlu0 %v6842, 64
        %v7712 = vpop.permute.xlu0 %7711
        %7713 = vrot.lane.b32.xlu0 %v6844, 64
        %v7714 = vpop.permute.xlu0 %7713
        %7715 = vrot.lane.b32.xlu0 %v6847, 64
        %v7716 = vpop.permute.xlu0 %7715
        %7717 = vrot.lane.b32.xlu0 %v6849, 64
        %v7718 = vpop.permute.xlu0 %7717
        %v7751 = vsel %vm1058, %v6854, %v7528
        %v7752 = vsel %vm1058, %v6854, %v7530
        %v7753 = vsel %vm1058, %v6854, %v7532
        %v7754 = vsel %vm1058, %v6854, %v7534
        %v7755 = vsel %vm1058, %v6854, %v7536
        %v7756 = vsel %vm1058, %v6854, %v7538
        %v7757 = vsel %vm1058, %v6854, %v7540
        %v7758 = vsel %vm1058, %v6854, %v7542
        %v7759 = vsel %vm1058, %v6854, %v7544
        %v7760 = vsel %vm1058, %v6854, %v7546
        %v7761 = vsel %vm1058, %v6854, %v7548
        %v7762 = vsel %vm1058, %v6854, %v7550
        %v7763 = vsel %vm1058, %v6854, %v7552
        %v7764 = vsel %vm1058, %v6854, %v7554
        %v7765 = vsel %vm1058, %v6854, %v7556
        %v7766 = vsel %vm1058, %v6854, %v7558
        %v7767 = vsel %vm1058, %v6854, %v7560
        %v7768 = vsel %vm1058, %v6854, %v7562
        %v7769 = vsel %vm1058, %v6854, %v7564
        %v7770 = vsel %vm1058, %v6854, %v7566
        %v7771 = vsel %vm1058, %v6854, %v7568
        %v7772 = vsel %vm1058, %v6854, %v7570
        %v7773 = vsel %vm1058, %v6854, %v7572
        %v7774 = vsel %vm1058, %v6854, %v7574
        %v7775 = vsel %vm1058, %v6854, %v7576
        %v7776 = vsel %vm1058, %v6854, %v7578
        %v7777 = vsel %vm1058, %v6854, %v7580
        %v7778 = vsel %vm1058, %v6854, %v7582
        %v7779 = vsel %vm1058, %v6854, %v7584
        %v7780 = vsel %vm1058, %v6854, %v7586
        %v7781 = vsel %vm1058, %v6854, %v7588
        %v7782 = vsel %vm1058, %v6854, %v7590
        %v7783 = vsel %vm1058, %v5212, %v7656
        %v7784 = vsel %vm1058, %v5214, %v7658
        %v7785 = vsel %vm1058, %v5217, %v7660
        %v7786 = vsel %vm1058, %v5219, %v7662
        %v7787 = vsel %vm1058, %v5222, %v7664
        %v7788 = vsel %vm1058, %v5224, %v7666
        %v7789 = vsel %vm1058, %v5227, %v7668
        %v7790 = vsel %vm1058, %v5229, %v7670
        %v7791 = vsel %vm1058, %v5232, %v7672
        %v7792 = vsel %vm1058, %v5234, %v7674
        %v7793 = vsel %vm1058, %v5237, %v7676
        %v7794 = vsel %vm1058, %v5239, %v7678
        %v7795 = vsel %vm1058, %v5242, %v7680
        %v7796 = vsel %vm1058, %v5244, %v7682
        %v7797 = vsel %vm1058, %v5247, %v7684
        %v7798 = vsel %vm1058, %v5249, %v7686
        %v7799 = vsel %vm1058, %v5252, %v7688
        %v7800 = vsel %vm1058, %v5254, %v7690
        %v7801 = vsel %vm1058, %v5257, %v7692
        %v7802 = vsel %vm1058, %v5259, %v7694
        %v7803 = vsel %vm1058, %v5262, %v7696
        %v7804 = vsel %vm1058, %v5264, %v7698
        %v7805 = vsel %vm1058, %v5267, %v7700
        %v7806 = vsel %vm1058, %v5269, %v7702
        %v7807 = vsel %vm1058, %v5272, %v7704
        %v7808 = vsel %vm1058, %v5274, %v7706
        %v7809 = vsel %vm1058, %v5277, %v7708
        %v7810 = vsel %vm1058, %v5279, %v7710
        %v7811 = vsel %vm1058, %v5282, %v7712
        %v7812 = vsel %vm1058, %v5284, %v7714
        %v7813 = vsel %vm1058, %v5287, %v7716
        %v7814 = vsel %vm1058, %v5289, %v7718
        %v7815 = vpack.c.bf16 %v7783, %v7751
        %v7816 = vpack.c.bf16 %v7784, %v7752
        %v7817 = vpack.c.bf16 %v7785, %v7753
        %v7818 = vpack.c.bf16 %v7786, %v7754
        %v7819 = vpack.c.bf16 %v7787, %v7755
        %v7820 = vpack.c.bf16 %v7788, %v7756
        %v7821 = vpack.c.bf16 %v7789, %v7757
        %v7822 = vpack.c.bf16 %v7790, %v7758
        %v7823 = vpack.c.bf16 %v7791, %v7759
        %v7824 = vpack.c.bf16 %v7792, %v7760
        %v7825 = vpack.c.bf16 %v7793, %v7761
        %v7826 = vpack.c.bf16 %v7794, %v7762
        %v7827 = vpack.c.bf16 %v7795, %v7763
        %v7828 = vpack.c.bf16 %v7796, %v7764
        %v7829 = vpack.c.bf16 %v7797, %v7765
        %v7830 = vpack.c.bf16 %v7798, %v7766
        %v7831 = vpack.c.bf16 %v7799, %v7767
        %v7832 = vpack.c.bf16 %v7800, %v7768
        %v7833 = vpack.c.bf16 %v7801, %v7769
        %v7834 = vpack.c.bf16 %v7802, %v7770
        %v7835 = vpack.c.bf16 %v7803, %v7771
        %v7836 = vpack.c.bf16 %v7804, %v7772
        %v7837 = vpack.c.bf16 %v7805, %v7773
        %v7838 = vpack.c.bf16 %v7806, %v7774
        %v7839 = vpack.c.bf16 %v7807, %v7775
        %v7840 = vpack.c.bf16 %v7808, %v7776
        %v7841 = vpack.c.bf16 %v7809, %v7777
        %v7842 = vpack.c.bf16 %v7810, %v7778
        %v7843 = vpack.c.bf16 %v7811, %v7779
        %v7844 = vpack.c.bf16 %v7812, %v7780
        %v7845 = vpack.c.bf16 %v7813, %v7781
        %v7846 = vpack.c.bf16 %v7814, %v7782
        %7847 = vst [vmem:[%s510] sm:$0xff] %v7815
        %7848 = vst [vmem:[%s510 + $0x8] sm:$0xff] %v7816
        %7849 = vst [vmem:[%s510 + $0x10] sm:$0xff] %v7817
        %7850 = vst [vmem:[%s510 + $0x18] sm:$0xff] %v7818
        %7851 = vst [vmem:[%s510 + $0x20] sm:$0xff] %v7819
        %7852 = vst [vmem:[%s510 + $0x28] sm:$0xff] %v7820
        %7853 = vst [vmem:[%s510 + $0x30] sm:$0xff] %v7821
        %7854 = vst [vmem:[%s510 + $0x38] sm:$0xff] %v7822
        %7855 = vst [vmem:[%s510 + $0x40] sm:$0xff] %v7823
        %7856 = vst [vmem:[%s510 + $0x48] sm:$0xff] %v7824
        %7857 = vst [vmem:[%s510 + $0x50] sm:$0xff] %v7825
        %7858 = vst [vmem:[%s510 + $0x58] sm:$0xff] %v7826
        %7859 = vst [vmem:[%s510 + $0x60] sm:$0xff] %v7827
        %7860 = vst [vmem:[%s510 + $0x68] sm:$0xff] %v7828
        %7861 = vst [vmem:[%s510 + $0x70] sm:$0xff] %v7829
        %7862 = vst [vmem:[%s510 + $0x78] sm:$0xff] %v7830
        %7863 = vst [vmem:[%s510 + $0x80] sm:$0xff] %v7831
        %7864 = vst [vmem:[%s510 + $0x88] sm:$0xff] %v7832
        %7865 = vst [vmem:[%s510 + $0x90] sm:$0xff] %v7833
        %7866 = vst [vmem:[%s510 + $0x98] sm:$0xff] %v7834
        %7867 = vst [vmem:[%s510 + $0xa0] sm:$0xff] %v7835
        %7868 = vst [vmem:[%s510 + $0xa8] sm:$0xff] %v7836
        %7869 = vst [vmem:[%s510 + $0xb0] sm:$0xff] %v7837
        %7870 = vst [vmem:[%s510 + $0xb8] sm:$0xff] %v7838
        %7871 = vst [vmem:[%s510 + $0xc0] sm:$0xff] %v7839
        %7872 = vst [vmem:[%s510 + $0xc8] sm:$0xff] %v7840
        %7873 = vst [vmem:[%s510 + $0xd0] sm:$0xff] %v7841
        %7874 = vst [vmem:[%s510 + $0xd8] sm:$0xff] %v7842
        %7875 = vst [vmem:[%s510 + $0xe0] sm:$0xff] %v7843
        %7876 = vst [vmem:[%s510 + $0xe8] sm:$0xff] %v7844
        %7877 = vst [vmem:[%s510 + $0xf0] sm:$0xff] %v7845
        %7878 = vst [vmem:[%s510 + $0xf8] sm:$0xff] %v7846
        %s7879 = sand.u32 %s216, 1
        %s7880 = scalar_lea.sflag [#allocation4], %s7879
        %s7881 = sand.u32 %s216, 1
        %s7882 = smul.addr %s7881, 256
        %s7883 = scalar_lea.vmem [#allocation16], %s7882
        %s7884 = sand.u32 %s35, 1
        %s7885 = scalar_lea.sflag [#allocation18], %s7884
        %s7886 = sand.u32 %s242, 1
        %s7887 = smul.addr %s7886, 256
        %s7888 = scalar_lea.vmem [#allocation17], %s7887
        %s7889 = sand.u32 %s35, 1
        %s7890 = scalar_lea.sflag [#allocation18], %s7889
        %s7891 = sand.u32 %s268, 1
        %s7892 = smul.addr %s7891, 256
        %s7893 = scalar_lea.vmem [#allocation19], %s7892
        // Predicated region
        $region85: #{channel_ctx_fea.1} parent=51 // pred_check
          %p7894 = pneg %p226
        $region86: #{channel_ctx_fea.1} parent=51 // pred_check_branch
          %7896 = sbr.rel (%p7894) target = $region88
        $region87: #{channel_ctx_fea.1} parent=51 // pred_region
          %s7897 = smul.u32 32, %s35
          %7899 = vsyncadd %s7880, 0
          %s7900 = smul.addr %s7897, 2
          %s7901 = smul.addr %s7900, 4
          %s7902 = scalar_lea.hbm %s8, %s7901
          %s7903 = sshll.u32 %s7883, 4
          %s7904 = int_to_ptr.vmem [resolvable:$true] %s7903
          %s7905 = sshll.u32 %s7902, 4
          %s7906 = int_to_ptr.hbm [resolvable:$true] %s7905
          %7911 = dma.vmem_to_hbm [thread:$0]  %s7904, 4096, %s7906, %s7880, 128, 128, 8
        $region88: #{channel_ctx_fea.1} parent=51 // pred_fallthru
          _
        // Predicated region
        $region89: #{channel_ctx_fea.1} parent=51 // pred_check
          %p7912 = pneg %p252
        $region90: #{channel_ctx_fea.1} parent=51 // pred_check_branch
          %7914 = sbr.rel (%p7912) target = $region92
        $region91: #{channel_ctx_fea.1} parent=51 // pred_region
          %s7915 = smul.u32 32, %s35
          %7917 = vsyncadd %s7885, 0
          %s7918 = smul.addr %s7915, 2
          %s7919 = smul.addr %s7918, 4
          %s7920 = scalar_lea.hbm %s9, %s7919
          %s7921 = sshll.u32 %s7888, 4
          %s7922 = int_to_ptr.vmem [resolvable:$true] %s7921
          %s7923 = sshll.u32 %s7920, 4
          %s7924 = int_to_ptr.hbm [resolvable:$true] %s7923
          %7929 = dma.vmem_to_hbm [thread:$0]  %s7922, 4096, %s7924, %s7885, 128, 128, 8
        $region92: #{channel_ctx_fea.1} parent=51 // pred_fallthru
          _
        // Predicated region
        $region93: #{channel_ctx_fea.1} parent=51 // pred_check
          %p7930 = pneg %p278
        $region94: #{channel_ctx_fea.1} parent=51 // pred_check_branch
          %7932 = sbr.rel (%p7930) target = $region96
        $region95: #{channel_ctx_fea.1} parent=51 // pred_region
          %s7933 = smul.u32 32, %s35
          %7935 = vsyncadd %s7890, 0
          %s7936 = smul.addr %s7933, 2
          %s7937 = smul.addr %s7936, 4
          %s7938 = scalar_lea.hbm %s10, %s7937
          %s7939 = sshll.u32 %s7893, 4
          %s7940 = int_to_ptr.vmem [resolvable:$true] %s7939
          %s7941 = sshll.u32 %s7938, 4
          %s7942 = int_to_ptr.hbm [resolvable:$true] %s7941
          %7947 = dma.vmem_to_hbm [thread:$0]  %s7940, 4096, %s7942, %s7890, 128, 128, 8
        $region96: #{channel_ctx_fea.1} parent=51 // pred_fallthru
          _
      $region52: #{channel_ctx_fea.1} parent=5 // pred_fallthru
        _
      %p7948 = scmp.le.s32.totalorder 2, %s30
      // Predicated region
      $region97: #{channel_ctx_fea.1} parent=5 // pred_check
        %p7949 = pneg %p7948
      $region98: #{channel_ctx_fea.1} parent=5 // pred_check_branch
        %7951 = sbr.rel (%p7949) target = $region100
      $region99: #{channel_ctx_fea.1} parent=5 // pred_region
        %s7952 = ssub.s32 %s30, 2
        // Predicated region
        $region101: #{channel_ctx_fea.1} parent=99 // pred_check
          %p7953 = pneg %p232
        $region102: #{channel_ctx_fea.1} parent=99 // pred_check_branch
          %7955 = sbr.rel (%p7953) target = $region104
        $region103: #{channel_ctx_fea.1} parent=99 // pred_region
          %s7956 = sand.u32 %s217, 1
          %s7957 = scalar_lea.sflag [#allocation4], %s7956
          %s7958 = sand.u32 %s217, 1
          %s7959 = smul.addr %s7958, 256
          %s7960 = scalar_lea.vmem [#allocation16], %s7959
          %7962 = dma.done %s7957, 4096
        $region104: #{channel_ctx_fea.1} parent=99 // pred_fallthru
          _
        // Predicated region
        $region105: #{channel_ctx_fea.1} parent=99 // pred_check
          %p7963 = pneg %p258
        $region106: #{channel_ctx_fea.1} parent=99 // pred_check_branch
          %7965 = sbr.rel (%p7963) target = $region108
        $region107: #{channel_ctx_fea.1} parent=99 // pred_region
          %s7966 = sand.u32 %s36, 1
          %s7967 = scalar_lea.sflag [#allocation18], %s7966
          %s7968 = sand.u32 %s243, 1
          %s7969 = smul.addr %s7968, 256
          %s7970 = scalar_lea.vmem [#allocation17], %s7969
          %7972 = dma.done %s7967, 4096
        $region108: #{channel_ctx_fea.1} parent=99 // pred_fallthru
          _
        // Predicated region
        $region109: #{channel_ctx_fea.1} parent=99 // pred_check
          %p7973 = pneg %p284
        $region110: #{channel_ctx_fea.1} parent=99 // pred_check_branch
          %7975 = sbr.rel (%p7973) target = $region112
        $region111: #{channel_ctx_fea.1} parent=99 // pred_region
          %s7976 = sand.u32 %s36, 1
          %s7977 = scalar_lea.sflag [#allocation18], %s7976
          %s7978 = sand.u32 %s269, 1
          %s7979 = smul.addr %s7978, 256
          %s7980 = scalar_lea.vmem [#allocation19], %s7979
          %7982 = dma.done %s7977, 4096
        $region112: #{channel_ctx_fea.1} parent=99 // pred_fallthru
          _
      $region100: #{channel_ctx_fea.1} parent=5 // pred_fallthru
        _
    $region6: #{channel_ctx_fea.1} parent=1 // loop_footer
      %s34 = sadd.s32 1, %s30
    $region7: #{channel_ctx_fea.1} parent=1 // loop_footer_branch
      %29 = sbr.rel target = $region3
    $region8: #{channel_ctx_fea.1} parent=1 // loop_exit
      _
    %7983 = vsyncpa [#allocation3], 1
    %s7984 = scalar_lea.sflag [#allocation3], 1
    %7985 = vsyncpa %s7984, 1
    %7986 = vsyncpa [#allocation6], 1
    %7987 = vsyncpa [#allocation9], 1
    %7988 = vsyncpa [#allocation12], 1
    %7989 = vsyncpa [#allocation15], 1
    %7990 = vsyncpa [#allocation4], 1
    %s7991 = scalar_lea.sflag [#allocation4], 1
    %7992 = vsyncpa %s7991, 1
    %7993 = vsyncpa [#allocation18], 1
    %s7994 = scalar_lea.sflag [#allocation18], 1
    %7995 = vsyncpa %s7994, 1

</llo_original>
